<compile_context>
chip_gen: v7x
topology: tpu7x:2x2x1
jax: 0.10.0
libtpu: 0.0.40
codegen_flags: <defaults>
</compile_context>

<pallas_src>
import math
import jax
import jax.numpy as jnp
from jax.experimental import pallas as pl
from jax.experimental.pallas import tpu as pltpu

EMBED = 128
HEADS = 8
HEAD_DIM = EMBED // HEADS
FF = 4 * EMBED
NUM_LAYERS = 2
MAX_LEN = 16
SRC_VOCAB = 100
TGT_VOCAB = 100
VOCAB_PAD = 128          # lane-dense padded logits width (sliced back to TGT_VOCAB)
PAD_IDX = 0
EPS = 1e-5
NEG_INF = -1e20          # plain Python float: never capture jnp scalar arrays in kernels


# ----------------------------- Pallas kernels ------------------------------ #

def _make_attn_block_kernel(causal: bool):
    """Fused: block-diag QKV projection -> per-head softmax attention ->
    output projection (+bias) -> residual add -> LayerNorm."""

    def kernel(xv_ref, xk_ref, xq_ref, res_ref, bias_ref,
               wq_ref, wk_ref, wv_ref, wo_ref, bo_ref, g_ref, b_ref, o_ref):
        # xv/xk/xq/res: (1, L, E) tiles for one batch element; bias: (1, 1, Lk)
        xq = xq_ref[0].astype(jnp.bfloat16)            # (Lq, E)
        xk = xk_ref[0].astype(jnp.bfloat16)            # (Lk, E)
        xv = xv_ref[0].astype(jnp.bfloat16)            # (Lv, E)

        # block-diagonal per-head projections as full-width MXU matmuls
        # (1/sqrt(head_dim) is pre-folded into wq)
        q = jnp.dot(xq, wq_ref[...], preferred_element_type=jnp.float32)   # (Lq, E)
        k = jnp.dot(xk, wk_ref[...], preferred_element_type=jnp.float32)   # (Lk, E)
        v = jnp.dot(xv, wv_ref[...], preferred_element_type=jnp.float32)   # (Lv, E)

        lq, lk = q.shape[0], k.shape[0]
        bias = bias_ref[0]                              # (1, Lk), broadcasts over rows
        if causal:
            rows = jax.lax.broadcasted_iota(jnp.int32, (lq, lk), 0)
            cols = jax.lax.broadcasted_iota(jnp.int32, (lq, lk), 1)
            # literal Python float -> no captured jax.Array constants
            bias = bias + (cols > rows).astype(jnp.float32) * NEG_INF      # (Lq, Lk)

        dn = (((1,), (1,)), ((), ()))                   # q @ k^T contraction
        head_outs = []
        for h in range(HEADS):                          # small static unroll
            lo = h * HEAD_DIM
            hi = lo + HEAD_DIM
            qh = q[:, lo:hi]                            # (Lq, Dh)
            kh = k[:, lo:hi]                            # (Lk, Dh)
            vh = v[:, lo:hi]                            # (Lv, Dh)
            e = jax.lax.dot_general(qh, kh, dn,
                                    preferred_element_type=jnp.float32)    # (Lq, Lk)
            e = e + bias
            m = jnp.max(e, axis=-1, keepdims=True)
            p = jnp.exp(e - m)
            denom = jnp.sum(p, axis=-1, keepdims=True)
            p = p * pl.reciprocal(denom, approx=True)   # EUP, not VALU
            head_outs.append(jnp.dot(p, vh, preferred_element_type=jnp.float32))

        ctx = jnp.concatenate(head_outs, axis=-1).astype(jnp.bfloat16)     # (Lq, E)

        # output projection + residual + LayerNorm epilogue (f32 statistics)
        proj = jnp.dot(ctx, wo_ref[...], preferred_element_type=jnp.float32) + bo_ref[...]
        y = proj + res_ref[0]
        mu = jnp.mean(y, axis=-1, keepdims=True)
        var = jnp.mean(jnp.square(y - mu), axis=-1, keepdims=True)
        o_ref[0] = ((y - mu) * jax.lax.rsqrt(var + EPS)) * g_ref[...] + b_ref[...]

    return kernel


def _ffn_ln_kernel(x_ref, w1_ref, b1_ref, w2_ref, b2_ref, g_ref, b_ref, o_ref):
    """Fused: Linear(E->FF) -> ReLU -> Linear(FF->E) -> residual -> LayerNorm."""
    x = x_ref[...]                                      # (TM, E) f32
    xb = x.astype(jnp.bfloat16)
    h = jnp.dot(xb, w1_ref[...], preferred_element_type=jnp.float32) + b1_ref[...]
    h = jnp.maximum(h, 0.0).astype(jnp.bfloat16)
    f = jnp.dot(h, w2_ref[...], preferred_element_type=jnp.float32) + b2_ref[...]
    y = f + x
    mu = jnp.mean(y, axis=-1, keepdims=True)
    var = jnp.mean(jnp.square(y - mu), axis=-1, keepdims=True)
    o_ref[...] = ((y - mu) * jax.lax.rsqrt(var + EPS)) * g_ref[...] + b_ref[...]


def _linear_kernel(x_ref, w_ref, b_ref, o_ref):
    xb = x_ref[...].astype(jnp.bfloat16)
    o_ref[...] = jnp.dot(xb, w_ref[...], preferred_element_type=jnp.float32) + b_ref[...]


# ------------------------------ thin wrappers ------------------------------ #

def _row_tile(m):
    for tm in (512, 256, 128, 64, 32, 16, 8):
        if m % tm == 0:
            return tm
    return m


def fused_attention_block(values, keys, query, residual, key_bias,
                          ap, gamma, beta, *, causal):
    """Matches SelfAttention.forward(values, keys, query, mask) followed by
    `LayerNorm(attention + residual)` (dropout == identity)."""
    n, lq, e = query.shape
    lk = keys.shape[1]
    lv = values.shape[1]
    assert lk == lv, "reference einsum requires key_len == value_len"

    return pl.pallas_call(
        _make_attn_block_kernel(causal),
        grid=(n,),
        in_specs=[
            pl.BlockSpec((1, lv, e), lambda i: (i, 0, 0)),   # values source
            pl.BlockSpec((1, lk, e), lambda i: (i, 0, 0)),   # keys source
            pl.BlockSpec((1, lq, e), lambda i: (i, 0, 0)),   # query source
            pl.BlockSpec((1, lq, e), lambda i: (i, 0, 0)),   # residual
            pl.BlockSpec((1, 1, lk), lambda i: (i, 0, 0)),   # additive key bias
            pl.BlockSpec((e, e), lambda i: (0, 0)),          # wq (block-diag, scaled)
            pl.BlockSpec((e, e), lambda i: (0, 0)),          # wk
            pl.BlockSpec((e, e), lambda i: (0, 0)),          # wv
            pl.BlockSpec((e, e), lambda i: (0, 0)),          # wo
            pl.BlockSpec((1, e), lambda i: (0, 0)),          # bo
            pl.BlockSpec((1, e), lambda i: (0, 0)),          # LN gamma
            pl.BlockSpec((1, e), lambda i: (0, 0)),          # LN beta
        ],
        out_specs=pl.BlockSpec((1, lq, e), lambda i: (i, 0, 0)),
        out_shape=jax.ShapeDtypeStruct((n, lq, e), jnp.float32),
        compiler_params=pltpu.CompilerParams(dimension_semantics=("parallel",)),
    )(values, keys, query, residual, key_bias,
      ap["wq"], ap["wk"], ap["wv"], ap["wo"], ap["bo"], gamma, beta)


def fused_ffn_block(x, w1, b1, w2, b2, gamma, beta):
    n, l, e = x.shape
    m = n * l
    tm = _row_tile(m)
    xf = x.reshape(m, e)
    out = pl.pallas_call(
        _ffn_ln_kernel,
        grid=(m // tm,),
        in_specs=[
            pl.BlockSpec((tm, e), lambda i: (i, 0)),
            pl.BlockSpec((e, FF), lambda i: (0, 0)),
            pl.BlockSpec((1, FF), lambda i: (0, 0)),
            pl.BlockSpec((FF, e), lambda i: (0, 0)),
            pl.BlockSpec((1, e), lambda i: (0, 0)),
            pl.BlockSpec((1, e), lambda i: (0, 0)),
            pl.BlockSpec((1, e), lambda i: (0, 0)),
        ],
        out_specs=pl.BlockSpec((tm, e), lambda i: (i, 0)),
        out_shape=jax.ShapeDtypeStruct((m, e), jnp.float32),
        compiler_params=pltpu.CompilerParams(dimension_semantics=("parallel",)),
    )(xf, w1, b1, w2, b2, gamma, beta)
    return out.reshape(n, l, e)


def output_projection(x, w_pad, b_pad, out_dim):
    n, l, e = x.shape
    m = n * l
    tm = _row_tile(m)
    vp = w_pad.shape[1]
    xf = x.reshape(m, e)
    out = pl.pallas_call(
        _linear_kernel,
        grid=(m // tm,),
        in_specs=[
            pl.BlockSpec((tm, e), lambda i: (i, 0)),
            pl.BlockSpec((e, vp), lambda i: (0, 0)),
            pl.BlockSpec((1, vp), lambda i: (0, 0)),
        ],
        out_specs=pl.BlockSpec((tm, vp), lambda i: (i, 0)),
        out_shape=jax.ShapeDtypeStruct((m, vp), jnp.float32),
        compiler_params=pltpu.CompilerParams(dimension_semantics=("parallel",)),
    )(xf, w_pad, b_pad)
    return out[:, :out_dim].reshape(n, l, out_dim)


# ------------------------------- parameters -------------------------------- #

def make_pos_encoding(max_len, embed):
    pos = jnp.arange(max_len, dtype=jnp.float32)[:, None]
    div = jnp.exp(jnp.arange(0, embed, 2, dtype=jnp.float32)
                  * (-math.log(10000.0) / embed))
    pe = jnp.zeros((max_len, embed), dtype=jnp.float32)
    pe = pe.at[:, 0::2].set(jnp.sin(pos * div))
    pe = pe.at[:, 1::2].set(jnp.cos(pos * div))
    return pe


def init_params(key):
    keys = iter(jax.random.split(key, 256))

    def nrm(shape, scale=0.02):
        return (scale * jax.random.normal(next(keys), shape)).astype(jnp.float32)

    def zeros(shape):
        return jnp.zeros(shape, jnp.float32)

    def ones(shape):
        return jnp.ones(shape, jnp.float32)

    eye_h = jnp.eye(HEADS, dtype=jnp.float32)

    def attn_params():
        # per-head (Dh, Dh) projections (same weight for every head, as in the
        # reference nn.Linear(head_dim, head_dim)) expanded to a block-diagonal
        # (E, E) matrix; 1/sqrt(head_dim) folded into wq (projection has no bias,
        # so this is mathematically identical to scaling the scores).
        wq = nrm((HEAD_DIM, HEAD_DIM))
        wk = nrm((HEAD_DIM, HEAD_DIM))
        wv = nrm((HEAD_DIM, HEAD_DIM))
        return dict(
            wq=jnp.kron(eye_h, wq * (1.0 / math.sqrt(HEAD_DIM))).astype(jnp.bfloat16),
            wk=jnp.kron(eye_h, wk).astype(jnp.bfloat16),
            wv=jnp.kron(eye_h, wv).astype(jnp.bfloat16),
            wo=nrm((EMBED, EMBED)).astype(jnp.bfloat16),
            bo=zeros((1, EMBED)),
        )

    def enc_layer():
        return dict(attn=attn_params(),
                    g1=ones((1, EMBED)), b1=zeros((1, EMBED)),
                    g2=ones((1, EMBED)), b2=zeros((1, EMBED)),
                    w1=nrm((EMBED, FF)).astype(jnp.bfloat16), bb1=zeros((1, FF)),
                    w2=nrm((FF, EMBED)).astype(jnp.bfloat16), bb2=zeros((1, EMBED)))

    def dec_layer():
        return dict(attn=attn_params(), cross=attn_params(),
                    g1=ones((1, EMBED)), b1=zeros((1, EMBED)),
                    g2=ones((1, EMBED)), b2=zeros((1, EMBED)),
                    g3=ones((1, EMBED)), b3=zeros((1, EMBED)),
                    w1=nrm((EMBED, FF)).astype(jnp.bfloat16), bb1=zeros((1, FF)),
                    w2=nrm((FF, EMBED)).astype(jnp.bfloat16), bb2=zeros((1, EMBED)))

    # final vocab projection, padded to a lane-dense width (sliced after kernel)
    w_out = nrm((EMBED, TGT_VOCAB))
    w_out_pad = jnp.zeros((EMBED, VOCAB_PAD), jnp.float32).at[:, :TGT_VOCAB].set(w_out)
    b_out_pad = jnp.zeros((1, VOCAB_PAD), jnp.float32)

    return dict(
        enc_emb=nrm((SRC_VOCAB, EMBED), 1.0),
        dec_emb=nrm((TGT_VOCAB, EMBED), 1.0),
        enc_layers=[enc_layer() for _ in range(NUM_LAYERS)],
        dec_layers=[dec_layer() for _ in range(NUM_LAYERS)],
        w_out=w_out_pad.astype(jnp.bfloat16),
        b_out=b_out_pad,
    )


# -------------------------------- forward ---------------------------------- #

def transformer_forward(params, src, tgt):
    n, ls = src.shape
    _, lt = tgt.shape
    assert ls == lt, "reference cross-attention requires equal src/tgt lengths"
    pe = make_pos_encoding(MAX_LEN, EMBED)

    # thin additive key-bias masks (keep = 0, masked = -1e20); shape (N, 1, Lk)
    src_bias = jnp.where(src == PAD_IDX, NEG_INF, 0.0).astype(jnp.float32)[:, None, :]
    zero_bias = jnp.zeros((n, 1, lt), jnp.float32)      # tgt mask is causal-only

    # embeddings (gather glue) + positional encoding; dropout == identity
    # TODO(synk): dropout is eval-mode identity (stochastic masking not implemented).
    x_src = jnp.take(params["enc_emb"], src, axis=0) + pe[None, :ls, :]
    x_tgt = jnp.take(params["dec_emb"], tgt, axis=0) + pe[None, :lt, :]

    # encoder
    for lp in params["enc_layers"]:
        x_src = fused_attention_block(x_src, x_src, x_src, x_src, src_bias,
                                      lp["attn"], lp["g1"], lp["b1"], causal=False)
        x_src = fused_ffn_block(x_src, lp["w1"], lp["bb1"], lp["w2"], lp["bb2"],
                                lp["g2"], lp["b2"])
    enc_out = x_src

    # decoder
    x = x_tgt
    for lp in params["dec_layers"]:
        # masked self-attention (causal) + norm1 residual
        query = fused_attention_block(x, x, x, x, zero_bias,
                                      lp["attn"], lp["g1"], lp["b1"], causal=True)
        # reference call: transformer_block(query, key, value, src_mask)
        #   => SelfAttention(values=decoder_query, keys=enc_out, query=enc_out);
        #   residual is the decoder `query`.
        x2 = fused_attention_block(query, enc_out, enc_out, query, src_bias,
                                   lp["cross"], lp["g2"], lp["b2"], causal=False)
        x = fused_ffn_block(x2, lp["w1"], lp["bb1"], lp["w2"], lp["bb2"],
                            lp["g3"], lp["b3"])

    return output_projection(x, params["w_out"], params["b_out"], TGT_VOCAB)


# --------------------------------- main ------------------------------------ #

if __name__ == "__main__":
    key = jax.random.PRNGKey(0)
    k_params, k_src, k_tgt = jax.random.split(key, 3)

    params = init_params(k_params)
    N, S = 2, 8
    src = jax.random.randint(k_src, (N, S), 0, SRC_VOCAB, dtype=jnp.int32)
    tgt = jax.random.randint(k_tgt, (N, S), 0, TGT_VOCAB, dtype=jnp.int32)

    fwd = jax.jit(transformer_forward)
    out = fwd(params, src, tgt)
    out = jax.block_until_ready(out)

    assert out.shape == (N, S, TGT_VOCAB)
    assert bool(jnp.all(jnp.isfinite(out)))
    print("KERNEL_OK")
</pallas_src>

<mosaic_0001>
module attributes {stable_mosaic.version = 11 : i64} {
  func.func @kernel(%arg0: i32, %arg1: memref<1x8x128xf32, #tpu.memory_space<vmem>>, %arg2: memref<1x8x128xf32, #tpu.memory_space<vmem>>, %arg3: memref<1x8x128xf32, #tpu.memory_space<vmem>>, %arg4: memref<1x8x128xf32, #tpu.memory_space<vmem>>, %arg5: memref<1x1x8xf32, #tpu.memory_space<vmem>>, %arg6: memref<128x128xbf16, #tpu.memory_space<vmem>>, %arg7: memref<128x128xbf16, #tpu.memory_space<vmem>>, %arg8: memref<128x128xbf16, #tpu.memory_space<vmem>>, %arg9: memref<128x128xbf16, #tpu.memory_space<vmem>>, %arg10: memref<1x128xf32, #tpu.memory_space<vmem>>, %arg11: memref<1x128xf32, #tpu.memory_space<vmem>>, %arg12: memref<1x128xf32, #tpu.memory_space<vmem>>, %arg13: memref<1x8x128xf32, #tpu.memory_space<vmem>>) attributes {dimension_semantics = [#tpu.dimension_semantics<parallel>], iteration_bounds = array<i64: 2>, scalar_prefetch = 0 : i64, scratch_operands = 0 : i64, tpu.core_type = #tpu.core_type<tc>, window_params = [{transform_indices = @transform_0, window_bounds = array<i64: 1, 8, 128>}, {transform_indices = @transform_1, window_bounds = array<i64: 1, 8, 128>}, {transform_indices = @transform_2, window_bounds = array<i64: 1, 8, 128>}, {transform_indices = @transform_3, window_bounds = array<i64: 1, 8, 128>}, {transform_indices = @transform_4, window_bounds = array<i64: 1, 1, 8>}, {pipeline_mode = #tpu.pipeline_mode<synchronous>, transform_indices = @transform_5, window_bounds = array<i64: 128, 128>}, {pipeline_mode = #tpu.pipeline_mode<synchronous>, transform_indices = @transform_6, window_bounds = array<i64: 128, 128>}, {pipeline_mode = #tpu.pipeline_mode<synchronous>, transform_indices = @transform_7, window_bounds = array<i64: 128, 128>}, {pipeline_mode = #tpu.pipeline_mode<synchronous>, transform_indices = @transform_8, window_bounds = array<i64: 128, 128>}, {pipeline_mode = #tpu.pipeline_mode<synchronous>, transform_indices = @transform_9, window_bounds = array<i64: 1, 128>}, {pipeline_mode = #tpu.pipeline_mode<synchronous>, transform_indices = @transform_10, window_bounds = array<i64: 1, 128>}, {pipeline_mode = #tpu.pipeline_mode<synchronous>, transform_indices = @transform_11, window_bounds = array<i64: 1, 128>}, {transform_indices = @transform_12, window_bounds = array<i64: 1, 8, 128>}]} {
    %c0 = arith.constant 0 : index
    %c0_0 = arith.constant 0 : index
    %c0_1 = arith.constant 0 : index
    %0 = vector.load %arg3[%c0, %c0_0, %c0_1] : memref<1x8x128xf32, #tpu.memory_space<vmem>>, vector<1x8x128xf32>
    %1 = vector.shape_cast %0 : vector<1x8x128xf32> to vector<8x128xf32>
    %2 = arith.truncf %1 : vector<8x128xf32> to vector<8x128xbf16>
    %c0_2 = arith.constant 0 : index
    %c0_3 = arith.constant 0 : index
    %c0_4 = arith.constant 0 : index
    %3 = vector.load %arg2[%c0_2, %c0_3, %c0_4] : memref<1x8x128xf32, #tpu.memory_space<vmem>>, vector<1x8x128xf32>
    %4 = vector.shape_cast %3 : vector<1x8x128xf32> to vector<8x128xf32>
    %5 = arith.truncf %4 : vector<8x128xf32> to vector<8x128xbf16>
    %c0_5 = arith.constant 0 : index
    %c0_6 = arith.constant 0 : index
    %c0_7 = arith.constant 0 : index
    %6 = vector.load %arg1[%c0_5, %c0_6, %c0_7] : memref<1x8x128xf32, #tpu.memory_space<vmem>>, vector<1x8x128xf32>
    %7 = vector.shape_cast %6 : vector<1x8x128xf32> to vector<8x128xf32>
    %8 = arith.truncf %7 : vector<8x128xf32> to vector<8x128xbf16>
    %c0_8 = arith.constant 0 : index
    %c0_9 = arith.constant 0 : index
    %9 = vector.load %arg6[%c0_8, %c0_9] : memref<128x128xbf16, #tpu.memory_space<vmem>>, vector<128x128xbf16>
    %cst = arith.constant dense<0.000000e+00> : vector<8x128xf32>
    %10 = tpu.matmul %2, %9, %cst {dimension_numbers = #tpu.dot_dimension_numbers<[1], [0], [0], [1], [0, 0, 1, 1], [], []>} : vector<8x128xbf16>, vector<128x128xbf16>, vector<8x128xf32> -> vector<8x128xf32>
    %c0_10 = arith.constant 0 : index
    %c0_11 = arith.constant 0 : index
    %11 = vector.load %arg7[%c0_10, %c0_11] : memref<128x128xbf16, #tpu.memory_space<vmem>>, vector<128x128xbf16>
    %cst_12 = arith.constant dense<0.000000e+00> : vector<8x128xf32>
    %12 = tpu.matmul %5, %11, %cst_12 {dimension_numbers = #tpu.dot_dimension_numbers<[1], [0], [0], [1], [0, 0, 1, 1], [], []>} : vector<8x128xbf16>, vector<128x128xbf16>, vector<8x128xf32> -> vector<8x128xf32>
    %c0_13 = arith.constant 0 : index
    %c0_14 = arith.constant 0 : index
    %13 = vector.load %arg8[%c0_13, %c0_14] : memref<128x128xbf16, #tpu.memory_space<vmem>>, vector<128x128xbf16>
    %cst_15 = arith.constant dense<0.000000e+00> : vector<8x128xf32>
    %14 = tpu.matmul %8, %13, %cst_15 {dimension_numbers = #tpu.dot_dimension_numbers<[1], [0], [0], [1], [0, 0, 1, 1], [], []>} : vector<8x128xbf16>, vector<128x128xbf16>, vector<8x128xf32> -> vector<8x128xf32>
    %c0_16 = arith.constant 0 : index
    %c0_17 = arith.constant 0 : index
    %c0_18 = arith.constant 0 : index
    %15 = vector.load %arg5[%c0_16, %c0_17, %c0_18] : memref<1x1x8xf32, #tpu.memory_space<vmem>>, vector<1x1x8xf32>
    %16 = vector.shape_cast %15 : vector<1x1x8xf32> to vector<1x8xf32>
    %17 = vector.extract_strided_slice %10 {offsets = [0, 0], sizes = [8, 16], strides = [1, 1]} : vector<8x128xf32> to vector<8x16xf32>
    %18 = vector.extract_strided_slice %12 {offsets = [0, 0], sizes = [8, 16], strides = [1, 1]} : vector<8x128xf32> to vector<8x16xf32>
    %19 = vector.extract_strided_slice %14 {offsets = [0, 0], sizes = [8, 16], strides = [1, 1]} : vector<8x128xf32> to vector<8x16xf32>
    %cst_19 = arith.constant dense<0.000000e+00> : vector<8x8xf32>
    %20 = tpu.matmul %17, %18, %cst_19 {dimension_numbers = #tpu.dot_dimension_numbers<[1], [1], [0], [0], [0, 0, 1, 0], [], []>} : vector<8x16xf32>, vector<8x16xf32>, vector<8x8xf32> -> vector<8x8xf32>
    %21 = vector.broadcast %16 : vector<1x8xf32> to vector<8x8xf32>
    %22 = arith.addf %20, %21 : vector<8x8xf32>
    %cst_20 = arith.constant dense<0xFF800000> : vector<8xf32>
    %23 = vector.multi_reduction <maximumf>, %22, %cst_20 [1] : vector<8x8xf32> to vector<8xf32>
    %24 = vector.shape_cast %23 : vector<8xf32> to vector<8x1xf32>
    %25 = vector.broadcast %24 : vector<8x1xf32> to vector<8x8xf32>
    %26 = arith.subf %22, %25 : vector<8x8xf32>
    %27 = math.exp %26 : vector<8x8xf32>
    %cst_21 = arith.constant dense<0.000000e+00> : vector<8xf32>
    %28 = vector.multi_reduction <add>, %27, %cst_21 [1] : vector<8x8xf32> to vector<8xf32>
    %29 = vector.shape_cast %28 : vector<8xf32> to vector<8x1xf32>
    %30 = tpu.reciprocal %29 {approx = true} : vector<8x1xf32> -> vector<8x1xf32>
    %31 = vector.broadcast %30 : vector<8x1xf32> to vector<8x8xf32>
    %32 = arith.mulf %27, %31 : vector<8x8xf32>
    %cst_22 = arith.constant dense<0.000000e+00> : vector<8x16xf32>
    %33 = tpu.matmul %32, %19, %cst_22 {dimension_numbers = #tpu.dot_dimension_numbers<[1], [0], [0], [1], [0, 0, 1, 1], [], []>} : vector<8x8xf32>, vector<8x16xf32>, vector<8x16xf32> -> vector<8x16xf32>
    %34 = vector.extract_strided_slice %10 {offsets = [0, 16], sizes = [8, 16], strides = [1, 1]} : vector<8x128xf32> to vector<8x16xf32>
    %35 = vector.extract_strided_slice %12 {offsets = [0, 16], sizes = [8, 16], strides = [1, 1]} : vector<8x128xf32> to vector<8x16xf32>
    %36 = vector.extract_strided_slice %14 {offsets = [0, 16], sizes = [8, 16], strides = [1, 1]} : vector<8x128xf32> to vector<8x16xf32>
    %cst_23 = arith.constant dense<0.000000e+00> : vector<8x8xf32>
    %37 = tpu.matmul %34, %35, %cst_23 {dimension_numbers = #tpu.dot_dimension_numbers<[1], [1], [0], [0], [0, 0, 1, 0], [], []>} : vector<8x16xf32>, vector<8x16xf32>, vector<8x8xf32> -> vector<8x8xf32>
    %38 = vector.broadcast %16 : vector<1x8xf32> to vector<8x8xf32>
    %39 = arith.addf %37, %38 : vector<8x8xf32>
    %cst_24 = arith.constant dense<0xFF800000> : vector<8xf32>
    %40 = vector.multi_reduction <maximumf>, %39, %cst_24 [1] : vector<8x8xf32> to vector<8xf32>
    %41 = vector.shape_cast %40 : vector<8xf32> to vector<8x1xf32>
    %42 = vector.broadcast %41 : vector<8x1xf32> to vector<8x8xf32>
    %43 = arith.subf %39, %42 : vector<8x8xf32>
    %44 = math.exp %43 : vector<8x8xf32>
    %cst_25 = arith.constant dense<0.000000e+00> : vector<8xf32>
    %45 = vector.multi_reduction <add>, %44, %cst_25 [1] : vector<8x8xf32> to vector<8xf32>
    %46 = vector.shape_cast %45 : vector<8xf32> to vector<8x1xf32>
    %47 = tpu.reciprocal %46 {approx = true} : vector<8x1xf32> -> vector<8x1xf32>
    %48 = vector.broadcast %47 : vector<8x1xf32> to vector<8x8xf32>
    %49 = arith.mulf %44, %48 : vector<8x8xf32>
    %cst_26 = arith.constant dense<0.000000e+00> : vector<8x16xf32>
    %50 = tpu.matmul %49, %36, %cst_26 {dimension_numbers = #tpu.dot_dimension_numbers<[1], [0], [0], [1], [0, 0, 1, 1], [], []>} : vector<8x8xf32>, vector<8x16xf32>, vector<8x16xf32> -> vector<8x16xf32>
    %51 = vector.extract_strided_slice %10 {offsets = [0, 32], sizes = [8, 16], strides = [1, 1]} : vector<8x128xf32> to vector<8x16xf32>
    %52 = vector.extract_strided_slice %12 {offsets = [0, 32], sizes = [8, 16], strides = [1, 1]} : vector<8x128xf32> to vector<8x16xf32>
    %53 = vector.extract_strided_slice %14 {offsets = [0, 32], sizes = [8, 16], strides = [1, 1]} : vector<8x128xf32> to vector<8x16xf32>
    %cst_27 = arith.constant dense<0.000000e+00> : vector<8x8xf32>
    %54 = tpu.matmul %51, %52, %cst_27 {dimension_numbers = #tpu.dot_dimension_numbers<[1], [1], [0], [0], [0, 0, 1, 0], [], []>} : vector<8x16xf32>, vector<8x16xf32>, vector<8x8xf32> -> vector<8x8xf32>
    %55 = vector.broadcast %16 : vector<1x8xf32> to vector<8x8xf32>
    %56 = arith.addf %54, %55 : vector<8x8xf32>
    %cst_28 = arith.constant dense<0xFF800000> : vector<8xf32>
    %57 = vector.multi_reduction <maximumf>, %56, %cst_28 [1] : vector<8x8xf32> to vector<8xf32>
    %58 = vector.shape_cast %57 : vector<8xf32> to vector<8x1xf32>
    %59 = vector.broadcast %58 : vector<8x1xf32> to vector<8x8xf32>
    %60 = arith.subf %56, %59 : vector<8x8xf32>
    %61 = math.exp %60 : vector<8x8xf32>
    %cst_29 = arith.constant dense<0.000000e+00> : vector<8xf32>
    %62 = vector.multi_reduction <add>, %61, %cst_29 [1] : vector<8x8xf32> to vector<8xf32>
    %63 = vector.shape_cast %62 : vector<8xf32> to vector<8x1xf32>
    %64 = tpu.reciprocal %63 {approx = true} : vector<8x1xf32> -> vector<8x1xf32>
    %65 = vector.broadcast %64 : vector<8x1xf32> to vector<8x8xf32>
    %66 = arith.mulf %61, %65 : vector<8x8xf32>
    %cst_30 = arith.constant dense<0.000000e+00> : vector<8x16xf32>
    %67 = tpu.matmul %66, %53, %cst_30 {dimension_numbers = #tpu.dot_dimension_numbers<[1], [0], [0], [1], [0, 0, 1, 1], [], []>} : vector<8x8xf32>, vector<8x16xf32>, vector<8x16xf32> -> vector<8x16xf32>
    %68 = vector.extract_strided_slice %10 {offsets = [0, 48], sizes = [8, 16], strides = [1, 1]} : vector<8x128xf32> to vector<8x16xf32>
    %69 = vector.extract_strided_slice %12 {offsets = [0, 48], sizes = [8, 16], strides = [1, 1]} : vector<8x128xf32> to vector<8x16xf32>
    %70 = vector.extract_strided_slice %14 {offsets = [0, 48], sizes = [8, 16], strides = [1, 1]} : vector<8x128xf32> to vector<8x16xf32>
    %cst_31 = arith.constant dense<0.000000e+00> : vector<8x8xf32>
    %71 = tpu.matmul %68, %69, %cst_31 {dimension_numbers = #tpu.dot_dimension_numbers<[1], [1], [0], [0], [0, 0, 1, 0], [], []>} : vector<8x16xf32>, vector<8x16xf32>, vector<8x8xf32> -> vector<8x8xf32>
    %72 = vector.broadcast %16 : vector<1x8xf32> to vector<8x8xf32>
    %73 = arith.addf %71, %72 : vector<8x8xf32>
    %cst_32 = arith.constant dense<0xFF800000> : vector<8xf32>
    %74 = vector.multi_reduction <maximumf>, %73, %cst_32 [1] : vector<8x8xf32> to vector<8xf32>
    %75 = vector.shape_cast %74 : vector<8xf32> to vector<8x1xf32>
    %76 = vector.broadcast %75 : vector<8x1xf32> to vector<8x8xf32>
    %77 = arith.subf %73, %76 : vector<8x8xf32>
    %78 = math.exp %77 : vector<8x8xf32>
    %cst_33 = arith.constant dense<0.000000e+00> : vector<8xf32>
    %79 = vector.multi_reduction <add>, %78, %cst_33 [1] : vector<8x8xf32> to vector<8xf32>
    %80 = vector.shape_cast %79 : vector<8xf32> to vector<8x1xf32>
    %81 = tpu.reciprocal %80 {approx = true} : vector<8x1xf32> -> vector<8x1xf32>
    %82 = vector.broadcast %81 : vector<8x1xf32> to vector<8x8xf32>
    %83 = arith.mulf %78, %82 : vector<8x8xf32>
    %cst_34 = arith.constant dense<0.000000e+00> : vector<8x16xf32>
    %84 = tpu.matmul %83, %70, %cst_34 {dimension_numbers = #tpu.dot_dimension_numbers<[1], [0], [0], [1], [0, 0, 1, 1], [], []>} : vector<8x8xf32>, vector<8x16xf32>, vector<8x16xf32> -> vector<8x16xf32>
    %85 = vector.extract_strided_slice %10 {offsets = [0, 64], sizes = [8, 16], strides = [1, 1]} : vector<8x128xf32> to vector<8x16xf32>
    %86 = vector.extract_strided_slice %12 {offsets = [0, 64], sizes = [8, 16], strides = [1, 1]} : vector<8x128xf32> to vector<8x16xf32>
    %87 = vector.extract_strided_slice %14 {offsets = [0, 64], sizes = [8, 16], strides = [1, 1]} : vector<8x128xf32> to vector<8x16xf32>
    %cst_35 = arith.constant dense<0.000000e+00> : vector<8x8xf32>
    %88 = tpu.matmul %85, %86, %cst_35 {dimension_numbers = #tpu.dot_dimension_numbers<[1], [1], [0], [0], [0, 0, 1, 0], [], []>} : vector<8x16xf32>, vector<8x16xf32>, vector<8x8xf32> -> vector<8x8xf32>
    %89 = vector.broadcast %16 : vector<1x8xf32> to vector<8x8xf32>
    %90 = arith.addf %88, %89 : vector<8x8xf32>
    %cst_36 = arith.constant dense<0xFF800000> : vector<8xf32>
    %91 = vector.multi_reduction <maximumf>, %90, %cst_36 [1] : vector<8x8xf32> to vector<8xf32>
    %92 = vector.shape_cast %91 : vector<8xf32> to vector<8x1xf32>
    %93 = vector.broadcast %92 : vector<8x1xf32> to vector<8x8xf32>
    %94 = arith.subf %90, %93 : vector<8x8xf32>
    %95 = math.exp %94 : vector<8x8xf32>
    %cst_37 = arith.constant dense<0.000000e+00> : vector<8xf32>
    %96 = vector.multi_reduction <add>, %95, %cst_37 [1] : vector<8x8xf32> to vector<8xf32>
    %97 = vector.shape_cast %96 : vector<8xf32> to vector<8x1xf32>
    %98 = tpu.reciprocal %97 {approx = true} : vector<8x1xf32> -> vector<8x1xf32>
    %99 = vector.broadcast %98 : vector<8x1xf32> to vector<8x8xf32>
    %100 = arith.mulf %95, %99 : vector<8x8xf32>
    %cst_38 = arith.constant dense<0.000000e+00> : vector<8x16xf32>
    %101 = tpu.matmul %100, %87, %cst_38 {dimension_numbers = #tpu.dot_dimension_numbers<[1], [0], [0], [1], [0, 0, 1, 1], [], []>} : vector<8x8xf32>, vector<8x16xf32>, vector<8x16xf32> -> vector<8x16xf32>
    %102 = vector.extract_strided_slice %10 {offsets = [0, 80], sizes = [8, 16], strides = [1, 1]} : vector<8x128xf32> to vector<8x16xf32>
    %103 = vector.extract_strided_slice %12 {offsets = [0, 80], sizes = [8, 16], strides = [1, 1]} : vector<8x128xf32> to vector<8x16xf32>
    %104 = vector.extract_strided_slice %14 {offsets = [0, 80], sizes = [8, 16], strides = [1, 1]} : vector<8x128xf32> to vector<8x16xf32>
    %cst_39 = arith.constant dense<0.000000e+00> : vector<8x8xf32>
    %105 = tpu.matmul %102, %103, %cst_39 {dimension_numbers = #tpu.dot_dimension_numbers<[1], [1], [0], [0], [0, 0, 1, 0], [], []>} : vector<8x16xf32>, vector<8x16xf32>, vector<8x8xf32> -> vector<8x8xf32>
    %106 = vector.broadcast %16 : vector<1x8xf32> to vector<8x8xf32>
    %107 = arith.addf %105, %106 : vector<8x8xf32>
    %cst_40 = arith.constant dense<0xFF800000> : vector<8xf32>
    %108 = vector.multi_reduction <maximumf>, %107, %cst_40 [1] : vector<8x8xf32> to vector<8xf32>
    %109 = vector.shape_cast %108 : vector<8xf32> to vector<8x1xf32>
    %110 = vector.broadcast %109 : vector<8x1xf32> to vector<8x8xf32>
    %111 = arith.subf %107, %110 : vector<8x8xf32>
    %112 = math.exp %111 : vector<8x8xf32>
    %cst_41 = arith.constant dense<0.000000e+00> : vector<8xf32>
    %113 = vector.multi_reduction <add>, %112, %cst_41 [1] : vector<8x8xf32> to vector<8xf32>
    %114 = vector.shape_cast %113 : vector<8xf32> to vector<8x1xf32>
    %115 = tpu.reciprocal %114 {approx = true} : vector<8x1xf32> -> vector<8x1xf32>
    %116 = vector.broadcast %115 : vector<8x1xf32> to vector<8x8xf32>
    %117 = arith.mulf %112, %116 : vector<8x8xf32>
    %cst_42 = arith.constant dense<0.000000e+00> : vector<8x16xf32>
    %118 = tpu.matmul %117, %104, %cst_42 {dimension_numbers = #tpu.dot_dimension_numbers<[1], [0], [0], [1], [0, 0, 1, 1], [], []>} : vector<8x8xf32>, vector<8x16xf32>, vector<8x16xf32> -> vector<8x16xf32>
    %119 = vector.extract_strided_slice %10 {offsets = [0, 96], sizes = [8, 16], strides = [1, 1]} : vector<8x128xf32> to vector<8x16xf32>
    %120 = vector.extract_strided_slice %12 {offsets = [0, 96], sizes = [8, 16], strides = [1, 1]} : vector<8x128xf32> to vector<8x16xf32>
    %121 = vector.extract_strided_slice %14 {offsets = [0, 96], sizes = [8, 16], strides = [1, 1]} : vector<8x128xf32> to vector<8x16xf32>
    %cst_43 = arith.constant dense<0.000000e+00> : vector<8x8xf32>
    %122 = tpu.matmul %119, %120, %cst_43 {dimension_numbers = #tpu.dot_dimension_numbers<[1], [1], [0], [0], [0, 0, 1, 0], [], []>} : vector<8x16xf32>, vector<8x16xf32>, vector<8x8xf32> -> vector<8x8xf32>
    %123 = vector.broadcast %16 : vector<1x8xf32> to vector<8x8xf32>
    %124 = arith.addf %122, %123 : vector<8x8xf32>
    %cst_44 = arith.constant dense<0xFF800000> : vector<8xf32>
    %125 = vector.multi_reduction <maximumf>, %124, %cst_44 [1] : vector<8x8xf32> to vector<8xf32>
    %126 = vector.shape_cast %125 : vector<8xf32> to vector<8x1xf32>
    %127 = vector.broadcast %126 : vector<8x1xf32> to vector<8x8xf32>
    %128 = arith.subf %124, %127 : vector<8x8xf32>
    %129 = math.exp %128 : vector<8x8xf32>
    %cst_45 = arith.constant dense<0.000000e+00> : vector<8xf32>
    %130 = vector.multi_reduction <add>, %129, %cst_45 [1] : vector<8x8xf32> to vector<8xf32>
    %131 = vector.shape_cast %130 : vector<8xf32> to vector<8x1xf32>
    %132 = tpu.reciprocal %131 {approx = true} : vector<8x1xf32> -> vector<8x1xf32>
    %133 = vector.broadcast %132 : vector<8x1xf32> to vector<8x8xf32>
    %134 = arith.mulf %129, %133 : vector<8x8xf32>
    %cst_46 = arith.constant dense<0.000000e+00> : vector<8x16xf32>
    %135 = tpu.matmul %134, %121, %cst_46 {dimension_numbers = #tpu.dot_dimension_numbers<[1], [0], [0], [1], [0, 0, 1, 1], [], []>} : vector<8x8xf32>, vector<8x16xf32>, vector<8x16xf32> -> vector<8x16xf32>
    %136 = vector.extract_strided_slice %10 {offsets = [0, 112], sizes = [8, 16], strides = [1, 1]} : vector<8x128xf32> to vector<8x16xf32>
    %137 = vector.extract_strided_slice %12 {offsets = [0, 112], sizes = [8, 16], strides = [1, 1]} : vector<8x128xf32> to vector<8x16xf32>
    %138 = vector.extract_strided_slice %14 {offsets = [0, 112], sizes = [8, 16], strides = [1, 1]} : vector<8x128xf32> to vector<8x16xf32>
    %cst_47 = arith.constant dense<0.000000e+00> : vector<8x8xf32>
    %139 = tpu.matmul %136, %137, %cst_47 {dimension_numbers = #tpu.dot_dimension_numbers<[1], [1], [0], [0], [0, 0, 1, 0], [], []>} : vector<8x16xf32>, vector<8x16xf32>, vector<8x8xf32> -> vector<8x8xf32>
    %140 = vector.broadcast %16 : vector<1x8xf32> to vector<8x8xf32>
    %141 = arith.addf %139, %140 : vector<8x8xf32>
    %cst_48 = arith.constant dense<0xFF800000> : vector<8xf32>
    %142 = vector.multi_reduction <maximumf>, %141, %cst_48 [1] : vector<8x8xf32> to vector<8xf32>
    %143 = vector.shape_cast %142 : vector<8xf32> to vector<8x1xf32>
    %144 = vector.broadcast %143 : vector<8x1xf32> to vector<8x8xf32>
    %145 = arith.subf %141, %144 : vector<8x8xf32>
    %146 = math.exp %145 : vector<8x8xf32>
    %cst_49 = arith.constant dense<0.000000e+00> : vector<8xf32>
    %147 = vector.multi_reduction <add>, %146, %cst_49 [1] : vector<8x8xf32> to vector<8xf32>
    %148 = vector.shape_cast %147 : vector<8xf32> to vector<8x1xf32>
    %149 = tpu.reciprocal %148 {approx = true} : vector<8x1xf32> -> vector<8x1xf32>
    %150 = vector.broadcast %149 : vector<8x1xf32> to vector<8x8xf32>
    %151 = arith.mulf %146, %150 : vector<8x8xf32>
    %cst_50 = arith.constant dense<0.000000e+00> : vector<8x16xf32>
    %152 = tpu.matmul %151, %138, %cst_50 {dimension_numbers = #tpu.dot_dimension_numbers<[1], [0], [0], [1], [0, 0, 1, 1], [], []>} : vector<8x8xf32>, vector<8x16xf32>, vector<8x16xf32> -> vector<8x16xf32>
    %153 = tpu.concatenate %33, %50, %67, %84, %101, %118, %135, %152 in 1 : vector<8x16xf32>, vector<8x16xf32>, vector<8x16xf32>, vector<8x16xf32>, vector<8x16xf32>, vector<8x16xf32>, vector<8x16xf32>, vector<8x16xf32> -> vector<8x128xf32>
    %154 = arith.truncf %153 : vector<8x128xf32> to vector<8x128xbf16>
    %c0_51 = arith.constant 0 : index
    %c0_52 = arith.constant 0 : index
    %155 = vector.load %arg9[%c0_51, %c0_52] : memref<128x128xbf16, #tpu.memory_space<vmem>>, vector<128x128xbf16>
    %cst_53 = arith.constant dense<0.000000e+00> : vector<8x128xf32>
    %156 = tpu.matmul %154, %155, %cst_53 {dimension_numbers = #tpu.dot_dimension_numbers<[1], [0], [0], [1], [0, 0, 1, 1], [], []>} : vector<8x128xbf16>, vector<128x128xbf16>, vector<8x128xf32> -> vector<8x128xf32>
    %c0_54 = arith.constant 0 : index
    %c0_55 = arith.constant 0 : index
    %157 = vector.load %arg10[%c0_54, %c0_55] : memref<1x128xf32, #tpu.memory_space<vmem>>, vector<1x128xf32>
    %158 = vector.broadcast %157 : vector<1x128xf32> to vector<8x128xf32>
    %159 = arith.addf %156, %158 : vector<8x128xf32>
    %c0_56 = arith.constant 0 : index
    %c0_57 = arith.constant 0 : index
    %c0_58 = arith.constant 0 : index
    %160 = vector.load %arg4[%c0_56, %c0_57, %c0_58] : memref<1x8x128xf32, #tpu.memory_space<vmem>>, vector<1x8x128xf32>
    %161 = vector.shape_cast %160 : vector<1x8x128xf32> to vector<8x128xf32>
    %162 = arith.addf %159, %161 : vector<8x128xf32>
    %cst_59 = arith.constant dense<0.000000e+00> : vector<8xf32>
    %163 = vector.multi_reduction <add>, %162, %cst_59 [1] : vector<8x128xf32> to vector<8xf32>
    %164 = vector.shape_cast %163 : vector<8xf32> to vector<8x1xf32>
    %cst_60 = arith.constant 1.280000e+02 : f32
    %165 = vector.broadcast %cst_60 : f32 to vector<8x1xf32>
    %166 = arith.divf %164, %165 : vector<8x1xf32>
    %167 = vector.broadcast %166 : vector<8x1xf32> to vector<8x128xf32>
    %168 = arith.subf %162, %167 : vector<8x128xf32>
    %169 = arith.mulf %168, %168 : vector<8x128xf32>
    %cst_61 = arith.constant dense<0.000000e+00> : vector<8xf32>
    %170 = vector.multi_reduction <add>, %169, %cst_61 [1] : vector<8x128xf32> to vector<8xf32>
    %171 = vector.shape_cast %170 : vector<8xf32> to vector<8x1xf32>
    %cst_62 = arith.constant 1.280000e+02 : f32
    %172 = vector.broadcast %cst_62 : f32 to vector<8x1xf32>
    %173 = arith.divf %171, %172 : vector<8x1xf32>
    %174 = vector.broadcast %166 : vector<8x1xf32> to vector<8x128xf32>
    %175 = arith.subf %162, %174 : vector<8x128xf32>
    %cst_63 = arith.constant 9.99999974E-6 : f32
    %176 = vector.broadcast %cst_63 : f32 to vector<8x1xf32>
    %177 = arith.addf %173, %176 : vector<8x1xf32>
    %178 = math.rsqrt %177 : vector<8x1xf32>
    %179 = vector.broadcast %178 : vector<8x1xf32> to vector<8x128xf32>
    %180 = arith.mulf %175, %179 : vector<8x128xf32>
    %c0_64 = arith.constant 0 : index
    %c0_65 = arith.constant 0 : index
    %181 = vector.load %arg11[%c0_64, %c0_65] : memref<1x128xf32, #tpu.memory_space<vmem>>, vector<1x128xf32>
    %182 = vector.broadcast %181 : vector<1x128xf32> to vector<8x128xf32>
    %183 = arith.mulf %180, %182 : vector<8x128xf32>
    %c0_66 = arith.constant 0 : index
    %c0_67 = arith.constant 0 : index
    %184 = vector.load %arg12[%c0_66, %c0_67] : memref<1x128xf32, #tpu.memory_space<vmem>>, vector<1x128xf32>
    %185 = vector.broadcast %184 : vector<1x128xf32> to vector<8x128xf32>
    %186 = arith.addf %183, %185 : vector<8x128xf32>
    %c0_68 = arith.constant 0 : index
    %c0_69 = arith.constant 0 : index
    %c0_70 = arith.constant 0 : index
    %187 = vector.load %arg13[%c0_68, %c0_69, %c0_70] : memref<1x8x128xf32, #tpu.memory_space<vmem>>, vector<1x8x128xf32>
    %188 = vector.shape_cast %187 : vector<1x8x128xf32> to vector<8x128xf32>
    %189 = vector.shape_cast %186 : vector<8x128xf32> to vector<1x8x128xf32>
    tpu.vector_store %arg13[%c0_68, %c0_69, %c0_70], %189 {strides = array<i32>} : memref<1x8x128xf32, #tpu.memory_space<vmem>>, vector<1x8x128xf32>,
    return
  }
  func.func @transform_0(%arg0: i32) -> (i32, i32, i32) {
    %c0_i32 = arith.constant 0 : i32
    %c0_i32_0 = arith.constant 0 : i32
    %c0_i32_1 = arith.constant 0 : i32
    return %arg0, %c0_i32, %c0_i32_0 : i32, i32, i32
  }
  func.func @transform_1(%arg0: i32) -> (i32, i32, i32) {
    %c0_i32 = arith.constant 0 : i32
    %c0_i32_0 = arith.constant 0 : i32
    %c0_i32_1 = arith.constant 0 : i32
    return %arg0, %c0_i32, %c0_i32_0 : i32, i32, i32
  }
  func.func @transform_2(%arg0: i32) -> (i32, i32, i32) {
    %c0_i32 = arith.constant 0 : i32
    %c0_i32_0 = arith.constant 0 : i32
    %c0_i32_1 = arith.constant 0 : i32
    return %arg0, %c0_i32, %c0_i32_0 : i32, i32, i32
  }
  func.func @transform_3(%arg0: i32) -> (i32, i32, i32) {
    %c0_i32 = arith.constant 0 : i32
    %c0_i32_0 = arith.constant 0 : i32
    %c0_i32_1 = arith.constant 0 : i32
    return %arg0, %c0_i32, %c0_i32_0 : i32, i32, i32
  }
  func.func @transform_4(%arg0: i32) -> (i32, i32, i32) {
    %c0_i32 = arith.constant 0 : i32
    %c0_i32_0 = arith.constant 0 : i32
    %c0_i32_1 = arith.constant 0 : i32
    return %arg0, %c0_i32, %c0_i32_0 : i32, i32, i32
  }
  func.func @transform_5(%arg0: i32) -> (i32, i32) {
    %c0_i32 = arith.constant 0 : i32
    %c0_i32_0 = arith.constant 0 : i32
    %c0_i32_1 = arith.constant 0 : i32
    return %c0_i32, %c0_i32_0 : i32, i32
  }
  func.func @transform_6(%arg0: i32) -> (i32, i32) {
    %c0_i32 = arith.constant 0 : i32
    %c0_i32_0 = arith.constant 0 : i32
    %c0_i32_1 = arith.constant 0 : i32
    return %c0_i32, %c0_i32_0 : i32, i32
  }
  func.func @transform_7(%arg0: i32) -> (i32, i32) {
    %c0_i32 = arith.constant 0 : i32
    %c0_i32_0 = arith.constant 0 : i32
    %c0_i32_1 = arith.constant 0 : i32
    return %c0_i32, %c0_i32_0 : i32, i32
  }
  func.func @transform_8(%arg0: i32) -> (i32, i32) {
    %c0_i32 = arith.constant 0 : i32
    %c0_i32_0 = arith.constant 0 : i32
    %c0_i32_1 = arith.constant 0 : i32
    return %c0_i32, %c0_i32_0 : i32, i32
  }
  func.func @transform_9(%arg0: i32) -> (i32, i32) {
    %c0_i32 = arith.constant 0 : i32
    %c0_i32_0 = arith.constant 0 : i32
    %c0_i32_1 = arith.constant 0 : i32
    return %c0_i32, %c0_i32_0 : i32, i32
  }
  func.func @transform_10(%arg0: i32) -> (i32, i32) {
    %c0_i32 = arith.constant 0 : i32
    %c0_i32_0 = arith.constant 0 : i32
    %c0_i32_1 = arith.constant 0 : i32
    return %c0_i32, %c0_i32_0 : i32, i32
  }
  func.func @transform_11(%arg0: i32) -> (i32, i32) {
    %c0_i32 = arith.constant 0 : i32
    %c0_i32_0 = arith.constant 0 : i32
    %c0_i32_1 = arith.constant 0 : i32
    return %c0_i32, %c0_i32_0 : i32, i32
  }
  func.func @transform_12(%arg0: i32) -> (i32, i32, i32) {
    %c0_i32 = arith.constant 0 : i32
    %c0_i32_0 = arith.constant 0 : i32
    %c0_i32_1 = arith.constant 0 : i32
    return %arg0, %c0_i32, %c0_i32_0 : i32, i32, i32
  }
}

module attributes {stable_mosaic.version = 11 : i64} {
  func.func @_ffn_ln_kernel(%arg0: i32, %arg1: memref<16x128xf32, #tpu.memory_space<vmem>>, %arg2: memref<128x512xbf16, #tpu.memory_space<vmem>>, %arg3: memref<1x512xf32, #tpu.memory_space<vmem>>, %arg4: memref<512x128xbf16, #tpu.memory_space<vmem>>, %arg5: memref<1x128xf32, #tpu.memory_space<vmem>>, %arg6: memref<1x128xf32, #tpu.memory_space<vmem>>, %arg7: memref<1x128xf32, #tpu.memory_space<vmem>>, %arg8: memref<16x128xf32, #tpu.memory_space<vmem>>) attributes {dimension_semantics = [#tpu.dimension_semantics<parallel>], iteration_bounds = array<i64: 1>, scalar_prefetch = 0 : i64, scratch_operands = 0 : i64, tpu.core_type = #tpu.core_type<tc>, window_params = [{transform_indices = @transform_0, window_bounds = array<i64: 16, 128>}, {pipeline_mode = #tpu.pipeline_mode<synchronous>, transform_indices = @transform_1, window_bounds = array<i64: 128, 512>}, {pipeline_mode = #tpu.pipeline_mode<synchronous>, transform_indices = @transform_2, window_bounds = array<i64: 1, 512>}, {pipeline_mode = #tpu.pipeline_mode<synchronous>, transform_indices = @transform_3, window_bounds = array<i64: 512, 128>}, {pipeline_mode = #tpu.pipeline_mode<synchronous>, transform_indices = @transform_4, window_bounds = array<i64: 1, 128>}, {pipeline_mode = #tpu.pipeline_mode<synchronous>, transform_indices = @transform_5, window_bounds = array<i64: 1, 128>}, {pipeline_mode = #tpu.pipeline_mode<synchronous>, transform_indices = @transform_6, window_bounds = array<i64: 1, 128>}, {transform_indices = @transform_7, window_bounds = array<i64: 16, 128>}]} {
    %c0 = arith.constant 0 : index
    %c0_0 = arith.constant 0 : index
    %0 = vector.load %arg1[%c0, %c0_0] : memref<16x128xf32, #tpu.memory_space<vmem>>, vector<16x128xf32>
    %1 = arith.truncf %0 : vector<16x128xf32> to vector<16x128xbf16>
    %c0_1 = arith.constant 0 : index
    %c0_2 = arith.constant 0 : index
    %2 = vector.load %arg2[%c0_1, %c0_2] : memref<128x512xbf16, #tpu.memory_space<vmem>>, vector<128x512xbf16>
    %cst = arith.constant dense<0.000000e+00> : vector<16x512xf32>
    %3 = tpu.matmul %1, %2, %cst {dimension_numbers = #tpu.dot_dimension_numbers<[1], [0], [0], [1], [0, 0, 1, 1], [], []>} : vector<16x128xbf16>, vector<128x512xbf16>, vector<16x512xf32> -> vector<16x512xf32>
    %c0_3 = arith.constant 0 : index
    %c0_4 = arith.constant 0 : index
    %4 = vector.load %arg3[%c0_3, %c0_4] : memref<1x512xf32, #tpu.memory_space<vmem>>, vector<1x512xf32>
    %5 = vector.broadcast %4 : vector<1x512xf32> to vector<16x512xf32>
    %6 = arith.addf %3, %5 : vector<16x512xf32>
    %cst_5 = arith.constant 0.000000e+00 : f32
    %7 = vector.broadcast %cst_5 : f32 to vector<16x512xf32>
    %8 = arith.maximumf %6, %7 : vector<16x512xf32>
    %9 = arith.truncf %8 : vector<16x512xf32> to vector<16x512xbf16>
    %c0_6 = arith.constant 0 : index
    %c0_7 = arith.constant 0 : index
    %10 = vector.load %arg4[%c0_6, %c0_7] : memref<512x128xbf16, #tpu.memory_space<vmem>>, vector<512x128xbf16>
    %cst_8 = arith.constant dense<0.000000e+00> : vector<16x128xf32>
    %11 = tpu.matmul %9, %10, %cst_8 {dimension_numbers = #tpu.dot_dimension_numbers<[1], [0], [0], [1], [0, 0, 1, 1], [], []>} : vector<16x512xbf16>, vector<512x128xbf16>, vector<16x128xf32> -> vector<16x128xf32>
    %c0_9 = arith.constant 0 : index
    %c0_10 = arith.constant 0 : index
    %12 = vector.load %arg5[%c0_9, %c0_10] : memref<1x128xf32, #tpu.memory_space<vmem>>, vector<1x128xf32>
    %13 = vector.broadcast %12 : vector<1x128xf32> to vector<16x128xf32>
    %14 = arith.addf %11, %13 : vector<16x128xf32>
    %15 = arith.addf %14, %0 : vector<16x128xf32>
    %cst_11 = arith.constant dense<0.000000e+00> : vector<16xf32>
    %16 = vector.multi_reduction <add>, %15, %cst_11 [1] : vector<16x128xf32> to vector<16xf32>
    %17 = vector.shape_cast %16 : vector<16xf32> to vector<16x1xf32>
    %cst_12 = arith.constant 1.280000e+02 : f32
    %18 = vector.broadcast %cst_12 : f32 to vector<16x1xf32>
    %19 = arith.divf %17, %18 : vector<16x1xf32>
    %20 = vector.broadcast %19 : vector<16x1xf32> to vector<16x128xf32>
    %21 = arith.subf %15, %20 : vector<16x128xf32>
    %22 = arith.mulf %21, %21 : vector<16x128xf32>
    %cst_13 = arith.constant dense<0.000000e+00> : vector<16xf32>
    %23 = vector.multi_reduction <add>, %22, %cst_13 [1] : vector<16x128xf32> to vector<16xf32>
    %24 = vector.shape_cast %23 : vector<16xf32> to vector<16x1xf32>
    %cst_14 = arith.constant 1.280000e+02 : f32
    %25 = vector.broadcast %cst_14 : f32 to vector<16x1xf32>
    %26 = arith.divf %24, %25 : vector<16x1xf32>
    %27 = vector.broadcast %19 : vector<16x1xf32> to vector<16x128xf32>
    %28 = arith.subf %15, %27 : vector<16x128xf32>
    %cst_15 = arith.constant 9.99999974E-6 : f32
    %29 = vector.broadcast %cst_15 : f32 to vector<16x1xf32>
    %30 = arith.addf %26, %29 : vector<16x1xf32>
    %31 = math.rsqrt %30 : vector<16x1xf32>
    %32 = vector.broadcast %31 : vector<16x1xf32> to vector<16x128xf32>
    %33 = arith.mulf %28, %32 : vector<16x128xf32>
    %c0_16 = arith.constant 0 : index
    %c0_17 = arith.constant 0 : index
    %34 = vector.load %arg6[%c0_16, %c0_17] : memref<1x128xf32, #tpu.memory_space<vmem>>, vector<1x128xf32>
    %35 = vector.broadcast %34 : vector<1x128xf32> to vector<16x128xf32>
    %36 = arith.mulf %33, %35 : vector<16x128xf32>
    %c0_18 = arith.constant 0 : index
    %c0_19 = arith.constant 0 : index
    %37 = vector.load %arg7[%c0_18, %c0_19] : memref<1x128xf32, #tpu.memory_space<vmem>>, vector<1x128xf32>
    %38 = vector.broadcast %37 : vector<1x128xf32> to vector<16x128xf32>
    %39 = arith.addf %36, %38 : vector<16x128xf32>
    %c0_20 = arith.constant 0 : index
    %c0_21 = arith.constant 0 : index
    %40 = vector.load %arg8[%c0_20, %c0_21] : memref<16x128xf32, #tpu.memory_space<vmem>>, vector<16x128xf32>
    tpu.vector_store %arg8[%c0_20, %c0_21], %39 {strides = array<i32>} : memref<16x128xf32, #tpu.memory_space<vmem>>, vector<16x128xf32>,
    return
  }
  func.func @transform_0(%arg0: i32) -> (i32, i32) {
    %c0_i32 = arith.constant 0 : i32
    %c0_i32_0 = arith.constant 0 : i32
    return %arg0, %c0_i32 : i32, i32
  }
  func.func @transform_1(%arg0: i32) -> (i32, i32) {
    %c0_i32 = arith.constant 0 : i32
    %c0_i32_0 = arith.constant 0 : i32
    %c0_i32_1 = arith.constant 0 : i32
    return %c0_i32, %c0_i32_0 : i32, i32
  }
  func.func @transform_2(%arg0: i32) -> (i32, i32) {
    %c0_i32 = arith.constant 0 : i32
    %c0_i32_0 = arith.constant 0 : i32
    %c0_i32_1 = arith.constant 0 : i32
    return %c0_i32, %c0_i32_0 : i32, i32
  }
  func.func @transform_3(%arg0: i32) -> (i32, i32) {
    %c0_i32 = arith.constant 0 : i32
    %c0_i32_0 = arith.constant 0 : i32
    %c0_i32_1 = arith.constant 0 : i32
    return %c0_i32, %c0_i32_0 : i32, i32
  }
  func.func @transform_4(%arg0: i32) -> (i32, i32) {
    %c0_i32 = arith.constant 0 : i32
    %c0_i32_0 = arith.constant 0 : i32
    %c0_i32_1 = arith.constant 0 : i32
    return %c0_i32, %c0_i32_0 : i32, i32
  }
  func.func @transform_5(%arg0: i32) -> (i32, i32) {
    %c0_i32 = arith.constant 0 : i32
    %c0_i32_0 = arith.constant 0 : i32
    %c0_i32_1 = arith.constant 0 : i32
    return %c0_i32, %c0_i32_0 : i32, i32
  }
  func.func @transform_6(%arg0: i32) -> (i32, i32) {
    %c0_i32 = arith.constant 0 : i32
    %c0_i32_0 = arith.constant 0 : i32
    %c0_i32_1 = arith.constant 0 : i32
    return %c0_i32, %c0_i32_0 : i32, i32
  }
  func.func @transform_7(%arg0: i32) -> (i32, i32) {
    %c0_i32 = arith.constant 0 : i32
    %c0_i32_0 = arith.constant 0 : i32
    return %arg0, %c0_i32 : i32, i32
  }
}

module attributes {stable_mosaic.version = 11 : i64} {
  func.func @kernel(%arg0: i32, %arg1: memref<1x8x128xf32, #tpu.memory_space<vmem>>, %arg2: memref<1x8x128xf32, #tpu.memory_space<vmem>>, %arg3: memref<1x8x128xf32, #tpu.memory_space<vmem>>, %arg4: memref<1x8x128xf32, #tpu.memory_space<vmem>>, %arg5: memref<1x1x8xf32, #tpu.memory_space<vmem>>, %arg6: memref<128x128xbf16, #tpu.memory_space<vmem>>, %arg7: memref<128x128xbf16, #tpu.memory_space<vmem>>, %arg8: memref<128x128xbf16, #tpu.memory_space<vmem>>, %arg9: memref<128x128xbf16, #tpu.memory_space<vmem>>, %arg10: memref<1x128xf32, #tpu.memory_space<vmem>>, %arg11: memref<1x128xf32, #tpu.memory_space<vmem>>, %arg12: memref<1x128xf32, #tpu.memory_space<vmem>>, %arg13: memref<1x8x128xf32, #tpu.memory_space<vmem>>) attributes {dimension_semantics = [#tpu.dimension_semantics<parallel>], iteration_bounds = array<i64: 2>, scalar_prefetch = 0 : i64, scratch_operands = 0 : i64, tpu.core_type = #tpu.core_type<tc>, window_params = [{transform_indices = @transform_0, window_bounds = array<i64: 1, 8, 128>}, {transform_indices = @transform_1, window_bounds = array<i64: 1, 8, 128>}, {transform_indices = @transform_2, window_bounds = array<i64: 1, 8, 128>}, {transform_indices = @transform_3, window_bounds = array<i64: 1, 8, 128>}, {transform_indices = @transform_4, window_bounds = array<i64: 1, 1, 8>}, {pipeline_mode = #tpu.pipeline_mode<synchronous>, transform_indices = @transform_5, window_bounds = array<i64: 128, 128>}, {pipeline_mode = #tpu.pipeline_mode<synchronous>, transform_indices = @transform_6, window_bounds = array<i64: 128, 128>}, {pipeline_mode = #tpu.pipeline_mode<synchronous>, transform_indices = @transform_7, window_bounds = array<i64: 128, 128>}, {pipeline_mode = #tpu.pipeline_mode<synchronous>, transform_indices = @transform_8, window_bounds = array<i64: 128, 128>}, {pipeline_mode = #tpu.pipeline_mode<synchronous>, transform_indices = @transform_9, window_bounds = array<i64: 1, 128>}, {pipeline_mode = #tpu.pipeline_mode<synchronous>, transform_indices = @transform_10, window_bounds = array<i64: 1, 128>}, {pipeline_mode = #tpu.pipeline_mode<synchronous>, transform_indices = @transform_11, window_bounds = array<i64: 1, 128>}, {transform_indices = @transform_12, window_bounds = array<i64: 1, 8, 128>}]} {
    %c0 = arith.constant 0 : index
    %c0_0 = arith.constant 0 : index
    %c0_1 = arith.constant 0 : index
    %0 = vector.load %arg3[%c0, %c0_0, %c0_1] : memref<1x8x128xf32, #tpu.memory_space<vmem>>, vector<1x8x128xf32>
    %1 = vector.shape_cast %0 : vector<1x8x128xf32> to vector<8x128xf32>
    %2 = arith.truncf %1 : vector<8x128xf32> to vector<8x128xbf16>
    %c0_2 = arith.constant 0 : index
    %c0_3 = arith.constant 0 : index
    %c0_4 = arith.constant 0 : index
    %3 = vector.load %arg2[%c0_2, %c0_3, %c0_4] : memref<1x8x128xf32, #tpu.memory_space<vmem>>, vector<1x8x128xf32>
    %4 = vector.shape_cast %3 : vector<1x8x128xf32> to vector<8x128xf32>
    %5 = arith.truncf %4 : vector<8x128xf32> to vector<8x128xbf16>
    %c0_5 = arith.constant 0 : index
    %c0_6 = arith.constant 0 : index
    %c0_7 = arith.constant 0 : index
    %6 = vector.load %arg1[%c0_5, %c0_6, %c0_7] : memref<1x8x128xf32, #tpu.memory_space<vmem>>, vector<1x8x128xf32>
    %7 = vector.shape_cast %6 : vector<1x8x128xf32> to vector<8x128xf32>
    %8 = arith.truncf %7 : vector<8x128xf32> to vector<8x128xbf16>
    %c0_8 = arith.constant 0 : index
    %c0_9 = arith.constant 0 : index
    %9 = vector.load %arg6[%c0_8, %c0_9] : memref<128x128xbf16, #tpu.memory_space<vmem>>, vector<128x128xbf16>
    %cst = arith.constant dense<0.000000e+00> : vector<8x128xf32>
    %10 = tpu.matmul %2, %9, %cst {dimension_numbers = #tpu.dot_dimension_numbers<[1], [0], [0], [1], [0, 0, 1, 1], [], []>} : vector<8x128xbf16>, vector<128x128xbf16>, vector<8x128xf32> -> vector<8x128xf32>
    %c0_10 = arith.constant 0 : index
    %c0_11 = arith.constant 0 : index
    %11 = vector.load %arg7[%c0_10, %c0_11] : memref<128x128xbf16, #tpu.memory_space<vmem>>, vector<128x128xbf16>
    %cst_12 = arith.constant dense<0.000000e+00> : vector<8x128xf32>
    %12 = tpu.matmul %5, %11, %cst_12 {dimension_numbers = #tpu.dot_dimension_numbers<[1], [0], [0], [1], [0, 0, 1, 1], [], []>} : vector<8x128xbf16>, vector<128x128xbf16>, vector<8x128xf32> -> vector<8x128xf32>
    %c0_13 = arith.constant 0 : index
    %c0_14 = arith.constant 0 : index
    %13 = vector.load %arg8[%c0_13, %c0_14] : memref<128x128xbf16, #tpu.memory_space<vmem>>, vector<128x128xbf16>
    %cst_15 = arith.constant dense<0.000000e+00> : vector<8x128xf32>
    %14 = tpu.matmul %8, %13, %cst_15 {dimension_numbers = #tpu.dot_dimension_numbers<[1], [0], [0], [1], [0, 0, 1, 1], [], []>} : vector<8x128xbf16>, vector<128x128xbf16>, vector<8x128xf32> -> vector<8x128xf32>
    %c0_16 = arith.constant 0 : index
    %c0_17 = arith.constant 0 : index
    %c0_18 = arith.constant 0 : index
    %15 = vector.load %arg5[%c0_16, %c0_17, %c0_18] : memref<1x1x8xf32, #tpu.memory_space<vmem>>, vector<1x1x8xf32>
    %16 = vector.shape_cast %15 : vector<1x1x8xf32> to vector<1x8xf32>
    %17 = tpu.iota {dimensions = array<i32: 0>} : vector<8x8xi32>
    %18 = tpu.iota {dimensions = array<i32: 1>} : vector<8x8xi32>
    %19 = arith.cmpi sgt, %18, %17 : vector<8x8xi32>
    %20 = arith.extui %19 : vector<8x8xi1> to vector<8x8xi32>
    %21 = arith.sitofp %20 : vector<8x8xi32> to vector<8x8xf32>
    %cst_19 = arith.constant -1.000000e+20 : f32
    %22 = vector.broadcast %cst_19 : f32 to vector<8x8xf32>
    %23 = arith.mulf %21, %22 : vector<8x8xf32>
    %24 = vector.broadcast %16 : vector<1x8xf32> to vector<8x8xf32>
    %25 = arith.addf %24, %23 : vector<8x8xf32>
    %26 = vector.extract_strided_slice %10 {offsets = [0, 0], sizes = [8, 16], strides = [1, 1]} : vector<8x128xf32> to vector<8x16xf32>
    %27 = vector.extract_strided_slice %12 {offsets = [0, 0], sizes = [8, 16], strides = [1, 1]} : vector<8x128xf32> to vector<8x16xf32>
    %28 = vector.extract_strided_slice %14 {offsets = [0, 0], sizes = [8, 16], strides = [1, 1]} : vector<8x128xf32> to vector<8x16xf32>
    %cst_20 = arith.constant dense<0.000000e+00> : vector<8x8xf32>
    %29 = tpu.matmul %26, %27, %cst_20 {dimension_numbers = #tpu.dot_dimension_numbers<[1], [1], [0], [0], [0, 0, 1, 0], [], []>} : vector<8x16xf32>, vector<8x16xf32>, vector<8x8xf32> -> vector<8x8xf32>
    %30 = arith.addf %29, %25 : vector<8x8xf32>
    %cst_21 = arith.constant dense<0xFF800000> : vector<8xf32>
    %31 = vector.multi_reduction <maximumf>, %30, %cst_21 [1] : vector<8x8xf32> to vector<8xf32>
    %32 = vector.shape_cast %31 : vector<8xf32> to vector<8x1xf32>
    %33 = vector.broadcast %32 : vector<8x1xf32> to vector<8x8xf32>
    %34 = arith.subf %30, %33 : vector<8x8xf32>
    %35 = math.exp %34 : vector<8x8xf32>
    %cst_22 = arith.constant dense<0.000000e+00> : vector<8xf32>
    %36 = vector.multi_reduction <add>, %35, %cst_22 [1] : vector<8x8xf32> to vector<8xf32>
    %37 = vector.shape_cast %36 : vector<8xf32> to vector<8x1xf32>
    %38 = tpu.reciprocal %37 {approx = true} : vector<8x1xf32> -> vector<8x1xf32>
    %39 = vector.broadcast %38 : vector<8x1xf32> to vector<8x8xf32>
    %40 = arith.mulf %35, %39 : vector<8x8xf32>
    %cst_23 = arith.constant dense<0.000000e+00> : vector<8x16xf32>
    %41 = tpu.matmul %40, %28, %cst_23 {dimension_numbers = #tpu.dot_dimension_numbers<[1], [0], [0], [1], [0, 0, 1, 1], [], []>} : vector<8x8xf32>, vector<8x16xf32>, vector<8x16xf32> -> vector<8x16xf32>
    %42 = vector.extract_strided_slice %10 {offsets = [0, 16], sizes = [8, 16], strides = [1, 1]} : vector<8x128xf32> to vector<8x16xf32>
    %43 = vector.extract_strided_slice %12 {offsets = [0, 16], sizes = [8, 16], strides = [1, 1]} : vector<8x128xf32> to vector<8x16xf32>
    %44 = vector.extract_strided_slice %14 {offsets = [0, 16], sizes = [8, 16], strides = [1, 1]} : vector<8x128xf32> to vector<8x16xf32>
    %cst_24 = arith.constant dense<0.000000e+00> : vector<8x8xf32>
    %45 = tpu.matmul %42, %43, %cst_24 {dimension_numbers = #tpu.dot_dimension_numbers<[1], [1], [0], [0], [0, 0, 1, 0], [], []>} : vector<8x16xf32>, vector<8x16xf32>, vector<8x8xf32> -> vector<8x8xf32>
    %46 = arith.addf %45, %25 : vector<8x8xf32>
    %cst_25 = arith.constant dense<0xFF800000> : vector<8xf32>
    %47 = vector.multi_reduction <maximumf>, %46, %cst_25 [1] : vector<8x8xf32> to vector<8xf32>
    %48 = vector.shape_cast %47 : vector<8xf32> to vector<8x1xf32>
    %49 = vector.broadcast %48 : vector<8x1xf32> to vector<8x8xf32>
    %50 = arith.subf %46, %49 : vector<8x8xf32>
    %51 = math.exp %50 : vector<8x8xf32>
    %cst_26 = arith.constant dense<0.000000e+00> : vector<8xf32>
    %52 = vector.multi_reduction <add>, %51, %cst_26 [1] : vector<8x8xf32> to vector<8xf32>
    %53 = vector.shape_cast %52 : vector<8xf32> to vector<8x1xf32>
    %54 = tpu.reciprocal %53 {approx = true} : vector<8x1xf32> -> vector<8x1xf32>
    %55 = vector.broadcast %54 : vector<8x1xf32> to vector<8x8xf32>
    %56 = arith.mulf %51, %55 : vector<8x8xf32>
    %cst_27 = arith.constant dense<0.000000e+00> : vector<8x16xf32>
    %57 = tpu.matmul %56, %44, %cst_27 {dimension_numbers = #tpu.dot_dimension_numbers<[1], [0], [0], [1], [0, 0, 1, 1], [], []>} : vector<8x8xf32>, vector<8x16xf32>, vector<8x16xf32> -> vector<8x16xf32>
    %58 = vector.extract_strided_slice %10 {offsets = [0, 32], sizes = [8, 16], strides = [1, 1]} : vector<8x128xf32> to vector<8x16xf32>
    %59 = vector.extract_strided_slice %12 {offsets = [0, 32], sizes = [8, 16], strides = [1, 1]} : vector<8x128xf32> to vector<8x16xf32>
    %60 = vector.extract_strided_slice %14 {offsets = [0, 32], sizes = [8, 16], strides = [1, 1]} : vector<8x128xf32> to vector<8x16xf32>
    %cst_28 = arith.constant dense<0.000000e+00> : vector<8x8xf32>
    %61 = tpu.matmul %58, %59, %cst_28 {dimension_numbers = #tpu.dot_dimension_numbers<[1], [1], [0], [0], [0, 0, 1, 0], [], []>} : vector<8x16xf32>, vector<8x16xf32>, vector<8x8xf32> -> vector<8x8xf32>
    %62 = arith.addf %61, %25 : vector<8x8xf32>
    %cst_29 = arith.constant dense<0xFF800000> : vector<8xf32>
    %63 = vector.multi_reduction <maximumf>, %62, %cst_29 [1] : vector<8x8xf32> to vector<8xf32>
    %64 = vector.shape_cast %63 : vector<8xf32> to vector<8x1xf32>
    %65 = vector.broadcast %64 : vector<8x1xf32> to vector<8x8xf32>
    %66 = arith.subf %62, %65 : vector<8x8xf32>
    %67 = math.exp %66 : vector<8x8xf32>
    %cst_30 = arith.constant dense<0.000000e+00> : vector<8xf32>
    %68 = vector.multi_reduction <add>, %67, %cst_30 [1] : vector<8x8xf32> to vector<8xf32>
    %69 = vector.shape_cast %68 : vector<8xf32> to vector<8x1xf32>
    %70 = tpu.reciprocal %69 {approx = true} : vector<8x1xf32> -> vector<8x1xf32>
    %71 = vector.broadcast %70 : vector<8x1xf32> to vector<8x8xf32>
    %72 = arith.mulf %67, %71 : vector<8x8xf32>
    %cst_31 = arith.constant dense<0.000000e+00> : vector<8x16xf32>
    %73 = tpu.matmul %72, %60, %cst_31 {dimension_numbers = #tpu.dot_dimension_numbers<[1], [0], [0], [1], [0, 0, 1, 1], [], []>} : vector<8x8xf32>, vector<8x16xf32>, vector<8x16xf32> -> vector<8x16xf32>
    %74 = vector.extract_strided_slice %10 {offsets = [0, 48], sizes = [8, 16], strides = [1, 1]} : vector<8x128xf32> to vector<8x16xf32>
    %75 = vector.extract_strided_slice %12 {offsets = [0, 48], sizes = [8, 16], strides = [1, 1]} : vector<8x128xf32> to vector<8x16xf32>
    %76 = vector.extract_strided_slice %14 {offsets = [0, 48], sizes = [8, 16], strides = [1, 1]} : vector<8x128xf32> to vector<8x16xf32>
    %cst_32 = arith.constant dense<0.000000e+00> : vector<8x8xf32>
    %77 = tpu.matmul %74, %75, %cst_32 {dimension_numbers = #tpu.dot_dimension_numbers<[1], [1], [0], [0], [0, 0, 1, 0], [], []>} : vector<8x16xf32>, vector<8x16xf32>, vector<8x8xf32> -> vector<8x8xf32>
    %78 = arith.addf %77, %25 : vector<8x8xf32>
    %cst_33 = arith.constant dense<0xFF800000> : vector<8xf32>
    %79 = vector.multi_reduction <maximumf>, %78, %cst_33 [1] : vector<8x8xf32> to vector<8xf32>
    %80 = vector.shape_cast %79 : vector<8xf32> to vector<8x1xf32>
    %81 = vector.broadcast %80 : vector<8x1xf32> to vector<8x8xf32>
    %82 = arith.subf %78, %81 : vector<8x8xf32>
    %83 = math.exp %82 : vector<8x8xf32>
    %cst_34 = arith.constant dense<0.000000e+00> : vector<8xf32>
    %84 = vector.multi_reduction <add>, %83, %cst_34 [1] : vector<8x8xf32> to vector<8xf32>
    %85 = vector.shape_cast %84 : vector<8xf32> to vector<8x1xf32>
    %86 = tpu.reciprocal %85 {approx = true} : vector<8x1xf32> -> vector<8x1xf32>
    %87 = vector.broadcast %86 : vector<8x1xf32> to vector<8x8xf32>
    %88 = arith.mulf %83, %87 : vector<8x8xf32>
    %cst_35 = arith.constant dense<0.000000e+00> : vector<8x16xf32>
    %89 = tpu.matmul %88, %76, %cst_35 {dimension_numbers = #tpu.dot_dimension_numbers<[1], [0], [0], [1], [0, 0, 1, 1], [], []>} : vector<8x8xf32>, vector<8x16xf32>, vector<8x16xf32> -> vector<8x16xf32>
    %90 = vector.extract_strided_slice %10 {offsets = [0, 64], sizes = [8, 16], strides = [1, 1]} : vector<8x128xf32> to vector<8x16xf32>
    %91 = vector.extract_strided_slice %12 {offsets = [0, 64], sizes = [8, 16], strides = [1, 1]} : vector<8x128xf32> to vector<8x16xf32>
    %92 = vector.extract_strided_slice %14 {offsets = [0, 64], sizes = [8, 16], strides = [1, 1]} : vector<8x128xf32> to vector<8x16xf32>
    %cst_36 = arith.constant dense<0.000000e+00> : vector<8x8xf32>
    %93 = tpu.matmul %90, %91, %cst_36 {dimension_numbers = #tpu.dot_dimension_numbers<[1], [1], [0], [0], [0, 0, 1, 0], [], []>} : vector<8x16xf32>, vector<8x16xf32>, vector<8x8xf32> -> vector<8x8xf32>
    %94 = arith.addf %93, %25 : vector<8x8xf32>
    %cst_37 = arith.constant dense<0xFF800000> : vector<8xf32>
    %95 = vector.multi_reduction <maximumf>, %94, %cst_37 [1] : vector<8x8xf32> to vector<8xf32>
    %96 = vector.shape_cast %95 : vector<8xf32> to vector<8x1xf32>
    %97 = vector.broadcast %96 : vector<8x1xf32> to vector<8x8xf32>
    %98 = arith.subf %94, %97 : vector<8x8xf32>
    %99 = math.exp %98 : vector<8x8xf32>
    %cst_38 = arith.constant dense<0.000000e+00> : vector<8xf32>
    %100 = vector.multi_reduction <add>, %99, %cst_38 [1] : vector<8x8xf32> to vector<8xf32>
    %101 = vector.shape_cast %100 : vector<8xf32> to vector<8x1xf32>
    %102 = tpu.reciprocal %101 {approx = true} : vector<8x1xf32> -> vector<8x1xf32>
    %103 = vector.broadcast %102 : vector<8x1xf32> to vector<8x8xf32>
    %104 = arith.mulf %99, %103 : vector<8x8xf32>
    %cst_39 = arith.constant dense<0.000000e+00> : vector<8x16xf32>
    %105 = tpu.matmul %104, %92, %cst_39 {dimension_numbers = #tpu.dot_dimension_numbers<[1], [0], [0], [1], [0, 0, 1, 1], [], []>} : vector<8x8xf32>, vector<8x16xf32>, vector<8x16xf32> -> vector<8x16xf32>
    %106 = vector.extract_strided_slice %10 {offsets = [0, 80], sizes = [8, 16], strides = [1, 1]} : vector<8x128xf32> to vector<8x16xf32>
    %107 = vector.extract_strided_slice %12 {offsets = [0, 80], sizes = [8, 16], strides = [1, 1]} : vector<8x128xf32> to vector<8x16xf32>
    %108 = vector.extract_strided_slice %14 {offsets = [0, 80], sizes = [8, 16], strides = [1, 1]} : vector<8x128xf32> to vector<8x16xf32>
    %cst_40 = arith.constant dense<0.000000e+00> : vector<8x8xf32>
    %109 = tpu.matmul %106, %107, %cst_40 {dimension_numbers = #tpu.dot_dimension_numbers<[1], [1], [0], [0], [0, 0, 1, 0], [], []>} : vector<8x16xf32>, vector<8x16xf32>, vector<8x8xf32> -> vector<8x8xf32>
    %110 = arith.addf %109, %25 : vector<8x8xf32>
    %cst_41 = arith.constant dense<0xFF800000> : vector<8xf32>
    %111 = vector.multi_reduction <maximumf>, %110, %cst_41 [1] : vector<8x8xf32> to vector<8xf32>
    %112 = vector.shape_cast %111 : vector<8xf32> to vector<8x1xf32>
    %113 = vector.broadcast %112 : vector<8x1xf32> to vector<8x8xf32>
    %114 = arith.subf %110, %113 : vector<8x8xf32>
    %115 = math.exp %114 : vector<8x8xf32>
    %cst_42 = arith.constant dense<0.000000e+00> : vector<8xf32>
    %116 = vector.multi_reduction <add>, %115, %cst_42 [1] : vector<8x8xf32> to vector<8xf32>
    %117 = vector.shape_cast %116 : vector<8xf32> to vector<8x1xf32>
    %118 = tpu.reciprocal %117 {approx = true} : vector<8x1xf32> -> vector<8x1xf32>
    %119 = vector.broadcast %118 : vector<8x1xf32> to vector<8x8xf32>
    %120 = arith.mulf %115, %119 : vector<8x8xf32>
    %cst_43 = arith.constant dense<0.000000e+00> : vector<8x16xf32>
    %121 = tpu.matmul %120, %108, %cst_43 {dimension_numbers = #tpu.dot_dimension_numbers<[1], [0], [0], [1], [0, 0, 1, 1], [], []>} : vector<8x8xf32>, vector<8x16xf32>, vector<8x16xf32> -> vector<8x16xf32>
    %122 = vector.extract_strided_slice %10 {offsets = [0, 96], sizes = [8, 16], strides = [1, 1]} : vector<8x128xf32> to vector<8x16xf32>
    %123 = vector.extract_strided_slice %12 {offsets = [0, 96], sizes = [8, 16], strides = [1, 1]} : vector<8x128xf32> to vector<8x16xf32>
    %124 = vector.extract_strided_slice %14 {offsets = [0, 96], sizes = [8, 16], strides = [1, 1]} : vector<8x128xf32> to vector<8x16xf32>
    %cst_44 = arith.constant dense<0.000000e+00> : vector<8x8xf32>
    %125 = tpu.matmul %122, %123, %cst_44 {dimension_numbers = #tpu.dot_dimension_numbers<[1], [1], [0], [0], [0, 0, 1, 0], [], []>} : vector<8x16xf32>, vector<8x16xf32>, vector<8x8xf32> -> vector<8x8xf32>
    %126 = arith.addf %125, %25 : vector<8x8xf32>
    %cst_45 = arith.constant dense<0xFF800000> : vector<8xf32>
    %127 = vector.multi_reduction <maximumf>, %126, %cst_45 [1] : vector<8x8xf32> to vector<8xf32>
    %128 = vector.shape_cast %127 : vector<8xf32> to vector<8x1xf32>
    %129 = vector.broadcast %128 : vector<8x1xf32> to vector<8x8xf32>
    %130 = arith.subf %126, %129 : vector<8x8xf32>
    %131 = math.exp %130 : vector<8x8xf32>
    %cst_46 = arith.constant dense<0.000000e+00> : vector<8xf32>
    %132 = vector.multi_reduction <add>, %131, %cst_46 [1] : vector<8x8xf32> to vector<8xf32>
    %133 = vector.shape_cast %132 : vector<8xf32> to vector<8x1xf32>
    %134 = tpu.reciprocal %133 {approx = true} : vector<8x1xf32> -> vector<8x1xf32>
    %135 = vector.broadcast %134 : vector<8x1xf32> to vector<8x8xf32>
    %136 = arith.mulf %131, %135 : vector<8x8xf32>
    %cst_47 = arith.constant dense<0.000000e+00> : vector<8x16xf32>
    %137 = tpu.matmul %136, %124, %cst_47 {dimension_numbers = #tpu.dot_dimension_numbers<[1], [0], [0], [1], [0, 0, 1, 1], [], []>} : vector<8x8xf32>, vector<8x16xf32>, vector<8x16xf32> -> vector<8x16xf32>
    %138 = vector.extract_strided_slice %10 {offsets = [0, 112], sizes = [8, 16], strides = [1, 1]} : vector<8x128xf32> to vector<8x16xf32>
    %139 = vector.extract_strided_slice %12 {offsets = [0, 112], sizes = [8, 16], strides = [1, 1]} : vector<8x128xf32> to vector<8x16xf32>
    %140 = vector.extract_strided_slice %14 {offsets = [0, 112], sizes = [8, 16], strides = [1, 1]} : vector<8x128xf32> to vector<8x16xf32>
    %cst_48 = arith.constant dense<0.000000e+00> : vector<8x8xf32>
    %141 = tpu.matmul %138, %139, %cst_48 {dimension_numbers = #tpu.dot_dimension_numbers<[1], [1], [0], [0], [0, 0, 1, 0], [], []>} : vector<8x16xf32>, vector<8x16xf32>, vector<8x8xf32> -> vector<8x8xf32>
    %142 = arith.addf %141, %25 : vector<8x8xf32>
    %cst_49 = arith.constant dense<0xFF800000> : vector<8xf32>
    %143 = vector.multi_reduction <maximumf>, %142, %cst_49 [1] : vector<8x8xf32> to vector<8xf32>
    %144 = vector.shape_cast %143 : vector<8xf32> to vector<8x1xf32>
    %145 = vector.broadcast %144 : vector<8x1xf32> to vector<8x8xf32>
    %146 = arith.subf %142, %145 : vector<8x8xf32>
    %147 = math.exp %146 : vector<8x8xf32>
    %cst_50 = arith.constant dense<0.000000e+00> : vector<8xf32>
    %148 = vector.multi_reduction <add>, %147, %cst_50 [1] : vector<8x8xf32> to vector<8xf32>
    %149 = vector.shape_cast %148 : vector<8xf32> to vector<8x1xf32>
    %150 = tpu.reciprocal %149 {approx = true} : vector<8x1xf32> -> vector<8x1xf32>
    %151 = vector.broadcast %150 : vector<8x1xf32> to vector<8x8xf32>
    %152 = arith.mulf %147, %151 : vector<8x8xf32>
    %cst_51 = arith.constant dense<0.000000e+00> : vector<8x16xf32>
    %153 = tpu.matmul %152, %140, %cst_51 {dimension_numbers = #tpu.dot_dimension_numbers<[1], [0], [0], [1], [0, 0, 1, 1], [], []>} : vector<8x8xf32>, vector<8x16xf32>, vector<8x16xf32> -> vector<8x16xf32>
    %154 = tpu.concatenate %41, %57, %73, %89, %105, %121, %137, %153 in 1 : vector<8x16xf32>, vector<8x16xf32>, vector<8x16xf32>, vector<8x16xf32>, vector<8x16xf32>, vector<8x16xf32>, vector<8x16xf32>, vector<8x16xf32> -> vector<8x128xf32>
    %155 = arith.truncf %154 : vector<8x128xf32> to vector<8x128xbf16>
    %c0_52 = arith.constant 0 : index
    %c0_53 = arith.constant 0 : index
    %156 = vector.load %arg9[%c0_52, %c0_53] : memref<128x128xbf16, #tpu.memory_space<vmem>>, vector<128x128xbf16>
    %cst_54 = arith.constant dense<0.000000e+00> : vector<8x128xf32>
    %157 = tpu.matmul %155, %156, %cst_54 {dimension_numbers = #tpu.dot_dimension_numbers<[1], [0], [0], [1], [0, 0, 1, 1], [], []>} : vector<8x128xbf16>, vector<128x128xbf16>, vector<8x128xf32> -> vector<8x128xf32>
    %c0_55 = arith.constant 0 : index
    %c0_56 = arith.constant 0 : index
    %158 = vector.load %arg10[%c0_55, %c0_56] : memref<1x128xf32, #tpu.memory_space<vmem>>, vector<1x128xf32>
    %159 = vector.broadcast %158 : vector<1x128xf32> to vector<8x128xf32>
    %160 = arith.addf %157, %159 : vector<8x128xf32>
    %c0_57 = arith.constant 0 : index
    %c0_58 = arith.constant 0 : index
    %c0_59 = arith.constant 0 : index
    %161 = vector.load %arg4[%c0_57, %c0_58, %c0_59] : memref<1x8x128xf32, #tpu.memory_space<vmem>>, vector<1x8x128xf32>
    %162 = vector.shape_cast %161 : vector<1x8x128xf32> to vector<8x128xf32>
    %163 = arith.addf %160, %162 : vector<8x128xf32>
    %cst_60 = arith.constant dense<0.000000e+00> : vector<8xf32>
    %164 = vector.multi_reduction <add>, %163, %cst_60 [1] : vector<8x128xf32> to vector<8xf32>
    %165 = vector.shape_cast %164 : vector<8xf32> to vector<8x1xf32>
    %cst_61 = arith.constant 1.280000e+02 : f32
    %166 = vector.broadcast %cst_61 : f32 to vector<8x1xf32>
    %167 = arith.divf %165, %166 : vector<8x1xf32>
    %168 = vector.broadcast %167 : vector<8x1xf32> to vector<8x128xf32>
    %169 = arith.subf %163, %168 : vector<8x128xf32>
    %170 = arith.mulf %169, %169 : vector<8x128xf32>
    %cst_62 = arith.constant dense<0.000000e+00> : vector<8xf32>
    %171 = vector.multi_reduction <add>, %170, %cst_62 [1] : vector<8x128xf32> to vector<8xf32>
    %172 = vector.shape_cast %171 : vector<8xf32> to vector<8x1xf32>
    %cst_63 = arith.constant 1.280000e+02 : f32
    %173 = vector.broadcast %cst_63 : f32 to vector<8x1xf32>
    %174 = arith.divf %172, %173 : vector<8x1xf32>
    %175 = vector.broadcast %167 : vector<8x1xf32> to vector<8x128xf32>
    %176 = arith.subf %163, %175 : vector<8x128xf32>
    %cst_64 = arith.constant 9.99999974E-6 : f32
    %177 = vector.broadcast %cst_64 : f32 to vector<8x1xf32>
    %178 = arith.addf %174, %177 : vector<8x1xf32>
    %179 = math.rsqrt %178 : vector<8x1xf32>
    %180 = vector.broadcast %179 : vector<8x1xf32> to vector<8x128xf32>
    %181 = arith.mulf %176, %180 : vector<8x128xf32>
    %c0_65 = arith.constant 0 : index
    %c0_66 = arith.constant 0 : index
    %182 = vector.load %arg11[%c0_65, %c0_66] : memref<1x128xf32, #tpu.memory_space<vmem>>, vector<1x128xf32>
    %183 = vector.broadcast %182 : vector<1x128xf32> to vector<8x128xf32>
    %184 = arith.mulf %181, %183 : vector<8x128xf32>
    %c0_67 = arith.constant 0 : index
    %c0_68 = arith.constant 0 : index
    %185 = vector.load %arg12[%c0_67, %c0_68] : memref<1x128xf32, #tpu.memory_space<vmem>>, vector<1x128xf32>
    %186 = vector.broadcast %185 : vector<1x128xf32> to vector<8x128xf32>
    %187 = arith.addf %184, %186 : vector<8x128xf32>
    %c0_69 = arith.constant 0 : index
    %c0_70 = arith.constant 0 : index
    %c0_71 = arith.constant 0 : index
    %188 = vector.load %arg13[%c0_69, %c0_70, %c0_71] : memref<1x8x128xf32, #tpu.memory_space<vmem>>, vector<1x8x128xf32>
    %189 = vector.shape_cast %188 : vector<1x8x128xf32> to vector<8x128xf32>
    %190 = vector.shape_cast %187 : vector<8x128xf32> to vector<1x8x128xf32>
    tpu.vector_store %arg13[%c0_69, %c0_70, %c0_71], %190 {strides = array<i32>} : memref<1x8x128xf32, #tpu.memory_space<vmem>>, vector<1x8x128xf32>,
    return
  }
  func.func @transform_0(%arg0: i32) -> (i32, i32, i32) {
    %c0_i32 = arith.constant 0 : i32
    %c0_i32_0 = arith.constant 0 : i32
    %c0_i32_1 = arith.constant 0 : i32
    return %arg0, %c0_i32, %c0_i32_0 : i32, i32, i32
  }
  func.func @transform_1(%arg0: i32) -> (i32, i32, i32) {
    %c0_i32 = arith.constant 0 : i32
    %c0_i32_0 = arith.constant 0 : i32
    %c0_i32_1 = arith.constant 0 : i32
    return %arg0, %c0_i32, %c0_i32_0 : i32, i32, i32
  }
  func.func @transform_2(%arg0: i32) -> (i32, i32, i32) {
    %c0_i32 = arith.constant 0 : i32
    %c0_i32_0 = arith.constant 0 : i32
    %c0_i32_1 = arith.constant 0 : i32
    return %arg0, %c0_i32, %c0_i32_0 : i32, i32, i32
  }
  func.func @transform_3(%arg0: i32) -> (i32, i32, i32) {
    %c0_i32 = arith.constant 0 : i32
    %c0_i32_0 = arith.constant 0 : i32
    %c0_i32_1 = arith.constant 0 : i32
    return %arg0, %c0_i32, %c0_i32_0 : i32, i32, i32
  }
  func.func @transform_4(%arg0: i32) -> (i32, i32, i32) {
    %c0_i32 = arith.constant 0 : i32
    %c0_i32_0 = arith.constant 0 : i32
    %c0_i32_1 = arith.constant 0 : i32
    return %arg0, %c0_i32, %c0_i32_0 : i32, i32, i32
  }
  func.func @transform_5(%arg0: i32) -> (i32, i32) {
    %c0_i32 = arith.constant 0 : i32
    %c0_i32_0 = arith.constant 0 : i32
    %c0_i32_1 = arith.constant 0 : i32
    return %c0_i32, %c0_i32_0 : i32, i32
  }
  func.func @transform_6(%arg0: i32) -> (i32, i32) {
    %c0_i32 = arith.constant 0 : i32
    %c0_i32_0 = arith.constant 0 : i32
    %c0_i32_1 = arith.constant 0 : i32
    return %c0_i32, %c0_i32_0 : i32, i32
  }
  func.func @transform_7(%arg0: i32) -> (i32, i32) {
    %c0_i32 = arith.constant 0 : i32
    %c0_i32_0 = arith.constant 0 : i32
    %c0_i32_1 = arith.constant 0 : i32
    return %c0_i32, %c0_i32_0 : i32, i32
  }
  func.func @transform_8(%arg0: i32) -> (i32, i32) {
    %c0_i32 = arith.constant 0 : i32
    %c0_i32_0 = arith.constant 0 : i32
    %c0_i32_1 = arith.constant 0 : i32
    return %c0_i32, %c0_i32_0 : i32, i32
  }
  func.func @transform_9(%arg0: i32) -> (i32, i32) {
    %c0_i32 = arith.constant 0 : i32
    %c0_i32_0 = arith.constant 0 : i32
    %c0_i32_1 = arith.constant 0 : i32
    return %c0_i32, %c0_i32_0 : i32, i32
  }
  func.func @transform_10(%arg0: i32) -> (i32, i32) {
    %c0_i32 = arith.constant 0 : i32
    %c0_i32_0 = arith.constant 0 : i32
    %c0_i32_1 = arith.constant 0 : i32
    return %c0_i32, %c0_i32_0 : i32, i32
  }
  func.func @transform_11(%arg0: i32) -> (i32, i32) {
    %c0_i32 = arith.constant 0 : i32
    %c0_i32_0 = arith.constant 0 : i32
    %c0_i32_1 = arith.constant 0 : i32
    return %c0_i32, %c0_i32_0 : i32, i32
  }
  func.func @transform_12(%arg0: i32) -> (i32, i32, i32) {
    %c0_i32 = arith.constant 0 : i32
    %c0_i32_0 = arith.constant 0 : i32
    %c0_i32_1 = arith.constant 0 : i32
    return %arg0, %c0_i32, %c0_i32_0 : i32, i32, i32
  }
}

module attributes {stable_mosaic.version = 11 : i64} {
  func.func @_linear_kernel(%arg0: i32, %arg1: memref<16x128xf32, #tpu.memory_space<vmem>>, %arg2: memref<128x128xbf16, #tpu.memory_space<vmem>>, %arg3: memref<1x128xf32, #tpu.memory_space<vmem>>, %arg4: memref<16x128xf32, #tpu.memory_space<vmem>>) attributes {dimension_semantics = [#tpu.dimension_semantics<parallel>], iteration_bounds = array<i64: 1>, scalar_prefetch = 0 : i64, scratch_operands = 0 : i64, tpu.core_type = #tpu.core_type<tc>, window_params = [{transform_indices = @transform_0, window_bounds = array<i64: 16, 128>}, {pipeline_mode = #tpu.pipeline_mode<synchronous>, transform_indices = @transform_1, window_bounds = array<i64: 128, 128>}, {pipeline_mode = #tpu.pipeline_mode<synchronous>, transform_indices = @transform_2, window_bounds = array<i64: 1, 128>}, {transform_indices = @transform_3, window_bounds = array<i64: 16, 128>}]} {
    %c0 = arith.constant 0 : index
    %c0_0 = arith.constant 0 : index
    %0 = vector.load %arg1[%c0, %c0_0] : memref<16x128xf32, #tpu.memory_space<vmem>>, vector<16x128xf32>
    %1 = arith.truncf %0 : vector<16x128xf32> to vector<16x128xbf16>
    %c0_1 = arith.constant 0 : index
    %c0_2 = arith.constant 0 : index
    %2 = vector.load %arg2[%c0_1, %c0_2] : memref<128x128xbf16, #tpu.memory_space<vmem>>, vector<128x128xbf16>
    %cst = arith.constant dense<0.000000e+00> : vector<16x128xf32>
    %3 = tpu.matmul %1, %2, %cst {dimension_numbers = #tpu.dot_dimension_numbers<[1], [0], [0], [1], [0, 0, 1, 1], [], []>} : vector<16x128xbf16>, vector<128x128xbf16>, vector<16x128xf32> -> vector<16x128xf32>
    %c0_3 = arith.constant 0 : index
    %c0_4 = arith.constant 0 : index
    %4 = vector.load %arg3[%c0_3, %c0_4] : memref<1x128xf32, #tpu.memory_space<vmem>>, vector<1x128xf32>
    %5 = vector.broadcast %4 : vector<1x128xf32> to vector<16x128xf32>
    %6 = arith.addf %3, %5 : vector<16x128xf32>
    %c0_5 = arith.constant 0 : index
    %c0_6 = arith.constant 0 : index
    %7 = vector.load %arg4[%c0_5, %c0_6] : memref<16x128xf32, #tpu.memory_space<vmem>>, vector<16x128xf32>
    tpu.vector_store %arg4[%c0_5, %c0_6], %6 {strides = array<i32>} : memref<16x128xf32, #tpu.memory_space<vmem>>, vector<16x128xf32>,
    return
  }
  func.func @transform_0(%arg0: i32) -> (i32, i32) {
    %c0_i32 = arith.constant 0 : i32
    %c0_i32_0 = arith.constant 0 : i32
    return %arg0, %c0_i32 : i32, i32
  }
  func.func @transform_1(%arg0: i32) -> (i32, i32) {
    %c0_i32 = arith.constant 0 : i32
    %c0_i32_0 = arith.constant 0 : i32
    %c0_i32_1 = arith.constant 0 : i32
    return %c0_i32, %c0_i32_0 : i32, i32
  }
  func.func @transform_2(%arg0: i32) -> (i32, i32) {
    %c0_i32 = arith.constant 0 : i32
    %c0_i32_0 = arith.constant 0 : i32
    %c0_i32_1 = arith.constant 0 : i32
    return %c0_i32, %c0_i32_0 : i32, i32
  }
  func.func @transform_3(%arg0: i32) -> (i32, i32) {
    %c0_i32 = arith.constant 0 : i32
    %c0_i32_0 = arith.constant 0 : i32
    return %arg0, %c0_i32 : i32, i32
  }
}

</mosaic_0001>

<llo_original>
// kernel: transformer_forward.12
$region0: #{transformer_forward.12}
  #allocation0 [shape = 'u32[]', space=smem, size = 0x4, offset = 0x4, fixed_abs, tag = 'smem constant byte address 0x4 - core index']
  #allocation1 [shape = 'u32[144,128]{1,0:T(1,128)}', space=vmem, size = 0x12000, scoped, tag = 'internal scratch']
  %s0 = inlined_call_operand.vmem [shape: f32[16,128], index: 0, kind: input, shape index: {}]
  %s1 = inlined_call_operand.vmem [shape: bf16[128,512], index: 1, kind: input, shape index: {}]
  %s2 = inlined_call_operand.vmem [shape: f32[1,512], index: 2, kind: input, shape index: {}]
  %s3 = inlined_call_operand.vmem [shape: bf16[512,128], index: 3, kind: input, shape index: {}]
  %s4 = inlined_call_operand.vmem [shape: f32[1,128], index: 4, kind: input, shape index: {}]
  %s5 = inlined_call_operand.vmem [shape: f32[1,128], index: 5, kind: input, shape index: {}]
  %s6 = inlined_call_operand.vmem [shape: f32[1,128], index: 6, kind: input, shape index: {}]
  %s7 = inlined_call_operand.vmem [shape: f32[16,128], index: 7, kind: output, shape index: {}]
  %s8 = sld [smem:[#allocation0]]
  $region38: #{transformer_forward.12} parent=0
    _
  %s10 = ssub.s32 1, %s8
  %s11 = scalar_select 0, %s10, %s8
  // Predicated region
  $region2: #{transformer_forward.12} parent=0 // pred_check
    _
  $region3: #{transformer_forward.12} parent=0 // pred_check_branch
    %13 = sbr.rel (0) target = $region5
  $region4: #{transformer_forward.12} parent=0 // pred_region
    _
  $region5: #{transformer_forward.12} parent=0 // pred_fallthru
    _
  // Predicated region
  $region6: #{transformer_forward.12} parent=0 // pred_check
    _
  $region7: #{transformer_forward.12} parent=0 // pred_check_branch
    %15 = sbr.rel (0) target = $region9
  $region8: #{transformer_forward.12} parent=0 // pred_region
    _
  $region9: #{transformer_forward.12} parent=0 // pred_fallthru
    _
  // Predicated region
  $region10: #{transformer_forward.12} parent=0 // pred_check
    _
  $region11: #{transformer_forward.12} parent=0 // pred_check_branch
    %17 = sbr.rel (0) target = $region13
  $region12: #{transformer_forward.12} parent=0 // pred_region
    _
  $region13: #{transformer_forward.12} parent=0 // pred_fallthru
    _
  // Predicated region
  $region14: #{transformer_forward.12} parent=0 // pred_check
    _
  $region15: #{transformer_forward.12} parent=0 // pred_check_branch
    %19 = sbr.rel (0) target = $region17
  $region16: #{transformer_forward.12} parent=0 // pred_region
    _
  $region17: #{transformer_forward.12} parent=0 // pred_fallthru
    _
  // Predicated region
  $region18: #{transformer_forward.12} parent=0 // pred_check
    _
  $region19: #{transformer_forward.12} parent=0 // pred_check_branch
    %21 = sbr.rel (0) target = $region21
  $region20: #{transformer_forward.12} parent=0 // pred_region
    _
  $region21: #{transformer_forward.12} parent=0 // pred_fallthru
    _
  // Predicated region
  $region22: #{transformer_forward.12} parent=0 // pred_check
    _
  $region23: #{transformer_forward.12} parent=0 // pred_check_branch
    %23 = sbr.rel (0) target = $region25
  $region24: #{transformer_forward.12} parent=0 // pred_region
    _
  $region25: #{transformer_forward.12} parent=0 // pred_fallthru
    _
  // Predicated region
  $region26: #{transformer_forward.12} parent=0 // pred_check
    _
  $region27: #{transformer_forward.12} parent=0 // pred_check_branch
    %25 = sbr.rel (0) target = $region29
  $region28: #{transformer_forward.12} parent=0 // pred_region
    _
  $region29: #{transformer_forward.12} parent=0 // pred_fallthru
    _
  %v27 = vld [vmem:[%s0] sm:$0xff]
  %v28 = vld [vmem:[%s0 + $0x8] sm:$0xff]
  %v29 = vpack.c.bf16 %v28, %v27
  %v30 = vld [vmem:[%s1] sm:$0xff]
  %v31 = vld [vmem:[%s1 + $0x8] sm:$0xff]
  %v32 = vld [vmem:[%s1 + $0x10] sm:$0xff]
  %v33 = vld [vmem:[%s1 + $0x18] sm:$0xff]
  %v34 = vld [vmem:[%s1 + $0x20] sm:$0xff]
  %v35 = vld [vmem:[%s1 + $0x28] sm:$0xff]
  %v36 = vld [vmem:[%s1 + $0x30] sm:$0xff]
  %v37 = vld [vmem:[%s1 + $0x38] sm:$0xff]
  %v38 = vld [vmem:[%s1 + $0x40] sm:$0xff]
  %v39 = vld [vmem:[%s1 + $0x48] sm:$0xff]
  %v40 = vld [vmem:[%s1 + $0x50] sm:$0xff]
  %v41 = vld [vmem:[%s1 + $0x58] sm:$0xff]
  %v42 = vld [vmem:[%s1 + $0x60] sm:$0xff]
  %v43 = vld [vmem:[%s1 + $0x68] sm:$0xff]
  %v44 = vld [vmem:[%s1 + $0x70] sm:$0xff]
  %v45 = vld [vmem:[%s1 + $0x78] sm:$0xff]
  %v46 = vld [vmem:[%s1 + $0x80] sm:$0xff]
  %v47 = vld [vmem:[%s1 + $0x88] sm:$0xff]
  %v48 = vld [vmem:[%s1 + $0x90] sm:$0xff]
  %v49 = vld [vmem:[%s1 + $0x98] sm:$0xff]
  %v50 = vld [vmem:[%s1 + $0xa0] sm:$0xff]
  %v51 = vld [vmem:[%s1 + $0xa8] sm:$0xff]
  %v52 = vld [vmem:[%s1 + $0xb0] sm:$0xff]
  %v53 = vld [vmem:[%s1 + $0xb8] sm:$0xff]
  %v54 = vld [vmem:[%s1 + $0xc0] sm:$0xff]
  %v55 = vld [vmem:[%s1 + $0xc8] sm:$0xff]
  %v56 = vld [vmem:[%s1 + $0xd0] sm:$0xff]
  %v57 = vld [vmem:[%s1 + $0xd8] sm:$0xff]
  %v58 = vld [vmem:[%s1 + $0xe0] sm:$0xff]
  %v59 = vld [vmem:[%s1 + $0xe8] sm:$0xff]
  %v60 = vld [vmem:[%s1 + $0xf0] sm:$0xff]
  %v61 = vld [vmem:[%s1 + $0xf8] sm:$0xff]
  %v62 = vld [vmem:[%s2] sm:$0xf]
  %v64 = vlaneseq
  %v65 = vshrl.u32 %v64, 7
  %v66 = vsub.s32 0, %v65
  %v67 = vrot.slane %v62, %v66
  %v68 = vlaneseq
  %v69 = vshrl.u32 %v68, 7
  %v70 = vsub.s32 1, %v69
  %v71 = vrot.slane %v62, %v70
  %v72 = vlaneseq
  %v73 = vshrl.u32 %v72, 7
  %v74 = vsub.s32 2, %v73
  %v75 = vrot.slane %v62, %v74
  %v76 = vlaneseq
  %v77 = vshrl.u32 %v76, 7
  %v78 = vsub.s32 3, %v77
  %v79 = vrot.slane %v62, %v78
  %v116 = vunpack.c.l.b16 %v30
  %v117 = vunpack.c.h.b16 %v30
  %v118 = vunpack.c.l.b16 %v31
  %v119 = vunpack.c.h.b16 %v31
  %v120 = vunpack.c.l.b16 %v32
  %v121 = vunpack.c.h.b16 %v32
  %v122 = vunpack.c.l.b16 %v33
  %v123 = vunpack.c.h.b16 %v33
  %v124 = vunpack.c.l.b16 %v34
  %v125 = vunpack.c.h.b16 %v34
  %v126 = vunpack.c.l.b16 %v35
  %v127 = vunpack.c.h.b16 %v35
  %v128 = vunpack.c.l.b16 %v36
  %v129 = vunpack.c.h.b16 %v36
  %v130 = vunpack.c.l.b16 %v37
  %v131 = vunpack.c.h.b16 %v37
  %v132 = vunpack.c.l.b16 %v38
  %v133 = vunpack.c.h.b16 %v38
  %v134 = vunpack.c.l.b16 %v39
  %v135 = vunpack.c.h.b16 %v39
  %v136 = vunpack.c.l.b16 %v40
  %v137 = vunpack.c.h.b16 %v40
  %v138 = vunpack.c.l.b16 %v41
  %v139 = vunpack.c.h.b16 %v41
  %v140 = vunpack.c.l.b16 %v42
  %v141 = vunpack.c.h.b16 %v42
  %v142 = vunpack.c.l.b16 %v43
  %v143 = vunpack.c.h.b16 %v43
  %v144 = vunpack.c.l.b16 %v44
  %v145 = vunpack.c.h.b16 %v44
  %v146 = vunpack.c.l.b16 %v45
  %v147 = vunpack.c.h.b16 %v45
  %v148 = vunpack.c.l.b16 %v46
  %v149 = vunpack.c.h.b16 %v46
  %v150 = vunpack.c.l.b16 %v47
  %v151 = vunpack.c.h.b16 %v47
  %v152 = vunpack.c.l.b16 %v48
  %v153 = vunpack.c.h.b16 %v48
  %v154 = vunpack.c.l.b16 %v49
  %v155 = vunpack.c.h.b16 %v49
  %v156 = vunpack.c.l.b16 %v50
  %v157 = vunpack.c.h.b16 %v50
  %v158 = vunpack.c.l.b16 %v51
  %v159 = vunpack.c.h.b16 %v51
  %v160 = vunpack.c.l.b16 %v52
  %v161 = vunpack.c.h.b16 %v52
  %v162 = vunpack.c.l.b16 %v53
  %v163 = vunpack.c.h.b16 %v53
  %v164 = vunpack.c.l.b16 %v54
  %v165 = vunpack.c.h.b16 %v54
  %v166 = vunpack.c.l.b16 %v55
  %v167 = vunpack.c.h.b16 %v55
  %v168 = vunpack.c.l.b16 %v56
  %v169 = vunpack.c.h.b16 %v56
  %v170 = vunpack.c.l.b16 %v57
  %v171 = vunpack.c.h.b16 %v57
  %v172 = vunpack.c.l.b16 %v58
  %v173 = vunpack.c.h.b16 %v58
  %v174 = vunpack.c.l.b16 %v59
  %v175 = vunpack.c.h.b16 %v59
  %v176 = vunpack.c.l.b16 %v60
  %v177 = vunpack.c.h.b16 %v60
  %v178 = vunpack.c.l.b16 %v61
  %v179 = vunpack.c.h.b16 %v61
  %v180 = vpack.c.b16 %v120, %v116
  %v181 = vpack.c.b16 %v121, %v117
  %v182 = vpack.c.b16 %v122, %v118
  %v183 = vpack.c.b16 %v123, %v119
  %v184 = vpack.c.b16 %v128, %v124
  %v185 = vpack.c.b16 %v129, %v125
  %v186 = vpack.c.b16 %v130, %v126
  %v187 = vpack.c.b16 %v131, %v127
  %v188 = vpack.c.b16 %v136, %v132
  %v189 = vpack.c.b16 %v137, %v133
  %v190 = vpack.c.b16 %v138, %v134
  %v191 = vpack.c.b16 %v139, %v135
  %v192 = vpack.c.b16 %v144, %v140
  %v193 = vpack.c.b16 %v145, %v141
  %v194 = vpack.c.b16 %v146, %v142
  %v195 = vpack.c.b16 %v147, %v143
  %v196 = vpack.c.b16 %v152, %v148
  %v197 = vpack.c.b16 %v153, %v149
  %v198 = vpack.c.b16 %v154, %v150
  %v199 = vpack.c.b16 %v155, %v151
  %v200 = vpack.c.b16 %v160, %v156
  %v201 = vpack.c.b16 %v161, %v157
  %v202 = vpack.c.b16 %v162, %v158
  %v203 = vpack.c.b16 %v163, %v159
  %v204 = vpack.c.b16 %v168, %v164
  %v205 = vpack.c.b16 %v169, %v165
  %v206 = vpack.c.b16 %v170, %v166
  %v207 = vpack.c.b16 %v171, %v167
  %v208 = vpack.c.b16 %v176, %v172
  %v209 = vpack.c.b16 %v177, %v173
  %v210 = vpack.c.b16 %v178, %v174
  %v211 = vpack.c.b16 %v179, %v175
  %244 = vmatprep.subr.bf16.mxu0 %v181
  %245 = vmatpush1.bf16.msra.mxu0 %v180
  %246 = vmatprep.subr.bf16.mxu0 %v185
  %247 = vmatpush1.bf16.msra.mxu0 %v184
  %248 = vmatprep.subr.bf16.mxu0 %v189
  %249 = vmatpush1.bf16.msra.mxu0 %v188
  %250 = vmatprep.subr.bf16.mxu0 %v193
  %251 = vmatpush1.bf16.msra.mxu0 %v192
  %252 = vmatprep.subr.bf16.mxu0 %v197
  %253 = vmatpush1.bf16.msra.mxu0 %v196
  %254 = vmatprep.subr.bf16.mxu0 %v201
  %255 = vmatpush1.bf16.msra.mxu0 %v200
  %256 = vmatprep.subr.bf16.mxu0 %v205
  %257 = vmatpush1.bf16.msra.mxu0 %v204
  %258 = vmatprep.subr.bf16.mxu0 %v209
  %259 = vmatpush1.bf16.msra.mxu0 %v208
  %260 = vmatprep.subr.bf16.mxu0 0
  %261 = vmatpush1.bf16.msra.mxu0 0
  %262 = vmatprep.subr.bf16.mxu0 0
  %263 = vmatpush1.bf16.msra.mxu0 0
  %264 = vmatprep.subr.bf16.mxu0 0
  %265 = vmatpush1.bf16.msra.mxu0 0
  %266 = vmatprep.subr.bf16.mxu0 0
  %267 = vmatpush1.bf16.msra.mxu0 0
  %268 = vmatprep.subr.bf16.mxu0 0
  %269 = vmatpush1.bf16.msra.mxu0 0
  %270 = vmatprep.subr.bf16.mxu0 0
  %271 = vmatpush1.bf16.msra.mxu0 0
  %272 = vmatprep.subr.bf16.mxu0 0
  %273 = vmatpush1.bf16.msra.mxu0 0
  %274 = vmatprep.subr.bf16.mxu0 0
  %275 = vmatpush1.bf16.msra.mxu0 0
  %276 = vmatprep.mubr.bf16.mxu0 0
  %277 = vmatmul.mubr.bf16.gmra.mrb[0].mxu0 %v29
  %v278 = vpop.f32.mrb[0].mxu0
  %v279 = vadd.f32 %v67, %v278
  %v280 = vpop.f32.mrb[0].mxu0
  %v281 = vadd.f32 %v71, %v280
  %v282 = vpop.f32.mrb[0].mxu0
  %v283 = vadd.f32 %v67, %v282
  %v284 = vpop.f32.mrb[0].mxu0
  %v285 = vadd.f32 %v71, %v284
  %286 = vdwg.mxu0
  %287 = vmatprep.subr.bf16.mxu0 %v183
  %288 = vmatpush1.bf16.msra.mxu0 %v182
  %289 = vmatprep.subr.bf16.mxu0 %v187
  %290 = vmatpush1.bf16.msra.mxu0 %v186
  %291 = vmatprep.subr.bf16.mxu0 %v191
  %292 = vmatpush1.bf16.msra.mxu0 %v190
  %293 = vmatprep.subr.bf16.mxu0 %v195
  %294 = vmatpush1.bf16.msra.mxu0 %v194
  %295 = vmatprep.subr.bf16.mxu0 %v199
  %296 = vmatpush1.bf16.msra.mxu0 %v198
  %297 = vmatprep.subr.bf16.mxu0 %v203
  %298 = vmatpush1.bf16.msra.mxu0 %v202
  %299 = vmatprep.subr.bf16.mxu0 %v207
  %300 = vmatpush1.bf16.msra.mxu0 %v206
  %301 = vmatprep.subr.bf16.mxu0 %v211
  %302 = vmatpush1.bf16.msra.mxu0 %v210
  %303 = vmatprep.subr.bf16.mxu0 0
  %304 = vmatpush1.bf16.msra.mxu0 0
  %305 = vmatprep.subr.bf16.mxu0 0
  %306 = vmatpush1.bf16.msra.mxu0 0
  %307 = vmatprep.subr.bf16.mxu0 0
  %308 = vmatpush1.bf16.msra.mxu0 0
  %309 = vmatprep.subr.bf16.mxu0 0
  %310 = vmatpush1.bf16.msra.mxu0 0
  %311 = vmatprep.subr.bf16.mxu0 0
  %312 = vmatpush1.bf16.msra.mxu0 0
  %313 = vmatprep.subr.bf16.mxu0 0
  %314 = vmatpush1.bf16.msra.mxu0 0
  %315 = vmatprep.subr.bf16.mxu0 0
  %316 = vmatpush1.bf16.msra.mxu0 0
  %317 = vmatprep.subr.bf16.mxu0 0
  %318 = vmatpush1.bf16.msra.mxu0 0
  %319 = vmatprep.mubr.bf16.mxu0 0
  %320 = vmatmul.mubr.bf16.gmra.mrb[0].mxu0 %v29
  %v321 = vpop.f32.mrb[0].mxu0
  %v322 = vadd.f32 %v75, %v321
  %v323 = vpop.f32.mrb[0].mxu0
  %v324 = vadd.f32 %v79, %v323
  %v325 = vpop.f32.mrb[0].mxu0
  %v326 = vadd.f32 %v75, %v325
  %v327 = vpop.f32.mrb[0].mxu0
  %v328 = vadd.f32 %v79, %v327
  %329 = vdwg.mxu0
  %v330 = vmax.f32 %v279, 0.0
  %v331 = vmax.f32 %v281, 0.0
  %v332 = vmax.f32 %v322, 0.0
  %v333 = vmax.f32 %v324, 0.0
  %v334 = vmax.f32 %v283, 0.0
  %v335 = vmax.f32 %v285, 0.0
  %v336 = vmax.f32 %v326, 0.0
  %v337 = vmax.f32 %v328, 0.0
  %v338 = vpack.c.bf16 %v334, %v330
  %v339 = vpack.c.bf16 %v335, %v331
  %v340 = vpack.c.bf16 %v336, %v332
  %v341 = vpack.c.bf16 %v337, %v333
  %v342 = vld [vmem:[%s3] sm:$0xf]
  %v343 = vld [vmem:[%s3 + $0x4] sm:$0xf]
  %v344 = vld [vmem:[%s3 + $0x8] sm:$0xf]
  %v345 = vld [vmem:[%s3 + $0xc] sm:$0xf]
  %v346 = vld [vmem:[%s3 + $0x10] sm:$0xf]
  %v347 = vld [vmem:[%s3 + $0x14] sm:$0xf]
  %v348 = vld [vmem:[%s3 + $0x18] sm:$0xf]
  %v349 = vld [vmem:[%s3 + $0x1c] sm:$0xf]
  %v350 = vld [vmem:[%s3 + $0x20] sm:$0xf]
  %v351 = vld [vmem:[%s3 + $0x24] sm:$0xf]
  %v352 = vld [vmem:[%s3 + $0x28] sm:$0xf]
  %v353 = vld [vmem:[%s3 + $0x2c] sm:$0xf]
  %v354 = vld [vmem:[%s3 + $0x30] sm:$0xf]
  %v355 = vld [vmem:[%s3 + $0x34] sm:$0xf]
  %v356 = vld [vmem:[%s3 + $0x38] sm:$0xf]
  %v357 = vld [vmem:[%s3 + $0x3c] sm:$0xf]
  %v358 = vld [vmem:[%s3 + $0x40] sm:$0xf]
  %v359 = vld [vmem:[%s3 + $0x44] sm:$0xf]
  %v360 = vld [vmem:[%s3 + $0x48] sm:$0xf]
  %v361 = vld [vmem:[%s3 + $0x4c] sm:$0xf]
  %v362 = vld [vmem:[%s3 + $0x50] sm:$0xf]
  %v363 = vld [vmem:[%s3 + $0x54] sm:$0xf]
  %v364 = vld [vmem:[%s3 + $0x58] sm:$0xf]
  %v365 = vld [vmem:[%s3 + $0x5c] sm:$0xf]
  %v366 = vld [vmem:[%s3 + $0x60] sm:$0xf]
  %v367 = vld [vmem:[%s3 + $0x64] sm:$0xf]
  %v368 = vld [vmem:[%s3 + $0x68] sm:$0xf]
  %v369 = vld [vmem:[%s3 + $0x6c] sm:$0xf]
  %v370 = vld [vmem:[%s3 + $0x70] sm:$0xf]
  %v371 = vld [vmem:[%s3 + $0x74] sm:$0xf]
  %v372 = vld [vmem:[%s3 + $0x78] sm:$0xf]
  %v373 = vld [vmem:[%s3 + $0x7c] sm:$0xf]
  %v374 = vld [vmem:[%s3 + $0x80] sm:$0xf]
  %v375 = vld [vmem:[%s3 + $0x84] sm:$0xf]
  %v376 = vld [vmem:[%s3 + $0x88] sm:$0xf]
  %v377 = vld [vmem:[%s3 + $0x8c] sm:$0xf]
  %v378 = vld [vmem:[%s3 + $0x90] sm:$0xf]
  %v379 = vld [vmem:[%s3 + $0x94] sm:$0xf]
  %v380 = vld [vmem:[%s3 + $0x98] sm:$0xf]
  %v381 = vld [vmem:[%s3 + $0x9c] sm:$0xf]
  %v382 = vld [vmem:[%s3 + $0xa0] sm:$0xf]
  %v383 = vld [vmem:[%s3 + $0xa4] sm:$0xf]
  %v384 = vld [vmem:[%s3 + $0xa8] sm:$0xf]
  %v385 = vld [vmem:[%s3 + $0xac] sm:$0xf]
  %v386 = vld [vmem:[%s3 + $0xb0] sm:$0xf]
  %v387 = vld [vmem:[%s3 + $0xb4] sm:$0xf]
  %v388 = vld [vmem:[%s3 + $0xb8] sm:$0xf]
  %v389 = vld [vmem:[%s3 + $0xbc] sm:$0xf]
  %v390 = vld [vmem:[%s3 + $0xc0] sm:$0xf]
  %v391 = vld [vmem:[%s3 + $0xc4] sm:$0xf]
  %v392 = vld [vmem:[%s3 + $0xc8] sm:$0xf]
  %v393 = vld [vmem:[%s3 + $0xcc] sm:$0xf]
  %v394 = vld [vmem:[%s3 + $0xd0] sm:$0xf]
  %v395 = vld [vmem:[%s3 + $0xd4] sm:$0xf]
  %v396 = vld [vmem:[%s3 + $0xd8] sm:$0xf]
  %v397 = vld [vmem:[%s3 + $0xdc] sm:$0xf]
  %v398 = vld [vmem:[%s3 + $0xe0] sm:$0xf]
  %v399 = vld [vmem:[%s3 + $0xe4] sm:$0xf]
  %v400 = vld [vmem:[%s3 + $0xe8] sm:$0xf]
  %v401 = vld [vmem:[%s3 + $0xec] sm:$0xf]
  %v402 = vld [vmem:[%s3 + $0xf0] sm:$0xf]
  %v403 = vld [vmem:[%s3 + $0xf4] sm:$0xf]
  %v404 = vld [vmem:[%s3 + $0xf8] sm:$0xf]
  %v405 = vld [vmem:[%s3 + $0xfc] sm:$0xf]
  %v406 = vld [vmem:[%s4] sm:$0x1]
  %v408 = vlaneseq
  %v409 = vshrl.u32 %v408, 7
  %v410 = vsub.s32 0, %v409
  %v411 = vrot.slane %v406, %v410
  %v477 = vunpack.c.l.b16 %v342
  %v478 = vunpack.c.l.b16 %v343
  %v479 = vunpack.c.l.b16 %v344
  %v480 = vunpack.c.l.b16 %v345
  %v481 = vunpack.c.l.b16 %v346
  %v482 = vunpack.c.l.b16 %v347
  %v483 = vunpack.c.l.b16 %v348
  %v484 = vunpack.c.l.b16 %v349
  %v485 = vunpack.c.l.b16 %v350
  %v486 = vunpack.c.l.b16 %v351
  %v487 = vunpack.c.l.b16 %v352
  %v488 = vunpack.c.l.b16 %v353
  %v489 = vunpack.c.l.b16 %v354
  %v490 = vunpack.c.l.b16 %v355
  %v491 = vunpack.c.l.b16 %v356
  %v492 = vunpack.c.l.b16 %v357
  %v493 = vunpack.c.l.b16 %v358
  %v494 = vunpack.c.l.b16 %v359
  %v495 = vunpack.c.l.b16 %v360
  %v496 = vunpack.c.l.b16 %v361
  %v497 = vunpack.c.l.b16 %v362
  %v498 = vunpack.c.l.b16 %v363
  %v499 = vunpack.c.l.b16 %v364
  %v500 = vunpack.c.l.b16 %v365
  %v501 = vunpack.c.l.b16 %v366
  %v502 = vunpack.c.l.b16 %v367
  %v503 = vunpack.c.l.b16 %v368
  %v504 = vunpack.c.l.b16 %v369
  %v505 = vunpack.c.l.b16 %v370
  %v506 = vunpack.c.l.b16 %v371
  %v507 = vunpack.c.l.b16 %v372
  %v508 = vunpack.c.l.b16 %v373
  %v509 = vunpack.c.l.b16 %v374
  %v510 = vunpack.c.l.b16 %v375
  %v511 = vunpack.c.l.b16 %v376
  %v512 = vunpack.c.l.b16 %v377
  %v513 = vunpack.c.l.b16 %v378
  %v514 = vunpack.c.l.b16 %v379
  %v515 = vunpack.c.l.b16 %v380
  %v516 = vunpack.c.l.b16 %v381
  %v517 = vunpack.c.l.b16 %v382
  %v518 = vunpack.c.l.b16 %v383
  %v519 = vunpack.c.l.b16 %v384
  %v520 = vunpack.c.l.b16 %v385
  %v521 = vunpack.c.l.b16 %v386
  %v522 = vunpack.c.l.b16 %v387
  %v523 = vunpack.c.l.b16 %v388
  %v524 = vunpack.c.l.b16 %v389
  %v525 = vunpack.c.l.b16 %v390
  %v526 = vunpack.c.l.b16 %v391
  %v527 = vunpack.c.l.b16 %v392
  %v528 = vunpack.c.l.b16 %v393
  %v529 = vunpack.c.l.b16 %v394
  %v530 = vunpack.c.l.b16 %v395
  %v531 = vunpack.c.l.b16 %v396
  %v532 = vunpack.c.l.b16 %v397
  %v533 = vunpack.c.l.b16 %v398
  %v534 = vunpack.c.l.b16 %v399
  %v535 = vunpack.c.l.b16 %v400
  %v536 = vunpack.c.l.b16 %v401
  %v537 = vunpack.c.l.b16 %v402
  %v538 = vunpack.c.l.b16 %v403
  %v539 = vunpack.c.l.b16 %v404
  %v540 = vunpack.c.l.b16 %v405
  %v541 = vpack.c.b16 %v478, %v477
  %v542 = vpack.c.b16 %v480, %v479
  %v543 = vpack.c.b16 %v482, %v481
  %v544 = vpack.c.b16 %v484, %v483
  %v545 = vpack.c.b16 %v486, %v485
  %v546 = vpack.c.b16 %v488, %v487
  %v547 = vpack.c.b16 %v490, %v489
  %v548 = vpack.c.b16 %v492, %v491
  %v549 = vpack.c.b16 %v494, %v493
  %v550 = vpack.c.b16 %v496, %v495
  %v551 = vpack.c.b16 %v498, %v497
  %v552 = vpack.c.b16 %v500, %v499
  %v553 = vpack.c.b16 %v502, %v501
  %v554 = vpack.c.b16 %v504, %v503
  %v555 = vpack.c.b16 %v506, %v505
  %v556 = vpack.c.b16 %v508, %v507
  %v557 = vpack.c.b16 %v510, %v509
  %v558 = vpack.c.b16 %v512, %v511
  %v559 = vpack.c.b16 %v514, %v513
  %v560 = vpack.c.b16 %v516, %v515
  %v561 = vpack.c.b16 %v518, %v517
  %v562 = vpack.c.b16 %v520, %v519
  %v563 = vpack.c.b16 %v522, %v521
  %v564 = vpack.c.b16 %v524, %v523
  %v565 = vpack.c.b16 %v526, %v525
  %v566 = vpack.c.b16 %v528, %v527
  %v567 = vpack.c.b16 %v530, %v529
  %v568 = vpack.c.b16 %v532, %v531
  %v569 = vpack.c.b16 %v534, %v533
  %v570 = vpack.c.b16 %v536, %v535
  %v571 = vpack.c.b16 %v538, %v537
  %v572 = vpack.c.b16 %v540, %v539
  %605 = vmatprep.subr.bf16.mxu0 0
  %606 = vmatpush1.bf16.msra.mxu0 %v541
  %607 = vmatprep.subr.bf16.mxu0 0
  %608 = vmatpush1.bf16.msra.mxu0 %v542
  %609 = vmatprep.subr.bf16.mxu0 0
  %610 = vmatpush1.bf16.msra.mxu0 %v543
  %611 = vmatprep.subr.bf16.mxu0 0
  %612 = vmatpush1.bf16.msra.mxu0 %v544
  %613 = vmatprep.subr.bf16.mxu0 0
  %614 = vmatpush1.bf16.msra.mxu0 %v545
  %615 = vmatprep.subr.bf16.mxu0 0
  %616 = vmatpush1.bf16.msra.mxu0 %v546
  %617 = vmatprep.subr.bf16.mxu0 0
  %618 = vmatpush1.bf16.msra.mxu0 %v547
  %619 = vmatprep.subr.bf16.mxu0 0
  %620 = vmatpush1.bf16.msra.mxu0 %v548
  %621 = vmatprep.subr.bf16.mxu0 0
  %622 = vmatpush1.bf16.msra.mxu0 %v549
  %623 = vmatprep.subr.bf16.mxu0 0
  %624 = vmatpush1.bf16.msra.mxu0 %v550
  %625 = vmatprep.subr.bf16.mxu0 0
  %626 = vmatpush1.bf16.msra.mxu0 %v551
  %627 = vmatprep.subr.bf16.mxu0 0
  %628 = vmatpush1.bf16.msra.mxu0 %v552
  %629 = vmatprep.subr.bf16.mxu0 0
  %630 = vmatpush1.bf16.msra.mxu0 %v553
  %631 = vmatprep.subr.bf16.mxu0 0
  %632 = vmatpush1.bf16.msra.mxu0 %v554
  %633 = vmatprep.subr.bf16.mxu0 0
  %634 = vmatpush1.bf16.msra.mxu0 %v555
  %635 = vmatprep.subr.bf16.mxu0 0
  %636 = vmatpush1.bf16.msra.mxu0 %v556
  %637 = vmatprep.mubr.bf16.mxu0 %v339
  %638 = vmatmul.mubr.bf16.gmra.mrb[0].mxu0 %v338
  %v639 = vpop.f32.mrb[0].mxu0
  %v640 = vadd.f32 %v411, %v639
  %v641 = vpop.f32.mrb[0].mxu0
  %v642 = vpop.f32.mrb[0].mxu0
  %v643 = vadd.f32 %v411, %v642
  %v644 = vpop.f32.mrb[0].mxu0
  %645 = vdwg.mxu0
  %646 = vmatprep.subr.bf16.mxu0 0
  %647 = vmatpush1.bf16.msra.mxu0 %v557
  %648 = vmatprep.subr.bf16.mxu0 0
  %649 = vmatpush1.bf16.msra.mxu0 %v558
  %650 = vmatprep.subr.bf16.mxu0 0
  %651 = vmatpush1.bf16.msra.mxu0 %v559
  %652 = vmatprep.subr.bf16.mxu0 0
  %653 = vmatpush1.bf16.msra.mxu0 %v560
  %654 = vmatprep.subr.bf16.mxu0 0
  %655 = vmatpush1.bf16.msra.mxu0 %v561
  %656 = vmatprep.subr.bf16.mxu0 0
  %657 = vmatpush1.bf16.msra.mxu0 %v562
  %658 = vmatprep.subr.bf16.mxu0 0
  %659 = vmatpush1.bf16.msra.mxu0 %v563
  %660 = vmatprep.subr.bf16.mxu0 0
  %661 = vmatpush1.bf16.msra.mxu0 %v564
  %662 = vmatprep.subr.bf16.mxu0 0
  %663 = vmatpush1.bf16.msra.mxu0 %v565
  %664 = vmatprep.subr.bf16.mxu0 0
  %665 = vmatpush1.bf16.msra.mxu0 %v566
  %666 = vmatprep.subr.bf16.mxu0 0
  %667 = vmatpush1.bf16.msra.mxu0 %v567
  %668 = vmatprep.subr.bf16.mxu0 0
  %669 = vmatpush1.bf16.msra.mxu0 %v568
  %670 = vmatprep.subr.bf16.mxu0 0
  %671 = vmatpush1.bf16.msra.mxu0 %v569
  %672 = vmatprep.subr.bf16.mxu0 0
  %673 = vmatpush1.bf16.msra.mxu0 %v570
  %674 = vmatprep.subr.bf16.mxu0 0
  %675 = vmatpush1.bf16.msra.mxu0 %v571
  %676 = vmatprep.subr.bf16.mxu0 0
  %677 = vmatpush1.bf16.msra.mxu0 %v572
  %678 = vmatprep.mubr.bf16.mxu0 %v341
  %679 = vmatmul.mubr.bf16.gmra.mrb[0].mxu0 %v340
  %v680 = vpop.f32.mrb[0].mxu0
  %v681 = vadd.f32 %v640, %v680
  %v682 = vpop.f32.mrb[0].mxu0
  %v683 = vpop.f32.mrb[0].mxu0
  %v684 = vadd.f32 %v643, %v683
  %v685 = vpop.f32.mrb[0].mxu0
  %686 = vdwg.mxu0
  %v687 = vadd.f32 %v681, %v27
  %v688 = vadd.f32 %v684, %v28
  %689 = vadd.xlane.f32.xlu0 %v687
  %v690 = vpop.xlane.xlu0 %689
  %691 = vadd.xlane.f32.xlu0 %v688
  %v692 = vpop.xlane.xlu0 %691
  %v693 = vrcp.pop 128.0
  %v694 = vmul.f32 %v690, %v693
  %v695 = vmul.f32 %v692, %v693
  %v696 = vsub.f32 %v687, %v694
  %v697 = vsub.f32 %v688, %v695
  %v698 = vmul.f32 %v696, %v696
  %v699 = vmul.f32 %v697, %v697
  %700 = vadd.xlane.f32.xlu0 %v698
  %v701 = vpop.xlane.xlu0 %700
  %702 = vadd.xlane.f32.xlu0 %v699
  %v703 = vpop.xlane.xlu0 %702
  %v704 = vmul.f32 %v701, %v693
  %v705 = vmul.f32 %v703, %v693
  %v706 = vadd.f32 %v704, 1e-05
  %v707 = vadd.f32 %v705, 1e-05
  %v708 = vrsqrt.pop %v706
  %v709 = vrsqrt.pop %v707
  %v710 = vmul.f32 %v696, %v708
  %v711 = vmul.f32 %v697, %v709
  %v712 = vld [vmem:[%s5] sm:$0x1]
  %v714 = vlaneseq
  %v715 = vshrl.u32 %v714, 7
  %v716 = vsub.s32 0, %v715
  %v717 = vrot.slane %v712, %v716
  %v719 = vmul.f32 %v710, %v717
  %v720 = vmul.f32 %v711, %v717
  %v721 = vld [vmem:[%s6] sm:$0x1]
  %v723 = vlaneseq
  %v724 = vshrl.u32 %v723, 7
  %v725 = vsub.s32 0, %v724
  %v726 = vrot.slane %v721, %v725
  %v728 = vadd.f32 %v719, %v726
  %v729 = vadd.f32 %v720, %v726
  %730 = vst [vmem:[%s7] sm:$0xff] %v728
  %731 = vst [vmem:[%s7 + $0x8] sm:$0xff] %v729
  // Predicated region
  $region30: #{transformer_forward.12} parent=0 // pred_check
    _
  $region31: #{transformer_forward.12} parent=0 // pred_check_branch
    %733 = sbr.rel (0) target = $region33
  $region32: #{transformer_forward.12} parent=0 // pred_region
    _
  $region33: #{transformer_forward.12} parent=0 // pred_fallthru
    _
  // Predicated region
  $region34: #{transformer_forward.12} parent=0 // pred_check
    _
  $region35: #{transformer_forward.12} parent=0 // pred_check_branch
    %735 = sbr.rel (0) target = $region37
  $region36: #{transformer_forward.12} parent=0 // pred_region
    _
  $region37: #{transformer_forward.12} parent=0 // pred_fallthru
    _

// kernel: transformer_forward.21
$region0: #{transformer_forward.21}
  #allocation0 [shape = 'u32[]', space=smem, size = 0x4, offset = 0x4, fixed_abs, tag = 'smem constant byte address 0x4 - core index']
  #allocation1 [shape = 'u32[144,128]{1,0:T(1,128)}', space=vmem, size = 0x12000, scoped, tag = 'internal scratch']
  %s0 = inlined_call_operand.vmem [shape: f32[16,128], index: 0, kind: input, shape index: {}]
  %s1 = inlined_call_operand.vmem [shape: bf16[128,128], index: 1, kind: input, shape index: {}]
  %s2 = inlined_call_operand.vmem [shape: f32[1,128], index: 2, kind: input, shape index: {}]
  %s3 = inlined_call_operand.vmem [shape: f32[16,128], index: 3, kind: output, shape index: {}]
  %s4 = sld [smem:[#allocation0]]
  $region22: #{transformer_forward.21} parent=0
    _
  %s6 = ssub.s32 1, %s4
  %s7 = scalar_select 0, %s6, %s4
  // Predicated region
  $region2: #{transformer_forward.21} parent=0 // pred_check
    _
  $region3: #{transformer_forward.21} parent=0 // pred_check_branch
    %9 = sbr.rel (0) target = $region5
  $region4: #{transformer_forward.21} parent=0 // pred_region
    _
  $region5: #{transformer_forward.21} parent=0 // pred_fallthru
    _
  // Predicated region
  $region6: #{transformer_forward.21} parent=0 // pred_check
    _
  $region7: #{transformer_forward.21} parent=0 // pred_check_branch
    %11 = sbr.rel (0) target = $region9
  $region8: #{transformer_forward.21} parent=0 // pred_region
    _
  $region9: #{transformer_forward.21} parent=0 // pred_fallthru
    _
  // Predicated region
  $region10: #{transformer_forward.21} parent=0 // pred_check
    _
  $region11: #{transformer_forward.21} parent=0 // pred_check_branch
    %13 = sbr.rel (0) target = $region13
  $region12: #{transformer_forward.21} parent=0 // pred_region
    _
  $region13: #{transformer_forward.21} parent=0 // pred_fallthru
    _
  %v15 = vld [vmem:[%s0] sm:$0xff]
  %v16 = vld [vmem:[%s0 + $0x8] sm:$0xff]
  %v17 = vpack.c.bf16 %v16, %v15
  %v18 = vld [vmem:[%s1] sm:$0xf]
  %v19 = vld [vmem:[%s1 + $0x4] sm:$0xf]
  %v20 = vld [vmem:[%s1 + $0x8] sm:$0xf]
  %v21 = vld [vmem:[%s1 + $0xc] sm:$0xf]
  %v22 = vld [vmem:[%s1 + $0x10] sm:$0xf]
  %v23 = vld [vmem:[%s1 + $0x14] sm:$0xf]
  %v24 = vld [vmem:[%s1 + $0x18] sm:$0xf]
  %v25 = vld [vmem:[%s1 + $0x1c] sm:$0xf]
  %v26 = vld [vmem:[%s1 + $0x20] sm:$0xf]
  %v27 = vld [vmem:[%s1 + $0x24] sm:$0xf]
  %v28 = vld [vmem:[%s1 + $0x28] sm:$0xf]
  %v29 = vld [vmem:[%s1 + $0x2c] sm:$0xf]
  %v30 = vld [vmem:[%s1 + $0x30] sm:$0xf]
  %v31 = vld [vmem:[%s1 + $0x34] sm:$0xf]
  %v32 = vld [vmem:[%s1 + $0x38] sm:$0xf]
  %v33 = vld [vmem:[%s1 + $0x3c] sm:$0xf]
  %v34 = vld [vmem:[%s2] sm:$0x1]
  %v36 = vlaneseq
  %v37 = vshrl.u32 %v36, 7
  %v38 = vsub.s32 0, %v37
  %v39 = vrot.slane %v34, %v38
  %v57 = vunpack.c.l.b16 %v18
  %v58 = vunpack.c.l.b16 %v19
  %v59 = vunpack.c.l.b16 %v20
  %v60 = vunpack.c.l.b16 %v21
  %v61 = vunpack.c.l.b16 %v22
  %v62 = vunpack.c.l.b16 %v23
  %v63 = vunpack.c.l.b16 %v24
  %v64 = vunpack.c.l.b16 %v25
  %v65 = vunpack.c.l.b16 %v26
  %v66 = vunpack.c.l.b16 %v27
  %v67 = vunpack.c.l.b16 %v28
  %v68 = vunpack.c.l.b16 %v29
  %v69 = vunpack.c.l.b16 %v30
  %v70 = vunpack.c.l.b16 %v31
  %v71 = vunpack.c.l.b16 %v32
  %v72 = vunpack.c.l.b16 %v33
  %v73 = vpack.c.b16 %v58, %v57
  %v74 = vpack.c.b16 %v60, %v59
  %v75 = vpack.c.b16 %v62, %v61
  %v76 = vpack.c.b16 %v64, %v63
  %v77 = vpack.c.b16 %v66, %v65
  %v78 = vpack.c.b16 %v68, %v67
  %v79 = vpack.c.b16 %v70, %v69
  %v80 = vpack.c.b16 %v72, %v71
  %89 = vmatprep.subr.bf16.mxu0 0
  %90 = vmatpush1.bf16.msra.mxu0 %v73
  %91 = vmatprep.subr.bf16.mxu0 0
  %92 = vmatpush1.bf16.msra.mxu0 %v74
  %93 = vmatprep.subr.bf16.mxu0 0
  %94 = vmatpush1.bf16.msra.mxu0 %v75
  %95 = vmatprep.subr.bf16.mxu0 0
  %96 = vmatpush1.bf16.msra.mxu0 %v76
  %97 = vmatprep.subr.bf16.mxu0 0
  %98 = vmatpush1.bf16.msra.mxu0 %v77
  %99 = vmatprep.subr.bf16.mxu0 0
  %100 = vmatpush1.bf16.msra.mxu0 %v78
  %101 = vmatprep.subr.bf16.mxu0 0
  %102 = vmatpush1.bf16.msra.mxu0 %v79
  %103 = vmatprep.subr.bf16.mxu0 0
  %104 = vmatpush1.bf16.msra.mxu0 %v80
  %105 = vmatprep.subr.bf16.mxu0 0
  %106 = vmatpush1.bf16.msra.mxu0 0
  %107 = vmatprep.subr.bf16.mxu0 0
  %108 = vmatpush1.bf16.msra.mxu0 0
  %109 = vmatprep.subr.bf16.mxu0 0
  %110 = vmatpush1.bf16.msra.mxu0 0
  %111 = vmatprep.subr.bf16.mxu0 0
  %112 = vmatpush1.bf16.msra.mxu0 0
  %113 = vmatprep.subr.bf16.mxu0 0
  %114 = vmatpush1.bf16.msra.mxu0 0
  %115 = vmatprep.subr.bf16.mxu0 0
  %116 = vmatpush1.bf16.msra.mxu0 0
  %117 = vmatprep.subr.bf16.mxu0 0
  %118 = vmatpush1.bf16.msra.mxu0 0
  %119 = vmatprep.subr.bf16.mxu0 0
  %120 = vmatpush1.bf16.msra.mxu0 0
  %121 = vmatprep.mubr.bf16.mxu0 0
  %122 = vmatmul.mubr.bf16.gmra.mrb[0].mxu0 %v17
  %v123 = vpop.f32.mrb[0].mxu0
  %v124 = vadd.f32 %v39, %v123
  %v125 = vpop.f32.mrb[0].mxu0
  %v126 = vpop.f32.mrb[0].mxu0
  %v127 = vadd.f32 %v39, %v126
  %v128 = vpop.f32.mrb[0].mxu0
  %129 = vdwg.mxu0
  %130 = vst [vmem:[%s3] sm:$0xff] %v124
  %131 = vst [vmem:[%s3 + $0x8] sm:$0xff] %v127
  // Predicated region
  $region14: #{transformer_forward.21} parent=0 // pred_check
    _
  $region15: #{transformer_forward.21} parent=0 // pred_check_branch
    %133 = sbr.rel (0) target = $region17
  $region16: #{transformer_forward.21} parent=0 // pred_region
    _
  $region17: #{transformer_forward.21} parent=0 // pred_fallthru
    _
  // Predicated region
  $region18: #{transformer_forward.21} parent=0 // pred_check
    _
  $region19: #{transformer_forward.21} parent=0 // pred_check_branch
    %135 = sbr.rel (0) target = $region21
  $region20: #{transformer_forward.21} parent=0 // pred_region
    _
  $region21: #{transformer_forward.21} parent=0 // pred_fallthru
    _

// kernel: transformer_forward.11
$region0: #{transformer_forward.11}
  #allocation0 [shape = 'u32[]', space=smem, size = 0x4, offset = 0x4, fixed_abs, tag = 'smem constant byte address 0x4 - core index']
  #allocation1 [shape = 'u32[144,128]{1,0:T(1,128)}', space=vmem, size = 0x12000, scoped, tag = 'internal scratch']
  %s0 = inlined_call_operand.vmem [shape: f32[2,8,128], index: 0, kind: input, shape index: {}, may-alias: {0,1,2,3}]
  %s1 = inlined_call_operand.vmem [shape: f32[2,8,128], index: 1, kind: input, shape index: {}, may-alias: {0,1,2,3}]
  %s2 = inlined_call_operand.vmem [shape: f32[2,8,128], index: 2, kind: input, shape index: {}, may-alias: {0,1,2,3}]
  %s3 = inlined_call_operand.vmem [shape: f32[2,8,128], index: 3, kind: input, shape index: {}, may-alias: {0,1,2,3}]
  %s4 = inlined_call_operand.vmem [shape: f32[2,1,8], index: 4, kind: input, shape index: {}]
  %s5 = inlined_call_operand.vmem [shape: bf16[128,128], index: 5, kind: input, shape index: {}]
  %s6 = inlined_call_operand.vmem [shape: bf16[128,128], index: 6, kind: input, shape index: {}]
  %s7 = inlined_call_operand.vmem [shape: bf16[128,128], index: 7, kind: input, shape index: {}]
  %s8 = inlined_call_operand.vmem [shape: bf16[128,128], index: 8, kind: input, shape index: {}]
  %s9 = inlined_call_operand.vmem [shape: f32[1,128], index: 9, kind: input, shape index: {}]
  %s10 = inlined_call_operand.vmem [shape: f32[1,128], index: 10, kind: input, shape index: {}]
  %s11 = inlined_call_operand.vmem [shape: f32[1,128], index: 11, kind: input, shape index: {}]
  %s12 = inlined_call_operand.vmem [shape: f32[2,8,128], index: 12, kind: output, shape index: {}]
  %s13 = sld [smem:[#allocation0]]
  $region81: #{transformer_forward.11} parent=0
    _
  %s15 = ssub.s32 1, %s13
  %s16 = scalar_select 0, %s15, %s13
  loop: start=0, step=1, limit=4
  $region2: #{transformer_forward.11} parent=0 // loop_pre_header
    _
  $region3: #{transformer_forward.11} parent=0 // loop_header
    %s18 = sphi 0, %s22
    %p19 = scmp.ge.s32.totalorder %s18, 4
    %s28 = sphi 0, %s30
    %s31 = sphi 0, %s28
    %s32 = sphi 0, %s31
    %s48 = sphi 0, %s32
    %s54 = sphi 0, %s56
    %s57 = sphi 0, %s54
    %s58 = sphi 0, %s57
    %s74 = sphi 0, %s58
    %s80 = sphi 0, %s82
    %s83 = sphi 0, %s80
    %s84 = sphi 0, %s83
    %s100 = sphi 0, %s84
    %s106 = sphi 0, %s108
    %s109 = sphi 0, %s106
    %s110 = sphi 0, %s109
    %s126 = sphi 0, %s110
    %s132 = sphi 0, %s134
    %s135 = sphi 0, %s132
    %s136 = sphi 0, %s135
    %s152 = sphi 0, %s136
    %s156 = sphi 0, %s156
    %s158 = sphi 0, %s156
    %s159 = sphi 0, %s158
    %s173 = sphi 0, %s159
    %s177 = sphi 0, %s177
    %s179 = sphi 0, %s177
    %s180 = sphi 0, %s179
    %s194 = sphi 0, %s180
    %s198 = sphi 0, %s198
    %s200 = sphi 0, %s198
    %s201 = sphi 0, %s200
    %s215 = sphi 0, %s201
    %s219 = sphi 0, %s219
    %s221 = sphi 0, %s219
    %s222 = sphi 0, %s221
    %s236 = sphi 0, %s222
    %s240 = sphi 0, %s240
    %s242 = sphi 0, %s240
    %s243 = sphi 0, %s242
    %s257 = sphi 0, %s243
    %s261 = sphi 0, %s261
    %s263 = sphi 0, %s261
    %s264 = sphi 0, %s263
    %s278 = sphi 0, %s264
    %s282 = sphi 0, %s282
    %s284 = sphi 0, %s282
    %s285 = sphi 0, %s284
    %s299 = sphi 0, %s285
    %s305 = sphi 0, %s307
    %s308 = sphi 0, %s305
    %s309 = sphi 0, %s308
    %s325 = sphi 0, %s309
  $region4: #{transformer_forward.11} parent=0 // loop_header_branch
    %21 = sbr.rel (%p19) target = $region8
  $region5: #{transformer_forward.11} parent=0 // loop_body
    %s23 = ssub.s32 %s18, 1
    %s24 = ssub.s32 %s18, 2
    %s25 = sadd.s32 %s18, 1
    %s26 = ssub.s32 %s18, %s25
    %p27 = scmp.eq.s32.totalorder %s26, 0
    %s29 = sadd.s32 %s28, 1
    %s30 = scalar_select %p27, %s28, %s29
    %p33 = pneg %p27
    %p34 = scmp.eq.s32.totalorder %s18, 1
    %p35 = por %p33, %p34
    %p36 = scmp.ne.s32.totalorder %s28, %s31
    %p37 = scmp.eq.s32.totalorder %s18, 0
    %p38 = por %p36, %p37
    %p39 = scmp.ne.s32.totalorder %s28, %s31
    %p40 = scmp.eq.s32.totalorder %s23, 1
    %p41 = por %p39, %p40
    %p42 = scmp.ne.s32.totalorder %s31, %s32
    %p43 = scmp.eq.s32.totalorder %s23, 0
    %p44 = por %p42, %p43
    %p45 = scmp.ne.s32.totalorder %s31, %s32
    %p46 = scmp.eq.s32.totalorder %s24, 1
    %p47 = por %p45, %p46
    %p49 = scmp.ne.s32.totalorder %s32, %s48
    %p50 = scmp.eq.s32.totalorder %s24, 0
    %p51 = por %p49, %p50
    %s52 = ssub.s32 %s18, %s25
    %p53 = scmp.eq.s32.totalorder %s52, 0
    %s55 = sadd.s32 %s54, 1
    %s56 = scalar_select %p53, %s54, %s55
    %p59 = pneg %p53
    %p60 = scmp.eq.s32.totalorder %s18, 1
    %p61 = por %p59, %p60
    %p62 = scmp.ne.s32.totalorder %s54, %s57
    %p63 = scmp.eq.s32.totalorder %s18, 0
    %p64 = por %p62, %p63
    %p65 = scmp.ne.s32.totalorder %s54, %s57
    %p66 = scmp.eq.s32.totalorder %s23, 1
    %p67 = por %p65, %p66
    %p68 = scmp.ne.s32.totalorder %s57, %s58
    %p69 = scmp.eq.s32.totalorder %s23, 0
    %p70 = por %p68, %p69
    %p71 = scmp.ne.s32.totalorder %s57, %s58
    %p72 = scmp.eq.s32.totalorder %s24, 1
    %p73 = por %p71, %p72
    %p75 = scmp.ne.s32.totalorder %s58, %s74
    %p76 = scmp.eq.s32.totalorder %s24, 0
    %p77 = por %p75, %p76
    %s78 = ssub.s32 %s18, %s25
    %p79 = scmp.eq.s32.totalorder %s78, 0
    %s81 = sadd.s32 %s80, 1
    %s82 = scalar_select %p79, %s80, %s81
    %p85 = pneg %p79
    %p86 = scmp.eq.s32.totalorder %s18, 1
    %p87 = por %p85, %p86
    %p88 = scmp.ne.s32.totalorder %s80, %s83
    %p89 = scmp.eq.s32.totalorder %s18, 0
    %p90 = por %p88, %p89
    %p91 = scmp.ne.s32.totalorder %s80, %s83
    %p92 = scmp.eq.s32.totalorder %s23, 1
    %p93 = por %p91, %p92
    %p94 = scmp.ne.s32.totalorder %s83, %s84
    %p95 = scmp.eq.s32.totalorder %s23, 0
    %p96 = por %p94, %p95
    %p97 = scmp.ne.s32.totalorder %s83, %s84
    %p98 = scmp.eq.s32.totalorder %s24, 1
    %p99 = por %p97, %p98
    %p101 = scmp.ne.s32.totalorder %s84, %s100
    %p102 = scmp.eq.s32.totalorder %s24, 0
    %p103 = por %p101, %p102
    %s104 = ssub.s32 %s18, %s25
    %p105 = scmp.eq.s32.totalorder %s104, 0
    %s107 = sadd.s32 %s106, 1
    %s108 = scalar_select %p105, %s106, %s107
    %p111 = pneg %p105
    %p112 = scmp.eq.s32.totalorder %s18, 1
    %p113 = por %p111, %p112
    %p114 = scmp.ne.s32.totalorder %s106, %s109
    %p115 = scmp.eq.s32.totalorder %s18, 0
    %p116 = por %p114, %p115
    %p117 = scmp.ne.s32.totalorder %s106, %s109
    %p118 = scmp.eq.s32.totalorder %s23, 1
    %p119 = por %p117, %p118
    %p120 = scmp.ne.s32.totalorder %s109, %s110
    %p121 = scmp.eq.s32.totalorder %s23, 0
    %p122 = por %p120, %p121
    %p123 = scmp.ne.s32.totalorder %s109, %s110
    %p124 = scmp.eq.s32.totalorder %s24, 1
    %p125 = por %p123, %p124
    %p127 = scmp.ne.s32.totalorder %s110, %s126
    %p128 = scmp.eq.s32.totalorder %s24, 0
    %p129 = por %p127, %p128
    %s130 = ssub.s32 %s18, %s25
    %p131 = scmp.eq.s32.totalorder %s130, 0
    %s133 = sadd.s32 %s132, 1
    %s134 = scalar_select %p131, %s132, %s133
    %p137 = pneg %p131
    %p138 = scmp.eq.s32.totalorder %s18, 1
    %p139 = por %p137, %p138
    %p140 = scmp.ne.s32.totalorder %s132, %s135
    %p141 = scmp.eq.s32.totalorder %s18, 0
    %p142 = por %p140, %p141
    %p143 = scmp.ne.s32.totalorder %s132, %s135
    %p144 = scmp.eq.s32.totalorder %s23, 1
    %p145 = por %p143, %p144
    %p146 = scmp.ne.s32.totalorder %s135, %s136
    %p147 = scmp.eq.s32.totalorder %s23, 0
    %p148 = por %p146, %p147
    %p149 = scmp.ne.s32.totalorder %s135, %s136
    %p150 = scmp.eq.s32.totalorder %s24, 1
    %p151 = por %p149, %p150
    %p153 = scmp.ne.s32.totalorder %s136, %s152
    %p154 = scmp.eq.s32.totalorder %s24, 0
    %p155 = por %p153, %p154
    %s157 = sadd.s32 %s156, 1
    %p160 = scmp.eq.s32.totalorder %s18, 1
    %p161 = scmp.ne.s32.totalorder %s156, %s158
    %p162 = scmp.eq.s32.totalorder %s18, 0
    %p163 = por %p161, %p162
    %p164 = scmp.ne.s32.totalorder %s156, %s158
    %p165 = scmp.eq.s32.totalorder %s23, 1
    %p166 = por %p164, %p165
    %p167 = scmp.ne.s32.totalorder %s158, %s159
    %p168 = scmp.eq.s32.totalorder %s23, 0
    %p169 = por %p167, %p168
    %p170 = scmp.ne.s32.totalorder %s158, %s159
    %p171 = scmp.eq.s32.totalorder %s24, 1
    %p172 = por %p170, %p171
    %p174 = scmp.ne.s32.totalorder %s159, %s173
    %p175 = scmp.eq.s32.totalorder %s24, 0
    %p176 = por %p174, %p175
    %s178 = sadd.s32 %s177, 1
    %p181 = scmp.eq.s32.totalorder %s18, 1
    %p182 = scmp.ne.s32.totalorder %s177, %s179
    %p183 = scmp.eq.s32.totalorder %s18, 0
    %p184 = por %p182, %p183
    %p185 = scmp.ne.s32.totalorder %s177, %s179
    %p186 = scmp.eq.s32.totalorder %s23, 1
    %p187 = por %p185, %p186
    %p188 = scmp.ne.s32.totalorder %s179, %s180
    %p189 = scmp.eq.s32.totalorder %s23, 0
    %p190 = por %p188, %p189
    %p191 = scmp.ne.s32.totalorder %s179, %s180
    %p192 = scmp.eq.s32.totalorder %s24, 1
    %p193 = por %p191, %p192
    %p195 = scmp.ne.s32.totalorder %s180, %s194
    %p196 = scmp.eq.s32.totalorder %s24, 0
    %p197 = por %p195, %p196
    %s199 = sadd.s32 %s198, 1
    %p202 = scmp.eq.s32.totalorder %s18, 1
    %p203 = scmp.ne.s32.totalorder %s198, %s200
    %p204 = scmp.eq.s32.totalorder %s18, 0
    %p205 = por %p203, %p204
    %p206 = scmp.ne.s32.totalorder %s198, %s200
    %p207 = scmp.eq.s32.totalorder %s23, 1
    %p208 = por %p206, %p207
    %p209 = scmp.ne.s32.totalorder %s200, %s201
    %p210 = scmp.eq.s32.totalorder %s23, 0
    %p211 = por %p209, %p210
    %p212 = scmp.ne.s32.totalorder %s200, %s201
    %p213 = scmp.eq.s32.totalorder %s24, 1
    %p214 = por %p212, %p213
    %p216 = scmp.ne.s32.totalorder %s201, %s215
    %p217 = scmp.eq.s32.totalorder %s24, 0
    %p218 = por %p216, %p217
    %s220 = sadd.s32 %s219, 1
    %p223 = scmp.eq.s32.totalorder %s18, 1
    %p224 = scmp.ne.s32.totalorder %s219, %s221
    %p225 = scmp.eq.s32.totalorder %s18, 0
    %p226 = por %p224, %p225
    %p227 = scmp.ne.s32.totalorder %s219, %s221
    %p228 = scmp.eq.s32.totalorder %s23, 1
    %p229 = por %p227, %p228
    %p230 = scmp.ne.s32.totalorder %s221, %s222
    %p231 = scmp.eq.s32.totalorder %s23, 0
    %p232 = por %p230, %p231
    %p233 = scmp.ne.s32.totalorder %s221, %s222
    %p234 = scmp.eq.s32.totalorder %s24, 1
    %p235 = por %p233, %p234
    %p237 = scmp.ne.s32.totalorder %s222, %s236
    %p238 = scmp.eq.s32.totalorder %s24, 0
    %p239 = por %p237, %p238
    %s241 = sadd.s32 %s240, 1
    %p244 = scmp.eq.s32.totalorder %s18, 1
    %p245 = scmp.ne.s32.totalorder %s240, %s242
    %p246 = scmp.eq.s32.totalorder %s18, 0
    %p247 = por %p245, %p246
    %p248 = scmp.ne.s32.totalorder %s240, %s242
    %p249 = scmp.eq.s32.totalorder %s23, 1
    %p250 = por %p248, %p249
    %p251 = scmp.ne.s32.totalorder %s242, %s243
    %p252 = scmp.eq.s32.totalorder %s23, 0
    %p253 = por %p251, %p252
    %p254 = scmp.ne.s32.totalorder %s242, %s243
    %p255 = scmp.eq.s32.totalorder %s24, 1
    %p256 = por %p254, %p255
    %p258 = scmp.ne.s32.totalorder %s243, %s257
    %p259 = scmp.eq.s32.totalorder %s24, 0
    %p260 = por %p258, %p259
    %s262 = sadd.s32 %s261, 1
    %p265 = scmp.eq.s32.totalorder %s18, 1
    %p266 = scmp.ne.s32.totalorder %s261, %s263
    %p267 = scmp.eq.s32.totalorder %s18, 0
    %p268 = por %p266, %p267
    %p269 = scmp.ne.s32.totalorder %s261, %s263
    %p270 = scmp.eq.s32.totalorder %s23, 1
    %p271 = por %p269, %p270
    %p272 = scmp.ne.s32.totalorder %s263, %s264
    %p273 = scmp.eq.s32.totalorder %s23, 0
    %p274 = por %p272, %p273
    %p275 = scmp.ne.s32.totalorder %s263, %s264
    %p276 = scmp.eq.s32.totalorder %s24, 1
    %p277 = por %p275, %p276
    %p279 = scmp.ne.s32.totalorder %s264, %s278
    %p280 = scmp.eq.s32.totalorder %s24, 0
    %p281 = por %p279, %p280
    %s283 = sadd.s32 %s282, 1
    %p286 = scmp.eq.s32.totalorder %s18, 1
    %p287 = scmp.ne.s32.totalorder %s282, %s284
    %p288 = scmp.eq.s32.totalorder %s18, 0
    %p289 = por %p287, %p288
    %p290 = scmp.ne.s32.totalorder %s282, %s284
    %p291 = scmp.eq.s32.totalorder %s23, 1
    %p292 = por %p290, %p291
    %p293 = scmp.ne.s32.totalorder %s284, %s285
    %p294 = scmp.eq.s32.totalorder %s23, 0
    %p295 = por %p293, %p294
    %p296 = scmp.ne.s32.totalorder %s284, %s285
    %p297 = scmp.eq.s32.totalorder %s24, 1
    %p298 = por %p296, %p297
    %p300 = scmp.ne.s32.totalorder %s285, %s299
    %p301 = scmp.eq.s32.totalorder %s24, 0
    %p302 = por %p300, %p301
    %s303 = ssub.s32 %s18, %s25
    %p304 = scmp.eq.s32.totalorder %s303, 0
    %s306 = sadd.s32 %s305, 1
    %s307 = scalar_select %p304, %s305, %s306
    %p310 = pneg %p304
    %p311 = scmp.eq.s32.totalorder %s18, 1
    %p312 = por %p310, %p311
    %p313 = scmp.ne.s32.totalorder %s305, %s308
    %p314 = scmp.eq.s32.totalorder %s18, 0
    %p315 = por %p313, %p314
    %p316 = scmp.ne.s32.totalorder %s305, %s308
    %p317 = scmp.eq.s32.totalorder %s23, 1
    %p318 = por %p316, %p317
    %p319 = scmp.ne.s32.totalorder %s308, %s309
    %p320 = scmp.eq.s32.totalorder %s23, 0
    %p321 = por %p319, %p320
    %p322 = scmp.ne.s32.totalorder %s308, %s309
    %p323 = scmp.eq.s32.totalorder %s24, 1
    %p324 = por %p322, %p323
    %p326 = scmp.ne.s32.totalorder %s309, %s325
    %p327 = scmp.eq.s32.totalorder %s24, 0
    %p328 = por %p326, %p327
    %p329 = scmp.le.s32.totalorder 1, %s18
    %p330 = scmp.lt.s32.totalorder %s18, 3
    %p331 = pnand %p329, %p330
    %p332 = pneg %p331
    // Predicated region
    $region9: #{transformer_forward.11} parent=5 // pred_check
      _
    $region10: #{transformer_forward.11} parent=5 // pred_check_branch
      %334 = sbr.rel (%p331) target = $region12
    $region11: #{transformer_forward.11} parent=5 // pred_region
      %s335 = ssub.s32 %s18, 1
      // Predicated region
      $region13: #{transformer_forward.11} parent=11 // pred_check
        %p336 = pneg %p169
      $region14: #{transformer_forward.11} parent=11 // pred_check_branch
        %338 = sbr.rel (%p336) target = $region16
      $region15: #{transformer_forward.11} parent=11 // pred_region
        _
      $region16: #{transformer_forward.11} parent=11 // pred_fallthru
        _
      // Predicated region
      $region17: #{transformer_forward.11} parent=11 // pred_check
        %p339 = pneg %p190
      $region18: #{transformer_forward.11} parent=11 // pred_check_branch
        %341 = sbr.rel (%p339) target = $region20
      $region19: #{transformer_forward.11} parent=11 // pred_region
        _
      $region20: #{transformer_forward.11} parent=11 // pred_fallthru
        _
      // Predicated region
      $region21: #{transformer_forward.11} parent=11 // pred_check
        %p342 = pneg %p211
      $region22: #{transformer_forward.11} parent=11 // pred_check_branch
        %344 = sbr.rel (%p342) target = $region24
      $region23: #{transformer_forward.11} parent=11 // pred_region
        _
      $region24: #{transformer_forward.11} parent=11 // pred_fallthru
        _
      // Predicated region
      $region25: #{transformer_forward.11} parent=11 // pred_check
        %p345 = pneg %p232
      $region26: #{transformer_forward.11} parent=11 // pred_check_branch
        %347 = sbr.rel (%p345) target = $region28
      $region27: #{transformer_forward.11} parent=11 // pred_region
        _
      $region28: #{transformer_forward.11} parent=11 // pred_fallthru
        _
      // Predicated region
      $region29: #{transformer_forward.11} parent=11 // pred_check
        %p348 = pneg %p253
      $region30: #{transformer_forward.11} parent=11 // pred_check_branch
        %350 = sbr.rel (%p348) target = $region32
      $region31: #{transformer_forward.11} parent=11 // pred_region
        _
      $region32: #{transformer_forward.11} parent=11 // pred_fallthru
        _
      // Predicated region
      $region33: #{transformer_forward.11} parent=11 // pred_check
        %p351 = pneg %p274
      $region34: #{transformer_forward.11} parent=11 // pred_check_branch
        %353 = sbr.rel (%p351) target = $region36
      $region35: #{transformer_forward.11} parent=11 // pred_region
        _
      $region36: #{transformer_forward.11} parent=11 // pred_fallthru
        _
      // Predicated region
      $region37: #{transformer_forward.11} parent=11 // pred_check
        %p354 = pneg %p295
      $region38: #{transformer_forward.11} parent=11 // pred_check_branch
        %356 = sbr.rel (%p354) target = $region40
      $region39: #{transformer_forward.11} parent=11 // pred_region
        _
      $region40: #{transformer_forward.11} parent=11 // pred_fallthru
        _
    $region12: #{transformer_forward.11} parent=5 // pred_fallthru
      _
    %p357 = scmp.lt.s32.totalorder %s18, 2
    // Predicated region
    $region41: #{transformer_forward.11} parent=5 // pred_check
      %p358 = pneg %p357
    $region42: #{transformer_forward.11} parent=5 // pred_check_branch
      %360 = sbr.rel (%p358) target = $region44
    $region43: #{transformer_forward.11} parent=5 // pred_region
      // Predicated region
      $region45: #{transformer_forward.11} parent=43 // pred_check
        %p361 = pneg %p38
      $region46: #{transformer_forward.11} parent=43 // pred_check_branch
        %363 = sbr.rel (%p361) target = $region48
      $region47: #{transformer_forward.11} parent=43 // pred_region
        %p364 = scmp.lt.s32.totalorder %s18, 1
        %s365 = scalar_select %p364, %s18, 1
        %s366 = smul.addr %s365, 8
        %s367 = scalar_lea.vmem %s0, %s366
      $region48: #{transformer_forward.11} parent=43 // pred_fallthru
        _
      // Predicated region
      $region49: #{transformer_forward.11} parent=43 // pred_check
        %p368 = pneg %p64
      $region50: #{transformer_forward.11} parent=43 // pred_check_branch
        %370 = sbr.rel (%p368) target = $region52
      $region51: #{transformer_forward.11} parent=43 // pred_region
        %p371 = scmp.lt.s32.totalorder %s18, 1
        %s372 = scalar_select %p371, %s18, 1
        %s373 = smul.addr %s372, 8
        %s374 = scalar_lea.vmem %s1, %s373
      $region52: #{transformer_forward.11} parent=43 // pred_fallthru
        _
      // Predicated region
      $region53: #{transformer_forward.11} parent=43 // pred_check
        %p375 = pneg %p90
      $region54: #{transformer_forward.11} parent=43 // pred_check_branch
        %377 = sbr.rel (%p375) target = $region56
      $region55: #{transformer_forward.11} parent=43 // pred_region
        %p378 = scmp.lt.s32.totalorder %s18, 1
        %s379 = scalar_select %p378, %s18, 1
        %s380 = smul.addr %s379, 8
        %s381 = scalar_lea.vmem %s2, %s380
      $region56: #{transformer_forward.11} parent=43 // pred_fallthru
        _
      // Predicated region
      $region57: #{transformer_forward.11} parent=43 // pred_check
        %p382 = pneg %p116
      $region58: #{transformer_forward.11} parent=43 // pred_check_branch
        %384 = sbr.rel (%p382) target = $region60
      $region59: #{transformer_forward.11} parent=43 // pred_region
        %p385 = scmp.lt.s32.totalorder %s18, 1
        %s386 = scalar_select %p385, %s18, 1
        %s387 = smul.addr %s386, 8
        %s388 = scalar_lea.vmem %s3, %s387
      $region60: #{transformer_forward.11} parent=43 // pred_fallthru
        _
      // Predicated region
      $region61: #{transformer_forward.11} parent=43 // pred_check
        %p389 = pneg %p142
      $region62: #{transformer_forward.11} parent=43 // pred_check_branch
        %391 = sbr.rel (%p389) target = $region64
      $region63: #{transformer_forward.11} parent=43 // pred_region
        %p392 = scmp.lt.s32.totalorder %s18, 1
        %s393 = scalar_select %p392, %s18, 1
        %s394 = scalar_lea.vmem %s4, %s393
      $region64: #{transformer_forward.11} parent=43 // pred_fallthru
        _
    $region44: #{transformer_forward.11} parent=5 // pred_fallthru
      _
    %p395 = scmp.le.s32.totalorder 1, %s18
    %p396 = scmp.lt.s32.totalorder %s18, 3
    %p397 = pnand %p395, %p396
    %p398 = pneg %p397
    // Predicated region
    $region65: #{transformer_forward.11} parent=5 // pred_check
      _
    $region66: #{transformer_forward.11} parent=5 // pred_check_branch
      %400 = sbr.rel (%p397) target = $region68
    $region67: #{transformer_forward.11} parent=5 // pred_region
      %s401 = ssub.s32 %s18, 1
      %p402 = scmp.lt.s32.totalorder %s23, 1
      %s403 = scalar_select %p402, %s23, 1
      %s404 = smul.addr %s403, 8
      %s405 = scalar_lea.vmem %s0, %s404
      %p406 = pneg %p44
      %p407 = pneg %p41
      %p408 = scmp.lt.s32.totalorder %s23, 1
      %s409 = scalar_select %p408, %s23, 1
      %s410 = smul.addr %s409, 8
      %s411 = scalar_lea.vmem %s1, %s410
      %p412 = pneg %p70
      %p413 = pneg %p67
      %p414 = scmp.lt.s32.totalorder %s23, 1
      %s415 = scalar_select %p414, %s23, 1
      %s416 = smul.addr %s415, 8
      %s417 = scalar_lea.vmem %s2, %s416
      %p418 = pneg %p96
      %p419 = pneg %p93
      %p420 = scmp.lt.s32.totalorder %s23, 1
      %s421 = scalar_select %p420, %s23, 1
      %s422 = smul.addr %s421, 8
      %s423 = scalar_lea.vmem %s3, %s422
      %p424 = pneg %p122
      %p425 = pneg %p119
      %p426 = scmp.lt.s32.totalorder %s23, 1
      %s427 = scalar_select %p426, %s23, 1
      %s428 = scalar_lea.vmem %s4, %s427
      %p429 = pneg %p148
      %p430 = pneg %p145
      %p431 = pneg %p169
      %p432 = pneg %p166
      %p433 = pneg %p190
      %p434 = pneg %p187
      %p435 = pneg %p211
      %p436 = pneg %p208
      %p437 = pneg %p232
      %p438 = pneg %p229
      %p439 = pneg %p253
      %p440 = pneg %p250
      %p441 = pneg %p274
      %p442 = pneg %p271
      %p443 = pneg %p295
      %p444 = pneg %p292
      %p445 = pneg %p321
      %p446 = pneg %p318
      %p447 = scmp.lt.s32.totalorder %s23, 1
      %s448 = scalar_select %p447, %s23, 1
      %s449 = smul.addr %s448, 8
      %s450 = scalar_lea.vmem %s12, %s449
      %p451 = scmp.lt.s32.totalorder %s23, 1
      %s452 = scalar_select %p451, %s23, 1
      %s453 = smul.addr %s452, 8
      %s454 = scalar_lea.vmem %s0, %s453
      %p455 = scmp.lt.s32.totalorder %s23, 1
      %s456 = scalar_select %p455, %s23, 1
      %s457 = smul.addr %s456, 8
      %s458 = scalar_lea.vmem %s1, %s457
      %p459 = scmp.lt.s32.totalorder %s23, 1
      %s460 = scalar_select %p459, %s23, 1
      %s461 = smul.addr %s460, 8
      %s462 = scalar_lea.vmem %s2, %s461
      %p463 = scmp.lt.s32.totalorder %s23, 1
      %s464 = scalar_select %p463, %s23, 1
      %s465 = smul.addr %s464, 8
      %s466 = scalar_lea.vmem %s3, %s465
      %p467 = scmp.lt.s32.totalorder %s23, 1
      %s468 = scalar_select %p467, %s23, 1
      %s469 = scalar_lea.vmem %s4, %s468
      %p470 = scmp.lt.s32.totalorder %s23, 1
      %s471 = scalar_select %p470, %s23, 1
      %s472 = smul.addr %s471, 8
      %s473 = scalar_lea.vmem %s12, %s472
      %v475 = vld [vmem:[%s462] sm:$0xff]
      %v476 = vpack.c.bf16 %v475, %v475
      %v477 = vld [vmem:[%s458] sm:$0xff]
      %v478 = vpack.c.bf16 %v477, %v477
      %v479 = vld [vmem:[%s454] sm:$0xff]
      %v480 = vpack.c.bf16 %v479, %v479
      %v481 = vld [vmem:[%s5] sm:$0xf]
      %v482 = vld [vmem:[%s5 + $0x4] sm:$0xf]
      %v483 = vld [vmem:[%s5 + $0x8] sm:$0xf]
      %v484 = vld [vmem:[%s5 + $0xc] sm:$0xf]
      %v485 = vld [vmem:[%s5 + $0x10] sm:$0xf]
      %v486 = vld [vmem:[%s5 + $0x14] sm:$0xf]
      %v487 = vld [vmem:[%s5 + $0x18] sm:$0xf]
      %v488 = vld [vmem:[%s5 + $0x1c] sm:$0xf]
      %v489 = vld [vmem:[%s5 + $0x20] sm:$0xf]
      %v490 = vld [vmem:[%s5 + $0x24] sm:$0xf]
      %v491 = vld [vmem:[%s5 + $0x28] sm:$0xf]
      %v492 = vld [vmem:[%s5 + $0x2c] sm:$0xf]
      %v493 = vld [vmem:[%s5 + $0x30] sm:$0xf]
      %v494 = vld [vmem:[%s5 + $0x34] sm:$0xf]
      %v495 = vld [vmem:[%s5 + $0x38] sm:$0xf]
      %v496 = vld [vmem:[%s5 + $0x3c] sm:$0xf]
      %v513 = vunpack.c.l.b16 %v481
      %v514 = vunpack.c.l.b16 %v482
      %v515 = vunpack.c.l.b16 %v483
      %v516 = vunpack.c.l.b16 %v484
      %v517 = vunpack.c.l.b16 %v485
      %v518 = vunpack.c.l.b16 %v486
      %v519 = vunpack.c.l.b16 %v487
      %v520 = vunpack.c.l.b16 %v488
      %v521 = vunpack.c.l.b16 %v489
      %v522 = vunpack.c.l.b16 %v490
      %v523 = vunpack.c.l.b16 %v491
      %v524 = vunpack.c.l.b16 %v492
      %v525 = vunpack.c.l.b16 %v493
      %v526 = vunpack.c.l.b16 %v494
      %v527 = vunpack.c.l.b16 %v495
      %v528 = vunpack.c.l.b16 %v496
      %v529 = vpack.c.b16 %v514, %v513
      %v530 = vpack.c.b16 %v516, %v515
      %v531 = vpack.c.b16 %v518, %v517
      %v532 = vpack.c.b16 %v520, %v519
      %v533 = vpack.c.b16 %v522, %v521
      %v534 = vpack.c.b16 %v524, %v523
      %v535 = vpack.c.b16 %v526, %v525
      %v536 = vpack.c.b16 %v528, %v527
      %545 = vmatprep.subr.bf16.mxu0 0
      %546 = vmatpush1.bf16.msra.mxu0 %v529
      %547 = vmatprep.subr.bf16.mxu0 0
      %548 = vmatpush1.bf16.msra.mxu0 %v530
      %549 = vmatprep.subr.bf16.mxu0 0
      %550 = vmatpush1.bf16.msra.mxu0 %v531
      %551 = vmatprep.subr.bf16.mxu0 0
      %552 = vmatpush1.bf16.msra.mxu0 %v532
      %553 = vmatprep.subr.bf16.mxu0 0
      %554 = vmatpush1.bf16.msra.mxu0 %v533
      %555 = vmatprep.subr.bf16.mxu0 0
      %556 = vmatpush1.bf16.msra.mxu0 %v534
      %557 = vmatprep.subr.bf16.mxu0 0
      %558 = vmatpush1.bf16.msra.mxu0 %v535
      %559 = vmatprep.subr.bf16.mxu0 0
      %560 = vmatpush1.bf16.msra.mxu0 %v536
      %561 = vmatprep.subr.bf16.mxu0 0
      %562 = vmatpush1.bf16.msra.mxu0 0
      %563 = vmatprep.subr.bf16.mxu0 0
      %564 = vmatpush1.bf16.msra.mxu0 0
      %565 = vmatprep.subr.bf16.mxu0 0
      %566 = vmatpush1.bf16.msra.mxu0 0
      %567 = vmatprep.subr.bf16.mxu0 0
      %568 = vmatpush1.bf16.msra.mxu0 0
      %569 = vmatprep.subr.bf16.mxu0 0
      %570 = vmatpush1.bf16.msra.mxu0 0
      %571 = vmatprep.subr.bf16.mxu0 0
      %572 = vmatpush1.bf16.msra.mxu0 0
      %573 = vmatprep.subr.bf16.mxu0 0
      %574 = vmatpush1.bf16.msra.mxu0 0
      %575 = vmatprep.subr.bf16.mxu0 0
      %576 = vmatpush1.bf16.msra.mxu0 0
      %577 = vmatprep.mubr.bf16.mxu0 0
      %578 = vmatmul.mubr.bf16.gmra.mrb[0].mxu0 %v476
      %v579 = vpop.f32.mrb[0].mxu0
      %v580 = vadd.f32 0.0, %v579
      %v581 = vpop.f32.mrb[0].mxu0
      %v582 = vpop.f32.mrb[0].mxu0
      %v583 = vpop.f32.mrb[0].mxu0
      %584 = vdwg.mxu0
      %v585 = vld [vmem:[%s6] sm:$0xf]
      %v586 = vld [vmem:[%s6 + $0x4] sm:$0xf]
      %v587 = vld [vmem:[%s6 + $0x8] sm:$0xf]
      %v588 = vld [vmem:[%s6 + $0xc] sm:$0xf]
      %v589 = vld [vmem:[%s6 + $0x10] sm:$0xf]
      %v590 = vld [vmem:[%s6 + $0x14] sm:$0xf]
      %v591 = vld [vmem:[%s6 + $0x18] sm:$0xf]
      %v592 = vld [vmem:[%s6 + $0x1c] sm:$0xf]
      %v593 = vld [vmem:[%s6 + $0x20] sm:$0xf]
      %v594 = vld [vmem:[%s6 + $0x24] sm:$0xf]
      %v595 = vld [vmem:[%s6 + $0x28] sm:$0xf]
      %v596 = vld [vmem:[%s6 + $0x2c] sm:$0xf]
      %v597 = vld [vmem:[%s6 + $0x30] sm:$0xf]
      %v598 = vld [vmem:[%s6 + $0x34] sm:$0xf]
      %v599 = vld [vmem:[%s6 + $0x38] sm:$0xf]
      %v600 = vld [vmem:[%s6 + $0x3c] sm:$0xf]
      %v617 = vunpack.c.l.b16 %v585
      %v618 = vunpack.c.l.b16 %v586
      %v619 = vunpack.c.l.b16 %v587
      %v620 = vunpack.c.l.b16 %v588
      %v621 = vunpack.c.l.b16 %v589
      %v622 = vunpack.c.l.b16 %v590
      %v623 = vunpack.c.l.b16 %v591
      %v624 = vunpack.c.l.b16 %v592
      %v625 = vunpack.c.l.b16 %v593
      %v626 = vunpack.c.l.b16 %v594
      %v627 = vunpack.c.l.b16 %v595
      %v628 = vunpack.c.l.b16 %v596
      %v629 = vunpack.c.l.b16 %v597
      %v630 = vunpack.c.l.b16 %v598
      %v631 = vunpack.c.l.b16 %v599
      %v632 = vunpack.c.l.b16 %v600
      %v633 = vpack.c.b16 %v618, %v617
      %v634 = vpack.c.b16 %v620, %v619
      %v635 = vpack.c.b16 %v622, %v621
      %v636 = vpack.c.b16 %v624, %v623
      %v637 = vpack.c.b16 %v626, %v625
      %v638 = vpack.c.b16 %v628, %v627
      %v639 = vpack.c.b16 %v630, %v629
      %v640 = vpack.c.b16 %v632, %v631
      %649 = vmatprep.subr.bf16.mxu0 0
      %650 = vmatpush1.bf16.msra.mxu0 %v633
      %651 = vmatprep.subr.bf16.mxu0 0
      %652 = vmatpush1.bf16.msra.mxu0 %v634
      %653 = vmatprep.subr.bf16.mxu0 0
      %654 = vmatpush1.bf16.msra.mxu0 %v635
      %655 = vmatprep.subr.bf16.mxu0 0
      %656 = vmatpush1.bf16.msra.mxu0 %v636
      %657 = vmatprep.subr.bf16.mxu0 0
      %658 = vmatpush1.bf16.msra.mxu0 %v637
      %659 = vmatprep.subr.bf16.mxu0 0
      %660 = vmatpush1.bf16.msra.mxu0 %v638
      %661 = vmatprep.subr.bf16.mxu0 0
      %662 = vmatpush1.bf16.msra.mxu0 %v639
      %663 = vmatprep.subr.bf16.mxu0 0
      %664 = vmatpush1.bf16.msra.mxu0 %v640
      %665 = vmatprep.subr.bf16.mxu0 0
      %666 = vmatpush1.bf16.msra.mxu0 0
      %667 = vmatprep.subr.bf16.mxu0 0
      %668 = vmatpush1.bf16.msra.mxu0 0
      %669 = vmatprep.subr.bf16.mxu0 0
      %670 = vmatpush1.bf16.msra.mxu0 0
      %671 = vmatprep.subr.bf16.mxu0 0
      %672 = vmatpush1.bf16.msra.mxu0 0
      %673 = vmatprep.subr.bf16.mxu0 0
      %674 = vmatpush1.bf16.msra.mxu0 0
      %675 = vmatprep.subr.bf16.mxu0 0
      %676 = vmatpush1.bf16.msra.mxu0 0
      %677 = vmatprep.subr.bf16.mxu0 0
      %678 = vmatpush1.bf16.msra.mxu0 0
      %679 = vmatprep.subr.bf16.mxu0 0
      %680 = vmatpush1.bf16.msra.mxu0 0
      %681 = vmatprep.mubr.bf16.mxu0 0
      %682 = vmatmul.mubr.bf16.gmra.mrb[0].mxu0 %v478
      %v683 = vpop.f32.mrb[0].mxu0
      %v684 = vadd.f32 0.0, %v683
      %v685 = vpop.f32.mrb[0].mxu0
      %v686 = vpop.f32.mrb[0].mxu0
      %v687 = vpop.f32.mrb[0].mxu0
      %688 = vdwg.mxu0
      %v689 = vld [vmem:[%s7] sm:$0xf]
      %v690 = vld [vmem:[%s7 + $0x4] sm:$0xf]
      %v691 = vld [vmem:[%s7 + $0x8] sm:$0xf]
      %v692 = vld [vmem:[%s7 + $0xc] sm:$0xf]
      %v693 = vld [vmem:[%s7 + $0x10] sm:$0xf]
      %v694 = vld [vmem:[%s7 + $0x14] sm:$0xf]
      %v695 = vld [vmem:[%s7 + $0x18] sm:$0xf]
      %v696 = vld [vmem:[%s7 + $0x1c] sm:$0xf]
      %v697 = vld [vmem:[%s7 + $0x20] sm:$0xf]
      %v698 = vld [vmem:[%s7 + $0x24] sm:$0xf]
      %v699 = vld [vmem:[%s7 + $0x28] sm:$0xf]
      %v700 = vld [vmem:[%s7 + $0x2c] sm:$0xf]
      %v701 = vld [vmem:[%s7 + $0x30] sm:$0xf]
      %v702 = vld [vmem:[%s7 + $0x34] sm:$0xf]
      %v703 = vld [vmem:[%s7 + $0x38] sm:$0xf]
      %v704 = vld [vmem:[%s7 + $0x3c] sm:$0xf]
      %v721 = vunpack.c.l.b16 %v689
      %v722 = vunpack.c.l.b16 %v690
      %v723 = vunpack.c.l.b16 %v691
      %v724 = vunpack.c.l.b16 %v692
      %v725 = vunpack.c.l.b16 %v693
      %v726 = vunpack.c.l.b16 %v694
      %v727 = vunpack.c.l.b16 %v695
      %v728 = vunpack.c.l.b16 %v696
      %v729 = vunpack.c.l.b16 %v697
      %v730 = vunpack.c.l.b16 %v698
      %v731 = vunpack.c.l.b16 %v699
      %v732 = vunpack.c.l.b16 %v700
      %v733 = vunpack.c.l.b16 %v701
      %v734 = vunpack.c.l.b16 %v702
      %v735 = vunpack.c.l.b16 %v703
      %v736 = vunpack.c.l.b16 %v704
      %v737 = vpack.c.b16 %v722, %v721
      %v738 = vpack.c.b16 %v724, %v723
      %v739 = vpack.c.b16 %v726, %v725
      %v740 = vpack.c.b16 %v728, %v727
      %v741 = vpack.c.b16 %v730, %v729
      %v742 = vpack.c.b16 %v732, %v731
      %v743 = vpack.c.b16 %v734, %v733
      %v744 = vpack.c.b16 %v736, %v735
      %753 = vmatprep.subr.bf16.mxu0 0
      %754 = vmatpush1.bf16.msra.mxu0 %v737
      %755 = vmatprep.subr.bf16.mxu0 0
      %756 = vmatpush1.bf16.msra.mxu0 %v738
      %757 = vmatprep.subr.bf16.mxu0 0
      %758 = vmatpush1.bf16.msra.mxu0 %v739
      %759 = vmatprep.subr.bf16.mxu0 0
      %760 = vmatpush1.bf16.msra.mxu0 %v740
      %761 = vmatprep.subr.bf16.mxu0 0
      %762 = vmatpush1.bf16.msra.mxu0 %v741
      %763 = vmatprep.subr.bf16.mxu0 0
      %764 = vmatpush1.bf16.msra.mxu0 %v742
      %765 = vmatprep.subr.bf16.mxu0 0
      %766 = vmatpush1.bf16.msra.mxu0 %v743
      %767 = vmatprep.subr.bf16.mxu0 0
      %768 = vmatpush1.bf16.msra.mxu0 %v744
      %769 = vmatprep.subr.bf16.mxu0 0
      %770 = vmatpush1.bf16.msra.mxu0 0
      %771 = vmatprep.subr.bf16.mxu0 0
      %772 = vmatpush1.bf16.msra.mxu0 0
      %773 = vmatprep.subr.bf16.mxu0 0
      %774 = vmatpush1.bf16.msra.mxu0 0
      %775 = vmatprep.subr.bf16.mxu0 0
      %776 = vmatpush1.bf16.msra.mxu0 0
      %777 = vmatprep.subr.bf16.mxu0 0
      %778 = vmatpush1.bf16.msra.mxu0 0
      %779 = vmatprep.subr.bf16.mxu0 0
      %780 = vmatpush1.bf16.msra.mxu0 0
      %781 = vmatprep.subr.bf16.mxu0 0
      %782 = vmatpush1.bf16.msra.mxu0 0
      %783 = vmatprep.subr.bf16.mxu0 0
      %784 = vmatpush1.bf16.msra.mxu0 0
      %785 = vmatprep.mubr.bf16.mxu0 0
      %786 = vmatmul.mubr.bf16.gmra.mrb[0].mxu0 %v480
      %v787 = vpop.f32.mrb[0].mxu0
      %v788 = vadd.f32 0.0, %v787
      %v789 = vpop.f32.mrb[0].mxu0
      %v790 = vpop.f32.mrb[0].mxu0
      %v791 = vpop.f32.mrb[0].mxu0
      %792 = vdwg.mxu0
      %v793 = vld [vmem:[%s469] sm:$0x1]
      %v795 = vlaneseq
      %v796 = vshrl.u32 %v795, 7
      %v797 = vsub.s32 0, %v796
      %v798 = vrot.slane %v793, %v797
      %vm800 = vcmask 130048
      %v802 = vsel %vm800, %v580, 0
      %v805 = vsel %vm800, %v684, 0
      %807 = vmatprep.subr.mxu0 0.0
      %808 = vmatpush1.xpose.msra.mxu0 %v805
      %809 = vmatprep.subr.mxu0 0.0
      %810 = vmatpush1.xpose.msra.mxu0 0.0
      %811 = vmatprep.subr.mxu0 0.0
      %812 = vmatpush1.xpose.msra.mxu0 0.0
      %813 = vmatprep.subr.mxu0 0.0
      %814 = vmatpush1.xpose.msra.mxu0 0.0
      %815 = vmatprep.subr.mxu0 0.0
      %816 = vmatpush1.xpose.msra.mxu0 0.0
      %817 = vmatprep.subr.mxu0 0.0
      %818 = vmatpush1.xpose.msra.mxu0 0.0
      %819 = vmatprep.subr.mxu0 0.0
      %820 = vmatpush1.xpose.msra.mxu0 0.0
      %821 = vmatprep.subr.mxu0 0.0
      %822 = vmatpush1.xpose.msra.mxu0 0.0
      %823 = vmatprep.subr.mxu0 0.0
      %824 = vmatpush1.xpose.msra.mxu0 0.0
      %825 = vmatprep.subr.mxu0 0.0
      %826 = vmatpush1.xpose.msra.mxu0 0.0
      %827 = vmatprep.subr.mxu0 0.0
      %828 = vmatpush1.xpose.msra.mxu0 0.0
      %829 = vmatprep.subr.mxu0 0.0
      %830 = vmatpush1.xpose.msra.mxu0 0.0
      %831 = vmatprep.subr.mxu0 0.0
      %832 = vmatpush1.xpose.msra.mxu0 0.0
      %833 = vmatprep.subr.mxu0 0.0
      %834 = vmatpush1.xpose.msra.mxu0 0.0
      %835 = vmatprep.subr.mxu0 0.0
      %836 = vmatpush1.xpose.msra.mxu0 0.0
      %837 = vmatprep.subr.mxu0 0.0
      %838 = vmatpush1.xpose.msra.mxu0 0.0
      %839 = vmatprep.subr.mxu0 0.0
      %840 = vmatpush1.xpose.msra.mxu0 0.0
      %841 = vmatprep.subr.mxu0 0.0
      %842 = vmatpush1.xpose.msra.mxu0 0.0
      %843 = vmatprep.subr.mxu0 0.0
      %844 = vmatpush1.xpose.msra.mxu0 0.0
      %845 = vmatprep.subr.mxu0 0.0
      %846 = vmatpush1.xpose.msra.mxu0 0.0
      %847 = vmatprep.subr.mxu0 0.0
      %848 = vmatpush1.xpose.msra.mxu0 0.0
      %849 = vmatprep.subr.mxu0 0.0
      %850 = vmatpush1.xpose.msra.mxu0 0.0
      %851 = vmatprep.subr.mxu0 0.0
      %852 = vmatpush1.xpose.msra.mxu0 0.0
      %853 = vmatprep.subr.mxu0 0.0
      %854 = vmatpush1.xpose.msra.mxu0 0.0
      %855 = vmatprep.subr.mxu0 0.0
      %856 = vmatpush1.xpose.msra.mxu0 0.0
      %857 = vmatprep.subr.mxu0 0.0
      %858 = vmatpush1.xpose.msra.mxu0 0.0
      %859 = vmatprep.subr.mxu0 0.0
      %860 = vmatpush1.xpose.msra.mxu0 0.0
      %861 = vmatprep.subr.mxu0 0.0
      %862 = vmatpush1.xpose.msra.mxu0 0.0
      %863 = vmatprep.subr.mxu0 0.0
      %864 = vmatpush1.xpose.msra.mxu0 0.0
      %865 = vmatprep.subr.mxu0 0.0
      %866 = vmatpush1.xpose.msra.mxu0 0.0
      %867 = vmatprep.subr.mxu0 0.0
      %868 = vmatpush1.xpose.msra.mxu0 0.0
      %869 = vmatprep.subr.mxu0 0.0
      %870 = vmatpush1.xpose.msra.mxu0 0.0
      %871 = vmatprep.mubr.f32.mxu0 0.0
      %872 = vmatmul.mubr.f32.gmra.mrb[0].mxu0 %v802
      %v873 = vpop.f32.mrb[0].mxu0
      %v874 = vadd.f32 %v798, %v873
      %v875 = vpop.f32.mrb[0].mxu0
      %876 = vdwg.mxu0
      %vm877 = vcmask 64512
      %v878 = vsel %vm877, %v874, -inf
      %879 = vmax.xlane.f32.xlu0 %v878
      %v880 = vpop.xlane.xlu0 %879
      %v881 = vsub.f32 %v874, %v880
      %v882 = vmul.f32 %v881, 1.442695
      %v883 = vpow.pop %v882
      %v884 = vsel %vm877, %v883, 0.0
      %885 = vadd.xlane.f32.xlu0 %v884
      %v886 = vpop.xlane.xlu0 %885
      %v887 = vrcp.pop %v886
      %v888 = vmul.f32 %v883, %v887
      %v890 = vsel %vm877, %v888, 0
      %892 = vmatprep.subr.mxu0 0.0
      %893 = vmatpush1.msra.mxu0 %v788
      %894 = vmatprep.subr.mxu0 0.0
      %895 = vmatpush1.msra.mxu0 0.0
      %896 = vmatprep.subr.mxu0 0.0
      %897 = vmatpush1.msra.mxu0 0.0
      %898 = vmatprep.subr.mxu0 0.0
      %899 = vmatpush1.msra.mxu0 0.0
      %900 = vmatprep.subr.mxu0 0.0
      %901 = vmatpush1.msra.mxu0 0.0
      %902 = vmatprep.subr.mxu0 0.0
      %903 = vmatpush1.msra.mxu0 0.0
      %904 = vmatprep.subr.mxu0 0.0
      %905 = vmatpush1.msra.mxu0 0.0
      %906 = vmatprep.subr.mxu0 0.0
      %907 = vmatpush1.msra.mxu0 0.0
      %908 = vmatprep.subr.mxu0 0.0
      %909 = vmatpush1.msra.mxu0 0.0
      %910 = vmatprep.subr.mxu0 0.0
      %911 = vmatpush1.msra.mxu0 0.0
      %912 = vmatprep.subr.mxu0 0.0
      %913 = vmatpush1.msra.mxu0 0.0
      %914 = vmatprep.subr.mxu0 0.0
      %915 = vmatpush1.msra.mxu0 0.0
      %916 = vmatprep.subr.mxu0 0.0
      %917 = vmatpush1.msra.mxu0 0.0
      %918 = vmatprep.subr.mxu0 0.0
      %919 = vmatpush1.msra.mxu0 0.0
      %920 = vmatprep.subr.mxu0 0.0
      %921 = vmatpush1.msra.mxu0 0.0
      %922 = vmatprep.subr.mxu0 0.0
      %923 = vmatpush1.msra.mxu0 0.0
      %924 = vmatprep.subr.mxu0 0.0
      %925 = vmatpush1.msra.mxu0 0.0
      %926 = vmatprep.subr.mxu0 0.0
      %927 = vmatpush1.msra.mxu0 0.0
      %928 = vmatprep.subr.mxu0 0.0
      %929 = vmatpush1.msra.mxu0 0.0
      %930 = vmatprep.subr.mxu0 0.0
      %931 = vmatpush1.msra.mxu0 0.0
      %932 = vmatprep.subr.mxu0 0.0
      %933 = vmatpush1.msra.mxu0 0.0
      %934 = vmatprep.subr.mxu0 0.0
      %935 = vmatpush1.msra.mxu0 0.0
      %936 = vmatprep.subr.mxu0 0.0
      %937 = vmatpush1.msra.mxu0 0.0
      %938 = vmatprep.subr.mxu0 0.0
      %939 = vmatpush1.msra.mxu0 0.0
      %940 = vmatprep.subr.mxu0 0.0
      %941 = vmatpush1.msra.mxu0 0.0
      %942 = vmatprep.subr.mxu0 0.0
      %943 = vmatpush1.msra.mxu0 0.0
      %944 = vmatprep.subr.mxu0 0.0
      %945 = vmatpush1.msra.mxu0 0.0
      %946 = vmatprep.subr.mxu0 0.0
      %947 = vmatpush1.msra.mxu0 0.0
      %948 = vmatprep.subr.mxu0 0.0
      %949 = vmatpush1.msra.mxu0 0.0
      %950 = vmatprep.subr.mxu0 0.0
      %951 = vmatpush1.msra.mxu0 0.0
      %952 = vmatprep.subr.mxu0 0.0
      %953 = vmatpush1.msra.mxu0 0.0
      %954 = vmatprep.subr.mxu0 0.0
      %955 = vmatpush1.msra.mxu0 0.0
      %956 = vmatprep.mubr.f32.mxu0 0.0
      %957 = vmatmul.mubr.f32.gmra.mrb[0].mxu0 %v890
      %v958 = vpop.f32.mrb[0].mxu0
      %v959 = vadd.f32 0.0, %v958
      %v960 = vpop.f32.mrb[0].mxu0
      %961 = vdwg.mxu0
      %962 = vrot.lane.b32.xlu0 %v580, 112
      %v963 = vpop.permute.xlu0 %962
      %964 = vrot.lane.b32.xlu0 %v684, 112
      %v965 = vpop.permute.xlu0 %964
      %v966 = vsel %vm800, %v963, 0
      %v968 = vsel %vm800, %v965, 0
      %970 = vmatprep.subr.mxu0 0.0
      %971 = vmatpush1.xpose.msra.mxu0 %v968
      %972 = vmatprep.subr.mxu0 0.0
      %973 = vmatpush1.xpose.msra.mxu0 0.0
      %974 = vmatprep.subr.mxu0 0.0
      %975 = vmatpush1.xpose.msra.mxu0 0.0
      %976 = vmatprep.subr.mxu0 0.0
      %977 = vmatpush1.xpose.msra.mxu0 0.0
      %978 = vmatprep.subr.mxu0 0.0
      %979 = vmatpush1.xpose.msra.mxu0 0.0
      %980 = vmatprep.subr.mxu0 0.0
      %981 = vmatpush1.xpose.msra.mxu0 0.0
      %982 = vmatprep.subr.mxu0 0.0
      %983 = vmatpush1.xpose.msra.mxu0 0.0
      %984 = vmatprep.subr.mxu0 0.0
      %985 = vmatpush1.xpose.msra.mxu0 0.0
      %986 = vmatprep.subr.mxu0 0.0
      %987 = vmatpush1.xpose.msra.mxu0 0.0
      %988 = vmatprep.subr.mxu0 0.0
      %989 = vmatpush1.xpose.msra.mxu0 0.0
      %990 = vmatprep.subr.mxu0 0.0
      %991 = vmatpush1.xpose.msra.mxu0 0.0
      %992 = vmatprep.subr.mxu0 0.0
      %993 = vmatpush1.xpose.msra.mxu0 0.0
      %994 = vmatprep.subr.mxu0 0.0
      %995 = vmatpush1.xpose.msra.mxu0 0.0
      %996 = vmatprep.subr.mxu0 0.0
      %997 = vmatpush1.xpose.msra.mxu0 0.0
      %998 = vmatprep.subr.mxu0 0.0
      %999 = vmatpush1.xpose.msra.mxu0 0.0
      %1000 = vmatprep.subr.mxu0 0.0
      %1001 = vmatpush1.xpose.msra.mxu0 0.0
      %1002 = vmatprep.subr.mxu0 0.0
      %1003 = vmatpush1.xpose.msra.mxu0 0.0
      %1004 = vmatprep.subr.mxu0 0.0
      %1005 = vmatpush1.xpose.msra.mxu0 0.0
      %1006 = vmatprep.subr.mxu0 0.0
      %1007 = vmatpush1.xpose.msra.mxu0 0.0
      %1008 = vmatprep.subr.mxu0 0.0
      %1009 = vmatpush1.xpose.msra.mxu0 0.0
      %1010 = vmatprep.subr.mxu0 0.0
      %1011 = vmatpush1.xpose.msra.mxu0 0.0
      %1012 = vmatprep.subr.mxu0 0.0
      %1013 = vmatpush1.xpose.msra.mxu0 0.0
      %1014 = vmatprep.subr.mxu0 0.0
      %1015 = vmatpush1.xpose.msra.mxu0 0.0
      %1016 = vmatprep.subr.mxu0 0.0
      %1017 = vmatpush1.xpose.msra.mxu0 0.0
      %1018 = vmatprep.subr.mxu0 0.0
      %1019 = vmatpush1.xpose.msra.mxu0 0.0
      %1020 = vmatprep.subr.mxu0 0.0
      %1021 = vmatpush1.xpose.msra.mxu0 0.0
      %1022 = vmatprep.subr.mxu0 0.0
      %1023 = vmatpush1.xpose.msra.mxu0 0.0
      %1024 = vmatprep.subr.mxu0 0.0
      %1025 = vmatpush1.xpose.msra.mxu0 0.0
      %1026 = vmatprep.subr.mxu0 0.0
      %1027 = vmatpush1.xpose.msra.mxu0 0.0
      %1028 = vmatprep.subr.mxu0 0.0
      %1029 = vmatpush1.xpose.msra.mxu0 0.0
      %1030 = vmatprep.subr.mxu0 0.0
      %1031 = vmatpush1.xpose.msra.mxu0 0.0
      %1032 = vmatprep.subr.mxu0 0.0
      %1033 = vmatpush1.xpose.msra.mxu0 0.0
      %1034 = vmatprep.mubr.f32.mxu0 0.0
      %1035 = vmatmul.mubr.f32.gmra.mrb[0].mxu0 %v966
      %v1036 = vpop.f32.mrb[0].mxu0
      %v1037 = vadd.f32 %v798, %v1036
      %v1038 = vpop.f32.mrb[0].mxu0
      %1039 = vdwg.mxu0
      %v1040 = vsel %vm877, %v1037, -inf
      %1041 = vmax.xlane.f32.xlu0 %v1040
      %v1042 = vpop.xlane.xlu0 %1041
      %v1043 = vsub.f32 %v1037, %v1042
      %v1044 = vmul.f32 %v1043, 1.442695
      %v1045 = vpow.pop %v1044
      %v1046 = vsel %vm877, %v1045, 0.0
      %1047 = vadd.xlane.f32.xlu0 %v1046
      %v1048 = vpop.xlane.xlu0 %1047
      %v1049 = vrcp.pop %v1048
      %v1050 = vmul.f32 %v1045, %v1049
      %1052 = vrot.lane.b32.xlu0 %v788, 112
      %v1053 = vpop.permute.xlu0 %1052
      %v1056 = vsel %vm877, %v1050, 0
      %1058 = vmatprep.subr.mxu0 0.0
      %1059 = vmatpush1.msra.mxu0 %v1053
      %1060 = vmatprep.subr.mxu0 0.0
      %1061 = vmatpush1.msra.mxu0 0.0
      %1062 = vmatprep.subr.mxu0 0.0
      %1063 = vmatpush1.msra.mxu0 0.0
      %1064 = vmatprep.subr.mxu0 0.0
      %1065 = vmatpush1.msra.mxu0 0.0
      %1066 = vmatprep.subr.mxu0 0.0
      %1067 = vmatpush1.msra.mxu0 0.0
      %1068 = vmatprep.subr.mxu0 0.0
      %1069 = vmatpush1.msra.mxu0 0.0
      %1070 = vmatprep.subr.mxu0 0.0
      %1071 = vmatpush1.msra.mxu0 0.0
      %1072 = vmatprep.subr.mxu0 0.0
      %1073 = vmatpush1.msra.mxu0 0.0
      %1074 = vmatprep.subr.mxu0 0.0
      %1075 = vmatpush1.msra.mxu0 0.0
      %1076 = vmatprep.subr.mxu0 0.0
      %1077 = vmatpush1.msra.mxu0 0.0
      %1078 = vmatprep.subr.mxu0 0.0
      %1079 = vmatpush1.msra.mxu0 0.0
      %1080 = vmatprep.subr.mxu0 0.0
      %1081 = vmatpush1.msra.mxu0 0.0
      %1082 = vmatprep.subr.mxu0 0.0
      %1083 = vmatpush1.msra.mxu0 0.0
      %1084 = vmatprep.subr.mxu0 0.0
      %1085 = vmatpush1.msra.mxu0 0.0
      %1086 = vmatprep.subr.mxu0 0.0
      %1087 = vmatpush1.msra.mxu0 0.0
      %1088 = vmatprep.subr.mxu0 0.0
      %1089 = vmatpush1.msra.mxu0 0.0
      %1090 = vmatprep.subr.mxu0 0.0
      %1091 = vmatpush1.msra.mxu0 0.0
      %1092 = vmatprep.subr.mxu0 0.0
      %1093 = vmatpush1.msra.mxu0 0.0
      %1094 = vmatprep.subr.mxu0 0.0
      %1095 = vmatpush1.msra.mxu0 0.0
      %1096 = vmatprep.subr.mxu0 0.0
      %1097 = vmatpush1.msra.mxu0 0.0
      %1098 = vmatprep.subr.mxu0 0.0
      %1099 = vmatpush1.msra.mxu0 0.0
      %1100 = vmatprep.subr.mxu0 0.0
      %1101 = vmatpush1.msra.mxu0 0.0
      %1102 = vmatprep.subr.mxu0 0.0
      %1103 = vmatpush1.msra.mxu0 0.0
      %1104 = vmatprep.subr.mxu0 0.0
      %1105 = vmatpush1.msra.mxu0 0.0
      %1106 = vmatprep.subr.mxu0 0.0
      %1107 = vmatpush1.msra.mxu0 0.0
      %1108 = vmatprep.subr.mxu0 0.0
      %1109 = vmatpush1.msra.mxu0 0.0
      %1110 = vmatprep.subr.mxu0 0.0
      %1111 = vmatpush1.msra.mxu0 0.0
      %1112 = vmatprep.subr.mxu0 0.0
      %1113 = vmatpush1.msra.mxu0 0.0
      %1114 = vmatprep.subr.mxu0 0.0
      %1115 = vmatpush1.msra.mxu0 0.0
      %1116 = vmatprep.subr.mxu0 0.0
      %1117 = vmatpush1.msra.mxu0 0.0
      %1118 = vmatprep.subr.mxu0 0.0
      %1119 = vmatpush1.msra.mxu0 0.0
      %1120 = vmatprep.subr.mxu0 0.0
      %1121 = vmatpush1.msra.mxu0 0.0
      %1122 = vmatprep.mubr.f32.mxu0 0.0
      %1123 = vmatmul.mubr.f32.gmra.mrb[0].mxu0 %v1056
      %v1124 = vpop.f32.mrb[0].mxu0
      %v1125 = vadd.f32 0.0, %v1124
      %v1126 = vpop.f32.mrb[0].mxu0
      %1127 = vdwg.mxu0
      %1128 = vrot.lane.b32.xlu0 %v580, 96
      %v1129 = vpop.permute.xlu0 %1128
      %1130 = vrot.lane.b32.xlu0 %v684, 96
      %v1131 = vpop.permute.xlu0 %1130
      %v1132 = vsel %vm800, %v1129, 0
      %v1134 = vsel %vm800, %v1131, 0
      %1136 = vmatprep.subr.mxu0 0.0
      %1137 = vmatpush1.xpose.msra.mxu0 %v1134
      %1138 = vmatprep.subr.mxu0 0.0
      %1139 = vmatpush1.xpose.msra.mxu0 0.0
      %1140 = vmatprep.subr.mxu0 0.0
      %1141 = vmatpush1.xpose.msra.mxu0 0.0
      %1142 = vmatprep.subr.mxu0 0.0
      %1143 = vmatpush1.xpose.msra.mxu0 0.0
      %1144 = vmatprep.subr.mxu0 0.0
      %1145 = vmatpush1.xpose.msra.mxu0 0.0
      %1146 = vmatprep.subr.mxu0 0.0
      %1147 = vmatpush1.xpose.msra.mxu0 0.0
      %1148 = vmatprep.subr.mxu0 0.0
      %1149 = vmatpush1.xpose.msra.mxu0 0.0
      %1150 = vmatprep.subr.mxu0 0.0
      %1151 = vmatpush1.xpose.msra.mxu0 0.0
      %1152 = vmatprep.subr.mxu0 0.0
      %1153 = vmatpush1.xpose.msra.mxu0 0.0
      %1154 = vmatprep.subr.mxu0 0.0
      %1155 = vmatpush1.xpose.msra.mxu0 0.0
      %1156 = vmatprep.subr.mxu0 0.0
      %1157 = vmatpush1.xpose.msra.mxu0 0.0
      %1158 = vmatprep.subr.mxu0 0.0
      %1159 = vmatpush1.xpose.msra.mxu0 0.0
      %1160 = vmatprep.subr.mxu0 0.0
      %1161 = vmatpush1.xpose.msra.mxu0 0.0
      %1162 = vmatprep.subr.mxu0 0.0
      %1163 = vmatpush1.xpose.msra.mxu0 0.0
      %1164 = vmatprep.subr.mxu0 0.0
      %1165 = vmatpush1.xpose.msra.mxu0 0.0
      %1166 = vmatprep.subr.mxu0 0.0
      %1167 = vmatpush1.xpose.msra.mxu0 0.0
      %1168 = vmatprep.subr.mxu0 0.0
      %1169 = vmatpush1.xpose.msra.mxu0 0.0
      %1170 = vmatprep.subr.mxu0 0.0
      %1171 = vmatpush1.xpose.msra.mxu0 0.0
      %1172 = vmatprep.subr.mxu0 0.0
      %1173 = vmatpush1.xpose.msra.mxu0 0.0
      %1174 = vmatprep.subr.mxu0 0.0
      %1175 = vmatpush1.xpose.msra.mxu0 0.0
      %1176 = vmatprep.subr.mxu0 0.0
      %1177 = vmatpush1.xpose.msra.mxu0 0.0
      %1178 = vmatprep.subr.mxu0 0.0
      %1179 = vmatpush1.xpose.msra.mxu0 0.0
      %1180 = vmatprep.subr.mxu0 0.0
      %1181 = vmatpush1.xpose.msra.mxu0 0.0
      %1182 = vmatprep.subr.mxu0 0.0
      %1183 = vmatpush1.xpose.msra.mxu0 0.0
      %1184 = vmatprep.subr.mxu0 0.0
      %1185 = vmatpush1.xpose.msra.mxu0 0.0
      %1186 = vmatprep.subr.mxu0 0.0
      %1187 = vmatpush1.xpose.msra.mxu0 0.0
      %1188 = vmatprep.subr.mxu0 0.0
      %1189 = vmatpush1.xpose.msra.mxu0 0.0
      %1190 = vmatprep.subr.mxu0 0.0
      %1191 = vmatpush1.xpose.msra.mxu0 0.0
      %1192 = vmatprep.subr.mxu0 0.0
      %1193 = vmatpush1.xpose.msra.mxu0 0.0
      %1194 = vmatprep.subr.mxu0 0.0
      %1195 = vmatpush1.xpose.msra.mxu0 0.0
      %1196 = vmatprep.subr.mxu0 0.0
      %1197 = vmatpush1.xpose.msra.mxu0 0.0
      %1198 = vmatprep.subr.mxu0 0.0
      %1199 = vmatpush1.xpose.msra.mxu0 0.0
      %1200 = vmatprep.mubr.f32.mxu0 0.0
      %1201 = vmatmul.mubr.f32.gmra.mrb[0].mxu0 %v1132
      %v1202 = vpop.f32.mrb[0].mxu0
      %v1203 = vadd.f32 %v798, %v1202
      %v1204 = vpop.f32.mrb[0].mxu0
      %1205 = vdwg.mxu0
      %v1206 = vsel %vm877, %v1203, -inf
      %1207 = vmax.xlane.f32.xlu0 %v1206
      %v1208 = vpop.xlane.xlu0 %1207
      %v1209 = vsub.f32 %v1203, %v1208
      %v1210 = vmul.f32 %v1209, 1.442695
      %v1211 = vpow.pop %v1210
      %v1212 = vsel %vm877, %v1211, 0.0
      %1213 = vadd.xlane.f32.xlu0 %v1212
      %v1214 = vpop.xlane.xlu0 %1213
      %v1215 = vrcp.pop %v1214
      %v1216 = vmul.f32 %v1211, %v1215
      %1217 = vrot.lane.b32.xlu0 %v788, 96
      %v1218 = vpop.permute.xlu0 %1217
      %v1221 = vsel %vm877, %v1216, 0
      %1223 = vmatprep.subr.mxu0 0.0
      %1224 = vmatpush1.msra.mxu0 %v1218
      %1225 = vmatprep.subr.mxu0 0.0
      %1226 = vmatpush1.msra.mxu0 0.0
      %1227 = vmatprep.subr.mxu0 0.0
      %1228 = vmatpush1.msra.mxu0 0.0
      %1229 = vmatprep.subr.mxu0 0.0
      %1230 = vmatpush1.msra.mxu0 0.0
      %1231 = vmatprep.subr.mxu0 0.0
      %1232 = vmatpush1.msra.mxu0 0.0
      %1233 = vmatprep.subr.mxu0 0.0
      %1234 = vmatpush1.msra.mxu0 0.0
      %1235 = vmatprep.subr.mxu0 0.0
      %1236 = vmatpush1.msra.mxu0 0.0
      %1237 = vmatprep.subr.mxu0 0.0
      %1238 = vmatpush1.msra.mxu0 0.0
      %1239 = vmatprep.subr.mxu0 0.0
      %1240 = vmatpush1.msra.mxu0 0.0
      %1241 = vmatprep.subr.mxu0 0.0
      %1242 = vmatpush1.msra.mxu0 0.0
      %1243 = vmatprep.subr.mxu0 0.0
      %1244 = vmatpush1.msra.mxu0 0.0
      %1245 = vmatprep.subr.mxu0 0.0
      %1246 = vmatpush1.msra.mxu0 0.0
      %1247 = vmatprep.subr.mxu0 0.0
      %1248 = vmatpush1.msra.mxu0 0.0
      %1249 = vmatprep.subr.mxu0 0.0
      %1250 = vmatpush1.msra.mxu0 0.0
      %1251 = vmatprep.subr.mxu0 0.0
      %1252 = vmatpush1.msra.mxu0 0.0
      %1253 = vmatprep.subr.mxu0 0.0
      %1254 = vmatpush1.msra.mxu0 0.0
      %1255 = vmatprep.subr.mxu0 0.0
      %1256 = vmatpush1.msra.mxu0 0.0
      %1257 = vmatprep.subr.mxu0 0.0
      %1258 = vmatpush1.msra.mxu0 0.0
      %1259 = vmatprep.subr.mxu0 0.0
      %1260 = vmatpush1.msra.mxu0 0.0
      %1261 = vmatprep.subr.mxu0 0.0
      %1262 = vmatpush1.msra.mxu0 0.0
      %1263 = vmatprep.subr.mxu0 0.0
      %1264 = vmatpush1.msra.mxu0 0.0
      %1265 = vmatprep.subr.mxu0 0.0
      %1266 = vmatpush1.msra.mxu0 0.0
      %1267 = vmatprep.subr.mxu0 0.0
      %1268 = vmatpush1.msra.mxu0 0.0
      %1269 = vmatprep.subr.mxu0 0.0
      %1270 = vmatpush1.msra.mxu0 0.0
      %1271 = vmatprep.subr.mxu0 0.0
      %1272 = vmatpush1.msra.mxu0 0.0
      %1273 = vmatprep.subr.mxu0 0.0
      %1274 = vmatpush1.msra.mxu0 0.0
      %1275 = vmatprep.subr.mxu0 0.0
      %1276 = vmatpush1.msra.mxu0 0.0
      %1277 = vmatprep.subr.mxu0 0.0
      %1278 = vmatpush1.msra.mxu0 0.0
      %1279 = vmatprep.subr.mxu0 0.0
      %1280 = vmatpush1.msra.mxu0 0.0
      %1281 = vmatprep.subr.mxu0 0.0
      %1282 = vmatpush1.msra.mxu0 0.0
      %1283 = vmatprep.subr.mxu0 0.0
      %1284 = vmatpush1.msra.mxu0 0.0
      %1285 = vmatprep.subr.mxu0 0.0
      %1286 = vmatpush1.msra.mxu0 0.0
      %1287 = vmatprep.mubr.f32.mxu0 0.0
      %1288 = vmatmul.mubr.f32.gmra.mrb[0].mxu0 %v1221
      %v1289 = vpop.f32.mrb[0].mxu0
      %v1290 = vadd.f32 0.0, %v1289
      %v1291 = vpop.f32.mrb[0].mxu0
      %1292 = vdwg.mxu0
      %1293 = vrot.lane.b32.xlu0 %v580, 80
      %v1294 = vpop.permute.xlu0 %1293
      %1295 = vrot.lane.b32.xlu0 %v684, 80
      %v1296 = vpop.permute.xlu0 %1295
      %v1297 = vsel %vm800, %v1294, 0
      %v1299 = vsel %vm800, %v1296, 0
      %1301 = vmatprep.subr.mxu0 0.0
      %1302 = vmatpush1.xpose.msra.mxu0 %v1299
      %1303 = vmatprep.subr.mxu0 0.0
      %1304 = vmatpush1.xpose.msra.mxu0 0.0
      %1305 = vmatprep.subr.mxu0 0.0
      %1306 = vmatpush1.xpose.msra.mxu0 0.0
      %1307 = vmatprep.subr.mxu0 0.0
      %1308 = vmatpush1.xpose.msra.mxu0 0.0
      %1309 = vmatprep.subr.mxu0 0.0
      %1310 = vmatpush1.xpose.msra.mxu0 0.0
      %1311 = vmatprep.subr.mxu0 0.0
      %1312 = vmatpush1.xpose.msra.mxu0 0.0
      %1313 = vmatprep.subr.mxu0 0.0
      %1314 = vmatpush1.xpose.msra.mxu0 0.0
      %1315 = vmatprep.subr.mxu0 0.0
      %1316 = vmatpush1.xpose.msra.mxu0 0.0
      %1317 = vmatprep.subr.mxu0 0.0
      %1318 = vmatpush1.xpose.msra.mxu0 0.0
      %1319 = vmatprep.subr.mxu0 0.0
      %1320 = vmatpush1.xpose.msra.mxu0 0.0
      %1321 = vmatprep.subr.mxu0 0.0
      %1322 = vmatpush1.xpose.msra.mxu0 0.0
      %1323 = vmatprep.subr.mxu0 0.0
      %1324 = vmatpush1.xpose.msra.mxu0 0.0
      %1325 = vmatprep.subr.mxu0 0.0
      %1326 = vmatpush1.xpose.msra.mxu0 0.0
      %1327 = vmatprep.subr.mxu0 0.0
      %1328 = vmatpush1.xpose.msra.mxu0 0.0
      %1329 = vmatprep.subr.mxu0 0.0
      %1330 = vmatpush1.xpose.msra.mxu0 0.0
      %1331 = vmatprep.subr.mxu0 0.0
      %1332 = vmatpush1.xpose.msra.mxu0 0.0
      %1333 = vmatprep.subr.mxu0 0.0
      %1334 = vmatpush1.xpose.msra.mxu0 0.0
      %1335 = vmatprep.subr.mxu0 0.0
      %1336 = vmatpush1.xpose.msra.mxu0 0.0
      %1337 = vmatprep.subr.mxu0 0.0
      %1338 = vmatpush1.xpose.msra.mxu0 0.0
      %1339 = vmatprep.subr.mxu0 0.0
      %1340 = vmatpush1.xpose.msra.mxu0 0.0
      %1341 = vmatprep.subr.mxu0 0.0
      %1342 = vmatpush1.xpose.msra.mxu0 0.0
      %1343 = vmatprep.subr.mxu0 0.0
      %1344 = vmatpush1.xpose.msra.mxu0 0.0
      %1345 = vmatprep.subr.mxu0 0.0
      %1346 = vmatpush1.xpose.msra.mxu0 0.0
      %1347 = vmatprep.subr.mxu0 0.0
      %1348 = vmatpush1.xpose.msra.mxu0 0.0
      %1349 = vmatprep.subr.mxu0 0.0
      %1350 = vmatpush1.xpose.msra.mxu0 0.0
      %1351 = vmatprep.subr.mxu0 0.0
      %1352 = vmatpush1.xpose.msra.mxu0 0.0
      %1353 = vmatprep.subr.mxu0 0.0
      %1354 = vmatpush1.xpose.msra.mxu0 0.0
      %1355 = vmatprep.subr.mxu0 0.0
      %1356 = vmatpush1.xpose.msra.mxu0 0.0
      %1357 = vmatprep.subr.mxu0 0.0
      %1358 = vmatpush1.xpose.msra.mxu0 0.0
      %1359 = vmatprep.subr.mxu0 0.0
      %1360 = vmatpush1.xpose.msra.mxu0 0.0
      %1361 = vmatprep.subr.mxu0 0.0
      %1362 = vmatpush1.xpose.msra.mxu0 0.0
      %1363 = vmatprep.subr.mxu0 0.0
      %1364 = vmatpush1.xpose.msra.mxu0 0.0
      %1365 = vmatprep.mubr.f32.mxu0 0.0
      %1366 = vmatmul.mubr.f32.gmra.mrb[0].mxu0 %v1297
      %v1367 = vpop.f32.mrb[0].mxu0
      %v1368 = vadd.f32 %v798, %v1367
      %v1369 = vpop.f32.mrb[0].mxu0
      %1370 = vdwg.mxu0
      %v1371 = vsel %vm877, %v1368, -inf
      %1372 = vmax.xlane.f32.xlu0 %v1371
      %v1373 = vpop.xlane.xlu0 %1372
      %v1374 = vsub.f32 %v1368, %v1373
      %v1375 = vmul.f32 %v1374, 1.442695
      %v1376 = vpow.pop %v1375
      %v1377 = vsel %vm877, %v1376, 0.0
      %1378 = vadd.xlane.f32.xlu0 %v1377
      %v1379 = vpop.xlane.xlu0 %1378
      %v1380 = vrcp.pop %v1379
      %v1381 = vmul.f32 %v1376, %v1380
      %1382 = vrot.lane.b32.xlu0 %v788, 80
      %v1383 = vpop.permute.xlu0 %1382
      %v1386 = vsel %vm877, %v1381, 0
      %1388 = vmatprep.subr.mxu0 0.0
      %1389 = vmatpush1.msra.mxu0 %v1383
      %1390 = vmatprep.subr.mxu0 0.0
      %1391 = vmatpush1.msra.mxu0 0.0
      %1392 = vmatprep.subr.mxu0 0.0
      %1393 = vmatpush1.msra.mxu0 0.0
      %1394 = vmatprep.subr.mxu0 0.0
      %1395 = vmatpush1.msra.mxu0 0.0
      %1396 = vmatprep.subr.mxu0 0.0
      %1397 = vmatpush1.msra.mxu0 0.0
      %1398 = vmatprep.subr.mxu0 0.0
      %1399 = vmatpush1.msra.mxu0 0.0
      %1400 = vmatprep.subr.mxu0 0.0
      %1401 = vmatpush1.msra.mxu0 0.0
      %1402 = vmatprep.subr.mxu0 0.0
      %1403 = vmatpush1.msra.mxu0 0.0
      %1404 = vmatprep.subr.mxu0 0.0
      %1405 = vmatpush1.msra.mxu0 0.0
      %1406 = vmatprep.subr.mxu0 0.0
      %1407 = vmatpush1.msra.mxu0 0.0
      %1408 = vmatprep.subr.mxu0 0.0
      %1409 = vmatpush1.msra.mxu0 0.0
      %1410 = vmatprep.subr.mxu0 0.0
      %1411 = vmatpush1.msra.mxu0 0.0
      %1412 = vmatprep.subr.mxu0 0.0
      %1413 = vmatpush1.msra.mxu0 0.0
      %1414 = vmatprep.subr.mxu0 0.0
      %1415 = vmatpush1.msra.mxu0 0.0
      %1416 = vmatprep.subr.mxu0 0.0
      %1417 = vmatpush1.msra.mxu0 0.0
      %1418 = vmatprep.subr.mxu0 0.0
      %1419 = vmatpush1.msra.mxu0 0.0
      %1420 = vmatprep.subr.mxu0 0.0
      %1421 = vmatpush1.msra.mxu0 0.0
      %1422 = vmatprep.subr.mxu0 0.0
      %1423 = vmatpush1.msra.mxu0 0.0
      %1424 = vmatprep.subr.mxu0 0.0
      %1425 = vmatpush1.msra.mxu0 0.0
      %1426 = vmatprep.subr.mxu0 0.0
      %1427 = vmatpush1.msra.mxu0 0.0
      %1428 = vmatprep.subr.mxu0 0.0
      %1429 = vmatpush1.msra.mxu0 0.0
      %1430 = vmatprep.subr.mxu0 0.0
      %1431 = vmatpush1.msra.mxu0 0.0
      %1432 = vmatprep.subr.mxu0 0.0
      %1433 = vmatpush1.msra.mxu0 0.0
      %1434 = vmatprep.subr.mxu0 0.0
      %1435 = vmatpush1.msra.mxu0 0.0
      %1436 = vmatprep.subr.mxu0 0.0
      %1437 = vmatpush1.msra.mxu0 0.0
      %1438 = vmatprep.subr.mxu0 0.0
      %1439 = vmatpush1.msra.mxu0 0.0
      %1440 = vmatprep.subr.mxu0 0.0
      %1441 = vmatpush1.msra.mxu0 0.0
      %1442 = vmatprep.subr.mxu0 0.0
      %1443 = vmatpush1.msra.mxu0 0.0
      %1444 = vmatprep.subr.mxu0 0.0
      %1445 = vmatpush1.msra.mxu0 0.0
      %1446 = vmatprep.subr.mxu0 0.0
      %1447 = vmatpush1.msra.mxu0 0.0
      %1448 = vmatprep.subr.mxu0 0.0
      %1449 = vmatpush1.msra.mxu0 0.0
      %1450 = vmatprep.subr.mxu0 0.0
      %1451 = vmatpush1.msra.mxu0 0.0
      %1452 = vmatprep.mubr.f32.mxu0 0.0
      %1453 = vmatmul.mubr.f32.gmra.mrb[0].mxu0 %v1386
      %v1454 = vpop.f32.mrb[0].mxu0
      %v1455 = vadd.f32 0.0, %v1454
      %v1456 = vpop.f32.mrb[0].mxu0
      %1457 = vdwg.mxu0
      %1458 = vrot.lane.b32.xlu0 %v580, 64
      %v1459 = vpop.permute.xlu0 %1458
      %1460 = vrot.lane.b32.xlu0 %v684, 64
      %v1461 = vpop.permute.xlu0 %1460
      %v1462 = vsel %vm800, %v1459, 0
      %v1464 = vsel %vm800, %v1461, 0
      %1466 = vmatprep.subr.mxu0 0.0
      %1467 = vmatpush1.xpose.msra.mxu0 %v1464
      %1468 = vmatprep.subr.mxu0 0.0
      %1469 = vmatpush1.xpose.msra.mxu0 0.0
      %1470 = vmatprep.subr.mxu0 0.0
      %1471 = vmatpush1.xpose.msra.mxu0 0.0
      %1472 = vmatprep.subr.mxu0 0.0
      %1473 = vmatpush1.xpose.msra.mxu0 0.0
      %1474 = vmatprep.subr.mxu0 0.0
      %1475 = vmatpush1.xpose.msra.mxu0 0.0
      %1476 = vmatprep.subr.mxu0 0.0
      %1477 = vmatpush1.xpose.msra.mxu0 0.0
      %1478 = vmatprep.subr.mxu0 0.0
      %1479 = vmatpush1.xpose.msra.mxu0 0.0
      %1480 = vmatprep.subr.mxu0 0.0
      %1481 = vmatpush1.xpose.msra.mxu0 0.0
      %1482 = vmatprep.subr.mxu0 0.0
      %1483 = vmatpush1.xpose.msra.mxu0 0.0
      %1484 = vmatprep.subr.mxu0 0.0
      %1485 = vmatpush1.xpose.msra.mxu0 0.0
      %1486 = vmatprep.subr.mxu0 0.0
      %1487 = vmatpush1.xpose.msra.mxu0 0.0
      %1488 = vmatprep.subr.mxu0 0.0
      %1489 = vmatpush1.xpose.msra.mxu0 0.0
      %1490 = vmatprep.subr.mxu0 0.0
      %1491 = vmatpush1.xpose.msra.mxu0 0.0
      %1492 = vmatprep.subr.mxu0 0.0
      %1493 = vmatpush1.xpose.msra.mxu0 0.0
      %1494 = vmatprep.subr.mxu0 0.0
      %1495 = vmatpush1.xpose.msra.mxu0 0.0
      %1496 = vmatprep.subr.mxu0 0.0
      %1497 = vmatpush1.xpose.msra.mxu0 0.0
      %1498 = vmatprep.subr.mxu0 0.0
      %1499 = vmatpush1.xpose.msra.mxu0 0.0
      %1500 = vmatprep.subr.mxu0 0.0
      %1501 = vmatpush1.xpose.msra.mxu0 0.0
      %1502 = vmatprep.subr.mxu0 0.0
      %1503 = vmatpush1.xpose.msra.mxu0 0.0
      %1504 = vmatprep.subr.mxu0 0.0
      %1505 = vmatpush1.xpose.msra.mxu0 0.0
      %1506 = vmatprep.subr.mxu0 0.0
      %1507 = vmatpush1.xpose.msra.mxu0 0.0
      %1508 = vmatprep.subr.mxu0 0.0
      %1509 = vmatpush1.xpose.msra.mxu0 0.0
      %1510 = vmatprep.subr.mxu0 0.0
      %1511 = vmatpush1.xpose.msra.mxu0 0.0
      %1512 = vmatprep.subr.mxu0 0.0
      %1513 = vmatpush1.xpose.msra.mxu0 0.0
      %1514 = vmatprep.subr.mxu0 0.0
      %1515 = vmatpush1.xpose.msra.mxu0 0.0
      %1516 = vmatprep.subr.mxu0 0.0
      %1517 = vmatpush1.xpose.msra.mxu0 0.0
      %1518 = vmatprep.subr.mxu0 0.0
      %1519 = vmatpush1.xpose.msra.mxu0 0.0
      %1520 = vmatprep.subr.mxu0 0.0
      %1521 = vmatpush1.xpose.msra.mxu0 0.0
      %1522 = vmatprep.subr.mxu0 0.0
      %1523 = vmatpush1.xpose.msra.mxu0 0.0
      %1524 = vmatprep.subr.mxu0 0.0
      %1525 = vmatpush1.xpose.msra.mxu0 0.0
      %1526 = vmatprep.subr.mxu0 0.0
      %1527 = vmatpush1.xpose.msra.mxu0 0.0
      %1528 = vmatprep.subr.mxu0 0.0
      %1529 = vmatpush1.xpose.msra.mxu0 0.0
      %1530 = vmatprep.mubr.f32.mxu0 0.0
      %1531 = vmatmul.mubr.f32.gmra.mrb[0].mxu0 %v1462
      %v1532 = vpop.f32.mrb[0].mxu0
      %v1533 = vadd.f32 %v798, %v1532
      %v1534 = vpop.f32.mrb[0].mxu0
      %1535 = vdwg.mxu0
      %v1536 = vsel %vm877, %v1533, -inf
      %1537 = vmax.xlane.f32.xlu0 %v1536
      %v1538 = vpop.xlane.xlu0 %1537
      %v1539 = vsub.f32 %v1533, %v1538
      %v1540 = vmul.f32 %v1539, 1.442695
      %v1541 = vpow.pop %v1540
      %v1542 = vsel %vm877, %v1541, 0.0
      %1543 = vadd.xlane.f32.xlu0 %v1542
      %v1544 = vpop.xlane.xlu0 %1543
      %v1545 = vrcp.pop %v1544
      %v1546 = vmul.f32 %v1541, %v1545
      %1547 = vrot.lane.b32.xlu0 %v788, 64
      %v1548 = vpop.permute.xlu0 %1547
      %v1551 = vsel %vm877, %v1546, 0
      %1553 = vmatprep.subr.mxu0 0.0
      %1554 = vmatpush1.msra.mxu0 %v1548
      %1555 = vmatprep.subr.mxu0 0.0
      %1556 = vmatpush1.msra.mxu0 0.0
      %1557 = vmatprep.subr.mxu0 0.0
      %1558 = vmatpush1.msra.mxu0 0.0
      %1559 = vmatprep.subr.mxu0 0.0
      %1560 = vmatpush1.msra.mxu0 0.0
      %1561 = vmatprep.subr.mxu0 0.0
      %1562 = vmatpush1.msra.mxu0 0.0
      %1563 = vmatprep.subr.mxu0 0.0
      %1564 = vmatpush1.msra.mxu0 0.0
      %1565 = vmatprep.subr.mxu0 0.0
      %1566 = vmatpush1.msra.mxu0 0.0
      %1567 = vmatprep.subr.mxu0 0.0
      %1568 = vmatpush1.msra.mxu0 0.0
      %1569 = vmatprep.subr.mxu0 0.0
      %1570 = vmatpush1.msra.mxu0 0.0
      %1571 = vmatprep.subr.mxu0 0.0
      %1572 = vmatpush1.msra.mxu0 0.0
      %1573 = vmatprep.subr.mxu0 0.0
      %1574 = vmatpush1.msra.mxu0 0.0
      %1575 = vmatprep.subr.mxu0 0.0
      %1576 = vmatpush1.msra.mxu0 0.0
      %1577 = vmatprep.subr.mxu0 0.0
      %1578 = vmatpush1.msra.mxu0 0.0
      %1579 = vmatprep.subr.mxu0 0.0
      %1580 = vmatpush1.msra.mxu0 0.0
      %1581 = vmatprep.subr.mxu0 0.0
      %1582 = vmatpush1.msra.mxu0 0.0
      %1583 = vmatprep.subr.mxu0 0.0
      %1584 = vmatpush1.msra.mxu0 0.0
      %1585 = vmatprep.subr.mxu0 0.0
      %1586 = vmatpush1.msra.mxu0 0.0
      %1587 = vmatprep.subr.mxu0 0.0
      %1588 = vmatpush1.msra.mxu0 0.0
      %1589 = vmatprep.subr.mxu0 0.0
      %1590 = vmatpush1.msra.mxu0 0.0
      %1591 = vmatprep.subr.mxu0 0.0
      %1592 = vmatpush1.msra.mxu0 0.0
      %1593 = vmatprep.subr.mxu0 0.0
      %1594 = vmatpush1.msra.mxu0 0.0
      %1595 = vmatprep.subr.mxu0 0.0
      %1596 = vmatpush1.msra.mxu0 0.0
      %1597 = vmatprep.subr.mxu0 0.0
      %1598 = vmatpush1.msra.mxu0 0.0
      %1599 = vmatprep.subr.mxu0 0.0
      %1600 = vmatpush1.msra.mxu0 0.0
      %1601 = vmatprep.subr.mxu0 0.0
      %1602 = vmatpush1.msra.mxu0 0.0
      %1603 = vmatprep.subr.mxu0 0.0
      %1604 = vmatpush1.msra.mxu0 0.0
      %1605 = vmatprep.subr.mxu0 0.0
      %1606 = vmatpush1.msra.mxu0 0.0
      %1607 = vmatprep.subr.mxu0 0.0
      %1608 = vmatpush1.msra.mxu0 0.0
      %1609 = vmatprep.subr.mxu0 0.0
      %1610 = vmatpush1.msra.mxu0 0.0
      %1611 = vmatprep.subr.mxu0 0.0
      %1612 = vmatpush1.msra.mxu0 0.0
      %1613 = vmatprep.subr.mxu0 0.0
      %1614 = vmatpush1.msra.mxu0 0.0
      %1615 = vmatprep.subr.mxu0 0.0
      %1616 = vmatpush1.msra.mxu0 0.0
      %1617 = vmatprep.mubr.f32.mxu0 0.0
      %1618 = vmatmul.mubr.f32.gmra.mrb[0].mxu0 %v1551
      %v1619 = vpop.f32.mrb[0].mxu0
      %v1620 = vadd.f32 0.0, %v1619
      %v1621 = vpop.f32.mrb[0].mxu0
      %1622 = vdwg.mxu0
      %1623 = vrot.lane.b32.xlu0 %v580, 48
      %v1624 = vpop.permute.xlu0 %1623
      %1625 = vrot.lane.b32.xlu0 %v684, 48
      %v1626 = vpop.permute.xlu0 %1625
      %v1627 = vsel %vm800, %v1624, 0
      %v1629 = vsel %vm800, %v1626, 0
      %1631 = vmatprep.subr.mxu0 0.0
      %1632 = vmatpush1.xpose.msra.mxu0 %v1629
      %1633 = vmatprep.subr.mxu0 0.0
      %1634 = vmatpush1.xpose.msra.mxu0 0.0
      %1635 = vmatprep.subr.mxu0 0.0
      %1636 = vmatpush1.xpose.msra.mxu0 0.0
      %1637 = vmatprep.subr.mxu0 0.0
      %1638 = vmatpush1.xpose.msra.mxu0 0.0
      %1639 = vmatprep.subr.mxu0 0.0
      %1640 = vmatpush1.xpose.msra.mxu0 0.0
      %1641 = vmatprep.subr.mxu0 0.0
      %1642 = vmatpush1.xpose.msra.mxu0 0.0
      %1643 = vmatprep.subr.mxu0 0.0
      %1644 = vmatpush1.xpose.msra.mxu0 0.0
      %1645 = vmatprep.subr.mxu0 0.0
      %1646 = vmatpush1.xpose.msra.mxu0 0.0
      %1647 = vmatprep.subr.mxu0 0.0
      %1648 = vmatpush1.xpose.msra.mxu0 0.0
      %1649 = vmatprep.subr.mxu0 0.0
      %1650 = vmatpush1.xpose.msra.mxu0 0.0
      %1651 = vmatprep.subr.mxu0 0.0
      %1652 = vmatpush1.xpose.msra.mxu0 0.0
      %1653 = vmatprep.subr.mxu0 0.0
      %1654 = vmatpush1.xpose.msra.mxu0 0.0
      %1655 = vmatprep.subr.mxu0 0.0
      %1656 = vmatpush1.xpose.msra.mxu0 0.0
      %1657 = vmatprep.subr.mxu0 0.0
      %1658 = vmatpush1.xpose.msra.mxu0 0.0
      %1659 = vmatprep.subr.mxu0 0.0
      %1660 = vmatpush1.xpose.msra.mxu0 0.0
      %1661 = vmatprep.subr.mxu0 0.0
      %1662 = vmatpush1.xpose.msra.mxu0 0.0
      %1663 = vmatprep.subr.mxu0 0.0
      %1664 = vmatpush1.xpose.msra.mxu0 0.0
      %1665 = vmatprep.subr.mxu0 0.0
      %1666 = vmatpush1.xpose.msra.mxu0 0.0
      %1667 = vmatprep.subr.mxu0 0.0
      %1668 = vmatpush1.xpose.msra.mxu0 0.0
      %1669 = vmatprep.subr.mxu0 0.0
      %1670 = vmatpush1.xpose.msra.mxu0 0.0
      %1671 = vmatprep.subr.mxu0 0.0
      %1672 = vmatpush1.xpose.msra.mxu0 0.0
      %1673 = vmatprep.subr.mxu0 0.0
      %1674 = vmatpush1.xpose.msra.mxu0 0.0
      %1675 = vmatprep.subr.mxu0 0.0
      %1676 = vmatpush1.xpose.msra.mxu0 0.0
      %1677 = vmatprep.subr.mxu0 0.0
      %1678 = vmatpush1.xpose.msra.mxu0 0.0
      %1679 = vmatprep.subr.mxu0 0.0
      %1680 = vmatpush1.xpose.msra.mxu0 0.0
      %1681 = vmatprep.subr.mxu0 0.0
      %1682 = vmatpush1.xpose.msra.mxu0 0.0
      %1683 = vmatprep.subr.mxu0 0.0
      %1684 = vmatpush1.xpose.msra.mxu0 0.0
      %1685 = vmatprep.subr.mxu0 0.0
      %1686 = vmatpush1.xpose.msra.mxu0 0.0
      %1687 = vmatprep.subr.mxu0 0.0
      %1688 = vmatpush1.xpose.msra.mxu0 0.0
      %1689 = vmatprep.subr.mxu0 0.0
      %1690 = vmatpush1.xpose.msra.mxu0 0.0
      %1691 = vmatprep.subr.mxu0 0.0
      %1692 = vmatpush1.xpose.msra.mxu0 0.0
      %1693 = vmatprep.subr.mxu0 0.0
      %1694 = vmatpush1.xpose.msra.mxu0 0.0
      %1695 = vmatprep.mubr.f32.mxu0 0.0
      %1696 = vmatmul.mubr.f32.gmra.mrb[0].mxu0 %v1627
      %v1697 = vpop.f32.mrb[0].mxu0
      %v1698 = vadd.f32 %v798, %v1697
      %v1699 = vpop.f32.mrb[0].mxu0
      %1700 = vdwg.mxu0
      %v1701 = vsel %vm877, %v1698, -inf
      %1702 = vmax.xlane.f32.xlu0 %v1701
      %v1703 = vpop.xlane.xlu0 %1702
      %v1704 = vsub.f32 %v1698, %v1703
      %v1705 = vmul.f32 %v1704, 1.442695
      %v1706 = vpow.pop %v1705
      %v1707 = vsel %vm877, %v1706, 0.0
      %1708 = vadd.xlane.f32.xlu0 %v1707
      %v1709 = vpop.xlane.xlu0 %1708
      %v1710 = vrcp.pop %v1709
      %v1711 = vmul.f32 %v1706, %v1710
      %1712 = vrot.lane.b32.xlu0 %v788, 48
      %v1713 = vpop.permute.xlu0 %1712
      %v1716 = vsel %vm877, %v1711, 0
      %1718 = vmatprep.subr.mxu0 0.0
      %1719 = vmatpush1.msra.mxu0 %v1713
      %1720 = vmatprep.subr.mxu0 0.0
      %1721 = vmatpush1.msra.mxu0 0.0
      %1722 = vmatprep.subr.mxu0 0.0
      %1723 = vmatpush1.msra.mxu0 0.0
      %1724 = vmatprep.subr.mxu0 0.0
      %1725 = vmatpush1.msra.mxu0 0.0
      %1726 = vmatprep.subr.mxu0 0.0
      %1727 = vmatpush1.msra.mxu0 0.0
      %1728 = vmatprep.subr.mxu0 0.0
      %1729 = vmatpush1.msra.mxu0 0.0
      %1730 = vmatprep.subr.mxu0 0.0
      %1731 = vmatpush1.msra.mxu0 0.0
      %1732 = vmatprep.subr.mxu0 0.0
      %1733 = vmatpush1.msra.mxu0 0.0
      %1734 = vmatprep.subr.mxu0 0.0
      %1735 = vmatpush1.msra.mxu0 0.0
      %1736 = vmatprep.subr.mxu0 0.0
      %1737 = vmatpush1.msra.mxu0 0.0
      %1738 = vmatprep.subr.mxu0 0.0
      %1739 = vmatpush1.msra.mxu0 0.0
      %1740 = vmatprep.subr.mxu0 0.0
      %1741 = vmatpush1.msra.mxu0 0.0
      %1742 = vmatprep.subr.mxu0 0.0
      %1743 = vmatpush1.msra.mxu0 0.0
      %1744 = vmatprep.subr.mxu0 0.0
      %1745 = vmatpush1.msra.mxu0 0.0
      %1746 = vmatprep.subr.mxu0 0.0
      %1747 = vmatpush1.msra.mxu0 0.0
      %1748 = vmatprep.subr.mxu0 0.0
      %1749 = vmatpush1.msra.mxu0 0.0
      %1750 = vmatprep.subr.mxu0 0.0
      %1751 = vmatpush1.msra.mxu0 0.0
      %1752 = vmatprep.subr.mxu0 0.0
      %1753 = vmatpush1.msra.mxu0 0.0
      %1754 = vmatprep.subr.mxu0 0.0
      %1755 = vmatpush1.msra.mxu0 0.0
      %1756 = vmatprep.subr.mxu0 0.0
      %1757 = vmatpush1.msra.mxu0 0.0
      %1758 = vmatprep.subr.mxu0 0.0
      %1759 = vmatpush1.msra.mxu0 0.0
      %1760 = vmatprep.subr.mxu0 0.0
      %1761 = vmatpush1.msra.mxu0 0.0
      %1762 = vmatprep.subr.mxu0 0.0
      %1763 = vmatpush1.msra.mxu0 0.0
      %1764 = vmatprep.subr.mxu0 0.0
      %1765 = vmatpush1.msra.mxu0 0.0
      %1766 = vmatprep.subr.mxu0 0.0
      %1767 = vmatpush1.msra.mxu0 0.0
      %1768 = vmatprep.subr.mxu0 0.0
      %1769 = vmatpush1.msra.mxu0 0.0
      %1770 = vmatprep.subr.mxu0 0.0
      %1771 = vmatpush1.msra.mxu0 0.0
      %1772 = vmatprep.subr.mxu0 0.0
      %1773 = vmatpush1.msra.mxu0 0.0
      %1774 = vmatprep.subr.mxu0 0.0
      %1775 = vmatpush1.msra.mxu0 0.0
      %1776 = vmatprep.subr.mxu0 0.0
      %1777 = vmatpush1.msra.mxu0 0.0
      %1778 = vmatprep.subr.mxu0 0.0
      %1779 = vmatpush1.msra.mxu0 0.0
      %1780 = vmatprep.subr.mxu0 0.0
      %1781 = vmatpush1.msra.mxu0 0.0
      %1782 = vmatprep.mubr.f32.mxu0 0.0
      %1783 = vmatmul.mubr.f32.gmra.mrb[0].mxu0 %v1716
      %v1784 = vpop.f32.mrb[0].mxu0
      %v1785 = vadd.f32 0.0, %v1784
      %v1786 = vpop.f32.mrb[0].mxu0
      %1787 = vdwg.mxu0
      %1788 = vrot.lane.b32.xlu0 %v580, 32
      %v1789 = vpop.permute.xlu0 %1788
      %1790 = vrot.lane.b32.xlu0 %v684, 32
      %v1791 = vpop.permute.xlu0 %1790
      %v1792 = vsel %vm800, %v1789, 0
      %v1794 = vsel %vm800, %v1791, 0
      %1796 = vmatprep.subr.mxu0 0.0
      %1797 = vmatpush1.xpose.msra.mxu0 %v1794
      %1798 = vmatprep.subr.mxu0 0.0
      %1799 = vmatpush1.xpose.msra.mxu0 0.0
      %1800 = vmatprep.subr.mxu0 0.0
      %1801 = vmatpush1.xpose.msra.mxu0 0.0
      %1802 = vmatprep.subr.mxu0 0.0
      %1803 = vmatpush1.xpose.msra.mxu0 0.0
      %1804 = vmatprep.subr.mxu0 0.0
      %1805 = vmatpush1.xpose.msra.mxu0 0.0
      %1806 = vmatprep.subr.mxu0 0.0
      %1807 = vmatpush1.xpose.msra.mxu0 0.0
      %1808 = vmatprep.subr.mxu0 0.0
      %1809 = vmatpush1.xpose.msra.mxu0 0.0
      %1810 = vmatprep.subr.mxu0 0.0
      %1811 = vmatpush1.xpose.msra.mxu0 0.0
      %1812 = vmatprep.subr.mxu0 0.0
      %1813 = vmatpush1.xpose.msra.mxu0 0.0
      %1814 = vmatprep.subr.mxu0 0.0
      %1815 = vmatpush1.xpose.msra.mxu0 0.0
      %1816 = vmatprep.subr.mxu0 0.0
      %1817 = vmatpush1.xpose.msra.mxu0 0.0
      %1818 = vmatprep.subr.mxu0 0.0
      %1819 = vmatpush1.xpose.msra.mxu0 0.0
      %1820 = vmatprep.subr.mxu0 0.0
      %1821 = vmatpush1.xpose.msra.mxu0 0.0
      %1822 = vmatprep.subr.mxu0 0.0
      %1823 = vmatpush1.xpose.msra.mxu0 0.0
      %1824 = vmatprep.subr.mxu0 0.0
      %1825 = vmatpush1.xpose.msra.mxu0 0.0
      %1826 = vmatprep.subr.mxu0 0.0
      %1827 = vmatpush1.xpose.msra.mxu0 0.0
      %1828 = vmatprep.subr.mxu0 0.0
      %1829 = vmatpush1.xpose.msra.mxu0 0.0
      %1830 = vmatprep.subr.mxu0 0.0
      %1831 = vmatpush1.xpose.msra.mxu0 0.0
      %1832 = vmatprep.subr.mxu0 0.0
      %1833 = vmatpush1.xpose.msra.mxu0 0.0
      %1834 = vmatprep.subr.mxu0 0.0
      %1835 = vmatpush1.xpose.msra.mxu0 0.0
      %1836 = vmatprep.subr.mxu0 0.0
      %1837 = vmatpush1.xpose.msra.mxu0 0.0
      %1838 = vmatprep.subr.mxu0 0.0
      %1839 = vmatpush1.xpose.msra.mxu0 0.0
      %1840 = vmatprep.subr.mxu0 0.0
      %1841 = vmatpush1.xpose.msra.mxu0 0.0
      %1842 = vmatprep.subr.mxu0 0.0
      %1843 = vmatpush1.xpose.msra.mxu0 0.0
      %1844 = vmatprep.subr.mxu0 0.0
      %1845 = vmatpush1.xpose.msra.mxu0 0.0
      %1846 = vmatprep.subr.mxu0 0.0
      %1847 = vmatpush1.xpose.msra.mxu0 0.0
      %1848 = vmatprep.subr.mxu0 0.0
      %1849 = vmatpush1.xpose.msra.mxu0 0.0
      %1850 = vmatprep.subr.mxu0 0.0
      %1851 = vmatpush1.xpose.msra.mxu0 0.0
      %1852 = vmatprep.subr.mxu0 0.0
      %1853 = vmatpush1.xpose.msra.mxu0 0.0
      %1854 = vmatprep.subr.mxu0 0.0
      %1855 = vmatpush1.xpose.msra.mxu0 0.0
      %1856 = vmatprep.subr.mxu0 0.0
      %1857 = vmatpush1.xpose.msra.mxu0 0.0
      %1858 = vmatprep.subr.mxu0 0.0
      %1859 = vmatpush1.xpose.msra.mxu0 0.0
      %1860 = vmatprep.mubr.f32.mxu0 0.0
      %1861 = vmatmul.mubr.f32.gmra.mrb[0].mxu0 %v1792
      %v1862 = vpop.f32.mrb[0].mxu0
      %v1863 = vadd.f32 %v798, %v1862
      %v1864 = vpop.f32.mrb[0].mxu0
      %1865 = vdwg.mxu0
      %v1866 = vsel %vm877, %v1863, -inf
      %1867 = vmax.xlane.f32.xlu0 %v1866
      %v1868 = vpop.xlane.xlu0 %1867
      %v1869 = vsub.f32 %v1863, %v1868
      %v1870 = vmul.f32 %v1869, 1.442695
      %v1871 = vpow.pop %v1870
      %v1872 = vsel %vm877, %v1871, 0.0
      %1873 = vadd.xlane.f32.xlu0 %v1872
      %v1874 = vpop.xlane.xlu0 %1873
      %v1875 = vrcp.pop %v1874
      %v1876 = vmul.f32 %v1871, %v1875
      %1877 = vrot.lane.b32.xlu0 %v788, 32
      %v1878 = vpop.permute.xlu0 %1877
      %v1881 = vsel %vm877, %v1876, 0
      %1883 = vmatprep.subr.mxu0 0.0
      %1884 = vmatpush1.msra.mxu0 %v1878
      %1885 = vmatprep.subr.mxu0 0.0
      %1886 = vmatpush1.msra.mxu0 0.0
      %1887 = vmatprep.subr.mxu0 0.0
      %1888 = vmatpush1.msra.mxu0 0.0
      %1889 = vmatprep.subr.mxu0 0.0
      %1890 = vmatpush1.msra.mxu0 0.0
      %1891 = vmatprep.subr.mxu0 0.0
      %1892 = vmatpush1.msra.mxu0 0.0
      %1893 = vmatprep.subr.mxu0 0.0
      %1894 = vmatpush1.msra.mxu0 0.0
      %1895 = vmatprep.subr.mxu0 0.0
      %1896 = vmatpush1.msra.mxu0 0.0
      %1897 = vmatprep.subr.mxu0 0.0
      %1898 = vmatpush1.msra.mxu0 0.0
      %1899 = vmatprep.subr.mxu0 0.0
      %1900 = vmatpush1.msra.mxu0 0.0
      %1901 = vmatprep.subr.mxu0 0.0
      %1902 = vmatpush1.msra.mxu0 0.0
      %1903 = vmatprep.subr.mxu0 0.0
      %1904 = vmatpush1.msra.mxu0 0.0
      %1905 = vmatprep.subr.mxu0 0.0
      %1906 = vmatpush1.msra.mxu0 0.0
      %1907 = vmatprep.subr.mxu0 0.0
      %1908 = vmatpush1.msra.mxu0 0.0
      %1909 = vmatprep.subr.mxu0 0.0
      %1910 = vmatpush1.msra.mxu0 0.0
      %1911 = vmatprep.subr.mxu0 0.0
      %1912 = vmatpush1.msra.mxu0 0.0
      %1913 = vmatprep.subr.mxu0 0.0
      %1914 = vmatpush1.msra.mxu0 0.0
      %1915 = vmatprep.subr.mxu0 0.0
      %1916 = vmatpush1.msra.mxu0 0.0
      %1917 = vmatprep.subr.mxu0 0.0
      %1918 = vmatpush1.msra.mxu0 0.0
      %1919 = vmatprep.subr.mxu0 0.0
      %1920 = vmatpush1.msra.mxu0 0.0
      %1921 = vmatprep.subr.mxu0 0.0
      %1922 = vmatpush1.msra.mxu0 0.0
      %1923 = vmatprep.subr.mxu0 0.0
      %1924 = vmatpush1.msra.mxu0 0.0
      %1925 = vmatprep.subr.mxu0 0.0
      %1926 = vmatpush1.msra.mxu0 0.0
      %1927 = vmatprep.subr.mxu0 0.0
      %1928 = vmatpush1.msra.mxu0 0.0
      %1929 = vmatprep.subr.mxu0 0.0
      %1930 = vmatpush1.msra.mxu0 0.0
      %1931 = vmatprep.subr.mxu0 0.0
      %1932 = vmatpush1.msra.mxu0 0.0
      %1933 = vmatprep.subr.mxu0 0.0
      %1934 = vmatpush1.msra.mxu0 0.0
      %1935 = vmatprep.subr.mxu0 0.0
      %1936 = vmatpush1.msra.mxu0 0.0
      %1937 = vmatprep.subr.mxu0 0.0
      %1938 = vmatpush1.msra.mxu0 0.0
      %1939 = vmatprep.subr.mxu0 0.0
      %1940 = vmatpush1.msra.mxu0 0.0
      %1941 = vmatprep.subr.mxu0 0.0
      %1942 = vmatpush1.msra.mxu0 0.0
      %1943 = vmatprep.subr.mxu0 0.0
      %1944 = vmatpush1.msra.mxu0 0.0
      %1945 = vmatprep.subr.mxu0 0.0
      %1946 = vmatpush1.msra.mxu0 0.0
      %1947 = vmatprep.mubr.f32.mxu0 0.0
      %1948 = vmatmul.mubr.f32.gmra.mrb[0].mxu0 %v1881
      %v1949 = vpop.f32.mrb[0].mxu0
      %v1950 = vadd.f32 0.0, %v1949
      %v1951 = vpop.f32.mrb[0].mxu0
      %1952 = vdwg.mxu0
      %1953 = vrot.lane.b32.xlu0 %v580, 16
      %v1954 = vpop.permute.xlu0 %1953
      %1955 = vrot.lane.b32.xlu0 %v684, 16
      %v1956 = vpop.permute.xlu0 %1955
      %v1957 = vsel %vm800, %v1954, 0
      %v1959 = vsel %vm800, %v1956, 0
      %1961 = vmatprep.subr.mxu0 0.0
      %1962 = vmatpush1.xpose.msra.mxu0 %v1959
      %1963 = vmatprep.subr.mxu0 0.0
      %1964 = vmatpush1.xpose.msra.mxu0 0.0
      %1965 = vmatprep.subr.mxu0 0.0
      %1966 = vmatpush1.xpose.msra.mxu0 0.0
      %1967 = vmatprep.subr.mxu0 0.0
      %1968 = vmatpush1.xpose.msra.mxu0 0.0
      %1969 = vmatprep.subr.mxu0 0.0
      %1970 = vmatpush1.xpose.msra.mxu0 0.0
      %1971 = vmatprep.subr.mxu0 0.0
      %1972 = vmatpush1.xpose.msra.mxu0 0.0
      %1973 = vmatprep.subr.mxu0 0.0
      %1974 = vmatpush1.xpose.msra.mxu0 0.0
      %1975 = vmatprep.subr.mxu0 0.0
      %1976 = vmatpush1.xpose.msra.mxu0 0.0
      %1977 = vmatprep.subr.mxu0 0.0
      %1978 = vmatpush1.xpose.msra.mxu0 0.0
      %1979 = vmatprep.subr.mxu0 0.0
      %1980 = vmatpush1.xpose.msra.mxu0 0.0
      %1981 = vmatprep.subr.mxu0 0.0
      %1982 = vmatpush1.xpose.msra.mxu0 0.0
      %1983 = vmatprep.subr.mxu0 0.0
      %1984 = vmatpush1.xpose.msra.mxu0 0.0
      %1985 = vmatprep.subr.mxu0 0.0
      %1986 = vmatpush1.xpose.msra.mxu0 0.0
      %1987 = vmatprep.subr.mxu0 0.0
      %1988 = vmatpush1.xpose.msra.mxu0 0.0
      %1989 = vmatprep.subr.mxu0 0.0
      %1990 = vmatpush1.xpose.msra.mxu0 0.0
      %1991 = vmatprep.subr.mxu0 0.0
      %1992 = vmatpush1.xpose.msra.mxu0 0.0
      %1993 = vmatprep.subr.mxu0 0.0
      %1994 = vmatpush1.xpose.msra.mxu0 0.0
      %1995 = vmatprep.subr.mxu0 0.0
      %1996 = vmatpush1.xpose.msra.mxu0 0.0
      %1997 = vmatprep.subr.mxu0 0.0
      %1998 = vmatpush1.xpose.msra.mxu0 0.0
      %1999 = vmatprep.subr.mxu0 0.0
      %2000 = vmatpush1.xpose.msra.mxu0 0.0
      %2001 = vmatprep.subr.mxu0 0.0
      %2002 = vmatpush1.xpose.msra.mxu0 0.0
      %2003 = vmatprep.subr.mxu0 0.0
      %2004 = vmatpush1.xpose.msra.mxu0 0.0
      %2005 = vmatprep.subr.mxu0 0.0
      %2006 = vmatpush1.xpose.msra.mxu0 0.0
      %2007 = vmatprep.subr.mxu0 0.0
      %2008 = vmatpush1.xpose.msra.mxu0 0.0
      %2009 = vmatprep.subr.mxu0 0.0
      %2010 = vmatpush1.xpose.msra.mxu0 0.0
      %2011 = vmatprep.subr.mxu0 0.0
      %2012 = vmatpush1.xpose.msra.mxu0 0.0
      %2013 = vmatprep.subr.mxu0 0.0
      %2014 = vmatpush1.xpose.msra.mxu0 0.0
      %2015 = vmatprep.subr.mxu0 0.0
      %2016 = vmatpush1.xpose.msra.mxu0 0.0
      %2017 = vmatprep.subr.mxu0 0.0
      %2018 = vmatpush1.xpose.msra.mxu0 0.0
      %2019 = vmatprep.subr.mxu0 0.0
      %2020 = vmatpush1.xpose.msra.mxu0 0.0
      %2021 = vmatprep.subr.mxu0 0.0
      %2022 = vmatpush1.xpose.msra.mxu0 0.0
      %2023 = vmatprep.subr.mxu0 0.0
      %2024 = vmatpush1.xpose.msra.mxu0 0.0
      %2025 = vmatprep.mubr.f32.mxu0 0.0
      %2026 = vmatmul.mubr.f32.gmra.mrb[0].mxu0 %v1957
      %v2027 = vpop.f32.mrb[0].mxu0
      %v2028 = vadd.f32 %v798, %v2027
      %v2029 = vpop.f32.mrb[0].mxu0
      %2030 = vdwg.mxu0
      %v2031 = vsel %vm877, %v2028, -inf
      %2032 = vmax.xlane.f32.xlu0 %v2031
      %v2033 = vpop.xlane.xlu0 %2032
      %v2034 = vsub.f32 %v2028, %v2033
      %v2035 = vmul.f32 %v2034, 1.442695
      %v2036 = vpow.pop %v2035
      %v2037 = vsel %vm877, %v2036, 0.0
      %2038 = vadd.xlane.f32.xlu0 %v2037
      %v2039 = vpop.xlane.xlu0 %2038
      %v2040 = vrcp.pop %v2039
      %v2041 = vmul.f32 %v2036, %v2040
      %2042 = vrot.lane.b32.xlu0 %v788, 16
      %v2043 = vpop.permute.xlu0 %2042
      %v2046 = vsel %vm877, %v2041, 0
      %2048 = vmatprep.subr.mxu0 0.0
      %2049 = vmatpush1.msra.mxu0 %v2043
      %2050 = vmatprep.subr.mxu0 0.0
      %2051 = vmatpush1.msra.mxu0 0.0
      %2052 = vmatprep.subr.mxu0 0.0
      %2053 = vmatpush1.msra.mxu0 0.0
      %2054 = vmatprep.subr.mxu0 0.0
      %2055 = vmatpush1.msra.mxu0 0.0
      %2056 = vmatprep.subr.mxu0 0.0
      %2057 = vmatpush1.msra.mxu0 0.0
      %2058 = vmatprep.subr.mxu0 0.0
      %2059 = vmatpush1.msra.mxu0 0.0
      %2060 = vmatprep.subr.mxu0 0.0
      %2061 = vmatpush1.msra.mxu0 0.0
      %2062 = vmatprep.subr.mxu0 0.0
      %2063 = vmatpush1.msra.mxu0 0.0
      %2064 = vmatprep.subr.mxu0 0.0
      %2065 = vmatpush1.msra.mxu0 0.0
      %2066 = vmatprep.subr.mxu0 0.0
      %2067 = vmatpush1.msra.mxu0 0.0
      %2068 = vmatprep.subr.mxu0 0.0
      %2069 = vmatpush1.msra.mxu0 0.0
      %2070 = vmatprep.subr.mxu0 0.0
      %2071 = vmatpush1.msra.mxu0 0.0
      %2072 = vmatprep.subr.mxu0 0.0
      %2073 = vmatpush1.msra.mxu0 0.0
      %2074 = vmatprep.subr.mxu0 0.0
      %2075 = vmatpush1.msra.mxu0 0.0
      %2076 = vmatprep.subr.mxu0 0.0
      %2077 = vmatpush1.msra.mxu0 0.0
      %2078 = vmatprep.subr.mxu0 0.0
      %2079 = vmatpush1.msra.mxu0 0.0
      %2080 = vmatprep.subr.mxu0 0.0
      %2081 = vmatpush1.msra.mxu0 0.0
      %2082 = vmatprep.subr.mxu0 0.0
      %2083 = vmatpush1.msra.mxu0 0.0
      %2084 = vmatprep.subr.mxu0 0.0
      %2085 = vmatpush1.msra.mxu0 0.0
      %2086 = vmatprep.subr.mxu0 0.0
      %2087 = vmatpush1.msra.mxu0 0.0
      %2088 = vmatprep.subr.mxu0 0.0
      %2089 = vmatpush1.msra.mxu0 0.0
      %2090 = vmatprep.subr.mxu0 0.0
      %2091 = vmatpush1.msra.mxu0 0.0
      %2092 = vmatprep.subr.mxu0 0.0
      %2093 = vmatpush1.msra.mxu0 0.0
      %2094 = vmatprep.subr.mxu0 0.0
      %2095 = vmatpush1.msra.mxu0 0.0
      %2096 = vmatprep.subr.mxu0 0.0
      %2097 = vmatpush1.msra.mxu0 0.0
      %2098 = vmatprep.subr.mxu0 0.0
      %2099 = vmatpush1.msra.mxu0 0.0
      %2100 = vmatprep.subr.mxu0 0.0
      %2101 = vmatpush1.msra.mxu0 0.0
      %2102 = vmatprep.subr.mxu0 0.0
      %2103 = vmatpush1.msra.mxu0 0.0
      %2104 = vmatprep.subr.mxu0 0.0
      %2105 = vmatpush1.msra.mxu0 0.0
      %2106 = vmatprep.subr.mxu0 0.0
      %2107 = vmatpush1.msra.mxu0 0.0
      %2108 = vmatprep.subr.mxu0 0.0
      %2109 = vmatpush1.msra.mxu0 0.0
      %2110 = vmatprep.subr.mxu0 0.0
      %2111 = vmatpush1.msra.mxu0 0.0
      %2112 = vmatprep.mubr.f32.mxu0 0.0
      %2113 = vmatmul.mubr.f32.gmra.mrb[0].mxu0 %v2046
      %v2114 = vpop.f32.mrb[0].mxu0
      %v2115 = vadd.f32 0.0, %v2114
      %v2116 = vpop.f32.mrb[0].mxu0
      %2117 = vdwg.mxu0
      %2119 = vrot.lane.b32.xlu0 %v1125, 16
      %v2120 = vpop.permute.xlu0 %2119
      %2123 = vrot.lane.b32.xlu0 %v1290, 32
      %v2124 = vpop.permute.xlu0 %2123
      %2127 = vrot.lane.b32.xlu0 %v1455, 48
      %v2128 = vpop.permute.xlu0 %2127
      %2131 = vrot.lane.b32.xlu0 %v1620, 64
      %v2132 = vpop.permute.xlu0 %2131
      %2135 = vrot.lane.b32.xlu0 %v1785, 80
      %v2136 = vpop.permute.xlu0 %2135
      %2139 = vrot.lane.b32.xlu0 %v1950, 96
      %v2140 = vpop.permute.xlu0 %2139
      %2143 = vrot.lane.b32.xlu0 %v2115, 112
      %v2144 = vpop.permute.xlu0 %2143
      %v2146 = vsel %vm800, %v959, %v2120
      %vm2147 = vcmask 261120
      %v2148 = vsel %vm2147, %v2146, %v2124
      %vm2149 = vcmask 392192
      %v2150 = vsel %vm2149, %v2148, %v2128
      %vm2151 = vcmask 523264
      %v2152 = vsel %vm2151, %v2150, %v2132
      %vm2153 = vcmask 654336
      %v2154 = vsel %vm2153, %v2152, %v2136
      %vm2155 = vcmask 785408
      %v2156 = vsel %vm2155, %v2154, %v2140
      %vm2157 = vcmask 916480
      %v2158 = vsel %vm2157, %v2156, %v2144
      %v2159 = vpack.c.bf16 %v2158, %v2158
      %v2160 = vld [vmem:[%s8] sm:$0xf]
      %v2161 = vld [vmem:[%s8 + $0x4] sm:$0xf]
      %v2162 = vld [vmem:[%s8 + $0x8] sm:$0xf]
      %v2163 = vld [vmem:[%s8 + $0xc] sm:$0xf]
      %v2164 = vld [vmem:[%s8 + $0x10] sm:$0xf]
      %v2165 = vld [vmem:[%s8 + $0x14] sm:$0xf]
      %v2166 = vld [vmem:[%s8 + $0x18] sm:$0xf]
      %v2167 = vld [vmem:[%s8 + $0x1c] sm:$0xf]
      %v2168 = vld [vmem:[%s8 + $0x20] sm:$0xf]
      %v2169 = vld [vmem:[%s8 + $0x24] sm:$0xf]
      %v2170 = vld [vmem:[%s8 + $0x28] sm:$0xf]
      %v2171 = vld [vmem:[%s8 + $0x2c] sm:$0xf]
      %v2172 = vld [vmem:[%s8 + $0x30] sm:$0xf]
      %v2173 = vld [vmem:[%s8 + $0x34] sm:$0xf]
      %v2174 = vld [vmem:[%s8 + $0x38] sm:$0xf]
      %v2175 = vld [vmem:[%s8 + $0x3c] sm:$0xf]
      %v2176 = vld [vmem:[%s9] sm:$0x1]
      %v2178 = vlaneseq
      %v2179 = vshrl.u32 %v2178, 7
      %v2180 = vsub.s32 0, %v2179
      %v2181 = vrot.slane %v2176, %v2180
      %v2199 = vunpack.c.l.b16 %v2160
      %v2200 = vunpack.c.l.b16 %v2161
      %v2201 = vunpack.c.l.b16 %v2162
      %v2202 = vunpack.c.l.b16 %v2163
      %v2203 = vunpack.c.l.b16 %v2164
      %v2204 = vunpack.c.l.b16 %v2165
      %v2205 = vunpack.c.l.b16 %v2166
      %v2206 = vunpack.c.l.b16 %v2167
      %v2207 = vunpack.c.l.b16 %v2168
      %v2208 = vunpack.c.l.b16 %v2169
      %v2209 = vunpack.c.l.b16 %v2170
      %v2210 = vunpack.c.l.b16 %v2171
      %v2211 = vunpack.c.l.b16 %v2172
      %v2212 = vunpack.c.l.b16 %v2173
      %v2213 = vunpack.c.l.b16 %v2174
      %v2214 = vunpack.c.l.b16 %v2175
      %v2215 = vpack.c.b16 %v2200, %v2199
      %v2216 = vpack.c.b16 %v2202, %v2201
      %v2217 = vpack.c.b16 %v2204, %v2203
      %v2218 = vpack.c.b16 %v2206, %v2205
      %v2219 = vpack.c.b16 %v2208, %v2207
      %v2220 = vpack.c.b16 %v2210, %v2209
      %v2221 = vpack.c.b16 %v2212, %v2211
      %v2222 = vpack.c.b16 %v2214, %v2213
      %2231 = vmatprep.subr.bf16.mxu0 0
      %2232 = vmatpush1.bf16.msra.mxu0 %v2215
      %2233 = vmatprep.subr.bf16.mxu0 0
      %2234 = vmatpush1.bf16.msra.mxu0 %v2216
      %2235 = vmatprep.subr.bf16.mxu0 0
      %2236 = vmatpush1.bf16.msra.mxu0 %v2217
      %2237 = vmatprep.subr.bf16.mxu0 0
      %2238 = vmatpush1.bf16.msra.mxu0 %v2218
      %2239 = vmatprep.subr.bf16.mxu0 0
      %2240 = vmatpush1.bf16.msra.mxu0 %v2219
      %2241 = vmatprep.subr.bf16.mxu0 0
      %2242 = vmatpush1.bf16.msra.mxu0 %v2220
      %2243 = vmatprep.subr.bf16.mxu0 0
      %2244 = vmatpush1.bf16.msra.mxu0 %v2221
      %2245 = vmatprep.subr.bf16.mxu0 0
      %2246 = vmatpush1.bf16.msra.mxu0 %v2222
      %2247 = vmatprep.subr.bf16.mxu0 0
      %2248 = vmatpush1.bf16.msra.mxu0 0
      %2249 = vmatprep.subr.bf16.mxu0 0
      %2250 = vmatpush1.bf16.msra.mxu0 0
      %2251 = vmatprep.subr.bf16.mxu0 0
      %2252 = vmatpush1.bf16.msra.mxu0 0
      %2253 = vmatprep.subr.bf16.mxu0 0
      %2254 = vmatpush1.bf16.msra.mxu0 0
      %2255 = vmatprep.subr.bf16.mxu0 0
      %2256 = vmatpush1.bf16.msra.mxu0 0
      %2257 = vmatprep.subr.bf16.mxu0 0
      %2258 = vmatpush1.bf16.msra.mxu0 0
      %2259 = vmatprep.subr.bf16.mxu0 0
      %2260 = vmatpush1.bf16.msra.mxu0 0
      %2261 = vmatprep.subr.bf16.mxu0 0
      %2262 = vmatpush1.bf16.msra.mxu0 0
      %2263 = vmatprep.mubr.bf16.mxu0 0
      %2264 = vmatmul.mubr.bf16.gmra.mrb[0].mxu0 %v2159
      %v2265 = vpop.f32.mrb[0].mxu0
      %v2266 = vadd.f32 %v2181, %v2265
      %v2267 = vpop.f32.mrb[0].mxu0
      %v2268 = vpop.f32.mrb[0].mxu0
      %v2269 = vpop.f32.mrb[0].mxu0
      %2270 = vdwg.mxu0
      %v2271 = vld [vmem:[%s466] sm:$0xff]
      %v2272 = vadd.f32 %v2266, %v2271
      %2273 = vadd.xlane.f32.xlu0 %v2272
      %v2274 = vpop.xlane.xlu0 %2273
      %v2275 = vrcp.pop 128.0
      %v2276 = vmul.f32 %v2274, %v2275
      %v2277 = vsub.f32 %v2272, %v2276
      %v2278 = vmul.f32 %v2277, %v2277
      %2279 = vadd.xlane.f32.xlu0 %v2278
      %v2280 = vpop.xlane.xlu0 %2279
      %v2281 = vmul.f32 %v2280, %v2275
      %v2282 = vadd.f32 %v2281, 1e-05
      %v2283 = vrsqrt.pop %v2282
      %v2284 = vmul.f32 %v2277, %v2283
      %v2285 = vld [vmem:[%s10] sm:$0x1]
      %v2287 = vlaneseq
      %v2288 = vshrl.u32 %v2287, 7
      %v2289 = vsub.s32 0, %v2288
      %v2290 = vrot.slane %v2285, %v2289
      %v2292 = vmul.f32 %v2284, %v2290
      %v2293 = vld [vmem:[%s11] sm:$0x1]
      %v2295 = vlaneseq
      %v2296 = vshrl.u32 %v2295, 7
      %v2297 = vsub.s32 0, %v2296
      %v2298 = vrot.slane %v2293, %v2297
      %v2300 = vadd.f32 %v2292, %v2298
      %2301 = vst [vmem:[%s473] sm:$0xff] %v2300
      %p2302 = scmp.lt.s32.totalorder %s23, 1
      %s2303 = scalar_select %p2302, %s23, 1
      %s2304 = smul.addr %s2303, 8
      %s2305 = scalar_lea.vmem %s12, %s2304
      // Predicated region
      $region69: #{transformer_forward.11} parent=67 // pred_check
        %p2306 = pneg %p318
      $region70: #{transformer_forward.11} parent=67 // pred_check_branch
        %2308 = sbr.rel (%p2306) target = $region72
      $region71: #{transformer_forward.11} parent=67 // pred_region
        _
      $region72: #{transformer_forward.11} parent=67 // pred_fallthru
        _
    $region68: #{transformer_forward.11} parent=5 // pred_fallthru
      _
    %p2309 = scmp.le.s32.totalorder 2, %s18
    // Predicated region
    $region73: #{transformer_forward.11} parent=5 // pred_check
      %p2310 = pneg %p2309
    $region74: #{transformer_forward.11} parent=5 // pred_check_branch
      %2312 = sbr.rel (%p2310) target = $region76
    $region75: #{transformer_forward.11} parent=5 // pred_region
      %s2313 = ssub.s32 %s18, 2
      // Predicated region
      $region77: #{transformer_forward.11} parent=75 // pred_check
        %p2314 = pneg %p324
      $region78: #{transformer_forward.11} parent=75 // pred_check_branch
        %2316 = sbr.rel (%p2314) target = $region80
      $region79: #{transformer_forward.11} parent=75 // pred_region
        %p2317 = scmp.lt.s32.totalorder %s24, 1
        %s2318 = scalar_select %p2317, %s24, 1
        %s2319 = smul.addr %s2318, 8
        %s2320 = scalar_lea.vmem %s12, %s2319
      $region80: #{transformer_forward.11} parent=75 // pred_fallthru
        _
    $region76: #{transformer_forward.11} parent=5 // pred_fallthru
      _
  $region6: #{transformer_forward.11} parent=0 // loop_footer
    %s22 = sadd.s32 1, %s18
  $region7: #{transformer_forward.11} parent=0 // loop_footer_branch
    %17 = sbr.rel target = $region3
  $region8: #{transformer_forward.11} parent=0 // loop_exit
    _

// kernel: transformer_forward.15
$region0: #{transformer_forward.15}
  #allocation0 [shape = 'u32[]', space=smem, size = 0x4, offset = 0x4, fixed_abs, tag = 'smem constant byte address 0x4 - core index']
  #allocation1 [shape = 'u32[144,128]{1,0:T(1,128)}', space=vmem, size = 0x12000, scoped, tag = 'internal scratch']
  %s0 = inlined_call_operand.vmem [shape: f32[2,8,128], index: 0, kind: input, shape index: {}, may-alias: {0,1,2,3}]
  %s1 = inlined_call_operand.vmem [shape: f32[2,8,128], index: 1, kind: input, shape index: {}, may-alias: {0,1,2,3}]
  %s2 = inlined_call_operand.vmem [shape: f32[2,8,128], index: 2, kind: input, shape index: {}, may-alias: {0,1,2,3}]
  %s3 = inlined_call_operand.vmem [shape: f32[2,8,128], index: 3, kind: input, shape index: {}, may-alias: {0,1,2,3}]
  %s4 = inlined_call_operand.vmem [shape: f32[2,1,8], index: 4, kind: input, shape index: {}]
  %s5 = inlined_call_operand.vmem [shape: bf16[128,128], index: 5, kind: input, shape index: {}]
  %s6 = inlined_call_operand.vmem [shape: bf16[128,128], index: 6, kind: input, shape index: {}]
  %s7 = inlined_call_operand.vmem [shape: bf16[128,128], index: 7, kind: input, shape index: {}]
  %s8 = inlined_call_operand.vmem [shape: bf16[128,128], index: 8, kind: input, shape index: {}]
  %s9 = inlined_call_operand.vmem [shape: f32[1,128], index: 9, kind: input, shape index: {}]
  %s10 = inlined_call_operand.vmem [shape: f32[1,128], index: 10, kind: input, shape index: {}]
  %s11 = inlined_call_operand.vmem [shape: f32[1,128], index: 11, kind: input, shape index: {}]
  %s12 = inlined_call_operand.vmem [shape: f32[2,8,128], index: 12, kind: output, shape index: {}]
  %s13 = sld [smem:[#allocation0]]
  $region81: #{transformer_forward.15} parent=0
    _
  %s15 = ssub.s32 1, %s13
  %s16 = scalar_select 0, %s15, %s13
  loop: start=0, step=1, limit=4
  $region2: #{transformer_forward.15} parent=0 // loop_pre_header
    _
  $region3: #{transformer_forward.15} parent=0 // loop_header
    %s18 = sphi 0, %s22
    %p19 = scmp.ge.s32.totalorder %s18, 4
    %s28 = sphi 0, %s30
    %s31 = sphi 0, %s28
    %s32 = sphi 0, %s31
    %s48 = sphi 0, %s32
    %s54 = sphi 0, %s56
    %s57 = sphi 0, %s54
    %s58 = sphi 0, %s57
    %s74 = sphi 0, %s58
    %s80 = sphi 0, %s82
    %s83 = sphi 0, %s80
    %s84 = sphi 0, %s83
    %s100 = sphi 0, %s84
    %s106 = sphi 0, %s108
    %s109 = sphi 0, %s106
    %s110 = sphi 0, %s109
    %s126 = sphi 0, %s110
    %s132 = sphi 0, %s134
    %s135 = sphi 0, %s132
    %s136 = sphi 0, %s135
    %s152 = sphi 0, %s136
    %s156 = sphi 0, %s156
    %s158 = sphi 0, %s156
    %s159 = sphi 0, %s158
    %s173 = sphi 0, %s159
    %s177 = sphi 0, %s177
    %s179 = sphi 0, %s177
    %s180 = sphi 0, %s179
    %s194 = sphi 0, %s180
    %s198 = sphi 0, %s198
    %s200 = sphi 0, %s198
    %s201 = sphi 0, %s200
    %s215 = sphi 0, %s201
    %s219 = sphi 0, %s219
    %s221 = sphi 0, %s219
    %s222 = sphi 0, %s221
    %s236 = sphi 0, %s222
    %s240 = sphi 0, %s240
    %s242 = sphi 0, %s240
    %s243 = sphi 0, %s242
    %s257 = sphi 0, %s243
    %s261 = sphi 0, %s261
    %s263 = sphi 0, %s261
    %s264 = sphi 0, %s263
    %s278 = sphi 0, %s264
    %s282 = sphi 0, %s282
    %s284 = sphi 0, %s282
    %s285 = sphi 0, %s284
    %s299 = sphi 0, %s285
    %s305 = sphi 0, %s307
    %s308 = sphi 0, %s305
    %s309 = sphi 0, %s308
    %s325 = sphi 0, %s309
  $region4: #{transformer_forward.15} parent=0 // loop_header_branch
    %21 = sbr.rel (%p19) target = $region8
  $region5: #{transformer_forward.15} parent=0 // loop_body
    %s23 = ssub.s32 %s18, 1
    %s24 = ssub.s32 %s18, 2
    %s25 = sadd.s32 %s18, 1
    %s26 = ssub.s32 %s18, %s25
    %p27 = scmp.eq.s32.totalorder %s26, 0
    %s29 = sadd.s32 %s28, 1
    %s30 = scalar_select %p27, %s28, %s29
    %p33 = pneg %p27
    %p34 = scmp.eq.s32.totalorder %s18, 1
    %p35 = por %p33, %p34
    %p36 = scmp.ne.s32.totalorder %s28, %s31
    %p37 = scmp.eq.s32.totalorder %s18, 0
    %p38 = por %p36, %p37
    %p39 = scmp.ne.s32.totalorder %s28, %s31
    %p40 = scmp.eq.s32.totalorder %s23, 1
    %p41 = por %p39, %p40
    %p42 = scmp.ne.s32.totalorder %s31, %s32
    %p43 = scmp.eq.s32.totalorder %s23, 0
    %p44 = por %p42, %p43
    %p45 = scmp.ne.s32.totalorder %s31, %s32
    %p46 = scmp.eq.s32.totalorder %s24, 1
    %p47 = por %p45, %p46
    %p49 = scmp.ne.s32.totalorder %s32, %s48
    %p50 = scmp.eq.s32.totalorder %s24, 0
    %p51 = por %p49, %p50
    %s52 = ssub.s32 %s18, %s25
    %p53 = scmp.eq.s32.totalorder %s52, 0
    %s55 = sadd.s32 %s54, 1
    %s56 = scalar_select %p53, %s54, %s55
    %p59 = pneg %p53
    %p60 = scmp.eq.s32.totalorder %s18, 1
    %p61 = por %p59, %p60
    %p62 = scmp.ne.s32.totalorder %s54, %s57
    %p63 = scmp.eq.s32.totalorder %s18, 0
    %p64 = por %p62, %p63
    %p65 = scmp.ne.s32.totalorder %s54, %s57
    %p66 = scmp.eq.s32.totalorder %s23, 1
    %p67 = por %p65, %p66
    %p68 = scmp.ne.s32.totalorder %s57, %s58
    %p69 = scmp.eq.s32.totalorder %s23, 0
    %p70 = por %p68, %p69
    %p71 = scmp.ne.s32.totalorder %s57, %s58
    %p72 = scmp.eq.s32.totalorder %s24, 1
    %p73 = por %p71, %p72
    %p75 = scmp.ne.s32.totalorder %s58, %s74
    %p76 = scmp.eq.s32.totalorder %s24, 0
    %p77 = por %p75, %p76
    %s78 = ssub.s32 %s18, %s25
    %p79 = scmp.eq.s32.totalorder %s78, 0
    %s81 = sadd.s32 %s80, 1
    %s82 = scalar_select %p79, %s80, %s81
    %p85 = pneg %p79
    %p86 = scmp.eq.s32.totalorder %s18, 1
    %p87 = por %p85, %p86
    %p88 = scmp.ne.s32.totalorder %s80, %s83
    %p89 = scmp.eq.s32.totalorder %s18, 0
    %p90 = por %p88, %p89
    %p91 = scmp.ne.s32.totalorder %s80, %s83
    %p92 = scmp.eq.s32.totalorder %s23, 1
    %p93 = por %p91, %p92
    %p94 = scmp.ne.s32.totalorder %s83, %s84
    %p95 = scmp.eq.s32.totalorder %s23, 0
    %p96 = por %p94, %p95
    %p97 = scmp.ne.s32.totalorder %s83, %s84
    %p98 = scmp.eq.s32.totalorder %s24, 1
    %p99 = por %p97, %p98
    %p101 = scmp.ne.s32.totalorder %s84, %s100
    %p102 = scmp.eq.s32.totalorder %s24, 0
    %p103 = por %p101, %p102
    %s104 = ssub.s32 %s18, %s25
    %p105 = scmp.eq.s32.totalorder %s104, 0
    %s107 = sadd.s32 %s106, 1
    %s108 = scalar_select %p105, %s106, %s107
    %p111 = pneg %p105
    %p112 = scmp.eq.s32.totalorder %s18, 1
    %p113 = por %p111, %p112
    %p114 = scmp.ne.s32.totalorder %s106, %s109
    %p115 = scmp.eq.s32.totalorder %s18, 0
    %p116 = por %p114, %p115
    %p117 = scmp.ne.s32.totalorder %s106, %s109
    %p118 = scmp.eq.s32.totalorder %s23, 1
    %p119 = por %p117, %p118
    %p120 = scmp.ne.s32.totalorder %s109, %s110
    %p121 = scmp.eq.s32.totalorder %s23, 0
    %p122 = por %p120, %p121
    %p123 = scmp.ne.s32.totalorder %s109, %s110
    %p124 = scmp.eq.s32.totalorder %s24, 1
    %p125 = por %p123, %p124
    %p127 = scmp.ne.s32.totalorder %s110, %s126
    %p128 = scmp.eq.s32.totalorder %s24, 0
    %p129 = por %p127, %p128
    %s130 = ssub.s32 %s18, %s25
    %p131 = scmp.eq.s32.totalorder %s130, 0
    %s133 = sadd.s32 %s132, 1
    %s134 = scalar_select %p131, %s132, %s133
    %p137 = pneg %p131
    %p138 = scmp.eq.s32.totalorder %s18, 1
    %p139 = por %p137, %p138
    %p140 = scmp.ne.s32.totalorder %s132, %s135
    %p141 = scmp.eq.s32.totalorder %s18, 0
    %p142 = por %p140, %p141
    %p143 = scmp.ne.s32.totalorder %s132, %s135
    %p144 = scmp.eq.s32.totalorder %s23, 1
    %p145 = por %p143, %p144
    %p146 = scmp.ne.s32.totalorder %s135, %s136
    %p147 = scmp.eq.s32.totalorder %s23, 0
    %p148 = por %p146, %p147
    %p149 = scmp.ne.s32.totalorder %s135, %s136
    %p150 = scmp.eq.s32.totalorder %s24, 1
    %p151 = por %p149, %p150
    %p153 = scmp.ne.s32.totalorder %s136, %s152
    %p154 = scmp.eq.s32.totalorder %s24, 0
    %p155 = por %p153, %p154
    %s157 = sadd.s32 %s156, 1
    %p160 = scmp.eq.s32.totalorder %s18, 1
    %p161 = scmp.ne.s32.totalorder %s156, %s158
    %p162 = scmp.eq.s32.totalorder %s18, 0
    %p163 = por %p161, %p162
    %p164 = scmp.ne.s32.totalorder %s156, %s158
    %p165 = scmp.eq.s32.totalorder %s23, 1
    %p166 = por %p164, %p165
    %p167 = scmp.ne.s32.totalorder %s158, %s159
    %p168 = scmp.eq.s32.totalorder %s23, 0
    %p169 = por %p167, %p168
    %p170 = scmp.ne.s32.totalorder %s158, %s159
    %p171 = scmp.eq.s32.totalorder %s24, 1
    %p172 = por %p170, %p171
    %p174 = scmp.ne.s32.totalorder %s159, %s173
    %p175 = scmp.eq.s32.totalorder %s24, 0
    %p176 = por %p174, %p175
    %s178 = sadd.s32 %s177, 1
    %p181 = scmp.eq.s32.totalorder %s18, 1
    %p182 = scmp.ne.s32.totalorder %s177, %s179
    %p183 = scmp.eq.s32.totalorder %s18, 0
    %p184 = por %p182, %p183
    %p185 = scmp.ne.s32.totalorder %s177, %s179
    %p186 = scmp.eq.s32.totalorder %s23, 1
    %p187 = por %p185, %p186
    %p188 = scmp.ne.s32.totalorder %s179, %s180
    %p189 = scmp.eq.s32.totalorder %s23, 0
    %p190 = por %p188, %p189
    %p191 = scmp.ne.s32.totalorder %s179, %s180
    %p192 = scmp.eq.s32.totalorder %s24, 1
    %p193 = por %p191, %p192
    %p195 = scmp.ne.s32.totalorder %s180, %s194
    %p196 = scmp.eq.s32.totalorder %s24, 0
    %p197 = por %p195, %p196
    %s199 = sadd.s32 %s198, 1
    %p202 = scmp.eq.s32.totalorder %s18, 1
    %p203 = scmp.ne.s32.totalorder %s198, %s200
    %p204 = scmp.eq.s32.totalorder %s18, 0
    %p205 = por %p203, %p204
    %p206 = scmp.ne.s32.totalorder %s198, %s200
    %p207 = scmp.eq.s32.totalorder %s23, 1
    %p208 = por %p206, %p207
    %p209 = scmp.ne.s32.totalorder %s200, %s201
    %p210 = scmp.eq.s32.totalorder %s23, 0
    %p211 = por %p209, %p210
    %p212 = scmp.ne.s32.totalorder %s200, %s201
    %p213 = scmp.eq.s32.totalorder %s24, 1
    %p214 = por %p212, %p213
    %p216 = scmp.ne.s32.totalorder %s201, %s215
    %p217 = scmp.eq.s32.totalorder %s24, 0
    %p218 = por %p216, %p217
    %s220 = sadd.s32 %s219, 1
    %p223 = scmp.eq.s32.totalorder %s18, 1
    %p224 = scmp.ne.s32.totalorder %s219, %s221
    %p225 = scmp.eq.s32.totalorder %s18, 0
    %p226 = por %p224, %p225
    %p227 = scmp.ne.s32.totalorder %s219, %s221
    %p228 = scmp.eq.s32.totalorder %s23, 1
    %p229 = por %p227, %p228
    %p230 = scmp.ne.s32.totalorder %s221, %s222
    %p231 = scmp.eq.s32.totalorder %s23, 0
    %p232 = por %p230, %p231
    %p233 = scmp.ne.s32.totalorder %s221, %s222
    %p234 = scmp.eq.s32.totalorder %s24, 1
    %p235 = por %p233, %p234
    %p237 = scmp.ne.s32.totalorder %s222, %s236
    %p238 = scmp.eq.s32.totalorder %s24, 0
    %p239 = por %p237, %p238
    %s241 = sadd.s32 %s240, 1
    %p244 = scmp.eq.s32.totalorder %s18, 1
    %p245 = scmp.ne.s32.totalorder %s240, %s242
    %p246 = scmp.eq.s32.totalorder %s18, 0
    %p247 = por %p245, %p246
    %p248 = scmp.ne.s32.totalorder %s240, %s242
    %p249 = scmp.eq.s32.totalorder %s23, 1
    %p250 = por %p248, %p249
    %p251 = scmp.ne.s32.totalorder %s242, %s243
    %p252 = scmp.eq.s32.totalorder %s23, 0
    %p253 = por %p251, %p252
    %p254 = scmp.ne.s32.totalorder %s242, %s243
    %p255 = scmp.eq.s32.totalorder %s24, 1
    %p256 = por %p254, %p255
    %p258 = scmp.ne.s32.totalorder %s243, %s257
    %p259 = scmp.eq.s32.totalorder %s24, 0
    %p260 = por %p258, %p259
    %s262 = sadd.s32 %s261, 1
    %p265 = scmp.eq.s32.totalorder %s18, 1
    %p266 = scmp.ne.s32.totalorder %s261, %s263
    %p267 = scmp.eq.s32.totalorder %s18, 0
    %p268 = por %p266, %p267
    %p269 = scmp.ne.s32.totalorder %s261, %s263
    %p270 = scmp.eq.s32.totalorder %s23, 1
    %p271 = por %p269, %p270
    %p272 = scmp.ne.s32.totalorder %s263, %s264
    %p273 = scmp.eq.s32.totalorder %s23, 0
    %p274 = por %p272, %p273
    %p275 = scmp.ne.s32.totalorder %s263, %s264
    %p276 = scmp.eq.s32.totalorder %s24, 1
    %p277 = por %p275, %p276
    %p279 = scmp.ne.s32.totalorder %s264, %s278
    %p280 = scmp.eq.s32.totalorder %s24, 0
    %p281 = por %p279, %p280
    %s283 = sadd.s32 %s282, 1
    %p286 = scmp.eq.s32.totalorder %s18, 1
    %p287 = scmp.ne.s32.totalorder %s282, %s284
    %p288 = scmp.eq.s32.totalorder %s18, 0
    %p289 = por %p287, %p288
    %p290 = scmp.ne.s32.totalorder %s282, %s284
    %p291 = scmp.eq.s32.totalorder %s23, 1
    %p292 = por %p290, %p291
    %p293 = scmp.ne.s32.totalorder %s284, %s285
    %p294 = scmp.eq.s32.totalorder %s23, 0
    %p295 = por %p293, %p294
    %p296 = scmp.ne.s32.totalorder %s284, %s285
    %p297 = scmp.eq.s32.totalorder %s24, 1
    %p298 = por %p296, %p297
    %p300 = scmp.ne.s32.totalorder %s285, %s299
    %p301 = scmp.eq.s32.totalorder %s24, 0
    %p302 = por %p300, %p301
    %s303 = ssub.s32 %s18, %s25
    %p304 = scmp.eq.s32.totalorder %s303, 0
    %s306 = sadd.s32 %s305, 1
    %s307 = scalar_select %p304, %s305, %s306
    %p310 = pneg %p304
    %p311 = scmp.eq.s32.totalorder %s18, 1
    %p312 = por %p310, %p311
    %p313 = scmp.ne.s32.totalorder %s305, %s308
    %p314 = scmp.eq.s32.totalorder %s18, 0
    %p315 = por %p313, %p314
    %p316 = scmp.ne.s32.totalorder %s305, %s308
    %p317 = scmp.eq.s32.totalorder %s23, 1
    %p318 = por %p316, %p317
    %p319 = scmp.ne.s32.totalorder %s308, %s309
    %p320 = scmp.eq.s32.totalorder %s23, 0
    %p321 = por %p319, %p320
    %p322 = scmp.ne.s32.totalorder %s308, %s309
    %p323 = scmp.eq.s32.totalorder %s24, 1
    %p324 = por %p322, %p323
    %p326 = scmp.ne.s32.totalorder %s309, %s325
    %p327 = scmp.eq.s32.totalorder %s24, 0
    %p328 = por %p326, %p327
    %p329 = scmp.le.s32.totalorder 1, %s18
    %p330 = scmp.lt.s32.totalorder %s18, 3
    %p331 = pnand %p329, %p330
    %p332 = pneg %p331
    // Predicated region
    $region9: #{transformer_forward.15} parent=5 // pred_check
      _
    $region10: #{transformer_forward.15} parent=5 // pred_check_branch
      %334 = sbr.rel (%p331) target = $region12
    $region11: #{transformer_forward.15} parent=5 // pred_region
      %s335 = ssub.s32 %s18, 1
      // Predicated region
      $region13: #{transformer_forward.15} parent=11 // pred_check
        %p336 = pneg %p169
      $region14: #{transformer_forward.15} parent=11 // pred_check_branch
        %338 = sbr.rel (%p336) target = $region16
      $region15: #{transformer_forward.15} parent=11 // pred_region
        _
      $region16: #{transformer_forward.15} parent=11 // pred_fallthru
        _
      // Predicated region
      $region17: #{transformer_forward.15} parent=11 // pred_check
        %p339 = pneg %p190
      $region18: #{transformer_forward.15} parent=11 // pred_check_branch
        %341 = sbr.rel (%p339) target = $region20
      $region19: #{transformer_forward.15} parent=11 // pred_region
        _
      $region20: #{transformer_forward.15} parent=11 // pred_fallthru
        _
      // Predicated region
      $region21: #{transformer_forward.15} parent=11 // pred_check
        %p342 = pneg %p211
      $region22: #{transformer_forward.15} parent=11 // pred_check_branch
        %344 = sbr.rel (%p342) target = $region24
      $region23: #{transformer_forward.15} parent=11 // pred_region
        _
      $region24: #{transformer_forward.15} parent=11 // pred_fallthru
        _
      // Predicated region
      $region25: #{transformer_forward.15} parent=11 // pred_check
        %p345 = pneg %p232
      $region26: #{transformer_forward.15} parent=11 // pred_check_branch
        %347 = sbr.rel (%p345) target = $region28
      $region27: #{transformer_forward.15} parent=11 // pred_region
        _
      $region28: #{transformer_forward.15} parent=11 // pred_fallthru
        _
      // Predicated region
      $region29: #{transformer_forward.15} parent=11 // pred_check
        %p348 = pneg %p253
      $region30: #{transformer_forward.15} parent=11 // pred_check_branch
        %350 = sbr.rel (%p348) target = $region32
      $region31: #{transformer_forward.15} parent=11 // pred_region
        _
      $region32: #{transformer_forward.15} parent=11 // pred_fallthru
        _
      // Predicated region
      $region33: #{transformer_forward.15} parent=11 // pred_check
        %p351 = pneg %p274
      $region34: #{transformer_forward.15} parent=11 // pred_check_branch
        %353 = sbr.rel (%p351) target = $region36
      $region35: #{transformer_forward.15} parent=11 // pred_region
        _
      $region36: #{transformer_forward.15} parent=11 // pred_fallthru
        _
      // Predicated region
      $region37: #{transformer_forward.15} parent=11 // pred_check
        %p354 = pneg %p295
      $region38: #{transformer_forward.15} parent=11 // pred_check_branch
        %356 = sbr.rel (%p354) target = $region40
      $region39: #{transformer_forward.15} parent=11 // pred_region
        _
      $region40: #{transformer_forward.15} parent=11 // pred_fallthru
        _
    $region12: #{transformer_forward.15} parent=5 // pred_fallthru
      _
    %p357 = scmp.lt.s32.totalorder %s18, 2
    // Predicated region
    $region41: #{transformer_forward.15} parent=5 // pred_check
      %p358 = pneg %p357
    $region42: #{transformer_forward.15} parent=5 // pred_check_branch
      %360 = sbr.rel (%p358) target = $region44
    $region43: #{transformer_forward.15} parent=5 // pred_region
      // Predicated region
      $region45: #{transformer_forward.15} parent=43 // pred_check
        %p361 = pneg %p38
      $region46: #{transformer_forward.15} parent=43 // pred_check_branch
        %363 = sbr.rel (%p361) target = $region48
      $region47: #{transformer_forward.15} parent=43 // pred_region
        %p364 = scmp.lt.s32.totalorder %s18, 1
        %s365 = scalar_select %p364, %s18, 1
        %s366 = smul.addr %s365, 8
        %s367 = scalar_lea.vmem %s0, %s366
      $region48: #{transformer_forward.15} parent=43 // pred_fallthru
        _
      // Predicated region
      $region49: #{transformer_forward.15} parent=43 // pred_check
        %p368 = pneg %p64
      $region50: #{transformer_forward.15} parent=43 // pred_check_branch
        %370 = sbr.rel (%p368) target = $region52
      $region51: #{transformer_forward.15} parent=43 // pred_region
        %p371 = scmp.lt.s32.totalorder %s18, 1
        %s372 = scalar_select %p371, %s18, 1
        %s373 = smul.addr %s372, 8
        %s374 = scalar_lea.vmem %s1, %s373
      $region52: #{transformer_forward.15} parent=43 // pred_fallthru
        _
      // Predicated region
      $region53: #{transformer_forward.15} parent=43 // pred_check
        %p375 = pneg %p90
      $region54: #{transformer_forward.15} parent=43 // pred_check_branch
        %377 = sbr.rel (%p375) target = $region56
      $region55: #{transformer_forward.15} parent=43 // pred_region
        %p378 = scmp.lt.s32.totalorder %s18, 1
        %s379 = scalar_select %p378, %s18, 1
        %s380 = smul.addr %s379, 8
        %s381 = scalar_lea.vmem %s2, %s380
      $region56: #{transformer_forward.15} parent=43 // pred_fallthru
        _
      // Predicated region
      $region57: #{transformer_forward.15} parent=43 // pred_check
        %p382 = pneg %p116
      $region58: #{transformer_forward.15} parent=43 // pred_check_branch
        %384 = sbr.rel (%p382) target = $region60
      $region59: #{transformer_forward.15} parent=43 // pred_region
        %p385 = scmp.lt.s32.totalorder %s18, 1
        %s386 = scalar_select %p385, %s18, 1
        %s387 = smul.addr %s386, 8
        %s388 = scalar_lea.vmem %s3, %s387
      $region60: #{transformer_forward.15} parent=43 // pred_fallthru
        _
      // Predicated region
      $region61: #{transformer_forward.15} parent=43 // pred_check
        %p389 = pneg %p142
      $region62: #{transformer_forward.15} parent=43 // pred_check_branch
        %391 = sbr.rel (%p389) target = $region64
      $region63: #{transformer_forward.15} parent=43 // pred_region
        %p392 = scmp.lt.s32.totalorder %s18, 1
        %s393 = scalar_select %p392, %s18, 1
        %s394 = scalar_lea.vmem %s4, %s393
      $region64: #{transformer_forward.15} parent=43 // pred_fallthru
        _
    $region44: #{transformer_forward.15} parent=5 // pred_fallthru
      _
    %p395 = scmp.le.s32.totalorder 1, %s18
    %p396 = scmp.lt.s32.totalorder %s18, 3
    %p397 = pnand %p395, %p396
    %p398 = pneg %p397
    // Predicated region
    $region65: #{transformer_forward.15} parent=5 // pred_check
      _
    $region66: #{transformer_forward.15} parent=5 // pred_check_branch
      %400 = sbr.rel (%p397) target = $region68
    $region67: #{transformer_forward.15} parent=5 // pred_region
      %s401 = ssub.s32 %s18, 1
      %p402 = scmp.lt.s32.totalorder %s23, 1
      %s403 = scalar_select %p402, %s23, 1
      %s404 = smul.addr %s403, 8
      %s405 = scalar_lea.vmem %s0, %s404
      %p406 = pneg %p44
      %p407 = pneg %p41
      %p408 = scmp.lt.s32.totalorder %s23, 1
      %s409 = scalar_select %p408, %s23, 1
      %s410 = smul.addr %s409, 8
      %s411 = scalar_lea.vmem %s1, %s410
      %p412 = pneg %p70
      %p413 = pneg %p67
      %p414 = scmp.lt.s32.totalorder %s23, 1
      %s415 = scalar_select %p414, %s23, 1
      %s416 = smul.addr %s415, 8
      %s417 = scalar_lea.vmem %s2, %s416
      %p418 = pneg %p96
      %p419 = pneg %p93
      %p420 = scmp.lt.s32.totalorder %s23, 1
      %s421 = scalar_select %p420, %s23, 1
      %s422 = smul.addr %s421, 8
      %s423 = scalar_lea.vmem %s3, %s422
      %p424 = pneg %p122
      %p425 = pneg %p119
      %p426 = scmp.lt.s32.totalorder %s23, 1
      %s427 = scalar_select %p426, %s23, 1
      %s428 = scalar_lea.vmem %s4, %s427
      %p429 = pneg %p148
      %p430 = pneg %p145
      %p431 = pneg %p169
      %p432 = pneg %p166
      %p433 = pneg %p190
      %p434 = pneg %p187
      %p435 = pneg %p211
      %p436 = pneg %p208
      %p437 = pneg %p232
      %p438 = pneg %p229
      %p439 = pneg %p253
      %p440 = pneg %p250
      %p441 = pneg %p274
      %p442 = pneg %p271
      %p443 = pneg %p295
      %p444 = pneg %p292
      %p445 = pneg %p321
      %p446 = pneg %p318
      %p447 = scmp.lt.s32.totalorder %s23, 1
      %s448 = scalar_select %p447, %s23, 1
      %s449 = smul.addr %s448, 8
      %s450 = scalar_lea.vmem %s12, %s449
      %p451 = scmp.lt.s32.totalorder %s23, 1
      %s452 = scalar_select %p451, %s23, 1
      %s453 = smul.addr %s452, 8
      %s454 = scalar_lea.vmem %s0, %s453
      %p455 = scmp.lt.s32.totalorder %s23, 1
      %s456 = scalar_select %p455, %s23, 1
      %s457 = smul.addr %s456, 8
      %s458 = scalar_lea.vmem %s1, %s457
      %p459 = scmp.lt.s32.totalorder %s23, 1
      %s460 = scalar_select %p459, %s23, 1
      %s461 = smul.addr %s460, 8
      %s462 = scalar_lea.vmem %s2, %s461
      %p463 = scmp.lt.s32.totalorder %s23, 1
      %s464 = scalar_select %p463, %s23, 1
      %s465 = smul.addr %s464, 8
      %s466 = scalar_lea.vmem %s3, %s465
      %p467 = scmp.lt.s32.totalorder %s23, 1
      %s468 = scalar_select %p467, %s23, 1
      %s469 = scalar_lea.vmem %s4, %s468
      %p470 = scmp.lt.s32.totalorder %s23, 1
      %s471 = scalar_select %p470, %s23, 1
      %s472 = smul.addr %s471, 8
      %s473 = scalar_lea.vmem %s12, %s472
      %v475 = vld [vmem:[%s462] sm:$0xff]
      %v476 = vpack.c.bf16 %v475, %v475
      %v477 = vld [vmem:[%s458] sm:$0xff]
      %v478 = vpack.c.bf16 %v477, %v477
      %v479 = vld [vmem:[%s454] sm:$0xff]
      %v480 = vpack.c.bf16 %v479, %v479
      %v481 = vld [vmem:[%s5] sm:$0xf]
      %v482 = vld [vmem:[%s5 + $0x4] sm:$0xf]
      %v483 = vld [vmem:[%s5 + $0x8] sm:$0xf]
      %v484 = vld [vmem:[%s5 + $0xc] sm:$0xf]
      %v485 = vld [vmem:[%s5 + $0x10] sm:$0xf]
      %v486 = vld [vmem:[%s5 + $0x14] sm:$0xf]
      %v487 = vld [vmem:[%s5 + $0x18] sm:$0xf]
      %v488 = vld [vmem:[%s5 + $0x1c] sm:$0xf]
      %v489 = vld [vmem:[%s5 + $0x20] sm:$0xf]
      %v490 = vld [vmem:[%s5 + $0x24] sm:$0xf]
      %v491 = vld [vmem:[%s5 + $0x28] sm:$0xf]
      %v492 = vld [vmem:[%s5 + $0x2c] sm:$0xf]
      %v493 = vld [vmem:[%s5 + $0x30] sm:$0xf]
      %v494 = vld [vmem:[%s5 + $0x34] sm:$0xf]
      %v495 = vld [vmem:[%s5 + $0x38] sm:$0xf]
      %v496 = vld [vmem:[%s5 + $0x3c] sm:$0xf]
      %v513 = vunpack.c.l.b16 %v481
      %v514 = vunpack.c.l.b16 %v482
      %v515 = vunpack.c.l.b16 %v483
      %v516 = vunpack.c.l.b16 %v484
      %v517 = vunpack.c.l.b16 %v485
      %v518 = vunpack.c.l.b16 %v486
      %v519 = vunpack.c.l.b16 %v487
      %v520 = vunpack.c.l.b16 %v488
      %v521 = vunpack.c.l.b16 %v489
      %v522 = vunpack.c.l.b16 %v490
      %v523 = vunpack.c.l.b16 %v491
      %v524 = vunpack.c.l.b16 %v492
      %v525 = vunpack.c.l.b16 %v493
      %v526 = vunpack.c.l.b16 %v494
      %v527 = vunpack.c.l.b16 %v495
      %v528 = vunpack.c.l.b16 %v496
      %v529 = vpack.c.b16 %v514, %v513
      %v530 = vpack.c.b16 %v516, %v515
      %v531 = vpack.c.b16 %v518, %v517
      %v532 = vpack.c.b16 %v520, %v519
      %v533 = vpack.c.b16 %v522, %v521
      %v534 = vpack.c.b16 %v524, %v523
      %v535 = vpack.c.b16 %v526, %v525
      %v536 = vpack.c.b16 %v528, %v527
      %545 = vmatprep.subr.bf16.mxu0 0
      %546 = vmatpush1.bf16.msra.mxu0 %v529
      %547 = vmatprep.subr.bf16.mxu0 0
      %548 = vmatpush1.bf16.msra.mxu0 %v530
      %549 = vmatprep.subr.bf16.mxu0 0
      %550 = vmatpush1.bf16.msra.mxu0 %v531
      %551 = vmatprep.subr.bf16.mxu0 0
      %552 = vmatpush1.bf16.msra.mxu0 %v532
      %553 = vmatprep.subr.bf16.mxu0 0
      %554 = vmatpush1.bf16.msra.mxu0 %v533
      %555 = vmatprep.subr.bf16.mxu0 0
      %556 = vmatpush1.bf16.msra.mxu0 %v534
      %557 = vmatprep.subr.bf16.mxu0 0
      %558 = vmatpush1.bf16.msra.mxu0 %v535
      %559 = vmatprep.subr.bf16.mxu0 0
      %560 = vmatpush1.bf16.msra.mxu0 %v536
      %561 = vmatprep.subr.bf16.mxu0 0
      %562 = vmatpush1.bf16.msra.mxu0 0
      %563 = vmatprep.subr.bf16.mxu0 0
      %564 = vmatpush1.bf16.msra.mxu0 0
      %565 = vmatprep.subr.bf16.mxu0 0
      %566 = vmatpush1.bf16.msra.mxu0 0
      %567 = vmatprep.subr.bf16.mxu0 0
      %568 = vmatpush1.bf16.msra.mxu0 0
      %569 = vmatprep.subr.bf16.mxu0 0
      %570 = vmatpush1.bf16.msra.mxu0 0
      %571 = vmatprep.subr.bf16.mxu0 0
      %572 = vmatpush1.bf16.msra.mxu0 0
      %573 = vmatprep.subr.bf16.mxu0 0
      %574 = vmatpush1.bf16.msra.mxu0 0
      %575 = vmatprep.subr.bf16.mxu0 0
      %576 = vmatpush1.bf16.msra.mxu0 0
      %577 = vmatprep.mubr.bf16.mxu0 0
      %578 = vmatmul.mubr.bf16.gmra.mrb[0].mxu0 %v476
      %v579 = vpop.f32.mrb[0].mxu0
      %v580 = vadd.f32 0.0, %v579
      %v581 = vpop.f32.mrb[0].mxu0
      %v582 = vpop.f32.mrb[0].mxu0
      %v583 = vpop.f32.mrb[0].mxu0
      %584 = vdwg.mxu0
      %v585 = vld [vmem:[%s6] sm:$0xf]
      %v586 = vld [vmem:[%s6 + $0x4] sm:$0xf]
      %v587 = vld [vmem:[%s6 + $0x8] sm:$0xf]
      %v588 = vld [vmem:[%s6 + $0xc] sm:$0xf]
      %v589 = vld [vmem:[%s6 + $0x10] sm:$0xf]
      %v590 = vld [vmem:[%s6 + $0x14] sm:$0xf]
      %v591 = vld [vmem:[%s6 + $0x18] sm:$0xf]
      %v592 = vld [vmem:[%s6 + $0x1c] sm:$0xf]
      %v593 = vld [vmem:[%s6 + $0x20] sm:$0xf]
      %v594 = vld [vmem:[%s6 + $0x24] sm:$0xf]
      %v595 = vld [vmem:[%s6 + $0x28] sm:$0xf]
      %v596 = vld [vmem:[%s6 + $0x2c] sm:$0xf]
      %v597 = vld [vmem:[%s6 + $0x30] sm:$0xf]
      %v598 = vld [vmem:[%s6 + $0x34] sm:$0xf]
      %v599 = vld [vmem:[%s6 + $0x38] sm:$0xf]
      %v600 = vld [vmem:[%s6 + $0x3c] sm:$0xf]
      %v617 = vunpack.c.l.b16 %v585
      %v618 = vunpack.c.l.b16 %v586
      %v619 = vunpack.c.l.b16 %v587
      %v620 = vunpack.c.l.b16 %v588
      %v621 = vunpack.c.l.b16 %v589
      %v622 = vunpack.c.l.b16 %v590
      %v623 = vunpack.c.l.b16 %v591
      %v624 = vunpack.c.l.b16 %v592
      %v625 = vunpack.c.l.b16 %v593
      %v626 = vunpack.c.l.b16 %v594
      %v627 = vunpack.c.l.b16 %v595
      %v628 = vunpack.c.l.b16 %v596
      %v629 = vunpack.c.l.b16 %v597
      %v630 = vunpack.c.l.b16 %v598
      %v631 = vunpack.c.l.b16 %v599
      %v632 = vunpack.c.l.b16 %v600
      %v633 = vpack.c.b16 %v618, %v617
      %v634 = vpack.c.b16 %v620, %v619
      %v635 = vpack.c.b16 %v622, %v621
      %v636 = vpack.c.b16 %v624, %v623
      %v637 = vpack.c.b16 %v626, %v625
      %v638 = vpack.c.b16 %v628, %v627
      %v639 = vpack.c.b16 %v630, %v629
      %v640 = vpack.c.b16 %v632, %v631
      %649 = vmatprep.subr.bf16.mxu0 0
      %650 = vmatpush1.bf16.msra.mxu0 %v633
      %651 = vmatprep.subr.bf16.mxu0 0
      %652 = vmatpush1.bf16.msra.mxu0 %v634
      %653 = vmatprep.subr.bf16.mxu0 0
      %654 = vmatpush1.bf16.msra.mxu0 %v635
      %655 = vmatprep.subr.bf16.mxu0 0
      %656 = vmatpush1.bf16.msra.mxu0 %v636
      %657 = vmatprep.subr.bf16.mxu0 0
      %658 = vmatpush1.bf16.msra.mxu0 %v637
      %659 = vmatprep.subr.bf16.mxu0 0
      %660 = vmatpush1.bf16.msra.mxu0 %v638
      %661 = vmatprep.subr.bf16.mxu0 0
      %662 = vmatpush1.bf16.msra.mxu0 %v639
      %663 = vmatprep.subr.bf16.mxu0 0
      %664 = vmatpush1.bf16.msra.mxu0 %v640
      %665 = vmatprep.subr.bf16.mxu0 0
      %666 = vmatpush1.bf16.msra.mxu0 0
      %667 = vmatprep.subr.bf16.mxu0 0
      %668 = vmatpush1.bf16.msra.mxu0 0
      %669 = vmatprep.subr.bf16.mxu0 0
      %670 = vmatpush1.bf16.msra.mxu0 0
      %671 = vmatprep.subr.bf16.mxu0 0
      %672 = vmatpush1.bf16.msra.mxu0 0
      %673 = vmatprep.subr.bf16.mxu0 0
      %674 = vmatpush1.bf16.msra.mxu0 0
      %675 = vmatprep.subr.bf16.mxu0 0
      %676 = vmatpush1.bf16.msra.mxu0 0
      %677 = vmatprep.subr.bf16.mxu0 0
      %678 = vmatpush1.bf16.msra.mxu0 0
      %679 = vmatprep.subr.bf16.mxu0 0
      %680 = vmatpush1.bf16.msra.mxu0 0
      %681 = vmatprep.mubr.bf16.mxu0 0
      %682 = vmatmul.mubr.bf16.gmra.mrb[0].mxu0 %v478
      %v683 = vpop.f32.mrb[0].mxu0
      %v684 = vadd.f32 0.0, %v683
      %v685 = vpop.f32.mrb[0].mxu0
      %v686 = vpop.f32.mrb[0].mxu0
      %v687 = vpop.f32.mrb[0].mxu0
      %688 = vdwg.mxu0
      %v689 = vld [vmem:[%s7] sm:$0xf]
      %v690 = vld [vmem:[%s7 + $0x4] sm:$0xf]
      %v691 = vld [vmem:[%s7 + $0x8] sm:$0xf]
      %v692 = vld [vmem:[%s7 + $0xc] sm:$0xf]
      %v693 = vld [vmem:[%s7 + $0x10] sm:$0xf]
      %v694 = vld [vmem:[%s7 + $0x14] sm:$0xf]
      %v695 = vld [vmem:[%s7 + $0x18] sm:$0xf]
      %v696 = vld [vmem:[%s7 + $0x1c] sm:$0xf]
      %v697 = vld [vmem:[%s7 + $0x20] sm:$0xf]
      %v698 = vld [vmem:[%s7 + $0x24] sm:$0xf]
      %v699 = vld [vmem:[%s7 + $0x28] sm:$0xf]
      %v700 = vld [vmem:[%s7 + $0x2c] sm:$0xf]
      %v701 = vld [vmem:[%s7 + $0x30] sm:$0xf]
      %v702 = vld [vmem:[%s7 + $0x34] sm:$0xf]
      %v703 = vld [vmem:[%s7 + $0x38] sm:$0xf]
      %v704 = vld [vmem:[%s7 + $0x3c] sm:$0xf]
      %v721 = vunpack.c.l.b16 %v689
      %v722 = vunpack.c.l.b16 %v690
      %v723 = vunpack.c.l.b16 %v691
      %v724 = vunpack.c.l.b16 %v692
      %v725 = vunpack.c.l.b16 %v693
      %v726 = vunpack.c.l.b16 %v694
      %v727 = vunpack.c.l.b16 %v695
      %v728 = vunpack.c.l.b16 %v696
      %v729 = vunpack.c.l.b16 %v697
      %v730 = vunpack.c.l.b16 %v698
      %v731 = vunpack.c.l.b16 %v699
      %v732 = vunpack.c.l.b16 %v700
      %v733 = vunpack.c.l.b16 %v701
      %v734 = vunpack.c.l.b16 %v702
      %v735 = vunpack.c.l.b16 %v703
      %v736 = vunpack.c.l.b16 %v704
      %v737 = vpack.c.b16 %v722, %v721
      %v738 = vpack.c.b16 %v724, %v723
      %v739 = vpack.c.b16 %v726, %v725
      %v740 = vpack.c.b16 %v728, %v727
      %v741 = vpack.c.b16 %v730, %v729
      %v742 = vpack.c.b16 %v732, %v731
      %v743 = vpack.c.b16 %v734, %v733
      %v744 = vpack.c.b16 %v736, %v735
      %753 = vmatprep.subr.bf16.mxu0 0
      %754 = vmatpush1.bf16.msra.mxu0 %v737
      %755 = vmatprep.subr.bf16.mxu0 0
      %756 = vmatpush1.bf16.msra.mxu0 %v738
      %757 = vmatprep.subr.bf16.mxu0 0
      %758 = vmatpush1.bf16.msra.mxu0 %v739
      %759 = vmatprep.subr.bf16.mxu0 0
      %760 = vmatpush1.bf16.msra.mxu0 %v740
      %761 = vmatprep.subr.bf16.mxu0 0
      %762 = vmatpush1.bf16.msra.mxu0 %v741
      %763 = vmatprep.subr.bf16.mxu0 0
      %764 = vmatpush1.bf16.msra.mxu0 %v742
      %765 = vmatprep.subr.bf16.mxu0 0
      %766 = vmatpush1.bf16.msra.mxu0 %v743
      %767 = vmatprep.subr.bf16.mxu0 0
      %768 = vmatpush1.bf16.msra.mxu0 %v744
      %769 = vmatprep.subr.bf16.mxu0 0
      %770 = vmatpush1.bf16.msra.mxu0 0
      %771 = vmatprep.subr.bf16.mxu0 0
      %772 = vmatpush1.bf16.msra.mxu0 0
      %773 = vmatprep.subr.bf16.mxu0 0
      %774 = vmatpush1.bf16.msra.mxu0 0
      %775 = vmatprep.subr.bf16.mxu0 0
      %776 = vmatpush1.bf16.msra.mxu0 0
      %777 = vmatprep.subr.bf16.mxu0 0
      %778 = vmatpush1.bf16.msra.mxu0 0
      %779 = vmatprep.subr.bf16.mxu0 0
      %780 = vmatpush1.bf16.msra.mxu0 0
      %781 = vmatprep.subr.bf16.mxu0 0
      %782 = vmatpush1.bf16.msra.mxu0 0
      %783 = vmatprep.subr.bf16.mxu0 0
      %784 = vmatpush1.bf16.msra.mxu0 0
      %785 = vmatprep.mubr.bf16.mxu0 0
      %786 = vmatmul.mubr.bf16.gmra.mrb[0].mxu0 %v480
      %v787 = vpop.f32.mrb[0].mxu0
      %v788 = vadd.f32 0.0, %v787
      %v789 = vpop.f32.mrb[0].mxu0
      %v790 = vpop.f32.mrb[0].mxu0
      %v791 = vpop.f32.mrb[0].mxu0
      %792 = vdwg.mxu0
      %v793 = vld [vmem:[%s469] sm:$0x1]
      %v794 = vlaneseq
      %v795 = vshrl.u32 %v794, 7
      %v796 = vlaneseq
      %v797 = vand.u32 %v796, 127
      %vm798 = vcmp.gt.s32.totalorder %v797, %v795
      %v799 = vsel %vm798, 1, 0
      %v800 = vcvt.s32.f32 %v799
      %v801 = vmul.f32 %v800, -1e+20
      %v803 = vlaneseq
      %v804 = vshrl.u32 %v803, 7
      %v805 = vsub.s32 0, %v804
      %v806 = vrot.slane %v793, %v805
      %v808 = vadd.f32 %v806, %v801
      %vm809 = vcmask 130048
      %v811 = vsel %vm809, %v580, 0
      %v814 = vsel %vm809, %v684, 0
      %816 = vmatprep.subr.mxu0 0.0
      %817 = vmatpush1.xpose.msra.mxu0 %v814
      %818 = vmatprep.subr.mxu0 0.0
      %819 = vmatpush1.xpose.msra.mxu0 0.0
      %820 = vmatprep.subr.mxu0 0.0
      %821 = vmatpush1.xpose.msra.mxu0 0.0
      %822 = vmatprep.subr.mxu0 0.0
      %823 = vmatpush1.xpose.msra.mxu0 0.0
      %824 = vmatprep.subr.mxu0 0.0
      %825 = vmatpush1.xpose.msra.mxu0 0.0
      %826 = vmatprep.subr.mxu0 0.0
      %827 = vmatpush1.xpose.msra.mxu0 0.0
      %828 = vmatprep.subr.mxu0 0.0
      %829 = vmatpush1.xpose.msra.mxu0 0.0
      %830 = vmatprep.subr.mxu0 0.0
      %831 = vmatpush1.xpose.msra.mxu0 0.0
      %832 = vmatprep.subr.mxu0 0.0
      %833 = vmatpush1.xpose.msra.mxu0 0.0
      %834 = vmatprep.subr.mxu0 0.0
      %835 = vmatpush1.xpose.msra.mxu0 0.0
      %836 = vmatprep.subr.mxu0 0.0
      %837 = vmatpush1.xpose.msra.mxu0 0.0
      %838 = vmatprep.subr.mxu0 0.0
      %839 = vmatpush1.xpose.msra.mxu0 0.0
      %840 = vmatprep.subr.mxu0 0.0
      %841 = vmatpush1.xpose.msra.mxu0 0.0
      %842 = vmatprep.subr.mxu0 0.0
      %843 = vmatpush1.xpose.msra.mxu0 0.0
      %844 = vmatprep.subr.mxu0 0.0
      %845 = vmatpush1.xpose.msra.mxu0 0.0
      %846 = vmatprep.subr.mxu0 0.0
      %847 = vmatpush1.xpose.msra.mxu0 0.0
      %848 = vmatprep.subr.mxu0 0.0
      %849 = vmatpush1.xpose.msra.mxu0 0.0
      %850 = vmatprep.subr.mxu0 0.0
      %851 = vmatpush1.xpose.msra.mxu0 0.0
      %852 = vmatprep.subr.mxu0 0.0
      %853 = vmatpush1.xpose.msra.mxu0 0.0
      %854 = vmatprep.subr.mxu0 0.0
      %855 = vmatpush1.xpose.msra.mxu0 0.0
      %856 = vmatprep.subr.mxu0 0.0
      %857 = vmatpush1.xpose.msra.mxu0 0.0
      %858 = vmatprep.subr.mxu0 0.0
      %859 = vmatpush1.xpose.msra.mxu0 0.0
      %860 = vmatprep.subr.mxu0 0.0
      %861 = vmatpush1.xpose.msra.mxu0 0.0
      %862 = vmatprep.subr.mxu0 0.0
      %863 = vmatpush1.xpose.msra.mxu0 0.0
      %864 = vmatprep.subr.mxu0 0.0
      %865 = vmatpush1.xpose.msra.mxu0 0.0
      %866 = vmatprep.subr.mxu0 0.0
      %867 = vmatpush1.xpose.msra.mxu0 0.0
      %868 = vmatprep.subr.mxu0 0.0
      %869 = vmatpush1.xpose.msra.mxu0 0.0
      %870 = vmatprep.subr.mxu0 0.0
      %871 = vmatpush1.xpose.msra.mxu0 0.0
      %872 = vmatprep.subr.mxu0 0.0
      %873 = vmatpush1.xpose.msra.mxu0 0.0
      %874 = vmatprep.subr.mxu0 0.0
      %875 = vmatpush1.xpose.msra.mxu0 0.0
      %876 = vmatprep.subr.mxu0 0.0
      %877 = vmatpush1.xpose.msra.mxu0 0.0
      %878 = vmatprep.subr.mxu0 0.0
      %879 = vmatpush1.xpose.msra.mxu0 0.0
      %880 = vmatprep.mubr.f32.mxu0 0.0
      %881 = vmatmul.mubr.f32.gmra.mrb[0].mxu0 %v811
      %v882 = vpop.f32.mrb[0].mxu0
      %v883 = vadd.f32 %v808, %v882
      %v884 = vpop.f32.mrb[0].mxu0
      %885 = vdwg.mxu0
      %vm886 = vcmask 64512
      %v887 = vsel %vm886, %v883, -inf
      %888 = vmax.xlane.f32.xlu0 %v887
      %v889 = vpop.xlane.xlu0 %888
      %v890 = vsub.f32 %v883, %v889
      %v891 = vmul.f32 %v890, 1.442695
      %v892 = vpow.pop %v891
      %v893 = vsel %vm886, %v892, 0.0
      %894 = vadd.xlane.f32.xlu0 %v893
      %v895 = vpop.xlane.xlu0 %894
      %v896 = vrcp.pop %v895
      %v897 = vmul.f32 %v892, %v896
      %v899 = vsel %vm886, %v897, 0
      %901 = vmatprep.subr.mxu0 0.0
      %902 = vmatpush1.msra.mxu0 %v788
      %903 = vmatprep.subr.mxu0 0.0
      %904 = vmatpush1.msra.mxu0 0.0
      %905 = vmatprep.subr.mxu0 0.0
      %906 = vmatpush1.msra.mxu0 0.0
      %907 = vmatprep.subr.mxu0 0.0
      %908 = vmatpush1.msra.mxu0 0.0
      %909 = vmatprep.subr.mxu0 0.0
      %910 = vmatpush1.msra.mxu0 0.0
      %911 = vmatprep.subr.mxu0 0.0
      %912 = vmatpush1.msra.mxu0 0.0
      %913 = vmatprep.subr.mxu0 0.0
      %914 = vmatpush1.msra.mxu0 0.0
      %915 = vmatprep.subr.mxu0 0.0
      %916 = vmatpush1.msra.mxu0 0.0
      %917 = vmatprep.subr.mxu0 0.0
      %918 = vmatpush1.msra.mxu0 0.0
      %919 = vmatprep.subr.mxu0 0.0
      %920 = vmatpush1.msra.mxu0 0.0
      %921 = vmatprep.subr.mxu0 0.0
      %922 = vmatpush1.msra.mxu0 0.0
      %923 = vmatprep.subr.mxu0 0.0
      %924 = vmatpush1.msra.mxu0 0.0
      %925 = vmatprep.subr.mxu0 0.0
      %926 = vmatpush1.msra.mxu0 0.0
      %927 = vmatprep.subr.mxu0 0.0
      %928 = vmatpush1.msra.mxu0 0.0
      %929 = vmatprep.subr.mxu0 0.0
      %930 = vmatpush1.msra.mxu0 0.0
      %931 = vmatprep.subr.mxu0 0.0
      %932 = vmatpush1.msra.mxu0 0.0
      %933 = vmatprep.subr.mxu0 0.0
      %934 = vmatpush1.msra.mxu0 0.0
      %935 = vmatprep.subr.mxu0 0.0
      %936 = vmatpush1.msra.mxu0 0.0
      %937 = vmatprep.subr.mxu0 0.0
      %938 = vmatpush1.msra.mxu0 0.0
      %939 = vmatprep.subr.mxu0 0.0
      %940 = vmatpush1.msra.mxu0 0.0
      %941 = vmatprep.subr.mxu0 0.0
      %942 = vmatpush1.msra.mxu0 0.0
      %943 = vmatprep.subr.mxu0 0.0
      %944 = vmatpush1.msra.mxu0 0.0
      %945 = vmatprep.subr.mxu0 0.0
      %946 = vmatpush1.msra.mxu0 0.0
      %947 = vmatprep.subr.mxu0 0.0
      %948 = vmatpush1.msra.mxu0 0.0
      %949 = vmatprep.subr.mxu0 0.0
      %950 = vmatpush1.msra.mxu0 0.0
      %951 = vmatprep.subr.mxu0 0.0
      %952 = vmatpush1.msra.mxu0 0.0
      %953 = vmatprep.subr.mxu0 0.0
      %954 = vmatpush1.msra.mxu0 0.0
      %955 = vmatprep.subr.mxu0 0.0
      %956 = vmatpush1.msra.mxu0 0.0
      %957 = vmatprep.subr.mxu0 0.0
      %958 = vmatpush1.msra.mxu0 0.0
      %959 = vmatprep.subr.mxu0 0.0
      %960 = vmatpush1.msra.mxu0 0.0
      %961 = vmatprep.subr.mxu0 0.0
      %962 = vmatpush1.msra.mxu0 0.0
      %963 = vmatprep.subr.mxu0 0.0
      %964 = vmatpush1.msra.mxu0 0.0
      %965 = vmatprep.mubr.f32.mxu0 0.0
      %966 = vmatmul.mubr.f32.gmra.mrb[0].mxu0 %v899
      %v967 = vpop.f32.mrb[0].mxu0
      %v968 = vadd.f32 0.0, %v967
      %v969 = vpop.f32.mrb[0].mxu0
      %970 = vdwg.mxu0
      %971 = vrot.lane.b32.xlu0 %v580, 112
      %v972 = vpop.permute.xlu0 %971
      %973 = vrot.lane.b32.xlu0 %v684, 112
      %v974 = vpop.permute.xlu0 %973
      %v975 = vsel %vm809, %v972, 0
      %v977 = vsel %vm809, %v974, 0
      %979 = vmatprep.subr.mxu0 0.0
      %980 = vmatpush1.xpose.msra.mxu0 %v977
      %981 = vmatprep.subr.mxu0 0.0
      %982 = vmatpush1.xpose.msra.mxu0 0.0
      %983 = vmatprep.subr.mxu0 0.0
      %984 = vmatpush1.xpose.msra.mxu0 0.0
      %985 = vmatprep.subr.mxu0 0.0
      %986 = vmatpush1.xpose.msra.mxu0 0.0
      %987 = vmatprep.subr.mxu0 0.0
      %988 = vmatpush1.xpose.msra.mxu0 0.0
      %989 = vmatprep.subr.mxu0 0.0
      %990 = vmatpush1.xpose.msra.mxu0 0.0
      %991 = vmatprep.subr.mxu0 0.0
      %992 = vmatpush1.xpose.msra.mxu0 0.0
      %993 = vmatprep.subr.mxu0 0.0
      %994 = vmatpush1.xpose.msra.mxu0 0.0
      %995 = vmatprep.subr.mxu0 0.0
      %996 = vmatpush1.xpose.msra.mxu0 0.0
      %997 = vmatprep.subr.mxu0 0.0
      %998 = vmatpush1.xpose.msra.mxu0 0.0
      %999 = vmatprep.subr.mxu0 0.0
      %1000 = vmatpush1.xpose.msra.mxu0 0.0
      %1001 = vmatprep.subr.mxu0 0.0
      %1002 = vmatpush1.xpose.msra.mxu0 0.0
      %1003 = vmatprep.subr.mxu0 0.0
      %1004 = vmatpush1.xpose.msra.mxu0 0.0
      %1005 = vmatprep.subr.mxu0 0.0
      %1006 = vmatpush1.xpose.msra.mxu0 0.0
      %1007 = vmatprep.subr.mxu0 0.0
      %1008 = vmatpush1.xpose.msra.mxu0 0.0
      %1009 = vmatprep.subr.mxu0 0.0
      %1010 = vmatpush1.xpose.msra.mxu0 0.0
      %1011 = vmatprep.subr.mxu0 0.0
      %1012 = vmatpush1.xpose.msra.mxu0 0.0
      %1013 = vmatprep.subr.mxu0 0.0
      %1014 = vmatpush1.xpose.msra.mxu0 0.0
      %1015 = vmatprep.subr.mxu0 0.0
      %1016 = vmatpush1.xpose.msra.mxu0 0.0
      %1017 = vmatprep.subr.mxu0 0.0
      %1018 = vmatpush1.xpose.msra.mxu0 0.0
      %1019 = vmatprep.subr.mxu0 0.0
      %1020 = vmatpush1.xpose.msra.mxu0 0.0
      %1021 = vmatprep.subr.mxu0 0.0
      %1022 = vmatpush1.xpose.msra.mxu0 0.0
      %1023 = vmatprep.subr.mxu0 0.0
      %1024 = vmatpush1.xpose.msra.mxu0 0.0
      %1025 = vmatprep.subr.mxu0 0.0
      %1026 = vmatpush1.xpose.msra.mxu0 0.0
      %1027 = vmatprep.subr.mxu0 0.0
      %1028 = vmatpush1.xpose.msra.mxu0 0.0
      %1029 = vmatprep.subr.mxu0 0.0
      %1030 = vmatpush1.xpose.msra.mxu0 0.0
      %1031 = vmatprep.subr.mxu0 0.0
      %1032 = vmatpush1.xpose.msra.mxu0 0.0
      %1033 = vmatprep.subr.mxu0 0.0
      %1034 = vmatpush1.xpose.msra.mxu0 0.0
      %1035 = vmatprep.subr.mxu0 0.0
      %1036 = vmatpush1.xpose.msra.mxu0 0.0
      %1037 = vmatprep.subr.mxu0 0.0
      %1038 = vmatpush1.xpose.msra.mxu0 0.0
      %1039 = vmatprep.subr.mxu0 0.0
      %1040 = vmatpush1.xpose.msra.mxu0 0.0
      %1041 = vmatprep.subr.mxu0 0.0
      %1042 = vmatpush1.xpose.msra.mxu0 0.0
      %1043 = vmatprep.mubr.f32.mxu0 0.0
      %1044 = vmatmul.mubr.f32.gmra.mrb[0].mxu0 %v975
      %v1045 = vpop.f32.mrb[0].mxu0
      %v1046 = vadd.f32 %v808, %v1045
      %v1047 = vpop.f32.mrb[0].mxu0
      %1048 = vdwg.mxu0
      %v1049 = vsel %vm886, %v1046, -inf
      %1050 = vmax.xlane.f32.xlu0 %v1049
      %v1051 = vpop.xlane.xlu0 %1050
      %v1052 = vsub.f32 %v1046, %v1051
      %v1053 = vmul.f32 %v1052, 1.442695
      %v1054 = vpow.pop %v1053
      %v1055 = vsel %vm886, %v1054, 0.0
      %1056 = vadd.xlane.f32.xlu0 %v1055
      %v1057 = vpop.xlane.xlu0 %1056
      %v1058 = vrcp.pop %v1057
      %v1059 = vmul.f32 %v1054, %v1058
      %1061 = vrot.lane.b32.xlu0 %v788, 112
      %v1062 = vpop.permute.xlu0 %1061
      %v1065 = vsel %vm886, %v1059, 0
      %1067 = vmatprep.subr.mxu0 0.0
      %1068 = vmatpush1.msra.mxu0 %v1062
      %1069 = vmatprep.subr.mxu0 0.0
      %1070 = vmatpush1.msra.mxu0 0.0
      %1071 = vmatprep.subr.mxu0 0.0
      %1072 = vmatpush1.msra.mxu0 0.0
      %1073 = vmatprep.subr.mxu0 0.0
      %1074 = vmatpush1.msra.mxu0 0.0
      %1075 = vmatprep.subr.mxu0 0.0
      %1076 = vmatpush1.msra.mxu0 0.0
      %1077 = vmatprep.subr.mxu0 0.0
      %1078 = vmatpush1.msra.mxu0 0.0
      %1079 = vmatprep.subr.mxu0 0.0
      %1080 = vmatpush1.msra.mxu0 0.0
      %1081 = vmatprep.subr.mxu0 0.0
      %1082 = vmatpush1.msra.mxu0 0.0
      %1083 = vmatprep.subr.mxu0 0.0
      %1084 = vmatpush1.msra.mxu0 0.0
      %1085 = vmatprep.subr.mxu0 0.0
      %1086 = vmatpush1.msra.mxu0 0.0
      %1087 = vmatprep.subr.mxu0 0.0
      %1088 = vmatpush1.msra.mxu0 0.0
      %1089 = vmatprep.subr.mxu0 0.0
      %1090 = vmatpush1.msra.mxu0 0.0
      %1091 = vmatprep.subr.mxu0 0.0
      %1092 = vmatpush1.msra.mxu0 0.0
      %1093 = vmatprep.subr.mxu0 0.0
      %1094 = vmatpush1.msra.mxu0 0.0
      %1095 = vmatprep.subr.mxu0 0.0
      %1096 = vmatpush1.msra.mxu0 0.0
      %1097 = vmatprep.subr.mxu0 0.0
      %1098 = vmatpush1.msra.mxu0 0.0
      %1099 = vmatprep.subr.mxu0 0.0
      %1100 = vmatpush1.msra.mxu0 0.0
      %1101 = vmatprep.subr.mxu0 0.0
      %1102 = vmatpush1.msra.mxu0 0.0
      %1103 = vmatprep.subr.mxu0 0.0
      %1104 = vmatpush1.msra.mxu0 0.0
      %1105 = vmatprep.subr.mxu0 0.0
      %1106 = vmatpush1.msra.mxu0 0.0
      %1107 = vmatprep.subr.mxu0 0.0
      %1108 = vmatpush1.msra.mxu0 0.0
      %1109 = vmatprep.subr.mxu0 0.0
      %1110 = vmatpush1.msra.mxu0 0.0
      %1111 = vmatprep.subr.mxu0 0.0
      %1112 = vmatpush1.msra.mxu0 0.0
      %1113 = vmatprep.subr.mxu0 0.0
      %1114 = vmatpush1.msra.mxu0 0.0
      %1115 = vmatprep.subr.mxu0 0.0
      %1116 = vmatpush1.msra.mxu0 0.0
      %1117 = vmatprep.subr.mxu0 0.0
      %1118 = vmatpush1.msra.mxu0 0.0
      %1119 = vmatprep.subr.mxu0 0.0
      %1120 = vmatpush1.msra.mxu0 0.0
      %1121 = vmatprep.subr.mxu0 0.0
      %1122 = vmatpush1.msra.mxu0 0.0
      %1123 = vmatprep.subr.mxu0 0.0
      %1124 = vmatpush1.msra.mxu0 0.0
      %1125 = vmatprep.subr.mxu0 0.0
      %1126 = vmatpush1.msra.mxu0 0.0
      %1127 = vmatprep.subr.mxu0 0.0
      %1128 = vmatpush1.msra.mxu0 0.0
      %1129 = vmatprep.subr.mxu0 0.0
      %1130 = vmatpush1.msra.mxu0 0.0
      %1131 = vmatprep.mubr.f32.mxu0 0.0
      %1132 = vmatmul.mubr.f32.gmra.mrb[0].mxu0 %v1065
      %v1133 = vpop.f32.mrb[0].mxu0
      %v1134 = vadd.f32 0.0, %v1133
      %v1135 = vpop.f32.mrb[0].mxu0
      %1136 = vdwg.mxu0
      %1137 = vrot.lane.b32.xlu0 %v580, 96
      %v1138 = vpop.permute.xlu0 %1137
      %1139 = vrot.lane.b32.xlu0 %v684, 96
      %v1140 = vpop.permute.xlu0 %1139
      %v1141 = vsel %vm809, %v1138, 0
      %v1143 = vsel %vm809, %v1140, 0
      %1145 = vmatprep.subr.mxu0 0.0
      %1146 = vmatpush1.xpose.msra.mxu0 %v1143
      %1147 = vmatprep.subr.mxu0 0.0
      %1148 = vmatpush1.xpose.msra.mxu0 0.0
      %1149 = vmatprep.subr.mxu0 0.0
      %1150 = vmatpush1.xpose.msra.mxu0 0.0
      %1151 = vmatprep.subr.mxu0 0.0
      %1152 = vmatpush1.xpose.msra.mxu0 0.0
      %1153 = vmatprep.subr.mxu0 0.0
      %1154 = vmatpush1.xpose.msra.mxu0 0.0
      %1155 = vmatprep.subr.mxu0 0.0
      %1156 = vmatpush1.xpose.msra.mxu0 0.0
      %1157 = vmatprep.subr.mxu0 0.0
      %1158 = vmatpush1.xpose.msra.mxu0 0.0
      %1159 = vmatprep.subr.mxu0 0.0
      %1160 = vmatpush1.xpose.msra.mxu0 0.0
      %1161 = vmatprep.subr.mxu0 0.0
      %1162 = vmatpush1.xpose.msra.mxu0 0.0
      %1163 = vmatprep.subr.mxu0 0.0
      %1164 = vmatpush1.xpose.msra.mxu0 0.0
      %1165 = vmatprep.subr.mxu0 0.0
      %1166 = vmatpush1.xpose.msra.mxu0 0.0
      %1167 = vmatprep.subr.mxu0 0.0
      %1168 = vmatpush1.xpose.msra.mxu0 0.0
      %1169 = vmatprep.subr.mxu0 0.0
      %1170 = vmatpush1.xpose.msra.mxu0 0.0
      %1171 = vmatprep.subr.mxu0 0.0
      %1172 = vmatpush1.xpose.msra.mxu0 0.0
      %1173 = vmatprep.subr.mxu0 0.0
      %1174 = vmatpush1.xpose.msra.mxu0 0.0
      %1175 = vmatprep.subr.mxu0 0.0
      %1176 = vmatpush1.xpose.msra.mxu0 0.0
      %1177 = vmatprep.subr.mxu0 0.0
      %1178 = vmatpush1.xpose.msra.mxu0 0.0
      %1179 = vmatprep.subr.mxu0 0.0
      %1180 = vmatpush1.xpose.msra.mxu0 0.0
      %1181 = vmatprep.subr.mxu0 0.0
      %1182 = vmatpush1.xpose.msra.mxu0 0.0
      %1183 = vmatprep.subr.mxu0 0.0
      %1184 = vmatpush1.xpose.msra.mxu0 0.0
      %1185 = vmatprep.subr.mxu0 0.0
      %1186 = vmatpush1.xpose.msra.mxu0 0.0
      %1187 = vmatprep.subr.mxu0 0.0
      %1188 = vmatpush1.xpose.msra.mxu0 0.0
      %1189 = vmatprep.subr.mxu0 0.0
      %1190 = vmatpush1.xpose.msra.mxu0 0.0
      %1191 = vmatprep.subr.mxu0 0.0
      %1192 = vmatpush1.xpose.msra.mxu0 0.0
      %1193 = vmatprep.subr.mxu0 0.0
      %1194 = vmatpush1.xpose.msra.mxu0 0.0
      %1195 = vmatprep.subr.mxu0 0.0
      %1196 = vmatpush1.xpose.msra.mxu0 0.0
      %1197 = vmatprep.subr.mxu0 0.0
      %1198 = vmatpush1.xpose.msra.mxu0 0.0
      %1199 = vmatprep.subr.mxu0 0.0
      %1200 = vmatpush1.xpose.msra.mxu0 0.0
      %1201 = vmatprep.subr.mxu0 0.0
      %1202 = vmatpush1.xpose.msra.mxu0 0.0
      %1203 = vmatprep.subr.mxu0 0.0
      %1204 = vmatpush1.xpose.msra.mxu0 0.0
      %1205 = vmatprep.subr.mxu0 0.0
      %1206 = vmatpush1.xpose.msra.mxu0 0.0
      %1207 = vmatprep.subr.mxu0 0.0
      %1208 = vmatpush1.xpose.msra.mxu0 0.0
      %1209 = vmatprep.mubr.f32.mxu0 0.0
      %1210 = vmatmul.mubr.f32.gmra.mrb[0].mxu0 %v1141
      %v1211 = vpop.f32.mrb[0].mxu0
      %v1212 = vadd.f32 %v808, %v1211
      %v1213 = vpop.f32.mrb[0].mxu0
      %1214 = vdwg.mxu0
      %v1215 = vsel %vm886, %v1212, -inf
      %1216 = vmax.xlane.f32.xlu0 %v1215
      %v1217 = vpop.xlane.xlu0 %1216
      %v1218 = vsub.f32 %v1212, %v1217
      %v1219 = vmul.f32 %v1218, 1.442695
      %v1220 = vpow.pop %v1219
      %v1221 = vsel %vm886, %v1220, 0.0
      %1222 = vadd.xlane.f32.xlu0 %v1221
      %v1223 = vpop.xlane.xlu0 %1222
      %v1224 = vrcp.pop %v1223
      %v1225 = vmul.f32 %v1220, %v1224
      %1226 = vrot.lane.b32.xlu0 %v788, 96
      %v1227 = vpop.permute.xlu0 %1226
      %v1230 = vsel %vm886, %v1225, 0
      %1232 = vmatprep.subr.mxu0 0.0
      %1233 = vmatpush1.msra.mxu0 %v1227
      %1234 = vmatprep.subr.mxu0 0.0
      %1235 = vmatpush1.msra.mxu0 0.0
      %1236 = vmatprep.subr.mxu0 0.0
      %1237 = vmatpush1.msra.mxu0 0.0
      %1238 = vmatprep.subr.mxu0 0.0
      %1239 = vmatpush1.msra.mxu0 0.0
      %1240 = vmatprep.subr.mxu0 0.0
      %1241 = vmatpush1.msra.mxu0 0.0
      %1242 = vmatprep.subr.mxu0 0.0
      %1243 = vmatpush1.msra.mxu0 0.0
      %1244 = vmatprep.subr.mxu0 0.0
      %1245 = vmatpush1.msra.mxu0 0.0
      %1246 = vmatprep.subr.mxu0 0.0
      %1247 = vmatpush1.msra.mxu0 0.0
      %1248 = vmatprep.subr.mxu0 0.0
      %1249 = vmatpush1.msra.mxu0 0.0
      %1250 = vmatprep.subr.mxu0 0.0
      %1251 = vmatpush1.msra.mxu0 0.0
      %1252 = vmatprep.subr.mxu0 0.0
      %1253 = vmatpush1.msra.mxu0 0.0
      %1254 = vmatprep.subr.mxu0 0.0
      %1255 = vmatpush1.msra.mxu0 0.0
      %1256 = vmatprep.subr.mxu0 0.0
      %1257 = vmatpush1.msra.mxu0 0.0
      %1258 = vmatprep.subr.mxu0 0.0
      %1259 = vmatpush1.msra.mxu0 0.0
      %1260 = vmatprep.subr.mxu0 0.0
      %1261 = vmatpush1.msra.mxu0 0.0
      %1262 = vmatprep.subr.mxu0 0.0
      %1263 = vmatpush1.msra.mxu0 0.0
      %1264 = vmatprep.subr.mxu0 0.0
      %1265 = vmatpush1.msra.mxu0 0.0
      %1266 = vmatprep.subr.mxu0 0.0
      %1267 = vmatpush1.msra.mxu0 0.0
      %1268 = vmatprep.subr.mxu0 0.0
      %1269 = vmatpush1.msra.mxu0 0.0
      %1270 = vmatprep.subr.mxu0 0.0
      %1271 = vmatpush1.msra.mxu0 0.0
      %1272 = vmatprep.subr.mxu0 0.0
      %1273 = vmatpush1.msra.mxu0 0.0
      %1274 = vmatprep.subr.mxu0 0.0
      %1275 = vmatpush1.msra.mxu0 0.0
      %1276 = vmatprep.subr.mxu0 0.0
      %1277 = vmatpush1.msra.mxu0 0.0
      %1278 = vmatprep.subr.mxu0 0.0
      %1279 = vmatpush1.msra.mxu0 0.0
      %1280 = vmatprep.subr.mxu0 0.0
      %1281 = vmatpush1.msra.mxu0 0.0
      %1282 = vmatprep.subr.mxu0 0.0
      %1283 = vmatpush1.msra.mxu0 0.0
      %1284 = vmatprep.subr.mxu0 0.0
      %1285 = vmatpush1.msra.mxu0 0.0
      %1286 = vmatprep.subr.mxu0 0.0
      %1287 = vmatpush1.msra.mxu0 0.0
      %1288 = vmatprep.subr.mxu0 0.0
      %1289 = vmatpush1.msra.mxu0 0.0
      %1290 = vmatprep.subr.mxu0 0.0
      %1291 = vmatpush1.msra.mxu0 0.0
      %1292 = vmatprep.subr.mxu0 0.0
      %1293 = vmatpush1.msra.mxu0 0.0
      %1294 = vmatprep.subr.mxu0 0.0
      %1295 = vmatpush1.msra.mxu0 0.0
      %1296 = vmatprep.mubr.f32.mxu0 0.0
      %1297 = vmatmul.mubr.f32.gmra.mrb[0].mxu0 %v1230
      %v1298 = vpop.f32.mrb[0].mxu0
      %v1299 = vadd.f32 0.0, %v1298
      %v1300 = vpop.f32.mrb[0].mxu0
      %1301 = vdwg.mxu0
      %1302 = vrot.lane.b32.xlu0 %v580, 80
      %v1303 = vpop.permute.xlu0 %1302
      %1304 = vrot.lane.b32.xlu0 %v684, 80
      %v1305 = vpop.permute.xlu0 %1304
      %v1306 = vsel %vm809, %v1303, 0
      %v1308 = vsel %vm809, %v1305, 0
      %1310 = vmatprep.subr.mxu0 0.0
      %1311 = vmatpush1.xpose.msra.mxu0 %v1308
      %1312 = vmatprep.subr.mxu0 0.0
      %1313 = vmatpush1.xpose.msra.mxu0 0.0
      %1314 = vmatprep.subr.mxu0 0.0
      %1315 = vmatpush1.xpose.msra.mxu0 0.0
      %1316 = vmatprep.subr.mxu0 0.0
      %1317 = vmatpush1.xpose.msra.mxu0 0.0
      %1318 = vmatprep.subr.mxu0 0.0
      %1319 = vmatpush1.xpose.msra.mxu0 0.0
      %1320 = vmatprep.subr.mxu0 0.0
      %1321 = vmatpush1.xpose.msra.mxu0 0.0
      %1322 = vmatprep.subr.mxu0 0.0
      %1323 = vmatpush1.xpose.msra.mxu0 0.0
      %1324 = vmatprep.subr.mxu0 0.0
      %1325 = vmatpush1.xpose.msra.mxu0 0.0
      %1326 = vmatprep.subr.mxu0 0.0
      %1327 = vmatpush1.xpose.msra.mxu0 0.0
      %1328 = vmatprep.subr.mxu0 0.0
      %1329 = vmatpush1.xpose.msra.mxu0 0.0
      %1330 = vmatprep.subr.mxu0 0.0
      %1331 = vmatpush1.xpose.msra.mxu0 0.0
      %1332 = vmatprep.subr.mxu0 0.0
      %1333 = vmatpush1.xpose.msra.mxu0 0.0
      %1334 = vmatprep.subr.mxu0 0.0
      %1335 = vmatpush1.xpose.msra.mxu0 0.0
      %1336 = vmatprep.subr.mxu0 0.0
      %1337 = vmatpush1.xpose.msra.mxu0 0.0
      %1338 = vmatprep.subr.mxu0 0.0
      %1339 = vmatpush1.xpose.msra.mxu0 0.0
      %1340 = vmatprep.subr.mxu0 0.0
      %1341 = vmatpush1.xpose.msra.mxu0 0.0
      %1342 = vmatprep.subr.mxu0 0.0
      %1343 = vmatpush1.xpose.msra.mxu0 0.0
      %1344 = vmatprep.subr.mxu0 0.0
      %1345 = vmatpush1.xpose.msra.mxu0 0.0
      %1346 = vmatprep.subr.mxu0 0.0
      %1347 = vmatpush1.xpose.msra.mxu0 0.0
      %1348 = vmatprep.subr.mxu0 0.0
      %1349 = vmatpush1.xpose.msra.mxu0 0.0
      %1350 = vmatprep.subr.mxu0 0.0
      %1351 = vmatpush1.xpose.msra.mxu0 0.0
      %1352 = vmatprep.subr.mxu0 0.0
      %1353 = vmatpush1.xpose.msra.mxu0 0.0
      %1354 = vmatprep.subr.mxu0 0.0
      %1355 = vmatpush1.xpose.msra.mxu0 0.0
      %1356 = vmatprep.subr.mxu0 0.0
      %1357 = vmatpush1.xpose.msra.mxu0 0.0
      %1358 = vmatprep.subr.mxu0 0.0
      %1359 = vmatpush1.xpose.msra.mxu0 0.0
      %1360 = vmatprep.subr.mxu0 0.0
      %1361 = vmatpush1.xpose.msra.mxu0 0.0
      %1362 = vmatprep.subr.mxu0 0.0
      %1363 = vmatpush1.xpose.msra.mxu0 0.0
      %1364 = vmatprep.subr.mxu0 0.0
      %1365 = vmatpush1.xpose.msra.mxu0 0.0
      %1366 = vmatprep.subr.mxu0 0.0
      %1367 = vmatpush1.xpose.msra.mxu0 0.0
      %1368 = vmatprep.subr.mxu0 0.0
      %1369 = vmatpush1.xpose.msra.mxu0 0.0
      %1370 = vmatprep.subr.mxu0 0.0
      %1371 = vmatpush1.xpose.msra.mxu0 0.0
      %1372 = vmatprep.subr.mxu0 0.0
      %1373 = vmatpush1.xpose.msra.mxu0 0.0
      %1374 = vmatprep.mubr.f32.mxu0 0.0
      %1375 = vmatmul.mubr.f32.gmra.mrb[0].mxu0 %v1306
      %v1376 = vpop.f32.mrb[0].mxu0
      %v1377 = vadd.f32 %v808, %v1376
      %v1378 = vpop.f32.mrb[0].mxu0
      %1379 = vdwg.mxu0
      %v1380 = vsel %vm886, %v1377, -inf
      %1381 = vmax.xlane.f32.xlu0 %v1380
      %v1382 = vpop.xlane.xlu0 %1381
      %v1383 = vsub.f32 %v1377, %v1382
      %v1384 = vmul.f32 %v1383, 1.442695
      %v1385 = vpow.pop %v1384
      %v1386 = vsel %vm886, %v1385, 0.0
      %1387 = vadd.xlane.f32.xlu0 %v1386
      %v1388 = vpop.xlane.xlu0 %1387
      %v1389 = vrcp.pop %v1388
      %v1390 = vmul.f32 %v1385, %v1389
      %1391 = vrot.lane.b32.xlu0 %v788, 80
      %v1392 = vpop.permute.xlu0 %1391
      %v1395 = vsel %vm886, %v1390, 0
      %1397 = vmatprep.subr.mxu0 0.0
      %1398 = vmatpush1.msra.mxu0 %v1392
      %1399 = vmatprep.subr.mxu0 0.0
      %1400 = vmatpush1.msra.mxu0 0.0
      %1401 = vmatprep.subr.mxu0 0.0
      %1402 = vmatpush1.msra.mxu0 0.0
      %1403 = vmatprep.subr.mxu0 0.0
      %1404 = vmatpush1.msra.mxu0 0.0
      %1405 = vmatprep.subr.mxu0 0.0
      %1406 = vmatpush1.msra.mxu0 0.0
      %1407 = vmatprep.subr.mxu0 0.0
      %1408 = vmatpush1.msra.mxu0 0.0
      %1409 = vmatprep.subr.mxu0 0.0
      %1410 = vmatpush1.msra.mxu0 0.0
      %1411 = vmatprep.subr.mxu0 0.0
      %1412 = vmatpush1.msra.mxu0 0.0
      %1413 = vmatprep.subr.mxu0 0.0
      %1414 = vmatpush1.msra.mxu0 0.0
      %1415 = vmatprep.subr.mxu0 0.0
      %1416 = vmatpush1.msra.mxu0 0.0
      %1417 = vmatprep.subr.mxu0 0.0
      %1418 = vmatpush1.msra.mxu0 0.0
      %1419 = vmatprep.subr.mxu0 0.0
      %1420 = vmatpush1.msra.mxu0 0.0
      %1421 = vmatprep.subr.mxu0 0.0
      %1422 = vmatpush1.msra.mxu0 0.0
      %1423 = vmatprep.subr.mxu0 0.0
      %1424 = vmatpush1.msra.mxu0 0.0
      %1425 = vmatprep.subr.mxu0 0.0
      %1426 = vmatpush1.msra.mxu0 0.0
      %1427 = vmatprep.subr.mxu0 0.0
      %1428 = vmatpush1.msra.mxu0 0.0
      %1429 = vmatprep.subr.mxu0 0.0
      %1430 = vmatpush1.msra.mxu0 0.0
      %1431 = vmatprep.subr.mxu0 0.0
      %1432 = vmatpush1.msra.mxu0 0.0
      %1433 = vmatprep.subr.mxu0 0.0
      %1434 = vmatpush1.msra.mxu0 0.0
      %1435 = vmatprep.subr.mxu0 0.0
      %1436 = vmatpush1.msra.mxu0 0.0
      %1437 = vmatprep.subr.mxu0 0.0
      %1438 = vmatpush1.msra.mxu0 0.0
      %1439 = vmatprep.subr.mxu0 0.0
      %1440 = vmatpush1.msra.mxu0 0.0
      %1441 = vmatprep.subr.mxu0 0.0
      %1442 = vmatpush1.msra.mxu0 0.0
      %1443 = vmatprep.subr.mxu0 0.0
      %1444 = vmatpush1.msra.mxu0 0.0
      %1445 = vmatprep.subr.mxu0 0.0
      %1446 = vmatpush1.msra.mxu0 0.0
      %1447 = vmatprep.subr.mxu0 0.0
      %1448 = vmatpush1.msra.mxu0 0.0
      %1449 = vmatprep.subr.mxu0 0.0
      %1450 = vmatpush1.msra.mxu0 0.0
      %1451 = vmatprep.subr.mxu0 0.0
      %1452 = vmatpush1.msra.mxu0 0.0
      %1453 = vmatprep.subr.mxu0 0.0
      %1454 = vmatpush1.msra.mxu0 0.0
      %1455 = vmatprep.subr.mxu0 0.0
      %1456 = vmatpush1.msra.mxu0 0.0
      %1457 = vmatprep.subr.mxu0 0.0
      %1458 = vmatpush1.msra.mxu0 0.0
      %1459 = vmatprep.subr.mxu0 0.0
      %1460 = vmatpush1.msra.mxu0 0.0
      %1461 = vmatprep.mubr.f32.mxu0 0.0
      %1462 = vmatmul.mubr.f32.gmra.mrb[0].mxu0 %v1395
      %v1463 = vpop.f32.mrb[0].mxu0
      %v1464 = vadd.f32 0.0, %v1463
      %v1465 = vpop.f32.mrb[0].mxu0
      %1466 = vdwg.mxu0
      %1467 = vrot.lane.b32.xlu0 %v580, 64
      %v1468 = vpop.permute.xlu0 %1467
      %1469 = vrot.lane.b32.xlu0 %v684, 64
      %v1470 = vpop.permute.xlu0 %1469
      %v1471 = vsel %vm809, %v1468, 0
      %v1473 = vsel %vm809, %v1470, 0
      %1475 = vmatprep.subr.mxu0 0.0
      %1476 = vmatpush1.xpose.msra.mxu0 %v1473
      %1477 = vmatprep.subr.mxu0 0.0
      %1478 = vmatpush1.xpose.msra.mxu0 0.0
      %1479 = vmatprep.subr.mxu0 0.0
      %1480 = vmatpush1.xpose.msra.mxu0 0.0
      %1481 = vmatprep.subr.mxu0 0.0
      %1482 = vmatpush1.xpose.msra.mxu0 0.0
      %1483 = vmatprep.subr.mxu0 0.0
      %1484 = vmatpush1.xpose.msra.mxu0 0.0
      %1485 = vmatprep.subr.mxu0 0.0
      %1486 = vmatpush1.xpose.msra.mxu0 0.0
      %1487 = vmatprep.subr.mxu0 0.0
      %1488 = vmatpush1.xpose.msra.mxu0 0.0
      %1489 = vmatprep.subr.mxu0 0.0
      %1490 = vmatpush1.xpose.msra.mxu0 0.0
      %1491 = vmatprep.subr.mxu0 0.0
      %1492 = vmatpush1.xpose.msra.mxu0 0.0
      %1493 = vmatprep.subr.mxu0 0.0
      %1494 = vmatpush1.xpose.msra.mxu0 0.0
      %1495 = vmatprep.subr.mxu0 0.0
      %1496 = vmatpush1.xpose.msra.mxu0 0.0
      %1497 = vmatprep.subr.mxu0 0.0
      %1498 = vmatpush1.xpose.msra.mxu0 0.0
      %1499 = vmatprep.subr.mxu0 0.0
      %1500 = vmatpush1.xpose.msra.mxu0 0.0
      %1501 = vmatprep.subr.mxu0 0.0
      %1502 = vmatpush1.xpose.msra.mxu0 0.0
      %1503 = vmatprep.subr.mxu0 0.0
      %1504 = vmatpush1.xpose.msra.mxu0 0.0
      %1505 = vmatprep.subr.mxu0 0.0
      %1506 = vmatpush1.xpose.msra.mxu0 0.0
      %1507 = vmatprep.subr.mxu0 0.0
      %1508 = vmatpush1.xpose.msra.mxu0 0.0
      %1509 = vmatprep.subr.mxu0 0.0
      %1510 = vmatpush1.xpose.msra.mxu0 0.0
      %1511 = vmatprep.subr.mxu0 0.0
      %1512 = vmatpush1.xpose.msra.mxu0 0.0
      %1513 = vmatprep.subr.mxu0 0.0
      %1514 = vmatpush1.xpose.msra.mxu0 0.0
      %1515 = vmatprep.subr.mxu0 0.0
      %1516 = vmatpush1.xpose.msra.mxu0 0.0
      %1517 = vmatprep.subr.mxu0 0.0
      %1518 = vmatpush1.xpose.msra.mxu0 0.0
      %1519 = vmatprep.subr.mxu0 0.0
      %1520 = vmatpush1.xpose.msra.mxu0 0.0
      %1521 = vmatprep.subr.mxu0 0.0
      %1522 = vmatpush1.xpose.msra.mxu0 0.0
      %1523 = vmatprep.subr.mxu0 0.0
      %1524 = vmatpush1.xpose.msra.mxu0 0.0
      %1525 = vmatprep.subr.mxu0 0.0
      %1526 = vmatpush1.xpose.msra.mxu0 0.0
      %1527 = vmatprep.subr.mxu0 0.0
      %1528 = vmatpush1.xpose.msra.mxu0 0.0
      %1529 = vmatprep.subr.mxu0 0.0
      %1530 = vmatpush1.xpose.msra.mxu0 0.0
      %1531 = vmatprep.subr.mxu0 0.0
      %1532 = vmatpush1.xpose.msra.mxu0 0.0
      %1533 = vmatprep.subr.mxu0 0.0
      %1534 = vmatpush1.xpose.msra.mxu0 0.0
      %1535 = vmatprep.subr.mxu0 0.0
      %1536 = vmatpush1.xpose.msra.mxu0 0.0
      %1537 = vmatprep.subr.mxu0 0.0
      %1538 = vmatpush1.xpose.msra.mxu0 0.0
      %1539 = vmatprep.mubr.f32.mxu0 0.0
      %1540 = vmatmul.mubr.f32.gmra.mrb[0].mxu0 %v1471
      %v1541 = vpop.f32.mrb[0].mxu0
      %v1542 = vadd.f32 %v808, %v1541
      %v1543 = vpop.f32.mrb[0].mxu0
      %1544 = vdwg.mxu0
      %v1545 = vsel %vm886, %v1542, -inf
      %1546 = vmax.xlane.f32.xlu0 %v1545
      %v1547 = vpop.xlane.xlu0 %1546
      %v1548 = vsub.f32 %v1542, %v1547
      %v1549 = vmul.f32 %v1548, 1.442695
      %v1550 = vpow.pop %v1549
      %v1551 = vsel %vm886, %v1550, 0.0
      %1552 = vadd.xlane.f32.xlu0 %v1551
      %v1553 = vpop.xlane.xlu0 %1552
      %v1554 = vrcp.pop %v1553
      %v1555 = vmul.f32 %v1550, %v1554
      %1556 = vrot.lane.b32.xlu0 %v788, 64
      %v1557 = vpop.permute.xlu0 %1556
      %v1560 = vsel %vm886, %v1555, 0
      %1562 = vmatprep.subr.mxu0 0.0
      %1563 = vmatpush1.msra.mxu0 %v1557
      %1564 = vmatprep.subr.mxu0 0.0
      %1565 = vmatpush1.msra.mxu0 0.0
      %1566 = vmatprep.subr.mxu0 0.0
      %1567 = vmatpush1.msra.mxu0 0.0
      %1568 = vmatprep.subr.mxu0 0.0
      %1569 = vmatpush1.msra.mxu0 0.0
      %1570 = vmatprep.subr.mxu0 0.0
      %1571 = vmatpush1.msra.mxu0 0.0
      %1572 = vmatprep.subr.mxu0 0.0
      %1573 = vmatpush1.msra.mxu0 0.0
      %1574 = vmatprep.subr.mxu0 0.0
      %1575 = vmatpush1.msra.mxu0 0.0
      %1576 = vmatprep.subr.mxu0 0.0
      %1577 = vmatpush1.msra.mxu0 0.0
      %1578 = vmatprep.subr.mxu0 0.0
      %1579 = vmatpush1.msra.mxu0 0.0
      %1580 = vmatprep.subr.mxu0 0.0
      %1581 = vmatpush1.msra.mxu0 0.0
      %1582 = vmatprep.subr.mxu0 0.0
      %1583 = vmatpush1.msra.mxu0 0.0
      %1584 = vmatprep.subr.mxu0 0.0
      %1585 = vmatpush1.msra.mxu0 0.0
      %1586 = vmatprep.subr.mxu0 0.0
      %1587 = vmatpush1.msra.mxu0 0.0
      %1588 = vmatprep.subr.mxu0 0.0
      %1589 = vmatpush1.msra.mxu0 0.0
      %1590 = vmatprep.subr.mxu0 0.0
      %1591 = vmatpush1.msra.mxu0 0.0
      %1592 = vmatprep.subr.mxu0 0.0
      %1593 = vmatpush1.msra.mxu0 0.0
      %1594 = vmatprep.subr.mxu0 0.0
      %1595 = vmatpush1.msra.mxu0 0.0
      %1596 = vmatprep.subr.mxu0 0.0
      %1597 = vmatpush1.msra.mxu0 0.0
      %1598 = vmatprep.subr.mxu0 0.0
      %1599 = vmatpush1.msra.mxu0 0.0
      %1600 = vmatprep.subr.mxu0 0.0
      %1601 = vmatpush1.msra.mxu0 0.0
      %1602 = vmatprep.subr.mxu0 0.0
      %1603 = vmatpush1.msra.mxu0 0.0
      %1604 = vmatprep.subr.mxu0 0.0
      %1605 = vmatpush1.msra.mxu0 0.0
      %1606 = vmatprep.subr.mxu0 0.0
      %1607 = vmatpush1.msra.mxu0 0.0
      %1608 = vmatprep.subr.mxu0 0.0
      %1609 = vmatpush1.msra.mxu0 0.0
      %1610 = vmatprep.subr.mxu0 0.0
      %1611 = vmatpush1.msra.mxu0 0.0
      %1612 = vmatprep.subr.mxu0 0.0
      %1613 = vmatpush1.msra.mxu0 0.0
      %1614 = vmatprep.subr.mxu0 0.0
      %1615 = vmatpush1.msra.mxu0 0.0
      %1616 = vmatprep.subr.mxu0 0.0
      %1617 = vmatpush1.msra.mxu0 0.0
      %1618 = vmatprep.subr.mxu0 0.0
      %1619 = vmatpush1.msra.mxu0 0.0
      %1620 = vmatprep.subr.mxu0 0.0
      %1621 = vmatpush1.msra.mxu0 0.0
      %1622 = vmatprep.subr.mxu0 0.0
      %1623 = vmatpush1.msra.mxu0 0.0
      %1624 = vmatprep.subr.mxu0 0.0
      %1625 = vmatpush1.msra.mxu0 0.0
      %1626 = vmatprep.mubr.f32.mxu0 0.0
      %1627 = vmatmul.mubr.f32.gmra.mrb[0].mxu0 %v1560
      %v1628 = vpop.f32.mrb[0].mxu0
      %v1629 = vadd.f32 0.0, %v1628
      %v1630 = vpop.f32.mrb[0].mxu0
      %1631 = vdwg.mxu0
      %1632 = vrot.lane.b32.xlu0 %v580, 48
      %v1633 = vpop.permute.xlu0 %1632
      %1634 = vrot.lane.b32.xlu0 %v684, 48
      %v1635 = vpop.permute.xlu0 %1634
      %v1636 = vsel %vm809, %v1633, 0
      %v1638 = vsel %vm809, %v1635, 0
      %1640 = vmatprep.subr.mxu0 0.0
      %1641 = vmatpush1.xpose.msra.mxu0 %v1638
      %1642 = vmatprep.subr.mxu0 0.0
      %1643 = vmatpush1.xpose.msra.mxu0 0.0
      %1644 = vmatprep.subr.mxu0 0.0
      %1645 = vmatpush1.xpose.msra.mxu0 0.0
      %1646 = vmatprep.subr.mxu0 0.0
      %1647 = vmatpush1.xpose.msra.mxu0 0.0
      %1648 = vmatprep.subr.mxu0 0.0
      %1649 = vmatpush1.xpose.msra.mxu0 0.0
      %1650 = vmatprep.subr.mxu0 0.0
      %1651 = vmatpush1.xpose.msra.mxu0 0.0
      %1652 = vmatprep.subr.mxu0 0.0
      %1653 = vmatpush1.xpose.msra.mxu0 0.0
      %1654 = vmatprep.subr.mxu0 0.0
      %1655 = vmatpush1.xpose.msra.mxu0 0.0
      %1656 = vmatprep.subr.mxu0 0.0
      %1657 = vmatpush1.xpose.msra.mxu0 0.0
      %1658 = vmatprep.subr.mxu0 0.0
      %1659 = vmatpush1.xpose.msra.mxu0 0.0
      %1660 = vmatprep.subr.mxu0 0.0
      %1661 = vmatpush1.xpose.msra.mxu0 0.0
      %1662 = vmatprep.subr.mxu0 0.0
      %1663 = vmatpush1.xpose.msra.mxu0 0.0
      %1664 = vmatprep.subr.mxu0 0.0
      %1665 = vmatpush1.xpose.msra.mxu0 0.0
      %1666 = vmatprep.subr.mxu0 0.0
      %1667 = vmatpush1.xpose.msra.mxu0 0.0
      %1668 = vmatprep.subr.mxu0 0.0
      %1669 = vmatpush1.xpose.msra.mxu0 0.0
      %1670 = vmatprep.subr.mxu0 0.0
      %1671 = vmatpush1.xpose.msra.mxu0 0.0
      %1672 = vmatprep.subr.mxu0 0.0
      %1673 = vmatpush1.xpose.msra.mxu0 0.0
      %1674 = vmatprep.subr.mxu0 0.0
      %1675 = vmatpush1.xpose.msra.mxu0 0.0
      %1676 = vmatprep.subr.mxu0 0.0
      %1677 = vmatpush1.xpose.msra.mxu0 0.0
      %1678 = vmatprep.subr.mxu0 0.0
      %1679 = vmatpush1.xpose.msra.mxu0 0.0
      %1680 = vmatprep.subr.mxu0 0.0
      %1681 = vmatpush1.xpose.msra.mxu0 0.0
      %1682 = vmatprep.subr.mxu0 0.0
      %1683 = vmatpush1.xpose.msra.mxu0 0.0
      %1684 = vmatprep.subr.mxu0 0.0
      %1685 = vmatpush1.xpose.msra.mxu0 0.0
      %1686 = vmatprep.subr.mxu0 0.0
      %1687 = vmatpush1.xpose.msra.mxu0 0.0
      %1688 = vmatprep.subr.mxu0 0.0
      %1689 = vmatpush1.xpose.msra.mxu0 0.0
      %1690 = vmatprep.subr.mxu0 0.0
      %1691 = vmatpush1.xpose.msra.mxu0 0.0
      %1692 = vmatprep.subr.mxu0 0.0
      %1693 = vmatpush1.xpose.msra.mxu0 0.0
      %1694 = vmatprep.subr.mxu0 0.0
      %1695 = vmatpush1.xpose.msra.mxu0 0.0
      %1696 = vmatprep.subr.mxu0 0.0
      %1697 = vmatpush1.xpose.msra.mxu0 0.0
      %1698 = vmatprep.subr.mxu0 0.0
      %1699 = vmatpush1.xpose.msra.mxu0 0.0
      %1700 = vmatprep.subr.mxu0 0.0
      %1701 = vmatpush1.xpose.msra.mxu0 0.0
      %1702 = vmatprep.subr.mxu0 0.0
      %1703 = vmatpush1.xpose.msra.mxu0 0.0
      %1704 = vmatprep.mubr.f32.mxu0 0.0
      %1705 = vmatmul.mubr.f32.gmra.mrb[0].mxu0 %v1636
      %v1706 = vpop.f32.mrb[0].mxu0
      %v1707 = vadd.f32 %v808, %v1706
      %v1708 = vpop.f32.mrb[0].mxu0
      %1709 = vdwg.mxu0
      %v1710 = vsel %vm886, %v1707, -inf
      %1711 = vmax.xlane.f32.xlu0 %v1710
      %v1712 = vpop.xlane.xlu0 %1711
      %v1713 = vsub.f32 %v1707, %v1712
      %v1714 = vmul.f32 %v1713, 1.442695
      %v1715 = vpow.pop %v1714
      %v1716 = vsel %vm886, %v1715, 0.0
      %1717 = vadd.xlane.f32.xlu0 %v1716
      %v1718 = vpop.xlane.xlu0 %1717
      %v1719 = vrcp.pop %v1718
      %v1720 = vmul.f32 %v1715, %v1719
      %1721 = vrot.lane.b32.xlu0 %v788, 48
      %v1722 = vpop.permute.xlu0 %1721
      %v1725 = vsel %vm886, %v1720, 0
      %1727 = vmatprep.subr.mxu0 0.0
      %1728 = vmatpush1.msra.mxu0 %v1722
      %1729 = vmatprep.subr.mxu0 0.0
      %1730 = vmatpush1.msra.mxu0 0.0
      %1731 = vmatprep.subr.mxu0 0.0
      %1732 = vmatpush1.msra.mxu0 0.0
      %1733 = vmatprep.subr.mxu0 0.0
      %1734 = vmatpush1.msra.mxu0 0.0
      %1735 = vmatprep.subr.mxu0 0.0
      %1736 = vmatpush1.msra.mxu0 0.0
      %1737 = vmatprep.subr.mxu0 0.0
      %1738 = vmatpush1.msra.mxu0 0.0
      %1739 = vmatprep.subr.mxu0 0.0
      %1740 = vmatpush1.msra.mxu0 0.0
      %1741 = vmatprep.subr.mxu0 0.0
      %1742 = vmatpush1.msra.mxu0 0.0
      %1743 = vmatprep.subr.mxu0 0.0
      %1744 = vmatpush1.msra.mxu0 0.0
      %1745 = vmatprep.subr.mxu0 0.0
      %1746 = vmatpush1.msra.mxu0 0.0
      %1747 = vmatprep.subr.mxu0 0.0
      %1748 = vmatpush1.msra.mxu0 0.0
      %1749 = vmatprep.subr.mxu0 0.0
      %1750 = vmatpush1.msra.mxu0 0.0
      %1751 = vmatprep.subr.mxu0 0.0
      %1752 = vmatpush1.msra.mxu0 0.0
      %1753 = vmatprep.subr.mxu0 0.0
      %1754 = vmatpush1.msra.mxu0 0.0
      %1755 = vmatprep.subr.mxu0 0.0
      %1756 = vmatpush1.msra.mxu0 0.0
      %1757 = vmatprep.subr.mxu0 0.0
      %1758 = vmatpush1.msra.mxu0 0.0
      %1759 = vmatprep.subr.mxu0 0.0
      %1760 = vmatpush1.msra.mxu0 0.0
      %1761 = vmatprep.subr.mxu0 0.0
      %1762 = vmatpush1.msra.mxu0 0.0
      %1763 = vmatprep.subr.mxu0 0.0
      %1764 = vmatpush1.msra.mxu0 0.0
      %1765 = vmatprep.subr.mxu0 0.0
      %1766 = vmatpush1.msra.mxu0 0.0
      %1767 = vmatprep.subr.mxu0 0.0
      %1768 = vmatpush1.msra.mxu0 0.0
      %1769 = vmatprep.subr.mxu0 0.0
      %1770 = vmatpush1.msra.mxu0 0.0
      %1771 = vmatprep.subr.mxu0 0.0
      %1772 = vmatpush1.msra.mxu0 0.0
      %1773 = vmatprep.subr.mxu0 0.0
      %1774 = vmatpush1.msra.mxu0 0.0
      %1775 = vmatprep.subr.mxu0 0.0
      %1776 = vmatpush1.msra.mxu0 0.0
      %1777 = vmatprep.subr.mxu0 0.0
      %1778 = vmatpush1.msra.mxu0 0.0
      %1779 = vmatprep.subr.mxu0 0.0
      %1780 = vmatpush1.msra.mxu0 0.0
      %1781 = vmatprep.subr.mxu0 0.0
      %1782 = vmatpush1.msra.mxu0 0.0
      %1783 = vmatprep.subr.mxu0 0.0
      %1784 = vmatpush1.msra.mxu0 0.0
      %1785 = vmatprep.subr.mxu0 0.0
      %1786 = vmatpush1.msra.mxu0 0.0
      %1787 = vmatprep.subr.mxu0 0.0
      %1788 = vmatpush1.msra.mxu0 0.0
      %1789 = vmatprep.subr.mxu0 0.0
      %1790 = vmatpush1.msra.mxu0 0.0
      %1791 = vmatprep.mubr.f32.mxu0 0.0
      %1792 = vmatmul.mubr.f32.gmra.mrb[0].mxu0 %v1725
      %v1793 = vpop.f32.mrb[0].mxu0
      %v1794 = vadd.f32 0.0, %v1793
      %v1795 = vpop.f32.mrb[0].mxu0
      %1796 = vdwg.mxu0
      %1797 = vrot.lane.b32.xlu0 %v580, 32
      %v1798 = vpop.permute.xlu0 %1797
      %1799 = vrot.lane.b32.xlu0 %v684, 32
      %v1800 = vpop.permute.xlu0 %1799
      %v1801 = vsel %vm809, %v1798, 0
      %v1803 = vsel %vm809, %v1800, 0
      %1805 = vmatprep.subr.mxu0 0.0
      %1806 = vmatpush1.xpose.msra.mxu0 %v1803
      %1807 = vmatprep.subr.mxu0 0.0
      %1808 = vmatpush1.xpose.msra.mxu0 0.0
      %1809 = vmatprep.subr.mxu0 0.0
      %1810 = vmatpush1.xpose.msra.mxu0 0.0
      %1811 = vmatprep.subr.mxu0 0.0
      %1812 = vmatpush1.xpose.msra.mxu0 0.0
      %1813 = vmatprep.subr.mxu0 0.0
      %1814 = vmatpush1.xpose.msra.mxu0 0.0
      %1815 = vmatprep.subr.mxu0 0.0
      %1816 = vmatpush1.xpose.msra.mxu0 0.0
      %1817 = vmatprep.subr.mxu0 0.0
      %1818 = vmatpush1.xpose.msra.mxu0 0.0
      %1819 = vmatprep.subr.mxu0 0.0
      %1820 = vmatpush1.xpose.msra.mxu0 0.0
      %1821 = vmatprep.subr.mxu0 0.0
      %1822 = vmatpush1.xpose.msra.mxu0 0.0
      %1823 = vmatprep.subr.mxu0 0.0
      %1824 = vmatpush1.xpose.msra.mxu0 0.0
      %1825 = vmatprep.subr.mxu0 0.0
      %1826 = vmatpush1.xpose.msra.mxu0 0.0
      %1827 = vmatprep.subr.mxu0 0.0
      %1828 = vmatpush1.xpose.msra.mxu0 0.0
      %1829 = vmatprep.subr.mxu0 0.0
      %1830 = vmatpush1.xpose.msra.mxu0 0.0
      %1831 = vmatprep.subr.mxu0 0.0
      %1832 = vmatpush1.xpose.msra.mxu0 0.0
      %1833 = vmatprep.subr.mxu0 0.0
      %1834 = vmatpush1.xpose.msra.mxu0 0.0
      %1835 = vmatprep.subr.mxu0 0.0
      %1836 = vmatpush1.xpose.msra.mxu0 0.0
      %1837 = vmatprep.subr.mxu0 0.0
      %1838 = vmatpush1.xpose.msra.mxu0 0.0
      %1839 = vmatprep.subr.mxu0 0.0
      %1840 = vmatpush1.xpose.msra.mxu0 0.0
      %1841 = vmatprep.subr.mxu0 0.0
      %1842 = vmatpush1.xpose.msra.mxu0 0.0
      %1843 = vmatprep.subr.mxu0 0.0
      %1844 = vmatpush1.xpose.msra.mxu0 0.0
      %1845 = vmatprep.subr.mxu0 0.0
      %1846 = vmatpush1.xpose.msra.mxu0 0.0
      %1847 = vmatprep.subr.mxu0 0.0
      %1848 = vmatpush1.xpose.msra.mxu0 0.0
      %1849 = vmatprep.subr.mxu0 0.0
      %1850 = vmatpush1.xpose.msra.mxu0 0.0
      %1851 = vmatprep.subr.mxu0 0.0
      %1852 = vmatpush1.xpose.msra.mxu0 0.0
      %1853 = vmatprep.subr.mxu0 0.0
      %1854 = vmatpush1.xpose.msra.mxu0 0.0
      %1855 = vmatprep.subr.mxu0 0.0
      %1856 = vmatpush1.xpose.msra.mxu0 0.0
      %1857 = vmatprep.subr.mxu0 0.0
      %1858 = vmatpush1.xpose.msra.mxu0 0.0
      %1859 = vmatprep.subr.mxu0 0.0
      %1860 = vmatpush1.xpose.msra.mxu0 0.0
      %1861 = vmatprep.subr.mxu0 0.0
      %1862 = vmatpush1.xpose.msra.mxu0 0.0
      %1863 = vmatprep.subr.mxu0 0.0
      %1864 = vmatpush1.xpose.msra.mxu0 0.0
      %1865 = vmatprep.subr.mxu0 0.0
      %1866 = vmatpush1.xpose.msra.mxu0 0.0
      %1867 = vmatprep.subr.mxu0 0.0
      %1868 = vmatpush1.xpose.msra.mxu0 0.0
      %1869 = vmatprep.mubr.f32.mxu0 0.0
      %1870 = vmatmul.mubr.f32.gmra.mrb[0].mxu0 %v1801
      %v1871 = vpop.f32.mrb[0].mxu0
      %v1872 = vadd.f32 %v808, %v1871
      %v1873 = vpop.f32.mrb[0].mxu0
      %1874 = vdwg.mxu0
      %v1875 = vsel %vm886, %v1872, -inf
      %1876 = vmax.xlane.f32.xlu0 %v1875
      %v1877 = vpop.xlane.xlu0 %1876
      %v1878 = vsub.f32 %v1872, %v1877
      %v1879 = vmul.f32 %v1878, 1.442695
      %v1880 = vpow.pop %v1879
      %v1881 = vsel %vm886, %v1880, 0.0
      %1882 = vadd.xlane.f32.xlu0 %v1881
      %v1883 = vpop.xlane.xlu0 %1882
      %v1884 = vrcp.pop %v1883
      %v1885 = vmul.f32 %v1880, %v1884
      %1886 = vrot.lane.b32.xlu0 %v788, 32
      %v1887 = vpop.permute.xlu0 %1886
      %v1890 = vsel %vm886, %v1885, 0
      %1892 = vmatprep.subr.mxu0 0.0
      %1893 = vmatpush1.msra.mxu0 %v1887
      %1894 = vmatprep.subr.mxu0 0.0
      %1895 = vmatpush1.msra.mxu0 0.0
      %1896 = vmatprep.subr.mxu0 0.0
      %1897 = vmatpush1.msra.mxu0 0.0
      %1898 = vmatprep.subr.mxu0 0.0
      %1899 = vmatpush1.msra.mxu0 0.0
      %1900 = vmatprep.subr.mxu0 0.0
      %1901 = vmatpush1.msra.mxu0 0.0
      %1902 = vmatprep.subr.mxu0 0.0
      %1903 = vmatpush1.msra.mxu0 0.0
      %1904 = vmatprep.subr.mxu0 0.0
      %1905 = vmatpush1.msra.mxu0 0.0
      %1906 = vmatprep.subr.mxu0 0.0
      %1907 = vmatpush1.msra.mxu0 0.0
      %1908 = vmatprep.subr.mxu0 0.0
      %1909 = vmatpush1.msra.mxu0 0.0
      %1910 = vmatprep.subr.mxu0 0.0
      %1911 = vmatpush1.msra.mxu0 0.0
      %1912 = vmatprep.subr.mxu0 0.0
      %1913 = vmatpush1.msra.mxu0 0.0
      %1914 = vmatprep.subr.mxu0 0.0
      %1915 = vmatpush1.msra.mxu0 0.0
      %1916 = vmatprep.subr.mxu0 0.0
      %1917 = vmatpush1.msra.mxu0 0.0
      %1918 = vmatprep.subr.mxu0 0.0
      %1919 = vmatpush1.msra.mxu0 0.0
      %1920 = vmatprep.subr.mxu0 0.0
      %1921 = vmatpush1.msra.mxu0 0.0
      %1922 = vmatprep.subr.mxu0 0.0
      %1923 = vmatpush1.msra.mxu0 0.0
      %1924 = vmatprep.subr.mxu0 0.0
      %1925 = vmatpush1.msra.mxu0 0.0
      %1926 = vmatprep.subr.mxu0 0.0
      %1927 = vmatpush1.msra.mxu0 0.0
      %1928 = vmatprep.subr.mxu0 0.0
      %1929 = vmatpush1.msra.mxu0 0.0
      %1930 = vmatprep.subr.mxu0 0.0
      %1931 = vmatpush1.msra.mxu0 0.0
      %1932 = vmatprep.subr.mxu0 0.0
      %1933 = vmatpush1.msra.mxu0 0.0
      %1934 = vmatprep.subr.mxu0 0.0
      %1935 = vmatpush1.msra.mxu0 0.0
      %1936 = vmatprep.subr.mxu0 0.0
      %1937 = vmatpush1.msra.mxu0 0.0
      %1938 = vmatprep.subr.mxu0 0.0
      %1939 = vmatpush1.msra.mxu0 0.0
      %1940 = vmatprep.subr.mxu0 0.0
      %1941 = vmatpush1.msra.mxu0 0.0
      %1942 = vmatprep.subr.mxu0 0.0
      %1943 = vmatpush1.msra.mxu0 0.0
      %1944 = vmatprep.subr.mxu0 0.0
      %1945 = vmatpush1.msra.mxu0 0.0
      %1946 = vmatprep.subr.mxu0 0.0
      %1947 = vmatpush1.msra.mxu0 0.0
      %1948 = vmatprep.subr.mxu0 0.0
      %1949 = vmatpush1.msra.mxu0 0.0
      %1950 = vmatprep.subr.mxu0 0.0
      %1951 = vmatpush1.msra.mxu0 0.0
      %1952 = vmatprep.subr.mxu0 0.0
      %1953 = vmatpush1.msra.mxu0 0.0
      %1954 = vmatprep.subr.mxu0 0.0
      %1955 = vmatpush1.msra.mxu0 0.0
      %1956 = vmatprep.mubr.f32.mxu0 0.0
      %1957 = vmatmul.mubr.f32.gmra.mrb[0].mxu0 %v1890
      %v1958 = vpop.f32.mrb[0].mxu0
      %v1959 = vadd.f32 0.0, %v1958
      %v1960 = vpop.f32.mrb[0].mxu0
      %1961 = vdwg.mxu0
      %1962 = vrot.lane.b32.xlu0 %v580, 16
      %v1963 = vpop.permute.xlu0 %1962
      %1964 = vrot.lane.b32.xlu0 %v684, 16
      %v1965 = vpop.permute.xlu0 %1964
      %v1966 = vsel %vm809, %v1963, 0
      %v1968 = vsel %vm809, %v1965, 0
      %1970 = vmatprep.subr.mxu0 0.0
      %1971 = vmatpush1.xpose.msra.mxu0 %v1968
      %1972 = vmatprep.subr.mxu0 0.0
      %1973 = vmatpush1.xpose.msra.mxu0 0.0
      %1974 = vmatprep.subr.mxu0 0.0
      %1975 = vmatpush1.xpose.msra.mxu0 0.0
      %1976 = vmatprep.subr.mxu0 0.0
      %1977 = vmatpush1.xpose.msra.mxu0 0.0
      %1978 = vmatprep.subr.mxu0 0.0
      %1979 = vmatpush1.xpose.msra.mxu0 0.0
      %1980 = vmatprep.subr.mxu0 0.0
      %1981 = vmatpush1.xpose.msra.mxu0 0.0
      %1982 = vmatprep.subr.mxu0 0.0
      %1983 = vmatpush1.xpose.msra.mxu0 0.0
      %1984 = vmatprep.subr.mxu0 0.0
      %1985 = vmatpush1.xpose.msra.mxu0 0.0
      %1986 = vmatprep.subr.mxu0 0.0
      %1987 = vmatpush1.xpose.msra.mxu0 0.0
      %1988 = vmatprep.subr.mxu0 0.0
      %1989 = vmatpush1.xpose.msra.mxu0 0.0
      %1990 = vmatprep.subr.mxu0 0.0
      %1991 = vmatpush1.xpose.msra.mxu0 0.0
      %1992 = vmatprep.subr.mxu0 0.0
      %1993 = vmatpush1.xpose.msra.mxu0 0.0
      %1994 = vmatprep.subr.mxu0 0.0
      %1995 = vmatpush1.xpose.msra.mxu0 0.0
      %1996 = vmatprep.subr.mxu0 0.0
      %1997 = vmatpush1.xpose.msra.mxu0 0.0
      %1998 = vmatprep.subr.mxu0 0.0
      %1999 = vmatpush1.xpose.msra.mxu0 0.0
      %2000 = vmatprep.subr.mxu0 0.0
      %2001 = vmatpush1.xpose.msra.mxu0 0.0
      %2002 = vmatprep.subr.mxu0 0.0
      %2003 = vmatpush1.xpose.msra.mxu0 0.0
      %2004 = vmatprep.subr.mxu0 0.0
      %2005 = vmatpush1.xpose.msra.mxu0 0.0
      %2006 = vmatprep.subr.mxu0 0.0
      %2007 = vmatpush1.xpose.msra.mxu0 0.0
      %2008 = vmatprep.subr.mxu0 0.0
      %2009 = vmatpush1.xpose.msra.mxu0 0.0
      %2010 = vmatprep.subr.mxu0 0.0
      %2011 = vmatpush1.xpose.msra.mxu0 0.0
      %2012 = vmatprep.subr.mxu0 0.0
      %2013 = vmatpush1.xpose.msra.mxu0 0.0
      %2014 = vmatprep.subr.mxu0 0.0
      %2015 = vmatpush1.xpose.msra.mxu0 0.0
      %2016 = vmatprep.subr.mxu0 0.0
      %2017 = vmatpush1.xpose.msra.mxu0 0.0
      %2018 = vmatprep.subr.mxu0 0.0
      %2019 = vmatpush1.xpose.msra.mxu0 0.0
      %2020 = vmatprep.subr.mxu0 0.0
      %2021 = vmatpush1.xpose.msra.mxu0 0.0
      %2022 = vmatprep.subr.mxu0 0.0
      %2023 = vmatpush1.xpose.msra.mxu0 0.0
      %2024 = vmatprep.subr.mxu0 0.0
      %2025 = vmatpush1.xpose.msra.mxu0 0.0
      %2026 = vmatprep.subr.mxu0 0.0
      %2027 = vmatpush1.xpose.msra.mxu0 0.0
      %2028 = vmatprep.subr.mxu0 0.0
      %2029 = vmatpush1.xpose.msra.mxu0 0.0
      %2030 = vmatprep.subr.mxu0 0.0
      %2031 = vmatpush1.xpose.msra.mxu0 0.0
      %2032 = vmatprep.subr.mxu0 0.0
      %2033 = vmatpush1.xpose.msra.mxu0 0.0
      %2034 = vmatprep.mubr.f32.mxu0 0.0
      %2035 = vmatmul.mubr.f32.gmra.mrb[0].mxu0 %v1966
      %v2036 = vpop.f32.mrb[0].mxu0
      %v2037 = vadd.f32 %v808, %v2036
      %v2038 = vpop.f32.mrb[0].mxu0
      %2039 = vdwg.mxu0
      %v2040 = vsel %vm886, %v2037, -inf
      %2041 = vmax.xlane.f32.xlu0 %v2040
      %v2042 = vpop.xlane.xlu0 %2041
      %v2043 = vsub.f32 %v2037, %v2042
      %v2044 = vmul.f32 %v2043, 1.442695
      %v2045 = vpow.pop %v2044
      %v2046 = vsel %vm886, %v2045, 0.0
      %2047 = vadd.xlane.f32.xlu0 %v2046
      %v2048 = vpop.xlane.xlu0 %2047
      %v2049 = vrcp.pop %v2048
      %v2050 = vmul.f32 %v2045, %v2049
      %2051 = vrot.lane.b32.xlu0 %v788, 16
      %v2052 = vpop.permute.xlu0 %2051
      %v2055 = vsel %vm886, %v2050, 0
      %2057 = vmatprep.subr.mxu0 0.0
      %2058 = vmatpush1.msra.mxu0 %v2052
      %2059 = vmatprep.subr.mxu0 0.0
      %2060 = vmatpush1.msra.mxu0 0.0
      %2061 = vmatprep.subr.mxu0 0.0
      %2062 = vmatpush1.msra.mxu0 0.0
      %2063 = vmatprep.subr.mxu0 0.0
      %2064 = vmatpush1.msra.mxu0 0.0
      %2065 = vmatprep.subr.mxu0 0.0
      %2066 = vmatpush1.msra.mxu0 0.0
      %2067 = vmatprep.subr.mxu0 0.0
      %2068 = vmatpush1.msra.mxu0 0.0
      %2069 = vmatprep.subr.mxu0 0.0
      %2070 = vmatpush1.msra.mxu0 0.0
      %2071 = vmatprep.subr.mxu0 0.0
      %2072 = vmatpush1.msra.mxu0 0.0
      %2073 = vmatprep.subr.mxu0 0.0
      %2074 = vmatpush1.msra.mxu0 0.0
      %2075 = vmatprep.subr.mxu0 0.0
      %2076 = vmatpush1.msra.mxu0 0.0
      %2077 = vmatprep.subr.mxu0 0.0
      %2078 = vmatpush1.msra.mxu0 0.0
      %2079 = vmatprep.subr.mxu0 0.0
      %2080 = vmatpush1.msra.mxu0 0.0
      %2081 = vmatprep.subr.mxu0 0.0
      %2082 = vmatpush1.msra.mxu0 0.0
      %2083 = vmatprep.subr.mxu0 0.0
      %2084 = vmatpush1.msra.mxu0 0.0
      %2085 = vmatprep.subr.mxu0 0.0
      %2086 = vmatpush1.msra.mxu0 0.0
      %2087 = vmatprep.subr.mxu0 0.0
      %2088 = vmatpush1.msra.mxu0 0.0
      %2089 = vmatprep.subr.mxu0 0.0
      %2090 = vmatpush1.msra.mxu0 0.0
      %2091 = vmatprep.subr.mxu0 0.0
      %2092 = vmatpush1.msra.mxu0 0.0
      %2093 = vmatprep.subr.mxu0 0.0
      %2094 = vmatpush1.msra.mxu0 0.0
      %2095 = vmatprep.subr.mxu0 0.0
      %2096 = vmatpush1.msra.mxu0 0.0
      %2097 = vmatprep.subr.mxu0 0.0
      %2098 = vmatpush1.msra.mxu0 0.0
      %2099 = vmatprep.subr.mxu0 0.0
      %2100 = vmatpush1.msra.mxu0 0.0
      %2101 = vmatprep.subr.mxu0 0.0
      %2102 = vmatpush1.msra.mxu0 0.0
      %2103 = vmatprep.subr.mxu0 0.0
      %2104 = vmatpush1.msra.mxu0 0.0
      %2105 = vmatprep.subr.mxu0 0.0
      %2106 = vmatpush1.msra.mxu0 0.0
      %2107 = vmatprep.subr.mxu0 0.0
      %2108 = vmatpush1.msra.mxu0 0.0
      %2109 = vmatprep.subr.mxu0 0.0
      %2110 = vmatpush1.msra.mxu0 0.0
      %2111 = vmatprep.subr.mxu0 0.0
      %2112 = vmatpush1.msra.mxu0 0.0
      %2113 = vmatprep.subr.mxu0 0.0
      %2114 = vmatpush1.msra.mxu0 0.0
      %2115 = vmatprep.subr.mxu0 0.0
      %2116 = vmatpush1.msra.mxu0 0.0
      %2117 = vmatprep.subr.mxu0 0.0
      %2118 = vmatpush1.msra.mxu0 0.0
      %2119 = vmatprep.subr.mxu0 0.0
      %2120 = vmatpush1.msra.mxu0 0.0
      %2121 = vmatprep.mubr.f32.mxu0 0.0
      %2122 = vmatmul.mubr.f32.gmra.mrb[0].mxu0 %v2055
      %v2123 = vpop.f32.mrb[0].mxu0
      %v2124 = vadd.f32 0.0, %v2123
      %v2125 = vpop.f32.mrb[0].mxu0
      %2126 = vdwg.mxu0
      %2128 = vrot.lane.b32.xlu0 %v1134, 16
      %v2129 = vpop.permute.xlu0 %2128
      %2132 = vrot.lane.b32.xlu0 %v1299, 32
      %v2133 = vpop.permute.xlu0 %2132
      %2136 = vrot.lane.b32.xlu0 %v1464, 48
      %v2137 = vpop.permute.xlu0 %2136
      %2140 = vrot.lane.b32.xlu0 %v1629, 64
      %v2141 = vpop.permute.xlu0 %2140
      %2144 = vrot.lane.b32.xlu0 %v1794, 80
      %v2145 = vpop.permute.xlu0 %2144
      %2148 = vrot.lane.b32.xlu0 %v1959, 96
      %v2149 = vpop.permute.xlu0 %2148
      %2152 = vrot.lane.b32.xlu0 %v2124, 112
      %v2153 = vpop.permute.xlu0 %2152
      %v2155 = vsel %vm809, %v968, %v2129
      %vm2156 = vcmask 261120
      %v2157 = vsel %vm2156, %v2155, %v2133
      %vm2158 = vcmask 392192
      %v2159 = vsel %vm2158, %v2157, %v2137
      %vm2160 = vcmask 523264
      %v2161 = vsel %vm2160, %v2159, %v2141
      %vm2162 = vcmask 654336
      %v2163 = vsel %vm2162, %v2161, %v2145
      %vm2164 = vcmask 785408
      %v2165 = vsel %vm2164, %v2163, %v2149
      %vm2166 = vcmask 916480
      %v2167 = vsel %vm2166, %v2165, %v2153
      %v2168 = vpack.c.bf16 %v2167, %v2167
      %v2169 = vld [vmem:[%s8] sm:$0xf]
      %v2170 = vld [vmem:[%s8 + $0x4] sm:$0xf]
      %v2171 = vld [vmem:[%s8 + $0x8] sm:$0xf]
      %v2172 = vld [vmem:[%s8 + $0xc] sm:$0xf]
      %v2173 = vld [vmem:[%s8 + $0x10] sm:$0xf]
      %v2174 = vld [vmem:[%s8 + $0x14] sm:$0xf]
      %v2175 = vld [vmem:[%s8 + $0x18] sm:$0xf]
      %v2176 = vld [vmem:[%s8 + $0x1c] sm:$0xf]
      %v2177 = vld [vmem:[%s8 + $0x20] sm:$0xf]
      %v2178 = vld [vmem:[%s8 + $0x24] sm:$0xf]
      %v2179 = vld [vmem:[%s8 + $0x28] sm:$0xf]
      %v2180 = vld [vmem:[%s8 + $0x2c] sm:$0xf]
      %v2181 = vld [vmem:[%s8 + $0x30] sm:$0xf]
      %v2182 = vld [vmem:[%s8 + $0x34] sm:$0xf]
      %v2183 = vld [vmem:[%s8 + $0x38] sm:$0xf]
      %v2184 = vld [vmem:[%s8 + $0x3c] sm:$0xf]
      %v2185 = vld [vmem:[%s9] sm:$0x1]
      %v2187 = vlaneseq
      %v2188 = vshrl.u32 %v2187, 7
      %v2189 = vsub.s32 0, %v2188
      %v2190 = vrot.slane %v2185, %v2189
      %v2208 = vunpack.c.l.b16 %v2169
      %v2209 = vunpack.c.l.b16 %v2170
      %v2210 = vunpack.c.l.b16 %v2171
      %v2211 = vunpack.c.l.b16 %v2172
      %v2212 = vunpack.c.l.b16 %v2173
      %v2213 = vunpack.c.l.b16 %v2174
      %v2214 = vunpack.c.l.b16 %v2175
      %v2215 = vunpack.c.l.b16 %v2176
      %v2216 = vunpack.c.l.b16 %v2177
      %v2217 = vunpack.c.l.b16 %v2178
      %v2218 = vunpack.c.l.b16 %v2179
      %v2219 = vunpack.c.l.b16 %v2180
      %v2220 = vunpack.c.l.b16 %v2181
      %v2221 = vunpack.c.l.b16 %v2182
      %v2222 = vunpack.c.l.b16 %v2183
      %v2223 = vunpack.c.l.b16 %v2184
      %v2224 = vpack.c.b16 %v2209, %v2208
      %v2225 = vpack.c.b16 %v2211, %v2210
      %v2226 = vpack.c.b16 %v2213, %v2212
      %v2227 = vpack.c.b16 %v2215, %v2214
      %v2228 = vpack.c.b16 %v2217, %v2216
      %v2229 = vpack.c.b16 %v2219, %v2218
      %v2230 = vpack.c.b16 %v2221, %v2220
      %v2231 = vpack.c.b16 %v2223, %v2222
      %2240 = vmatprep.subr.bf16.mxu0 0
      %2241 = vmatpush1.bf16.msra.mxu0 %v2224
      %2242 = vmatprep.subr.bf16.mxu0 0
      %2243 = vmatpush1.bf16.msra.mxu0 %v2225
      %2244 = vmatprep.subr.bf16.mxu0 0
      %2245 = vmatpush1.bf16.msra.mxu0 %v2226
      %2246 = vmatprep.subr.bf16.mxu0 0
      %2247 = vmatpush1.bf16.msra.mxu0 %v2227
      %2248 = vmatprep.subr.bf16.mxu0 0
      %2249 = vmatpush1.bf16.msra.mxu0 %v2228
      %2250 = vmatprep.subr.bf16.mxu0 0
      %2251 = vmatpush1.bf16.msra.mxu0 %v2229
      %2252 = vmatprep.subr.bf16.mxu0 0
      %2253 = vmatpush1.bf16.msra.mxu0 %v2230
      %2254 = vmatprep.subr.bf16.mxu0 0
      %2255 = vmatpush1.bf16.msra.mxu0 %v2231
      %2256 = vmatprep.subr.bf16.mxu0 0
      %2257 = vmatpush1.bf16.msra.mxu0 0
      %2258 = vmatprep.subr.bf16.mxu0 0
      %2259 = vmatpush1.bf16.msra.mxu0 0
      %2260 = vmatprep.subr.bf16.mxu0 0
      %2261 = vmatpush1.bf16.msra.mxu0 0
      %2262 = vmatprep.subr.bf16.mxu0 0
      %2263 = vmatpush1.bf16.msra.mxu0 0
      %2264 = vmatprep.subr.bf16.mxu0 0
      %2265 = vmatpush1.bf16.msra.mxu0 0
      %2266 = vmatprep.subr.bf16.mxu0 0
      %2267 = vmatpush1.bf16.msra.mxu0 0
      %2268 = vmatprep.subr.bf16.mxu0 0
      %2269 = vmatpush1.bf16.msra.mxu0 0
      %2270 = vmatprep.subr.bf16.mxu0 0
      %2271 = vmatpush1.bf16.msra.mxu0 0
      %2272 = vmatprep.mubr.bf16.mxu0 0
      %2273 = vmatmul.mubr.bf16.gmra.mrb[0].mxu0 %v2168
      %v2274 = vpop.f32.mrb[0].mxu0
      %v2275 = vadd.f32 %v2190, %v2274
      %v2276 = vpop.f32.mrb[0].mxu0
      %v2277 = vpop.f32.mrb[0].mxu0
      %v2278 = vpop.f32.mrb[0].mxu0
      %2279 = vdwg.mxu0
      %v2280 = vld [vmem:[%s466] sm:$0xff]
      %v2281 = vadd.f32 %v2275, %v2280
      %2282 = vadd.xlane.f32.xlu0 %v2281
      %v2283 = vpop.xlane.xlu0 %2282
      %v2284 = vrcp.pop 128.0
      %v2285 = vmul.f32 %v2283, %v2284
      %v2286 = vsub.f32 %v2281, %v2285
      %v2287 = vmul.f32 %v2286, %v2286
      %2288 = vadd.xlane.f32.xlu0 %v2287
      %v2289 = vpop.xlane.xlu0 %2288
      %v2290 = vmul.f32 %v2289, %v2284
      %v2291 = vadd.f32 %v2290, 1e-05
      %v2292 = vrsqrt.pop %v2291
      %v2293 = vmul.f32 %v2286, %v2292
      %v2294 = vld [vmem:[%s10] sm:$0x1]
      %v2296 = vlaneseq
      %v2297 = vshrl.u32 %v2296, 7
      %v2298 = vsub.s32 0, %v2297
      %v2299 = vrot.slane %v2294, %v2298
      %v2301 = vmul.f32 %v2293, %v2299
      %v2302 = vld [vmem:[%s11] sm:$0x1]
      %v2304 = vlaneseq
      %v2305 = vshrl.u32 %v2304, 7
      %v2306 = vsub.s32 0, %v2305
      %v2307 = vrot.slane %v2302, %v2306
      %v2309 = vadd.f32 %v2301, %v2307
      %2310 = vst [vmem:[%s473] sm:$0xff] %v2309
      %p2311 = scmp.lt.s32.totalorder %s23, 1
      %s2312 = scalar_select %p2311, %s23, 1
      %s2313 = smul.addr %s2312, 8
      %s2314 = scalar_lea.vmem %s12, %s2313
      // Predicated region
      $region69: #{transformer_forward.15} parent=67 // pred_check
        %p2315 = pneg %p318
      $region70: #{transformer_forward.15} parent=67 // pred_check_branch
        %2317 = sbr.rel (%p2315) target = $region72
      $region71: #{transformer_forward.15} parent=67 // pred_region
        _
      $region72: #{transformer_forward.15} parent=67 // pred_fallthru
        _
    $region68: #{transformer_forward.15} parent=5 // pred_fallthru
      _
    %p2318 = scmp.le.s32.totalorder 2, %s18
    // Predicated region
    $region73: #{transformer_forward.15} parent=5 // pred_check
      %p2319 = pneg %p2318
    $region74: #{transformer_forward.15} parent=5 // pred_check_branch
      %2321 = sbr.rel (%p2319) target = $region76
    $region75: #{transformer_forward.15} parent=5 // pred_region
      %s2322 = ssub.s32 %s18, 2
      // Predicated region
      $region77: #{transformer_forward.15} parent=75 // pred_check
        %p2323 = pneg %p324
      $region78: #{transformer_forward.15} parent=75 // pred_check_branch
        %2325 = sbr.rel (%p2323) target = $region80
      $region79: #{transformer_forward.15} parent=75 // pred_region
        %p2326 = scmp.lt.s32.totalorder %s24, 1
        %s2327 = scalar_select %p2326, %s24, 1
        %s2328 = smul.addr %s2327, 8
        %s2329 = scalar_lea.vmem %s12, %s2328
      $region80: #{transformer_forward.15} parent=75 // pred_fallthru
        _
    $region76: #{transformer_forward.15} parent=5 // pred_fallthru
      _
  $region6: #{transformer_forward.15} parent=0 // loop_footer
    %s22 = sadd.s32 1, %s18
  $region7: #{transformer_forward.15} parent=0 // loop_footer_branch
    %17 = sbr.rel target = $region3
  $region8: #{transformer_forward.15} parent=0 // loop_exit
    _

</llo_original>
